<compile_context>
chip_gen: v6e
topology: v6e:2x2x1
jax: 0.10.0
libtpu: 0.0.40
codegen_flags: <defaults>
</compile_context>

<pallas_src>
import numpy as np
import jax
import jax.numpy as jnp
from jax.experimental import pallas as pl
from jax.experimental.pallas import tpu as pltpu

PIXEL_NORM_EPS = 1e-4   # pixel_norm default eps
WN_EPS = 1e-4           # weight_normalize default eps


def _silu(x):
    return x * jax.nn.sigmoid(x)


# -----------------------------------------------------------------------------
# Parameter preparation (plain JAX) — replicates the custom Conv2d / Linear
# eval-time weight transform:  w / sqrt(fan_in) / (eps + ||w|| / sqrt(fan_in))
# -----------------------------------------------------------------------------
def weight_normalize(w, eps=WN_EPS):
    axes = tuple(range(1, w.ndim))
    n = jnp.sqrt(jnp.sum(w * w, axis=axes, keepdims=True))
    alpha = float(np.sqrt(n.size / w.size))
    return w / (eps + alpha * n)


def effective_weight(w):
    fan_in = int(np.prod(w.shape[1:]))
    return weight_normalize(w) / np.sqrt(fan_in)


# -----------------------------------------------------------------------------
# Pallas kernel
# -----------------------------------------------------------------------------
def _make_kernel(H, W, C, output_scale_factor):
    Wp = W + 2            # padded row length
    M = H * Wp            # "superset" conv-output rows
    inv_osf = 1.0 / float(output_scale_factor)

    def kernel(x_ref, tscale_ref, w1_ref, w2_ref, mask_ref, o_ref, pad_ref):
        # ---- pixel_norm + SiLU over the whole zero-padded flat image -------
        # Padding rows of x are zero and stay zero (pixel_norm(0)=silu(0)=0),
        # so no explicit scratch zeroing / border maintenance is needed.
        xp = x_ref[...].astype(jnp.float32)                        # (Np, C)
        xn = xp * jax.lax.rsqrt(
            jnp.mean(xp * xp, axis=-1, keepdims=True) + PIXEL_NORM_EPS)
        pad_ref[...] = _silu(xn)

        # Residual written early (unscaled): frees xn's vregs before the
        # matmul loops; o_ref is combined + scaled once at the end.
        o_ref[...] = xn[Wp + 1:Wp + 1 + M, :]

        def conv3x3(w_ref):
            # 9 taps; each tap is one contiguous slice of the flat padded
            # image, cast to bf16 at the MXU boundary, accumulated in f32.
            acc = None
            for dy in range(3):
                for dx in range(3):
                    patch = pad_ref[pl.ds(dy * Wp + dx, M), :]
                    part = jnp.dot(patch.astype(jnp.bfloat16),
                                   w_ref[dy, dx],
                                   preferred_element_type=jnp.float32)
                    acc = part if acc is None else acc + part
            return acc                                             # (M, C) f32

        # ---- conv1 + timestep modulation + SiLU ----
        h = conv3x3(w1_ref)
        h = _silu(h * tscale_ref[...])                             # (M,C)*(1,C)

        # Zero the 2 padding columns (mask) and re-embed valid pixels at the
        # interior offset Wp+1: a single contiguous offset store.
        pad_ref[pl.ds(Wp + 1, M), :] = h * mask_ref[...]

        # ---- conv2 + residual + output scale ----
        h = conv3x3(w2_ref)
        o_ref[...] = (o_ref[...] + h) * inv_osf

    return kernel


# -----------------------------------------------------------------------------
# Wrapper (NCHW in / NCHW out, like the PyTorch module)
# -----------------------------------------------------------------------------
def resnet_block_2d(x_nchw, temb, conv1_w, conv2_w, time_emb_w,
                    output_scale_factor=1.0):
    """ResnetBlock2D forward (type='down', up=down=False, no conv_shortcut).

    x_nchw:     (B, C, H, W)
    temb:       (B, T)
    conv1_w:    (C, C, 3, 3)   PyTorch OIHW
    conv2_w:    (C, C, 3, 3)
    time_emb_w: (C, T)         PyTorch Linear (out, in)
    """
    B, C, H, W = x_nchw.shape
    Hp, Wp = H + 2, W + 2
    M = H * Wp                              # superset rows produced per conv
    # rows needed by the furthest (dy=2,dx=2) tap, rounded up to a sublane mult
    Np = ((Hp * Wp + 2 + 7) // 8) * 8

    # ---- effective (weight-normalized) weights; bf16 for the MXU ----
    w1 = jnp.transpose(effective_weight(conv1_w.astype(jnp.float32)),
                       (2, 3, 1, 0)).astype(jnp.bfloat16)          # HWIO
    w2 = jnp.transpose(effective_weight(conv2_w.astype(jnp.float32)),
                       (2, 3, 1, 0)).astype(jnp.bfloat16)
    wl = jnp.transpose(effective_weight(time_emb_w.astype(jnp.float32)),
                       (1, 0))                                     # (T, C)

    # ---- timestep projection (+1) hoisted out of the kernel (tiny B x C) ----
    tscale = 1.0 + (_silu(temb.astype(jnp.float32)) @ wl)[:, None, :]  # (B,1,C)

    # ---- zero-padded, flattened, bf16 activations (layout plumbing) ----
    x_nhwc = jnp.transpose(x_nchw, (0, 2, 3, 1)).astype(jnp.float32)
    x_pad = jnp.pad(x_nhwc, ((0, 0), (1, 1), (1, 1), (0, 0)))
    x_flat = x_pad.reshape(B, Hp * Wp, C)
    x_flat = jnp.pad(x_flat, ((0, 0), (0, Np - Hp * Wp), (0, 0)))
    x_flat = x_flat.astype(jnp.bfloat16)                           # (B, Np, C)

    # mask of valid (non padding-column) superset rows, built host-side
    mask = (np.arange(M) % Wp < W).astype(np.float32).reshape(M, 1)
    mask = jnp.asarray(mask)

    kernel = _make_kernel(H, W, C, output_scale_factor)

    # NOTE: blocks are tiny at these shapes; production channel counts would
    # additionally need Cout / H tiling to respect the per-chip VMEM budget.
    out_flat = pl.pallas_call(
        kernel,
        out_shape=jax.ShapeDtypeStruct((B, M, C), jnp.float32),
        grid_spec=pltpu.PrefetchScalarGridSpec(
            num_scalar_prefetch=0,
            grid=(B,),
            in_specs=[
                pl.BlockSpec((None, Np, C), lambda b: (b, 0, 0)),    # x (flat)
                pl.BlockSpec((None, 1, C), lambda b: (b, 0, 0)),     # 1 + tproj
                pl.BlockSpec((3, 3, C, C), lambda b: (0, 0, 0, 0)),  # conv1 w
                pl.BlockSpec((3, 3, C, C), lambda b: (0, 0, 0, 0)),  # conv2 w
                pl.BlockSpec((M, 1), lambda b: (0, 0)),              # col mask
            ],
            out_specs=pl.BlockSpec((None, M, C), lambda b: (b, 0, 0)),
            scratch_shapes=[pltpu.VMEM((Np, C), jnp.float32)],
        ),
        compiler_params=pltpu.CompilerParams(
            dimension_semantics=("parallel",)),
    )(x_flat, tscale, w1, w2, mask)

    # drop the 2 padding columns of the superset layout, back to NCHW
    out = out_flat.reshape(B, H, Wp, C)[:, :, :W, :]
    return jnp.transpose(out, (0, 3, 1, 2))


# -----------------------------------------------------------------------------
# Pure-JAX reference (validation only).  Matmul operands are rounded to bf16
# exactly like the kernel does, so the comparison isolates conv/indexing logic
# rather than bf16 quantization noise.
# -----------------------------------------------------------------------------
def _q(x):
    return x.astype(jnp.bfloat16).astype(jnp.float32)


def _ref_forward(x_nchw, temb, conv1_w, conv2_w, time_emb_w, osf=1.0):
    w1 = _q(jnp.transpose(effective_weight(conv1_w.astype(jnp.float32)),
                          (2, 3, 1, 0)))
    w2 = _q(jnp.transpose(effective_weight(conv2_w.astype(jnp.float32)),
                          (2, 3, 1, 0)))
    wl = jnp.transpose(effective_weight(time_emb_w.astype(jnp.float32)), (1, 0))

    x = _q(jnp.transpose(x_nchw, (0, 2, 3, 1)).astype(jnp.float32))
    xn = x * jax.lax.rsqrt(
        jnp.mean(x * x, axis=-1, keepdims=True) + PIXEL_NORM_EPS)

    def conv(h, w):
        return jax.lax.conv_general_dilated(
            h, w, (1, 1), 'SAME',
            dimension_numbers=('NHWC', 'HWIO', 'NHWC'),
            precision=jax.lax.Precision.HIGHEST)

    h = conv(_q(_silu(xn)), w1)
    tp = _silu(temb.astype(jnp.float32)) @ wl
    h = _silu(h * (1.0 + tp[:, None, None, :]))
    h = conv(_q(h), w2)                       # dropout(p=0) == identity
    out = (xn + h) / osf
    return jnp.transpose(out, (0, 3, 1, 2))


if __name__ == "__main__":
    key = jax.random.PRNGKey(0)
    B, C, H, W, T = 2, 8, 16, 16, 32
    k1, k2, k3, k4, k5 = jax.random.split(key, 5)

    x = jax.random.normal(k1, (B, C, H, W), jnp.float32)
    temb = jax.random.normal(k2, (B, T), jnp.float32)
    conv1_w = jax.random.normal(k3, (C, C, 3, 3), jnp.float32) * 0.2
    conv2_w = jax.random.normal(k4, (C, C, 3, 3), jnp.float32) * 0.2
    time_w = jax.random.normal(k5, (C, T), jnp.float32) * 0.2

    out = resnet_block_2d(x, temb, conv1_w, conv2_w, time_w)
    out = jax.block_until_ready(out)
    assert out.shape == (B, C, H, W)

    ref = _ref_forward(x, temb, conv1_w, conv2_w, time_w)
    np.testing.assert_allclose(np.asarray(out), np.asarray(ref),
                               rtol=2e-2, atol=2e-2)
    print("KERNEL_OK")
</pallas_src>

<mosaic_0001>
module attributes {stable_mosaic.version = 11 : i64} {
  func.func @kernel(%arg0: i32, %arg1: memref<1x328x8xbf16, #tpu.memory_space<vmem>>, %arg2: memref<1x1x8xf32, #tpu.memory_space<vmem>>, %arg3: memref<3x3x8x8xbf16, #tpu.memory_space<vmem>>, %arg4: memref<3x3x8x8xbf16, #tpu.memory_space<vmem>>, %arg5: memref<288x1xf32, #tpu.memory_space<vmem>>, %arg6: memref<1x288x8xf32, #tpu.memory_space<vmem>>, %arg7: memref<328x8xf32, #tpu.memory_space<vmem>>) attributes {dimension_semantics = [#tpu.dimension_semantics<parallel>], iteration_bounds = array<i64: 2>, scalar_prefetch = 0 : i64, scratch_operands = 1 : i64, tpu.core_type = #tpu.core_type<tc>, window_params = [{transform_indices = @transform_0, window_bounds = array<i64: 1, 328, 8>}, {transform_indices = @transform_1, window_bounds = array<i64: 1, 1, 8>}, {pipeline_mode = #tpu.pipeline_mode<synchronous>, transform_indices = @transform_2, window_bounds = array<i64: 3, 3, 8, 8>}, {pipeline_mode = #tpu.pipeline_mode<synchronous>, transform_indices = @transform_3, window_bounds = array<i64: 3, 3, 8, 8>}, {pipeline_mode = #tpu.pipeline_mode<synchronous>, transform_indices = @transform_4, window_bounds = array<i64: 288, 1>}, {transform_indices = @transform_5, window_bounds = array<i64: 1, 288, 8>}]} {
    %c0 = arith.constant 0 : index
    %c0_0 = arith.constant 0 : index
    %c0_1 = arith.constant 0 : index
    %0 = vector.load %arg1[%c0, %c0_0, %c0_1] : memref<1x328x8xbf16, #tpu.memory_space<vmem>>, vector<1x328x8xbf16>
    %1 = vector.shape_cast %0 : vector<1x328x8xbf16> to vector<328x8xbf16>
    %2 = arith.extf %1 : vector<328x8xbf16> to vector<328x8xf32>
    %3 = arith.mulf %2, %2 : vector<328x8xf32>
    %cst = arith.constant dense<0.000000e+00> : vector<328xf32>
    %4 = vector.multi_reduction <add>, %3, %cst [1] : vector<328x8xf32> to vector<328xf32>
    %5 = vector.shape_cast %4 : vector<328xf32> to vector<328x1xf32>
    %cst_2 = arith.constant 8.000000e+00 : f32
    %6 = vector.broadcast %cst_2 : f32 to vector<328x1xf32>
    %7 = arith.divf %5, %6 : vector<328x1xf32>
    %cst_3 = arith.constant 9.99999974E-5 : f32
    %8 = vector.broadcast %cst_3 : f32 to vector<328x1xf32>
    %9 = arith.addf %7, %8 : vector<328x1xf32>
    %10 = math.rsqrt %9 : vector<328x1xf32>
    %11 = vector.broadcast %10 : vector<328x1xf32> to vector<328x8xf32>
    %12 = arith.mulf %2, %11 : vector<328x8xf32>
    %13 = arith.negf %12 : vector<328x8xf32>
    %14 = math.exp %13 : vector<328x8xf32>
    %cst_4 = arith.constant 1.000000e+00 : f32
    %15 = vector.broadcast %cst_4 : f32 to vector<328x8xf32>
    %16 = arith.addf %15, %14 : vector<328x8xf32>
    %17 = arith.divf %15, %16 : vector<328x8xf32>
    %18 = arith.mulf %12, %17 : vector<328x8xf32>
    %c0_5 = arith.constant 0 : index
    %c0_6 = arith.constant 0 : index
    %19 = vector.load %arg7[%c0_5, %c0_6] : memref<328x8xf32, #tpu.memory_space<vmem>>, vector<328x8xf32>
    tpu.vector_store %arg7[%c0_5, %c0_6], %18 {strides = array<i32>} : memref<328x8xf32, #tpu.memory_space<vmem>>, vector<328x8xf32>,
    %20 = vector.extract_strided_slice %12 {offsets = [19, 0], sizes = [288, 8], strides = [1, 1]} : vector<328x8xf32> to vector<288x8xf32>
    %c0_7 = arith.constant 0 : index
    %c0_8 = arith.constant 0 : index
    %c0_9 = arith.constant 0 : index
    %21 = vector.load %arg6[%c0_7, %c0_8, %c0_9] : memref<1x288x8xf32, #tpu.memory_space<vmem>>, vector<1x288x8xf32>
    %22 = vector.shape_cast %21 : vector<1x288x8xf32> to vector<288x8xf32>
    %23 = vector.shape_cast %20 : vector<288x8xf32> to vector<1x288x8xf32>
    tpu.vector_store %arg6[%c0_7, %c0_8, %c0_9], %23 {strides = array<i32>} : memref<1x288x8xf32, #tpu.memory_space<vmem>>, vector<1x288x8xf32>,
    %c0_10 = arith.constant 0 : index
    %c0_11 = arith.constant 0 : index
    %24 = vector.load %arg7[%c0_10, %c0_11] : memref<328x8xf32, #tpu.memory_space<vmem>>, vector<288x8xf32>
    %25 = arith.truncf %24 : vector<288x8xf32> to vector<288x8xbf16>
    %c0_12 = arith.constant 0 : index
    %c0_13 = arith.constant 0 : index
    %c0_14 = arith.constant 0 : index
    %c0_15 = arith.constant 0 : index
    %26 = vector.load %arg3[%c0_12, %c0_13, %c0_14, %c0_15] : memref<3x3x8x8xbf16, #tpu.memory_space<vmem>>, vector<1x1x8x8xbf16>
    %27 = vector.shape_cast %26 : vector<1x1x8x8xbf16> to vector<8x8xbf16>
    %cst_16 = arith.constant dense<0.000000e+00> : vector<288x8xf32>
    %28 = tpu.matmul %25, %27, %cst_16 {dimension_numbers = #tpu.dot_dimension_numbers<[1], [0], [0], [1], [0, 0, 1, 1], [], []>} : vector<288x8xbf16>, vector<8x8xbf16>, vector<288x8xf32> -> vector<288x8xf32>
    %c1 = arith.constant 1 : index
    %c0_17 = arith.constant 0 : index
    %29 = vector.load %arg7[%c1, %c0_17] : memref<328x8xf32, #tpu.memory_space<vmem>>, vector<288x8xf32>
    %30 = arith.truncf %29 : vector<288x8xf32> to vector<288x8xbf16>
    %c0_18 = arith.constant 0 : index
    %c1_19 = arith.constant 1 : index
    %c0_20 = arith.constant 0 : index
    %c0_21 = arith.constant 0 : index
    %31 = vector.load %arg3[%c0_18, %c1_19, %c0_20, %c0_21] : memref<3x3x8x8xbf16, #tpu.memory_space<vmem>>, vector<1x1x8x8xbf16>
    %32 = vector.shape_cast %31 : vector<1x1x8x8xbf16> to vector<8x8xbf16>
    %cst_22 = arith.constant dense<0.000000e+00> : vector<288x8xf32>
    %33 = tpu.matmul %30, %32, %cst_22 {dimension_numbers = #tpu.dot_dimension_numbers<[1], [0], [0], [1], [0, 0, 1, 1], [], []>} : vector<288x8xbf16>, vector<8x8xbf16>, vector<288x8xf32> -> vector<288x8xf32>
    %34 = arith.addf %28, %33 : vector<288x8xf32>
    %c2 = arith.constant 2 : index
    %c0_23 = arith.constant 0 : index
    %35 = vector.load %arg7[%c2, %c0_23] : memref<328x8xf32, #tpu.memory_space<vmem>>, vector<288x8xf32>
    %36 = arith.truncf %35 : vector<288x8xf32> to vector<288x8xbf16>
    %c0_24 = arith.constant 0 : index
    %c2_25 = arith.constant 2 : index
    %c0_26 = arith.constant 0 : index
    %c0_27 = arith.constant 0 : index
    %37 = vector.load %arg3[%c0_24, %c2_25, %c0_26, %c0_27] : memref<3x3x8x8xbf16, #tpu.memory_space<vmem>>, vector<1x1x8x8xbf16>
    %38 = vector.shape_cast %37 : vector<1x1x8x8xbf16> to vector<8x8xbf16>
    %cst_28 = arith.constant dense<0.000000e+00> : vector<288x8xf32>
    %39 = tpu.matmul %36, %38, %cst_28 {dimension_numbers = #tpu.dot_dimension_numbers<[1], [0], [0], [1], [0, 0, 1, 1], [], []>} : vector<288x8xbf16>, vector<8x8xbf16>, vector<288x8xf32> -> vector<288x8xf32>
    %40 = arith.addf %34, %39 : vector<288x8xf32>
    %c18 = arith.constant 18 : index
    %c0_29 = arith.constant 0 : index
    %41 = vector.load %arg7[%c18, %c0_29] : memref<328x8xf32, #tpu.memory_space<vmem>>, vector<288x8xf32>
    %42 = arith.truncf %41 : vector<288x8xf32> to vector<288x8xbf16>
    %c1_30 = arith.constant 1 : index
    %c0_31 = arith.constant 0 : index
    %c0_32 = arith.constant 0 : index
    %c0_33 = arith.constant 0 : index
    %43 = vector.load %arg3[%c1_30, %c0_31, %c0_32, %c0_33] : memref<3x3x8x8xbf16, #tpu.memory_space<vmem>>, vector<1x1x8x8xbf16>
    %44 = vector.shape_cast %43 : vector<1x1x8x8xbf16> to vector<8x8xbf16>
    %cst_34 = arith.constant dense<0.000000e+00> : vector<288x8xf32>
    %45 = tpu.matmul %42, %44, %cst_34 {dimension_numbers = #tpu.dot_dimension_numbers<[1], [0], [0], [1], [0, 0, 1, 1], [], []>} : vector<288x8xbf16>, vector<8x8xbf16>, vector<288x8xf32> -> vector<288x8xf32>
    %46 = arith.addf %40, %45 : vector<288x8xf32>
    %c19 = arith.constant 19 : index
    %c0_35 = arith.constant 0 : index
    %47 = vector.load %arg7[%c19, %c0_35] : memref<328x8xf32, #tpu.memory_space<vmem>>, vector<288x8xf32>
    %48 = arith.truncf %47 : vector<288x8xf32> to vector<288x8xbf16>
    %c1_36 = arith.constant 1 : index
    %c1_37 = arith.constant 1 : index
    %c0_38 = arith.constant 0 : index
    %c0_39 = arith.constant 0 : index
    %49 = vector.load %arg3[%c1_36, %c1_37, %c0_38, %c0_39] : memref<3x3x8x8xbf16, #tpu.memory_space<vmem>>, vector<1x1x8x8xbf16>
    %50 = vector.shape_cast %49 : vector<1x1x8x8xbf16> to vector<8x8xbf16>
    %cst_40 = arith.constant dense<0.000000e+00> : vector<288x8xf32>
    %51 = tpu.matmul %48, %50, %cst_40 {dimension_numbers = #tpu.dot_dimension_numbers<[1], [0], [0], [1], [0, 0, 1, 1], [], []>} : vector<288x8xbf16>, vector<8x8xbf16>, vector<288x8xf32> -> vector<288x8xf32>
    %52 = arith.addf %46, %51 : vector<288x8xf32>
    %c20 = arith.constant 20 : index
    %c0_41 = arith.constant 0 : index
    %53 = vector.load %arg7[%c20, %c0_41] : memref<328x8xf32, #tpu.memory_space<vmem>>, vector<288x8xf32>
    %54 = arith.truncf %53 : vector<288x8xf32> to vector<288x8xbf16>
    %c1_42 = arith.constant 1 : index
    %c2_43 = arith.constant 2 : index
    %c0_44 = arith.constant 0 : index
    %c0_45 = arith.constant 0 : index
    %55 = vector.load %arg3[%c1_42, %c2_43, %c0_44, %c0_45] : memref<3x3x8x8xbf16, #tpu.memory_space<vmem>>, vector<1x1x8x8xbf16>
    %56 = vector.shape_cast %55 : vector<1x1x8x8xbf16> to vector<8x8xbf16>
    %cst_46 = arith.constant dense<0.000000e+00> : vector<288x8xf32>
    %57 = tpu.matmul %54, %56, %cst_46 {dimension_numbers = #tpu.dot_dimension_numbers<[1], [0], [0], [1], [0, 0, 1, 1], [], []>} : vector<288x8xbf16>, vector<8x8xbf16>, vector<288x8xf32> -> vector<288x8xf32>
    %58 = arith.addf %52, %57 : vector<288x8xf32>
    %c36 = arith.constant 36 : index
    %c0_47 = arith.constant 0 : index
    %59 = vector.load %arg7[%c36, %c0_47] : memref<328x8xf32, #tpu.memory_space<vmem>>, vector<288x8xf32>
    %60 = arith.truncf %59 : vector<288x8xf32> to vector<288x8xbf16>
    %c2_48 = arith.constant 2 : index
    %c0_49 = arith.constant 0 : index
    %c0_50 = arith.constant 0 : index
    %c0_51 = arith.constant 0 : index
    %61 = vector.load %arg3[%c2_48, %c0_49, %c0_50, %c0_51] : memref<3x3x8x8xbf16, #tpu.memory_space<vmem>>, vector<1x1x8x8xbf16>
    %62 = vector.shape_cast %61 : vector<1x1x8x8xbf16> to vector<8x8xbf16>
    %cst_52 = arith.constant dense<0.000000e+00> : vector<288x8xf32>
    %63 = tpu.matmul %60, %62, %cst_52 {dimension_numbers = #tpu.dot_dimension_numbers<[1], [0], [0], [1], [0, 0, 1, 1], [], []>} : vector<288x8xbf16>, vector<8x8xbf16>, vector<288x8xf32> -> vector<288x8xf32>
    %64 = arith.addf %58, %63 : vector<288x8xf32>
    %c37 = arith.constant 37 : index
    %c0_53 = arith.constant 0 : index
    %65 = vector.load %arg7[%c37, %c0_53] : memref<328x8xf32, #tpu.memory_space<vmem>>, vector<288x8xf32>
    %66 = arith.truncf %65 : vector<288x8xf32> to vector<288x8xbf16>
    %c2_54 = arith.constant 2 : index
    %c1_55 = arith.constant 1 : index
    %c0_56 = arith.constant 0 : index
    %c0_57 = arith.constant 0 : index
    %67 = vector.load %arg3[%c2_54, %c1_55, %c0_56, %c0_57] : memref<3x3x8x8xbf16, #tpu.memory_space<vmem>>, vector<1x1x8x8xbf16>
    %68 = vector.shape_cast %67 : vector<1x1x8x8xbf16> to vector<8x8xbf16>
    %cst_58 = arith.constant dense<0.000000e+00> : vector<288x8xf32>
    %69 = tpu.matmul %66, %68, %cst_58 {dimension_numbers = #tpu.dot_dimension_numbers<[1], [0], [0], [1], [0, 0, 1, 1], [], []>} : vector<288x8xbf16>, vector<8x8xbf16>, vector<288x8xf32> -> vector<288x8xf32>
    %70 = arith.addf %64, %69 : vector<288x8xf32>
    %c38 = arith.constant 38 : index
    %c0_59 = arith.constant 0 : index
    %71 = vector.load %arg7[%c38, %c0_59] : memref<328x8xf32, #tpu.memory_space<vmem>>, vector<288x8xf32>
    %72 = arith.truncf %71 : vector<288x8xf32> to vector<288x8xbf16>
    %c2_60 = arith.constant 2 : index
    %c2_61 = arith.constant 2 : index
    %c0_62 = arith.constant 0 : index
    %c0_63 = arith.constant 0 : index
    %73 = vector.load %arg3[%c2_60, %c2_61, %c0_62, %c0_63] : memref<3x3x8x8xbf16, #tpu.memory_space<vmem>>, vector<1x1x8x8xbf16>
    %74 = vector.shape_cast %73 : vector<1x1x8x8xbf16> to vector<8x8xbf16>
    %cst_64 = arith.constant dense<0.000000e+00> : vector<288x8xf32>
    %75 = tpu.matmul %72, %74, %cst_64 {dimension_numbers = #tpu.dot_dimension_numbers<[1], [0], [0], [1], [0, 0, 1, 1], [], []>} : vector<288x8xbf16>, vector<8x8xbf16>, vector<288x8xf32> -> vector<288x8xf32>
    %76 = arith.addf %70, %75 : vector<288x8xf32>
    %c0_65 = arith.constant 0 : index
    %c0_66 = arith.constant 0 : index
    %c0_67 = arith.constant 0 : index
    %77 = vector.load %arg2[%c0_65, %c0_66, %c0_67] : memref<1x1x8xf32, #tpu.memory_space<vmem>>, vector<1x1x8xf32>
    %78 = vector.shape_cast %77 : vector<1x1x8xf32> to vector<1x8xf32>
    %79 = vector.broadcast %78 : vector<1x8xf32> to vector<288x8xf32>
    %80 = arith.mulf %76, %79 : vector<288x8xf32>
    %81 = arith.negf %80 : vector<288x8xf32>
    %82 = math.exp %81 : vector<288x8xf32>
    %cst_68 = arith.constant 1.000000e+00 : f32
    %83 = vector.broadcast %cst_68 : f32 to vector<288x8xf32>
    %84 = arith.addf %83, %82 : vector<288x8xf32>
    %85 = arith.divf %83, %84 : vector<288x8xf32>
    %86 = arith.mulf %80, %85 : vector<288x8xf32>
    %c0_69 = arith.constant 0 : index
    %c0_70 = arith.constant 0 : index
    %87 = vector.load %arg5[%c0_69, %c0_70] : memref<288x1xf32, #tpu.memory_space<vmem>>, vector<288x1xf32>
    %88 = vector.broadcast %87 : vector<288x1xf32> to vector<288x8xf32>
    %89 = arith.mulf %86, %88 : vector<288x8xf32>
    %c19_71 = arith.constant 19 : index
    %c0_72 = arith.constant 0 : index
    %90 = vector.load %arg7[%c19_71, %c0_72] : memref<328x8xf32, #tpu.memory_space<vmem>>, vector<288x8xf32>
    tpu.vector_store %arg7[%c19_71, %c0_72], %89 {strides = array<i32>} : memref<328x8xf32, #tpu.memory_space<vmem>>, vector<288x8xf32>,
    %c0_73 = arith.constant 0 : index
    %c0_74 = arith.constant 0 : index
    %91 = vector.load %arg7[%c0_73, %c0_74] : memref<328x8xf32, #tpu.memory_space<vmem>>, vector<288x8xf32>
    %92 = arith.truncf %91 : vector<288x8xf32> to vector<288x8xbf16>
    %c0_75 = arith.constant 0 : index
    %c0_76 = arith.constant 0 : index
    %c0_77 = arith.constant 0 : index
    %c0_78 = arith.constant 0 : index
    %93 = vector.load %arg4[%c0_75, %c0_76, %c0_77, %c0_78] : memref<3x3x8x8xbf16, #tpu.memory_space<vmem>>, vector<1x1x8x8xbf16>
    %94 = vector.shape_cast %93 : vector<1x1x8x8xbf16> to vector<8x8xbf16>
    %cst_79 = arith.constant dense<0.000000e+00> : vector<288x8xf32>
    %95 = tpu.matmul %92, %94, %cst_79 {dimension_numbers = #tpu.dot_dimension_numbers<[1], [0], [0], [1], [0, 0, 1, 1], [], []>} : vector<288x8xbf16>, vector<8x8xbf16>, vector<288x8xf32> -> vector<288x8xf32>
    %c1_80 = arith.constant 1 : index
    %c0_81 = arith.constant 0 : index
    %96 = vector.load %arg7[%c1_80, %c0_81] : memref<328x8xf32, #tpu.memory_space<vmem>>, vector<288x8xf32>
    %97 = arith.truncf %96 : vector<288x8xf32> to vector<288x8xbf16>
    %c0_82 = arith.constant 0 : index
    %c1_83 = arith.constant 1 : index
    %c0_84 = arith.constant 0 : index
    %c0_85 = arith.constant 0 : index
    %98 = vector.load %arg4[%c0_82, %c1_83, %c0_84, %c0_85] : memref<3x3x8x8xbf16, #tpu.memory_space<vmem>>, vector<1x1x8x8xbf16>
    %99 = vector.shape_cast %98 : vector<1x1x8x8xbf16> to vector<8x8xbf16>
    %cst_86 = arith.constant dense<0.000000e+00> : vector<288x8xf32>
    %100 = tpu.matmul %97, %99, %cst_86 {dimension_numbers = #tpu.dot_dimension_numbers<[1], [0], [0], [1], [0, 0, 1, 1], [], []>} : vector<288x8xbf16>, vector<8x8xbf16>, vector<288x8xf32> -> vector<288x8xf32>
    %101 = arith.addf %95, %100 : vector<288x8xf32>
    %c2_87 = arith.constant 2 : index
    %c0_88 = arith.constant 0 : index
    %102 = vector.load %arg7[%c2_87, %c0_88] : memref<328x8xf32, #tpu.memory_space<vmem>>, vector<288x8xf32>
    %103 = arith.truncf %102 : vector<288x8xf32> to vector<288x8xbf16>
    %c0_89 = arith.constant 0 : index
    %c2_90 = arith.constant 2 : index
    %c0_91 = arith.constant 0 : index
    %c0_92 = arith.constant 0 : index
    %104 = vector.load %arg4[%c0_89, %c2_90, %c0_91, %c0_92] : memref<3x3x8x8xbf16, #tpu.memory_space<vmem>>, vector<1x1x8x8xbf16>
    %105 = vector.shape_cast %104 : vector<1x1x8x8xbf16> to vector<8x8xbf16>
    %cst_93 = arith.constant dense<0.000000e+00> : vector<288x8xf32>
    %106 = tpu.matmul %103, %105, %cst_93 {dimension_numbers = #tpu.dot_dimension_numbers<[1], [0], [0], [1], [0, 0, 1, 1], [], []>} : vector<288x8xbf16>, vector<8x8xbf16>, vector<288x8xf32> -> vector<288x8xf32>
    %107 = arith.addf %101, %106 : vector<288x8xf32>
    %c18_94 = arith.constant 18 : index
    %c0_95 = arith.constant 0 : index
    %108 = vector.load %arg7[%c18_94, %c0_95] : memref<328x8xf32, #tpu.memory_space<vmem>>, vector<288x8xf32>
    %109 = arith.truncf %108 : vector<288x8xf32> to vector<288x8xbf16>
    %c1_96 = arith.constant 1 : index
    %c0_97 = arith.constant 0 : index
    %c0_98 = arith.constant 0 : index
    %c0_99 = arith.constant 0 : index
    %110 = vector.load %arg4[%c1_96, %c0_97, %c0_98, %c0_99] : memref<3x3x8x8xbf16, #tpu.memory_space<vmem>>, vector<1x1x8x8xbf16>
    %111 = vector.shape_cast %110 : vector<1x1x8x8xbf16> to vector<8x8xbf16>
    %cst_100 = arith.constant dense<0.000000e+00> : vector<288x8xf32>
    %112 = tpu.matmul %109, %111, %cst_100 {dimension_numbers = #tpu.dot_dimension_numbers<[1], [0], [0], [1], [0, 0, 1, 1], [], []>} : vector<288x8xbf16>, vector<8x8xbf16>, vector<288x8xf32> -> vector<288x8xf32>
    %113 = arith.addf %107, %112 : vector<288x8xf32>
    %c19_101 = arith.constant 19 : index
    %c0_102 = arith.constant 0 : index
    %114 = vector.load %arg7[%c19_101, %c0_102] : memref<328x8xf32, #tpu.memory_space<vmem>>, vector<288x8xf32>
    %115 = arith.truncf %114 : vector<288x8xf32> to vector<288x8xbf16>
    %c1_103 = arith.constant 1 : index
    %c1_104 = arith.constant 1 : index
    %c0_105 = arith.constant 0 : index
    %c0_106 = arith.constant 0 : index
    %116 = vector.load %arg4[%c1_103, %c1_104, %c0_105, %c0_106] : memref<3x3x8x8xbf16, #tpu.memory_space<vmem>>, vector<1x1x8x8xbf16>
    %117 = vector.shape_cast %116 : vector<1x1x8x8xbf16> to vector<8x8xbf16>
    %cst_107 = arith.constant dense<0.000000e+00> : vector<288x8xf32>
    %118 = tpu.matmul %115, %117, %cst_107 {dimension_numbers = #tpu.dot_dimension_numbers<[1], [0], [0], [1], [0, 0, 1, 1], [], []>} : vector<288x8xbf16>, vector<8x8xbf16>, vector<288x8xf32> -> vector<288x8xf32>
    %119 = arith.addf %113, %118 : vector<288x8xf32>
    %c20_108 = arith.constant 20 : index
    %c0_109 = arith.constant 0 : index
    %120 = vector.load %arg7[%c20_108, %c0_109] : memref<328x8xf32, #tpu.memory_space<vmem>>, vector<288x8xf32>
    %121 = arith.truncf %120 : vector<288x8xf32> to vector<288x8xbf16>
    %c1_110 = arith.constant 1 : index
    %c2_111 = arith.constant 2 : index
    %c0_112 = arith.constant 0 : index
    %c0_113 = arith.constant 0 : index
    %122 = vector.load %arg4[%c1_110, %c2_111, %c0_112, %c0_113] : memref<3x3x8x8xbf16, #tpu.memory_space<vmem>>, vector<1x1x8x8xbf16>
    %123 = vector.shape_cast %122 : vector<1x1x8x8xbf16> to vector<8x8xbf16>
    %cst_114 = arith.constant dense<0.000000e+00> : vector<288x8xf32>
    %124 = tpu.matmul %121, %123, %cst_114 {dimension_numbers = #tpu.dot_dimension_numbers<[1], [0], [0], [1], [0, 0, 1, 1], [], []>} : vector<288x8xbf16>, vector<8x8xbf16>, vector<288x8xf32> -> vector<288x8xf32>
    %125 = arith.addf %119, %124 : vector<288x8xf32>
    %c36_115 = arith.constant 36 : index
    %c0_116 = arith.constant 0 : index
    %126 = vector.load %arg7[%c36_115, %c0_116] : memref<328x8xf32, #tpu.memory_space<vmem>>, vector<288x8xf32>
    %127 = arith.truncf %126 : vector<288x8xf32> to vector<288x8xbf16>
    %c2_117 = arith.constant 2 : index
    %c0_118 = arith.constant 0 : index
    %c0_119 = arith.constant 0 : index
    %c0_120 = arith.constant 0 : index
    %128 = vector.load %arg4[%c2_117, %c0_118, %c0_119, %c0_120] : memref<3x3x8x8xbf16, #tpu.memory_space<vmem>>, vector<1x1x8x8xbf16>
    %129 = vector.shape_cast %128 : vector<1x1x8x8xbf16> to vector<8x8xbf16>
    %cst_121 = arith.constant dense<0.000000e+00> : vector<288x8xf32>
    %130 = tpu.matmul %127, %129, %cst_121 {dimension_numbers = #tpu.dot_dimension_numbers<[1], [0], [0], [1], [0, 0, 1, 1], [], []>} : vector<288x8xbf16>, vector<8x8xbf16>, vector<288x8xf32> -> vector<288x8xf32>
    %131 = arith.addf %125, %130 : vector<288x8xf32>
    %c37_122 = arith.constant 37 : index
    %c0_123 = arith.constant 0 : index
    %132 = vector.load %arg7[%c37_122, %c0_123] : memref<328x8xf32, #tpu.memory_space<vmem>>, vector<288x8xf32>
    %133 = arith.truncf %132 : vector<288x8xf32> to vector<288x8xbf16>
    %c2_124 = arith.constant 2 : index
    %c1_125 = arith.constant 1 : index
    %c0_126 = arith.constant 0 : index
    %c0_127 = arith.constant 0 : index
    %134 = vector.load %arg4[%c2_124, %c1_125, %c0_126, %c0_127] : memref<3x3x8x8xbf16, #tpu.memory_space<vmem>>, vector<1x1x8x8xbf16>
    %135 = vector.shape_cast %134 : vector<1x1x8x8xbf16> to vector<8x8xbf16>
    %cst_128 = arith.constant dense<0.000000e+00> : vector<288x8xf32>
    %136 = tpu.matmul %133, %135, %cst_128 {dimension_numbers = #tpu.dot_dimension_numbers<[1], [0], [0], [1], [0, 0, 1, 1], [], []>} : vector<288x8xbf16>, vector<8x8xbf16>, vector<288x8xf32> -> vector<288x8xf32>
    %137 = arith.addf %131, %136 : vector<288x8xf32>
    %c38_129 = arith.constant 38 : index
    %c0_130 = arith.constant 0 : index
    %138 = vector.load %arg7[%c38_129, %c0_130] : memref<328x8xf32, #tpu.memory_space<vmem>>, vector<288x8xf32>
    %139 = arith.truncf %138 : vector<288x8xf32> to vector<288x8xbf16>
    %c2_131 = arith.constant 2 : index
    %c2_132 = arith.constant 2 : index
    %c0_133 = arith.constant 0 : index
    %c0_134 = arith.constant 0 : index
    %140 = vector.load %arg4[%c2_131, %c2_132, %c0_133, %c0_134] : memref<3x3x8x8xbf16, #tpu.memory_space<vmem>>, vector<1x1x8x8xbf16>
    %141 = vector.shape_cast %140 : vector<1x1x8x8xbf16> to vector<8x8xbf16>
    %cst_135 = arith.constant dense<0.000000e+00> : vector<288x8xf32>
    %142 = tpu.matmul %139, %141, %cst_135 {dimension_numbers = #tpu.dot_dimension_numbers<[1], [0], [0], [1], [0, 0, 1, 1], [], []>} : vector<288x8xbf16>, vector<8x8xbf16>, vector<288x8xf32> -> vector<288x8xf32>
    %143 = arith.addf %137, %142 : vector<288x8xf32>
    %c0_136 = arith.constant 0 : index
    %c0_137 = arith.constant 0 : index
    %c0_138 = arith.constant 0 : index
    %144 = vector.load %arg6[%c0_136, %c0_137, %c0_138] : memref<1x288x8xf32, #tpu.memory_space<vmem>>, vector<1x288x8xf32>
    %145 = vector.shape_cast %144 : vector<1x288x8xf32> to vector<288x8xf32>
    %146 = arith.addf %145, %143 : vector<288x8xf32>
    %cst_139 = arith.constant 1.000000e+00 : f32
    %147 = vector.broadcast %cst_139 : f32 to vector<288x8xf32>
    %148 = arith.mulf %146, %147 : vector<288x8xf32>
    %c0_140 = arith.constant 0 : index
    %c0_141 = arith.constant 0 : index
    %c0_142 = arith.constant 0 : index
    %149 = vector.load %arg6[%c0_140, %c0_141, %c0_142] : memref<1x288x8xf32, #tpu.memory_space<vmem>>, vector<1x288x8xf32>
    %150 = vector.shape_cast %149 : vector<1x288x8xf32> to vector<288x8xf32>
    %151 = vector.shape_cast %148 : vector<288x8xf32> to vector<1x288x8xf32>
    tpu.vector_store %arg6[%c0_140, %c0_141, %c0_142], %151 {strides = array<i32>} : memref<1x288x8xf32, #tpu.memory_space<vmem>>, vector<1x288x8xf32>,
    return
  }
  func.func @transform_0(%arg0: i32) -> (i32, i32, i32) {
    %c0_i32 = arith.constant 0 : i32
    %c0_i32_0 = arith.constant 0 : i32
    %c0_i32_1 = arith.constant 0 : i32
    return %arg0, %c0_i32, %c0_i32_0 : i32, i32, i32
  }
  func.func @transform_1(%arg0: i32) -> (i32, i32, i32) {
    %c0_i32 = arith.constant 0 : i32
    %c0_i32_0 = arith.constant 0 : i32
    %c0_i32_1 = arith.constant 0 : i32
    return %arg0, %c0_i32, %c0_i32_0 : i32, i32, i32
  }
  func.func @transform_2(%arg0: i32) -> (i32, i32, i32, i32) {
    %c0_i32 = arith.constant 0 : i32
    %c0_i32_0 = arith.constant 0 : i32
    %c0_i32_1 = arith.constant 0 : i32
    %c0_i32_2 = arith.constant 0 : i32
    %c0_i32_3 = arith.constant 0 : i32
    return %c0_i32, %c0_i32_0, %c0_i32_1, %c0_i32_2 : i32, i32, i32, i32
  }
  func.func @transform_3(%arg0: i32) -> (i32, i32, i32, i32) {
    %c0_i32 = arith.constant 0 : i32
    %c0_i32_0 = arith.constant 0 : i32
    %c0_i32_1 = arith.constant 0 : i32
    %c0_i32_2 = arith.constant 0 : i32
    %c0_i32_3 = arith.constant 0 : i32
    return %c0_i32, %c0_i32_0, %c0_i32_1, %c0_i32_2 : i32, i32, i32, i32
  }
  func.func @transform_4(%arg0: i32) -> (i32, i32) {
    %c0_i32 = arith.constant 0 : i32
    %c0_i32_0 = arith.constant 0 : i32
    %c0_i32_1 = arith.constant 0 : i32
    return %c0_i32, %c0_i32_0 : i32, i32
  }
  func.func @transform_5(%arg0: i32) -> (i32, i32, i32) {
    %c0_i32 = arith.constant 0 : i32
    %c0_i32_0 = arith.constant 0 : i32
    %c0_i32_1 = arith.constant 0 : i32
    return %arg0, %c0_i32, %c0_i32_0 : i32, i32, i32
  }
}

</mosaic_0001>

<llo_original>
// kernel: tpu_custom_call.1
$region0: #{tpu_custom_call.1}
  #allocation0 [shape = 'u32[]', space=smem, size = 0x4, offset = 0x4, fixed_abs, tag = 'smem constant byte address 0x4 - core index']
  #allocation1 [shape = 'u32[144,128]{1,0:T(1,128)}', space=vmem, size = 0x12000, scoped, tag = 'internal scratch']
  #allocation2 [shape = 'f32[328,8]{1,0:T(8,128)}', space=vmem, size = 0x29000, scoped, tag = 'scratch operand']
  %s0 = inlined_call_operand.vmem [shape: bf16[2,328,8], index: 0, kind: input, shape index: {}]
  %s1 = inlined_call_operand.vmem [shape: f32[2,1,8], index: 1, kind: input, shape index: {}]
  %s2 = inlined_call_operand.vmem [shape: bf16[3,3,8,8], index: 2, kind: input, shape index: {}]
  %s3 = inlined_call_operand.vmem [shape: bf16[3,3,8,8], index: 3, kind: input, shape index: {}]
  %s4 = inlined_call_operand.vmem [shape: f32[288,1], index: 4, kind: input, shape index: {}]
  %s5 = inlined_call_operand.vmem [shape: f32[2,288,8], index: 5, kind: output, shape index: {}]
  %s6 = sld [smem:[#allocation0]]
  $region53: #{tpu_custom_call.1} parent=0
    _
  %s8 = ssub.s32 1, %s6
  %s9 = scalar_select 0, %s8, %s6
  loop: start=0, step=1, limit=4
  $region2: #{tpu_custom_call.1} parent=0 // loop_pre_header
    _
  $region3: #{tpu_custom_call.1} parent=0 // loop_header
    %s11 = sphi 0, %s15
    %p12 = scmp.ge.s32.totalorder %s11, 4
    %s21 = sphi 0, %s23
    %s24 = sphi 0, %s21
    %s25 = sphi 0, %s24
    %s41 = sphi 0, %s25
    %s47 = sphi 0, %s49
    %s50 = sphi 0, %s47
    %s51 = sphi 0, %s50
    %s67 = sphi 0, %s51
    %s71 = sphi 0, %s71
    %s73 = sphi 0, %s71
    %s74 = sphi 0, %s73
    %s88 = sphi 0, %s74
    %s92 = sphi 0, %s92
    %s94 = sphi 0, %s92
    %s95 = sphi 0, %s94
    %s109 = sphi 0, %s95
    %s113 = sphi 0, %s113
    %s115 = sphi 0, %s113
    %s116 = sphi 0, %s115
    %s130 = sphi 0, %s116
    %s136 = sphi 0, %s138
    %s139 = sphi 0, %s136
    %s140 = sphi 0, %s139
    %s156 = sphi 0, %s140
  $region4: #{tpu_custom_call.1} parent=0 // loop_header_branch
    %14 = sbr.rel (%p12) target = $region8
  $region5: #{tpu_custom_call.1} parent=0 // loop_body
    %s16 = ssub.s32 %s11, 1
    %s17 = ssub.s32 %s11, 2
    %s18 = sadd.s32 %s11, 1
    %s19 = ssub.s32 %s11, %s18
    %p20 = scmp.eq.s32.totalorder %s19, 0
    %s22 = sadd.s32 %s21, 1
    %s23 = scalar_select %p20, %s21, %s22
    %p26 = pneg %p20
    %p27 = scmp.eq.s32.totalorder %s11, 1
    %p28 = por %p26, %p27
    %p29 = scmp.ne.s32.totalorder %s21, %s24
    %p30 = scmp.eq.s32.totalorder %s11, 0
    %p31 = por %p29, %p30
    %p32 = scmp.ne.s32.totalorder %s21, %s24
    %p33 = scmp.eq.s32.totalorder %s16, 1
    %p34 = por %p32, %p33
    %p35 = scmp.ne.s32.totalorder %s24, %s25
    %p36 = scmp.eq.s32.totalorder %s16, 0
    %p37 = por %p35, %p36
    %p38 = scmp.ne.s32.totalorder %s24, %s25
    %p39 = scmp.eq.s32.totalorder %s17, 1
    %p40 = por %p38, %p39
    %p42 = scmp.ne.s32.totalorder %s25, %s41
    %p43 = scmp.eq.s32.totalorder %s17, 0
    %p44 = por %p42, %p43
    %s45 = ssub.s32 %s11, %s18
    %p46 = scmp.eq.s32.totalorder %s45, 0
    %s48 = sadd.s32 %s47, 1
    %s49 = scalar_select %p46, %s47, %s48
    %p52 = pneg %p46
    %p53 = scmp.eq.s32.totalorder %s11, 1
    %p54 = por %p52, %p53
    %p55 = scmp.ne.s32.totalorder %s47, %s50
    %p56 = scmp.eq.s32.totalorder %s11, 0
    %p57 = por %p55, %p56
    %p58 = scmp.ne.s32.totalorder %s47, %s50
    %p59 = scmp.eq.s32.totalorder %s16, 1
    %p60 = por %p58, %p59
    %p61 = scmp.ne.s32.totalorder %s50, %s51
    %p62 = scmp.eq.s32.totalorder %s16, 0
    %p63 = por %p61, %p62
    %p64 = scmp.ne.s32.totalorder %s50, %s51
    %p65 = scmp.eq.s32.totalorder %s17, 1
    %p66 = por %p64, %p65
    %p68 = scmp.ne.s32.totalorder %s51, %s67
    %p69 = scmp.eq.s32.totalorder %s17, 0
    %p70 = por %p68, %p69
    %s72 = sadd.s32 %s71, 1
    %p75 = scmp.eq.s32.totalorder %s11, 1
    %p76 = scmp.ne.s32.totalorder %s71, %s73
    %p77 = scmp.eq.s32.totalorder %s11, 0
    %p78 = por %p76, %p77
    %p79 = scmp.ne.s32.totalorder %s71, %s73
    %p80 = scmp.eq.s32.totalorder %s16, 1
    %p81 = por %p79, %p80
    %p82 = scmp.ne.s32.totalorder %s73, %s74
    %p83 = scmp.eq.s32.totalorder %s16, 0
    %p84 = por %p82, %p83
    %p85 = scmp.ne.s32.totalorder %s73, %s74
    %p86 = scmp.eq.s32.totalorder %s17, 1
    %p87 = por %p85, %p86
    %p89 = scmp.ne.s32.totalorder %s74, %s88
    %p90 = scmp.eq.s32.totalorder %s17, 0
    %p91 = por %p89, %p90
    %s93 = sadd.s32 %s92, 1
    %p96 = scmp.eq.s32.totalorder %s11, 1
    %p97 = scmp.ne.s32.totalorder %s92, %s94
    %p98 = scmp.eq.s32.totalorder %s11, 0
    %p99 = por %p97, %p98
    %p100 = scmp.ne.s32.totalorder %s92, %s94
    %p101 = scmp.eq.s32.totalorder %s16, 1
    %p102 = por %p100, %p101
    %p103 = scmp.ne.s32.totalorder %s94, %s95
    %p104 = scmp.eq.s32.totalorder %s16, 0
    %p105 = por %p103, %p104
    %p106 = scmp.ne.s32.totalorder %s94, %s95
    %p107 = scmp.eq.s32.totalorder %s17, 1
    %p108 = por %p106, %p107
    %p110 = scmp.ne.s32.totalorder %s95, %s109
    %p111 = scmp.eq.s32.totalorder %s17, 0
    %p112 = por %p110, %p111
    %s114 = sadd.s32 %s113, 1
    %p117 = scmp.eq.s32.totalorder %s11, 1
    %p118 = scmp.ne.s32.totalorder %s113, %s115
    %p119 = scmp.eq.s32.totalorder %s11, 0
    %p120 = por %p118, %p119
    %p121 = scmp.ne.s32.totalorder %s113, %s115
    %p122 = scmp.eq.s32.totalorder %s16, 1
    %p123 = por %p121, %p122
    %p124 = scmp.ne.s32.totalorder %s115, %s116
    %p125 = scmp.eq.s32.totalorder %s16, 0
    %p126 = por %p124, %p125
    %p127 = scmp.ne.s32.totalorder %s115, %s116
    %p128 = scmp.eq.s32.totalorder %s17, 1
    %p129 = por %p127, %p128
    %p131 = scmp.ne.s32.totalorder %s116, %s130
    %p132 = scmp.eq.s32.totalorder %s17, 0
    %p133 = por %p131, %p132
    %s134 = ssub.s32 %s11, %s18
    %p135 = scmp.eq.s32.totalorder %s134, 0
    %s137 = sadd.s32 %s136, 1
    %s138 = scalar_select %p135, %s136, %s137
    %p141 = pneg %p135
    %p142 = scmp.eq.s32.totalorder %s11, 1
    %p143 = por %p141, %p142
    %p144 = scmp.ne.s32.totalorder %s136, %s139
    %p145 = scmp.eq.s32.totalorder %s11, 0
    %p146 = por %p144, %p145
    %p147 = scmp.ne.s32.totalorder %s136, %s139
    %p148 = scmp.eq.s32.totalorder %s16, 1
    %p149 = por %p147, %p148
    %p150 = scmp.ne.s32.totalorder %s139, %s140
    %p151 = scmp.eq.s32.totalorder %s16, 0
    %p152 = por %p150, %p151
    %p153 = scmp.ne.s32.totalorder %s139, %s140
    %p154 = scmp.eq.s32.totalorder %s17, 1
    %p155 = por %p153, %p154
    %p157 = scmp.ne.s32.totalorder %s140, %s156
    %p158 = scmp.eq.s32.totalorder %s17, 0
    %p159 = por %p157, %p158
    %p160 = scmp.le.s32.totalorder 1, %s11
    %p161 = scmp.lt.s32.totalorder %s11, 3
    %p162 = pnand %p160, %p161
    %p163 = pneg %p162
    // Predicated region
    $region9: #{tpu_custom_call.1} parent=5 // pred_check
      _
    $region10: #{tpu_custom_call.1} parent=5 // pred_check_branch
      %165 = sbr.rel (%p162) target = $region12
    $region11: #{tpu_custom_call.1} parent=5 // pred_region
      %s166 = ssub.s32 %s11, 1
      // Predicated region
      $region13: #{tpu_custom_call.1} parent=11 // pred_check
        %p167 = pneg %p84
      $region14: #{tpu_custom_call.1} parent=11 // pred_check_branch
        %169 = sbr.rel (%p167) target = $region16
      $region15: #{tpu_custom_call.1} parent=11 // pred_region
        _
      $region16: #{tpu_custom_call.1} parent=11 // pred_fallthru
        _
      // Predicated region
      $region17: #{tpu_custom_call.1} parent=11 // pred_check
        %p170 = pneg %p105
      $region18: #{tpu_custom_call.1} parent=11 // pred_check_branch
        %172 = sbr.rel (%p170) target = $region20
      $region19: #{tpu_custom_call.1} parent=11 // pred_region
        _
      $region20: #{tpu_custom_call.1} parent=11 // pred_fallthru
        _
      // Predicated region
      $region21: #{tpu_custom_call.1} parent=11 // pred_check
        %p173 = pneg %p126
      $region22: #{tpu_custom_call.1} parent=11 // pred_check_branch
        %175 = sbr.rel (%p173) target = $region24
      $region23: #{tpu_custom_call.1} parent=11 // pred_region
        _
      $region24: #{tpu_custom_call.1} parent=11 // pred_fallthru
        _
    $region12: #{tpu_custom_call.1} parent=5 // pred_fallthru
      _
    %p176 = scmp.lt.s32.totalorder %s11, 2
    // Predicated region
    $region25: #{tpu_custom_call.1} parent=5 // pred_check
      %p177 = pneg %p176
    $region26: #{tpu_custom_call.1} parent=5 // pred_check_branch
      %179 = sbr.rel (%p177) target = $region28
    $region27: #{tpu_custom_call.1} parent=5 // pred_region
      // Predicated region
      $region29: #{tpu_custom_call.1} parent=27 // pred_check
        %p180 = pneg %p31
      $region30: #{tpu_custom_call.1} parent=27 // pred_check_branch
        %182 = sbr.rel (%p180) target = $region32
      $region31: #{tpu_custom_call.1} parent=27 // pred_region
        %p183 = scmp.lt.s32.totalorder %s11, 1
        %s184 = scalar_select %p183, %s11, 1
        %s185 = smul.addr %s184, 41
        %s186 = smul.addr %s185, 4
        %s187 = scalar_lea.vmem %s0, %s186
      $region32: #{tpu_custom_call.1} parent=27 // pred_fallthru
        _
      // Predicated region
      $region33: #{tpu_custom_call.1} parent=27 // pred_check
        %p188 = pneg %p57
      $region34: #{tpu_custom_call.1} parent=27 // pred_check_branch
        %190 = sbr.rel (%p188) target = $region36
      $region35: #{tpu_custom_call.1} parent=27 // pred_region
        %p191 = scmp.lt.s32.totalorder %s11, 1
        %s192 = scalar_select %p191, %s11, 1
        %s193 = scalar_lea.vmem %s1, %s192
      $region36: #{tpu_custom_call.1} parent=27 // pred_fallthru
        _
    $region28: #{tpu_custom_call.1} parent=5 // pred_fallthru
      _
    %p194 = scmp.le.s32.totalorder 1, %s11
    %p195 = scmp.lt.s32.totalorder %s11, 3
    %p196 = pnand %p194, %p195
    %p197 = pneg %p196
    // Predicated region
    $region37: #{tpu_custom_call.1} parent=5 // pred_check
      _
    $region38: #{tpu_custom_call.1} parent=5 // pred_check_branch
      %199 = sbr.rel (%p196) target = $region40
    $region39: #{tpu_custom_call.1} parent=5 // pred_region
      %s200 = ssub.s32 %s11, 1
      %p201 = scmp.lt.s32.totalorder %s16, 1
      %s202 = scalar_select %p201, %s16, 1
      %s203 = smul.addr %s202, 41
      %s204 = smul.addr %s203, 4
      %s205 = scalar_lea.vmem %s0, %s204
      %p206 = pneg %p37
      %p207 = pneg %p34
      %p208 = scmp.lt.s32.totalorder %s16, 1
      %s209 = scalar_select %p208, %s16, 1
      %s210 = scalar_lea.vmem %s1, %s209
      %p211 = pneg %p63
      %p212 = pneg %p60
      %p213 = pneg %p84
      %p214 = pneg %p81
      %p215 = pneg %p105
      %p216 = pneg %p102
      %p217 = pneg %p126
      %p218 = pneg %p123
      %p219 = pneg %p152
      %p220 = pneg %p149
      %p221 = scmp.lt.s32.totalorder %s16, 1
      %s222 = scalar_select %p221, %s16, 1
      %s223 = smul.addr %s222, 36
      %s224 = smul.addr %s223, 8
      %s225 = scalar_lea.vmem %s5, %s224
      %p226 = scmp.lt.s32.totalorder %s16, 1
      %s227 = scalar_select %p226, %s16, 1
      %s228 = smul.addr %s227, 41
      %s229 = smul.addr %s228, 4
      %s230 = scalar_lea.vmem %s0, %s229
      %p231 = scmp.lt.s32.totalorder %s16, 1
      %s232 = scalar_select %p231, %s16, 1
      %s233 = scalar_lea.vmem %s1, %s232
      %p234 = scmp.lt.s32.totalorder %s16, 1
      %s235 = scalar_select %p234, %s16, 1
      %s236 = smul.addr %s235, 36
      %s237 = smul.addr %s236, 8
      %s238 = scalar_lea.vmem %s5, %s237
      %v240 = vld [vmem:[%s230] sm:$0xf]
      %v241 = vld [vmem:[%s230 + $0x4] sm:$0xf]
      %v242 = vld [vmem:[%s230 + $0x8] sm:$0xf]
      %v243 = vld [vmem:[%s230 + $0xc] sm:$0xf]
      %v244 = vld [vmem:[%s230 + $0x10] sm:$0xf]
      %v245 = vld [vmem:[%s230 + $0x14] sm:$0xf]
      %v246 = vld [vmem:[%s230 + $0x18] sm:$0xf]
      %v247 = vld [vmem:[%s230 + $0x1c] sm:$0xf]
      %v248 = vld [vmem:[%s230 + $0x20] sm:$0xf]
      %v249 = vld [vmem:[%s230 + $0x24] sm:$0xf]
      %v250 = vld [vmem:[%s230 + $0x28] sm:$0xf]
      %v251 = vld [vmem:[%s230 + $0x2c] sm:$0xf]
      %v252 = vld [vmem:[%s230 + $0x30] sm:$0xf]
      %v253 = vld [vmem:[%s230 + $0x34] sm:$0xf]
      %v254 = vld [vmem:[%s230 + $0x38] sm:$0xf]
      %v255 = vld [vmem:[%s230 + $0x3c] sm:$0xf]
      %v256 = vld [vmem:[%s230 + $0x40] sm:$0xf]
      %v257 = vld [vmem:[%s230 + $0x44] sm:$0xf]
      %v258 = vld [vmem:[%s230 + $0x48] sm:$0xf]
      %v259 = vld [vmem:[%s230 + $0x4c] sm:$0xf]
      %v260 = vld [vmem:[%s230 + $0x50] sm:$0xf]
      %v261 = vld [vmem:[%s230 + $0x54] sm:$0xf]
      %v262 = vld [vmem:[%s230 + $0x58] sm:$0xf]
      %v263 = vld [vmem:[%s230 + $0x5c] sm:$0xf]
      %v264 = vld [vmem:[%s230 + $0x60] sm:$0xf]
      %v265 = vld [vmem:[%s230 + $0x64] sm:$0xf]
      %v266 = vld [vmem:[%s230 + $0x68] sm:$0xf]
      %v267 = vld [vmem:[%s230 + $0x6c] sm:$0xf]
      %v268 = vld [vmem:[%s230 + $0x70] sm:$0xf]
      %v269 = vld [vmem:[%s230 + $0x74] sm:$0xf]
      %v270 = vld [vmem:[%s230 + $0x78] sm:$0xf]
      %v271 = vld [vmem:[%s230 + $0x7c] sm:$0xf]
      %v272 = vld [vmem:[%s230 + $0x80] sm:$0xf]
      %v273 = vld [vmem:[%s230 + $0x84] sm:$0xf]
      %v274 = vld [vmem:[%s230 + $0x88] sm:$0xf]
      %v275 = vld [vmem:[%s230 + $0x8c] sm:$0xf]
      %v276 = vld [vmem:[%s230 + $0x90] sm:$0xf]
      %v277 = vld [vmem:[%s230 + $0x94] sm:$0xf]
      %v278 = vld [vmem:[%s230 + $0x98] sm:$0xf]
      %v279 = vld [vmem:[%s230 + $0x9c] sm:$0xf]
      %v280 = vld [vmem:[%s230 + $0xa0] sm:$0xf]
      %v281 = vunpack.c.l.bf16 %v240
      %v282 = vunpack.c.l.bf16 %v241
      %v283 = vunpack.c.l.bf16 %v242
      %v284 = vunpack.c.l.bf16 %v243
      %v285 = vunpack.c.l.bf16 %v244
      %v286 = vunpack.c.l.bf16 %v245
      %v287 = vunpack.c.l.bf16 %v246
      %v288 = vunpack.c.l.bf16 %v247
      %v289 = vunpack.c.l.bf16 %v248
      %v290 = vunpack.c.l.bf16 %v249
      %v291 = vunpack.c.l.bf16 %v250
      %v292 = vunpack.c.l.bf16 %v251
      %v293 = vunpack.c.l.bf16 %v252
      %v294 = vunpack.c.l.bf16 %v253
      %v295 = vunpack.c.l.bf16 %v254
      %v296 = vunpack.c.l.bf16 %v255
      %v297 = vunpack.c.l.bf16 %v256
      %v298 = vunpack.c.l.bf16 %v257
      %v299 = vunpack.c.l.bf16 %v258
      %v300 = vunpack.c.l.bf16 %v259
      %v301 = vunpack.c.l.bf16 %v260
      %v302 = vunpack.c.l.bf16 %v261
      %v303 = vunpack.c.l.bf16 %v262
      %v304 = vunpack.c.l.bf16 %v263
      %v305 = vunpack.c.l.bf16 %v264
      %v306 = vunpack.c.l.bf16 %v265
      %v307 = vunpack.c.l.bf16 %v266
      %v308 = vunpack.c.l.bf16 %v267
      %v309 = vunpack.c.l.bf16 %v268
      %v310 = vunpack.c.l.bf16 %v269
      %v311 = vunpack.c.l.bf16 %v270
      %v312 = vunpack.c.l.bf16 %v271
      %v313 = vunpack.c.l.bf16 %v272
      %v314 = vunpack.c.l.bf16 %v273
      %v315 = vunpack.c.l.bf16 %v274
      %v316 = vunpack.c.l.bf16 %v275
      %v317 = vunpack.c.l.bf16 %v276
      %v318 = vunpack.c.l.bf16 %v277
      %v319 = vunpack.c.l.bf16 %v278
      %v320 = vunpack.c.l.bf16 %v279
      %v321 = vunpack.c.l.bf16 %v280
      %v322 = vmul.f32 %v281, %v281
      %v323 = vmul.f32 %v282, %v282
      %v324 = vmul.f32 %v283, %v283
      %v325 = vmul.f32 %v284, %v284
      %v326 = vmul.f32 %v285, %v285
      %v327 = vmul.f32 %v286, %v286
      %v328 = vmul.f32 %v287, %v287
      %v329 = vmul.f32 %v288, %v288
      %v330 = vmul.f32 %v289, %v289
      %v331 = vmul.f32 %v290, %v290
      %v332 = vmul.f32 %v291, %v291
      %v333 = vmul.f32 %v292, %v292
      %v334 = vmul.f32 %v293, %v293
      %v335 = vmul.f32 %v294, %v294
      %v336 = vmul.f32 %v295, %v295
      %v337 = vmul.f32 %v296, %v296
      %v338 = vmul.f32 %v297, %v297
      %v339 = vmul.f32 %v298, %v298
      %v340 = vmul.f32 %v299, %v299
      %v341 = vmul.f32 %v300, %v300
      %v342 = vmul.f32 %v301, %v301
      %v343 = vmul.f32 %v302, %v302
      %v344 = vmul.f32 %v303, %v303
      %v345 = vmul.f32 %v304, %v304
      %v346 = vmul.f32 %v305, %v305
      %v347 = vmul.f32 %v306, %v306
      %v348 = vmul.f32 %v307, %v307
      %v349 = vmul.f32 %v308, %v308
      %v350 = vmul.f32 %v309, %v309
      %v351 = vmul.f32 %v310, %v310
      %v352 = vmul.f32 %v311, %v311
      %v353 = vmul.f32 %v312, %v312
      %v354 = vmul.f32 %v313, %v313
      %v355 = vmul.f32 %v314, %v314
      %v356 = vmul.f32 %v315, %v315
      %v357 = vmul.f32 %v316, %v316
      %v358 = vmul.f32 %v317, %v317
      %v359 = vmul.f32 %v318, %v318
      %v360 = vmul.f32 %v319, %v319
      %v361 = vmul.f32 %v320, %v320
      %v362 = vmul.f32 %v321, %v321
      %vm363 = vcmask 64512
      %v364 = vsel %vm363, %v322, 0.0
      %365 = vadd.xlane.f32.xlu0 %v364
      %v366 = vpop.xlane.xlu0 %365
      %v367 = vsel %vm363, %v323, 0.0
      %368 = vadd.xlane.f32.xlu0 %v367
      %v369 = vpop.xlane.xlu0 %368
      %v370 = vsel %vm363, %v324, 0.0
      %371 = vadd.xlane.f32.xlu0 %v370
      %v372 = vpop.xlane.xlu0 %371
      %v373 = vsel %vm363, %v325, 0.0
      %374 = vadd.xlane.f32.xlu0 %v373
      %v375 = vpop.xlane.xlu0 %374
      %v376 = vsel %vm363, %v326, 0.0
      %377 = vadd.xlane.f32.xlu0 %v376
      %v378 = vpop.xlane.xlu0 %377
      %v379 = vsel %vm363, %v327, 0.0
      %380 = vadd.xlane.f32.xlu0 %v379
      %v381 = vpop.xlane.xlu0 %380
      %v382 = vsel %vm363, %v328, 0.0
      %383 = vadd.xlane.f32.xlu0 %v382
      %v384 = vpop.xlane.xlu0 %383
      %v385 = vsel %vm363, %v329, 0.0
      %386 = vadd.xlane.f32.xlu0 %v385
      %v387 = vpop.xlane.xlu0 %386
      %v388 = vsel %vm363, %v330, 0.0
      %389 = vadd.xlane.f32.xlu0 %v388
      %v390 = vpop.xlane.xlu0 %389
      %v391 = vsel %vm363, %v331, 0.0
      %392 = vadd.xlane.f32.xlu0 %v391
      %v393 = vpop.xlane.xlu0 %392
      %v394 = vsel %vm363, %v332, 0.0
      %395 = vadd.xlane.f32.xlu0 %v394
      %v396 = vpop.xlane.xlu0 %395
      %v397 = vsel %vm363, %v333, 0.0
      %398 = vadd.xlane.f32.xlu0 %v397
      %v399 = vpop.xlane.xlu0 %398
      %v400 = vsel %vm363, %v334, 0.0
      %401 = vadd.xlane.f32.xlu0 %v400
      %v402 = vpop.xlane.xlu0 %401
      %v403 = vsel %vm363, %v335, 0.0
      %404 = vadd.xlane.f32.xlu0 %v403
      %v405 = vpop.xlane.xlu0 %404
      %v406 = vsel %vm363, %v336, 0.0
      %407 = vadd.xlane.f32.xlu0 %v406
      %v408 = vpop.xlane.xlu0 %407
      %v409 = vsel %vm363, %v337, 0.0
      %410 = vadd.xlane.f32.xlu0 %v409
      %v411 = vpop.xlane.xlu0 %410
      %v412 = vsel %vm363, %v338, 0.0
      %413 = vadd.xlane.f32.xlu0 %v412
      %v414 = vpop.xlane.xlu0 %413
      %v415 = vsel %vm363, %v339, 0.0
      %416 = vadd.xlane.f32.xlu0 %v415
      %v417 = vpop.xlane.xlu0 %416
      %v418 = vsel %vm363, %v340, 0.0
      %419 = vadd.xlane.f32.xlu0 %v418
      %v420 = vpop.xlane.xlu0 %419
      %v421 = vsel %vm363, %v341, 0.0
      %422 = vadd.xlane.f32.xlu0 %v421
      %v423 = vpop.xlane.xlu0 %422
      %v424 = vsel %vm363, %v342, 0.0
      %425 = vadd.xlane.f32.xlu0 %v424
      %v426 = vpop.xlane.xlu0 %425
      %v427 = vsel %vm363, %v343, 0.0
      %428 = vadd.xlane.f32.xlu0 %v427
      %v429 = vpop.xlane.xlu0 %428
      %v430 = vsel %vm363, %v344, 0.0
      %431 = vadd.xlane.f32.xlu0 %v430
      %v432 = vpop.xlane.xlu0 %431
      %v433 = vsel %vm363, %v345, 0.0
      %434 = vadd.xlane.f32.xlu0 %v433
      %v435 = vpop.xlane.xlu0 %434
      %v436 = vsel %vm363, %v346, 0.0
      %437 = vadd.xlane.f32.xlu0 %v436
      %v438 = vpop.xlane.xlu0 %437
      %v439 = vsel %vm363, %v347, 0.0
      %440 = vadd.xlane.f32.xlu0 %v439
      %v441 = vpop.xlane.xlu0 %440
      %v442 = vsel %vm363, %v348, 0.0
      %443 = vadd.xlane.f32.xlu0 %v442
      %v444 = vpop.xlane.xlu0 %443
      %v445 = vsel %vm363, %v349, 0.0
      %446 = vadd.xlane.f32.xlu0 %v445
      %v447 = vpop.xlane.xlu0 %446
      %v448 = vsel %vm363, %v350, 0.0
      %449 = vadd.xlane.f32.xlu0 %v448
      %v450 = vpop.xlane.xlu0 %449
      %v451 = vsel %vm363, %v351, 0.0
      %452 = vadd.xlane.f32.xlu0 %v451
      %v453 = vpop.xlane.xlu0 %452
      %v454 = vsel %vm363, %v352, 0.0
      %455 = vadd.xlane.f32.xlu0 %v454
      %v456 = vpop.xlane.xlu0 %455
      %v457 = vsel %vm363, %v353, 0.0
      %458 = vadd.xlane.f32.xlu0 %v457
      %v459 = vpop.xlane.xlu0 %458
      %v460 = vsel %vm363, %v354, 0.0
      %461 = vadd.xlane.f32.xlu0 %v460
      %v462 = vpop.xlane.xlu0 %461
      %v463 = vsel %vm363, %v355, 0.0
      %464 = vadd.xlane.f32.xlu0 %v463
      %v465 = vpop.xlane.xlu0 %464
      %v466 = vsel %vm363, %v356, 0.0
      %467 = vadd.xlane.f32.xlu0 %v466
      %v468 = vpop.xlane.xlu0 %467
      %v469 = vsel %vm363, %v357, 0.0
      %470 = vadd.xlane.f32.xlu0 %v469
      %v471 = vpop.xlane.xlu0 %470
      %v472 = vsel %vm363, %v358, 0.0
      %473 = vadd.xlane.f32.xlu0 %v472
      %v474 = vpop.xlane.xlu0 %473
      %v475 = vsel %vm363, %v359, 0.0
      %476 = vadd.xlane.f32.xlu0 %v475
      %v477 = vpop.xlane.xlu0 %476
      %v478 = vsel %vm363, %v360, 0.0
      %479 = vadd.xlane.f32.xlu0 %v478
      %v480 = vpop.xlane.xlu0 %479
      %v481 = vsel %vm363, %v361, 0.0
      %482 = vadd.xlane.f32.xlu0 %v481
      %v483 = vpop.xlane.xlu0 %482
      %v484 = vsel %vm363, %v362, 0.0
      %485 = vadd.xlane.f32.xlu0 %v484
      %v486 = vpop.xlane.xlu0 %485
      %v487 = vrcp.pop 8.0
      %v488 = vmul.f32 %v366, %v487
      %v489 = vmul.f32 %v369, %v487
      %v490 = vmul.f32 %v372, %v487
      %v491 = vmul.f32 %v375, %v487
      %v492 = vmul.f32 %v378, %v487
      %v493 = vmul.f32 %v381, %v487
      %v494 = vmul.f32 %v384, %v487
      %v495 = vmul.f32 %v387, %v487
      %v496 = vmul.f32 %v390, %v487
      %v497 = vmul.f32 %v393, %v487
      %v498 = vmul.f32 %v396, %v487
      %v499 = vmul.f32 %v399, %v487
      %v500 = vmul.f32 %v402, %v487
      %v501 = vmul.f32 %v405, %v487
      %v502 = vmul.f32 %v408, %v487
      %v503 = vmul.f32 %v411, %v487
      %v504 = vmul.f32 %v414, %v487
      %v505 = vmul.f32 %v417, %v487
      %v506 = vmul.f32 %v420, %v487
      %v507 = vmul.f32 %v423, %v487
      %v508 = vmul.f32 %v426, %v487
      %v509 = vmul.f32 %v429, %v487
      %v510 = vmul.f32 %v432, %v487
      %v511 = vmul.f32 %v435, %v487
      %v512 = vmul.f32 %v438, %v487
      %v513 = vmul.f32 %v441, %v487
      %v514 = vmul.f32 %v444, %v487
      %v515 = vmul.f32 %v447, %v487
      %v516 = vmul.f32 %v450, %v487
      %v517 = vmul.f32 %v453, %v487
      %v518 = vmul.f32 %v456, %v487
      %v519 = vmul.f32 %v459, %v487
      %v520 = vmul.f32 %v462, %v487
      %v521 = vmul.f32 %v465, %v487
      %v522 = vmul.f32 %v468, %v487
      %v523 = vmul.f32 %v471, %v487
      %v524 = vmul.f32 %v474, %v487
      %v525 = vmul.f32 %v477, %v487
      %v526 = vmul.f32 %v480, %v487
      %v527 = vmul.f32 %v483, %v487
      %v528 = vmul.f32 %v486, %v487
      %v529 = vadd.f32 %v488, 0.0001
      %v530 = vadd.f32 %v489, 0.0001
      %v531 = vadd.f32 %v490, 0.0001
      %v532 = vadd.f32 %v491, 0.0001
      %v533 = vadd.f32 %v492, 0.0001
      %v534 = vadd.f32 %v493, 0.0001
      %v535 = vadd.f32 %v494, 0.0001
      %v536 = vadd.f32 %v495, 0.0001
      %v537 = vadd.f32 %v496, 0.0001
      %v538 = vadd.f32 %v497, 0.0001
      %v539 = vadd.f32 %v498, 0.0001
      %v540 = vadd.f32 %v499, 0.0001
      %v541 = vadd.f32 %v500, 0.0001
      %v542 = vadd.f32 %v501, 0.0001
      %v543 = vadd.f32 %v502, 0.0001
      %v544 = vadd.f32 %v503, 0.0001
      %v545 = vadd.f32 %v504, 0.0001
      %v546 = vadd.f32 %v505, 0.0001
      %v547 = vadd.f32 %v506, 0.0001
      %v548 = vadd.f32 %v507, 0.0001
      %v549 = vadd.f32 %v508, 0.0001
      %v550 = vadd.f32 %v509, 0.0001
      %v551 = vadd.f32 %v510, 0.0001
      %v552 = vadd.f32 %v511, 0.0001
      %v553 = vadd.f32 %v512, 0.0001
      %v554 = vadd.f32 %v513, 0.0001
      %v555 = vadd.f32 %v514, 0.0001
      %v556 = vadd.f32 %v515, 0.0001
      %v557 = vadd.f32 %v516, 0.0001
      %v558 = vadd.f32 %v517, 0.0001
      %v559 = vadd.f32 %v518, 0.0001
      %v560 = vadd.f32 %v519, 0.0001
      %v561 = vadd.f32 %v520, 0.0001
      %v562 = vadd.f32 %v521, 0.0001
      %v563 = vadd.f32 %v522, 0.0001
      %v564 = vadd.f32 %v523, 0.0001
      %v565 = vadd.f32 %v524, 0.0001
      %v566 = vadd.f32 %v525, 0.0001
      %v567 = vadd.f32 %v526, 0.0001
      %v568 = vadd.f32 %v527, 0.0001
      %v569 = vadd.f32 %v528, 0.0001
      %v570 = vrsqrt.pop %v529
      %v571 = vrsqrt.pop %v530
      %v572 = vrsqrt.pop %v531
      %v573 = vrsqrt.pop %v532
      %v574 = vrsqrt.pop %v533
      %v575 = vrsqrt.pop %v534
      %v576 = vrsqrt.pop %v535
      %v577 = vrsqrt.pop %v536
      %v578 = vrsqrt.pop %v537
      %v579 = vrsqrt.pop %v538
      %v580 = vrsqrt.pop %v539
      %v581 = vrsqrt.pop %v540
      %v582 = vrsqrt.pop %v541
      %v583 = vrsqrt.pop %v542
      %v584 = vrsqrt.pop %v543
      %v585 = vrsqrt.pop %v544
      %v586 = vrsqrt.pop %v545
      %v587 = vrsqrt.pop %v546
      %v588 = vrsqrt.pop %v547
      %v589 = vrsqrt.pop %v548
      %v590 = vrsqrt.pop %v549
      %v591 = vrsqrt.pop %v550
      %v592 = vrsqrt.pop %v551
      %v593 = vrsqrt.pop %v552
      %v594 = vrsqrt.pop %v553
      %v595 = vrsqrt.pop %v554
      %v596 = vrsqrt.pop %v555
      %v597 = vrsqrt.pop %v556
      %v598 = vrsqrt.pop %v557
      %v599 = vrsqrt.pop %v558
      %v600 = vrsqrt.pop %v559
      %v601 = vrsqrt.pop %v560
      %v602 = vrsqrt.pop %v561
      %v603 = vrsqrt.pop %v562
      %v604 = vrsqrt.pop %v563
      %v605 = vrsqrt.pop %v564
      %v606 = vrsqrt.pop %v565
      %v607 = vrsqrt.pop %v566
      %v608 = vrsqrt.pop %v567
      %v609 = vrsqrt.pop %v568
      %v610 = vrsqrt.pop %v569
      %v611 = vmul.f32 %v281, %v570
      %v612 = vmul.f32 %v282, %v571
      %v613 = vmul.f32 %v283, %v572
      %v614 = vmul.f32 %v284, %v573
      %v615 = vmul.f32 %v285, %v574
      %v616 = vmul.f32 %v286, %v575
      %v617 = vmul.f32 %v287, %v576
      %v618 = vmul.f32 %v288, %v577
      %v619 = vmul.f32 %v289, %v578
      %v620 = vmul.f32 %v290, %v579
      %v621 = vmul.f32 %v291, %v580
      %v622 = vmul.f32 %v292, %v581
      %v623 = vmul.f32 %v293, %v582
      %v624 = vmul.f32 %v294, %v583
      %v625 = vmul.f32 %v295, %v584
      %v626 = vmul.f32 %v296, %v585
      %v627 = vmul.f32 %v297, %v586
      %v628 = vmul.f32 %v298, %v587
      %v629 = vmul.f32 %v299, %v588
      %v630 = vmul.f32 %v300, %v589
      %v631 = vmul.f32 %v301, %v590
      %v632 = vmul.f32 %v302, %v591
      %v633 = vmul.f32 %v303, %v592
      %v634 = vmul.f32 %v304, %v593
      %v635 = vmul.f32 %v305, %v594
      %v636 = vmul.f32 %v306, %v595
      %v637 = vmul.f32 %v307, %v596
      %v638 = vmul.f32 %v308, %v597
      %v639 = vmul.f32 %v309, %v598
      %v640 = vmul.f32 %v310, %v599
      %v641 = vmul.f32 %v311, %v600
      %v642 = vmul.f32 %v312, %v601
      %v643 = vmul.f32 %v313, %v602
      %v644 = vmul.f32 %v314, %v603
      %v645 = vmul.f32 %v315, %v604
      %v646 = vmul.f32 %v316, %v605
      %v647 = vmul.f32 %v317, %v606
      %v648 = vmul.f32 %v318, %v607
      %v649 = vmul.f32 %v319, %v608
      %v650 = vmul.f32 %v320, %v609
      %v651 = vmul.f32 %v321, %v610
      %v652 = vxor.u32 %v611, 2147483648
      %v653 = vxor.u32 %v612, 2147483648
      %v654 = vxor.u32 %v613, 2147483648
      %v655 = vxor.u32 %v614, 2147483648
      %v656 = vxor.u32 %v615, 2147483648
      %v657 = vxor.u32 %v616, 2147483648
      %v658 = vxor.u32 %v617, 2147483648
      %v659 = vxor.u32 %v618, 2147483648
      %v660 = vxor.u32 %v619, 2147483648
      %v661 = vxor.u32 %v620, 2147483648
      %v662 = vxor.u32 %v621, 2147483648
      %v663 = vxor.u32 %v622, 2147483648
      %v664 = vxor.u32 %v623, 2147483648
      %v665 = vxor.u32 %v624, 2147483648
      %v666 = vxor.u32 %v625, 2147483648
      %v667 = vxor.u32 %v626, 2147483648
      %v668 = vxor.u32 %v627, 2147483648
      %v669 = vxor.u32 %v628, 2147483648
      %v670 = vxor.u32 %v629, 2147483648
      %v671 = vxor.u32 %v630, 2147483648
      %v672 = vxor.u32 %v631, 2147483648
      %v673 = vxor.u32 %v632, 2147483648
      %v674 = vxor.u32 %v633, 2147483648
      %v675 = vxor.u32 %v634, 2147483648
      %v676 = vxor.u32 %v635, 2147483648
      %v677 = vxor.u32 %v636, 2147483648
      %v678 = vxor.u32 %v637, 2147483648
      %v679 = vxor.u32 %v638, 2147483648
      %v680 = vxor.u32 %v639, 2147483648
      %v681 = vxor.u32 %v640, 2147483648
      %v682 = vxor.u32 %v641, 2147483648
      %v683 = vxor.u32 %v642, 2147483648
      %v684 = vxor.u32 %v643, 2147483648
      %v685 = vxor.u32 %v644, 2147483648
      %v686 = vxor.u32 %v645, 2147483648
      %v687 = vxor.u32 %v646, 2147483648
      %v688 = vxor.u32 %v647, 2147483648
      %v689 = vxor.u32 %v648, 2147483648
      %v690 = vxor.u32 %v649, 2147483648
      %v691 = vxor.u32 %v650, 2147483648
      %v692 = vxor.u32 %v651, 2147483648
      %v693 = vmul.f32 %v652, 1.442695
      %v694 = vpow.pop %v693
      %v695 = vmul.f32 %v653, 1.442695
      %v696 = vpow.pop %v695
      %v697 = vmul.f32 %v654, 1.442695
      %v698 = vpow.pop %v697
      %v699 = vmul.f32 %v655, 1.442695
      %v700 = vpow.pop %v699
      %v701 = vmul.f32 %v656, 1.442695
      %v702 = vpow.pop %v701
      %v703 = vmul.f32 %v657, 1.442695
      %v704 = vpow.pop %v703
      %v705 = vmul.f32 %v658, 1.442695
      %v706 = vpow.pop %v705
      %v707 = vmul.f32 %v659, 1.442695
      %v708 = vpow.pop %v707
      %v709 = vmul.f32 %v660, 1.442695
      %v710 = vpow.pop %v709
      %v711 = vmul.f32 %v661, 1.442695
      %v712 = vpow.pop %v711
      %v713 = vmul.f32 %v662, 1.442695
      %v714 = vpow.pop %v713
      %v715 = vmul.f32 %v663, 1.442695
      %v716 = vpow.pop %v715
      %v717 = vmul.f32 %v664, 1.442695
      %v718 = vpow.pop %v717
      %v719 = vmul.f32 %v665, 1.442695
      %v720 = vpow.pop %v719
      %v721 = vmul.f32 %v666, 1.442695
      %v722 = vpow.pop %v721
      %v723 = vmul.f32 %v667, 1.442695
      %v724 = vpow.pop %v723
      %v725 = vmul.f32 %v668, 1.442695
      %v726 = vpow.pop %v725
      %v727 = vmul.f32 %v669, 1.442695
      %v728 = vpow.pop %v727
      %v729 = vmul.f32 %v670, 1.442695
      %v730 = vpow.pop %v729
      %v731 = vmul.f32 %v671, 1.442695
      %v732 = vpow.pop %v731
      %v733 = vmul.f32 %v672, 1.442695
      %v734 = vpow.pop %v733
      %v735 = vmul.f32 %v673, 1.442695
      %v736 = vpow.pop %v735
      %v737 = vmul.f32 %v674, 1.442695
      %v738 = vpow.pop %v737
      %v739 = vmul.f32 %v675, 1.442695
      %v740 = vpow.pop %v739
      %v741 = vmul.f32 %v676, 1.442695
      %v742 = vpow.pop %v741
      %v743 = vmul.f32 %v677, 1.442695
      %v744 = vpow.pop %v743
      %v745 = vmul.f32 %v678, 1.442695
      %v746 = vpow.pop %v745
      %v747 = vmul.f32 %v679, 1.442695
      %v748 = vpow.pop %v747
      %v749 = vmul.f32 %v680, 1.442695
      %v750 = vpow.pop %v749
      %v751 = vmul.f32 %v681, 1.442695
      %v752 = vpow.pop %v751
      %v753 = vmul.f32 %v682, 1.442695
      %v754 = vpow.pop %v753
      %v755 = vmul.f32 %v683, 1.442695
      %v756 = vpow.pop %v755
      %v757 = vmul.f32 %v684, 1.442695
      %v758 = vpow.pop %v757
      %v759 = vmul.f32 %v685, 1.442695
      %v760 = vpow.pop %v759
      %v761 = vmul.f32 %v686, 1.442695
      %v762 = vpow.pop %v761
      %v763 = vmul.f32 %v687, 1.442695
      %v764 = vpow.pop %v763
      %v765 = vmul.f32 %v688, 1.442695
      %v766 = vpow.pop %v765
      %v767 = vmul.f32 %v689, 1.442695
      %v768 = vpow.pop %v767
      %v769 = vmul.f32 %v690, 1.442695
      %v770 = vpow.pop %v769
      %v771 = vmul.f32 %v691, 1.442695
      %v772 = vpow.pop %v771
      %v773 = vmul.f32 %v692, 1.442695
      %v774 = vpow.pop %v773
      %v775 = vadd.f32 %v694, 1.0
      %v776 = vadd.f32 %v696, 1.0
      %v777 = vadd.f32 %v698, 1.0
      %v778 = vadd.f32 %v700, 1.0
      %v779 = vadd.f32 %v702, 1.0
      %v780 = vadd.f32 %v704, 1.0
      %v781 = vadd.f32 %v706, 1.0
      %v782 = vadd.f32 %v708, 1.0
      %v783 = vadd.f32 %v710, 1.0
      %v784 = vadd.f32 %v712, 1.0
      %v785 = vadd.f32 %v714, 1.0
      %v786 = vadd.f32 %v716, 1.0
      %v787 = vadd.f32 %v718, 1.0
      %v788 = vadd.f32 %v720, 1.0
      %v789 = vadd.f32 %v722, 1.0
      %v790 = vadd.f32 %v724, 1.0
      %v791 = vadd.f32 %v726, 1.0
      %v792 = vadd.f32 %v728, 1.0
      %v793 = vadd.f32 %v730, 1.0
      %v794 = vadd.f32 %v732, 1.0
      %v795 = vadd.f32 %v734, 1.0
      %v796 = vadd.f32 %v736, 1.0
      %v797 = vadd.f32 %v738, 1.0
      %v798 = vadd.f32 %v740, 1.0
      %v799 = vadd.f32 %v742, 1.0
      %v800 = vadd.f32 %v744, 1.0
      %v801 = vadd.f32 %v746, 1.0
      %v802 = vadd.f32 %v748, 1.0
      %v803 = vadd.f32 %v750, 1.0
      %v804 = vadd.f32 %v752, 1.0
      %v805 = vadd.f32 %v754, 1.0
      %v806 = vadd.f32 %v756, 1.0
      %v807 = vadd.f32 %v758, 1.0
      %v808 = vadd.f32 %v760, 1.0
      %v809 = vadd.f32 %v762, 1.0
      %v810 = vadd.f32 %v764, 1.0
      %v811 = vadd.f32 %v766, 1.0
      %v812 = vadd.f32 %v768, 1.0
      %v813 = vadd.f32 %v770, 1.0
      %v814 = vadd.f32 %v772, 1.0
      %v815 = vadd.f32 %v774, 1.0
      %v816 = vrcp.pop %v775
      %v817 = vmul.f32 1.0, %v816
      %v818 = vrcp.pop %v776
      %v819 = vmul.f32 1.0, %v818
      %v820 = vrcp.pop %v777
      %v821 = vmul.f32 1.0, %v820
      %v822 = vrcp.pop %v778
      %v823 = vmul.f32 1.0, %v822
      %v824 = vrcp.pop %v779
      %v825 = vmul.f32 1.0, %v824
      %v826 = vrcp.pop %v780
      %v827 = vmul.f32 1.0, %v826
      %v828 = vrcp.pop %v781
      %v829 = vmul.f32 1.0, %v828
      %v830 = vrcp.pop %v782
      %v831 = vmul.f32 1.0, %v830
      %v832 = vrcp.pop %v783
      %v833 = vmul.f32 1.0, %v832
      %v834 = vrcp.pop %v784
      %v835 = vmul.f32 1.0, %v834
      %v836 = vrcp.pop %v785
      %v837 = vmul.f32 1.0, %v836
      %v838 = vrcp.pop %v786
      %v839 = vmul.f32 1.0, %v838
      %v840 = vrcp.pop %v787
      %v841 = vmul.f32 1.0, %v840
      %v842 = vrcp.pop %v788
      %v843 = vmul.f32 1.0, %v842
      %v844 = vrcp.pop %v789
      %v845 = vmul.f32 1.0, %v844
      %v846 = vrcp.pop %v790
      %v847 = vmul.f32 1.0, %v846
      %v848 = vrcp.pop %v791
      %v849 = vmul.f32 1.0, %v848
      %v850 = vrcp.pop %v792
      %v851 = vmul.f32 1.0, %v850
      %v852 = vrcp.pop %v793
      %v853 = vmul.f32 1.0, %v852
      %v854 = vrcp.pop %v794
      %v855 = vmul.f32 1.0, %v854
      %v856 = vrcp.pop %v795
      %v857 = vmul.f32 1.0, %v856
      %v858 = vrcp.pop %v796
      %v859 = vmul.f32 1.0, %v858
      %v860 = vrcp.pop %v797
      %v861 = vmul.f32 1.0, %v860
      %v862 = vrcp.pop %v798
      %v863 = vmul.f32 1.0, %v862
      %v864 = vrcp.pop %v799
      %v865 = vmul.f32 1.0, %v864
      %v866 = vrcp.pop %v800
      %v867 = vmul.f32 1.0, %v866
      %v868 = vrcp.pop %v801
      %v869 = vmul.f32 1.0, %v868
      %v870 = vrcp.pop %v802
      %v871 = vmul.f32 1.0, %v870
      %v872 = vrcp.pop %v803
      %v873 = vmul.f32 1.0, %v872
      %v874 = vrcp.pop %v804
      %v875 = vmul.f32 1.0, %v874
      %v876 = vrcp.pop %v805
      %v877 = vmul.f32 1.0, %v876
      %v878 = vrcp.pop %v806
      %v879 = vmul.f32 1.0, %v878
      %v880 = vrcp.pop %v807
      %v881 = vmul.f32 1.0, %v880
      %v882 = vrcp.pop %v808
      %v883 = vmul.f32 1.0, %v882
      %v884 = vrcp.pop %v809
      %v885 = vmul.f32 1.0, %v884
      %v886 = vrcp.pop %v810
      %v887 = vmul.f32 1.0, %v886
      %v888 = vrcp.pop %v811
      %v889 = vmul.f32 1.0, %v888
      %v890 = vrcp.pop %v812
      %v891 = vmul.f32 1.0, %v890
      %v892 = vrcp.pop %v813
      %v893 = vmul.f32 1.0, %v892
      %v894 = vrcp.pop %v814
      %v895 = vmul.f32 1.0, %v894
      %v896 = vrcp.pop %v815
      %v897 = vmul.f32 1.0, %v896
      %v898 = vmul.f32 %v611, %v817
      %v899 = vmul.f32 %v612, %v819
      %v900 = vmul.f32 %v613, %v821
      %v901 = vmul.f32 %v614, %v823
      %v902 = vmul.f32 %v615, %v825
      %v903 = vmul.f32 %v616, %v827
      %v904 = vmul.f32 %v617, %v829
      %v905 = vmul.f32 %v618, %v831
      %v906 = vmul.f32 %v619, %v833
      %v907 = vmul.f32 %v620, %v835
      %v908 = vmul.f32 %v621, %v837
      %v909 = vmul.f32 %v622, %v839
      %v910 = vmul.f32 %v623, %v841
      %v911 = vmul.f32 %v624, %v843
      %v912 = vmul.f32 %v625, %v845
      %v913 = vmul.f32 %v626, %v847
      %v914 = vmul.f32 %v627, %v849
      %v915 = vmul.f32 %v628, %v851
      %v916 = vmul.f32 %v629, %v853
      %v917 = vmul.f32 %v630, %v855
      %v918 = vmul.f32 %v631, %v857
      %v919 = vmul.f32 %v632, %v859
      %v920 = vmul.f32 %v633, %v861
      %v921 = vmul.f32 %v634, %v863
      %v922 = vmul.f32 %v635, %v865
      %v923 = vmul.f32 %v636, %v867
      %v924 = vmul.f32 %v637, %v869
      %v925 = vmul.f32 %v638, %v871
      %v926 = vmul.f32 %v639, %v873
      %v927 = vmul.f32 %v640, %v875
      %v928 = vmul.f32 %v641, %v877
      %v929 = vmul.f32 %v642, %v879
      %v930 = vmul.f32 %v643, %v881
      %v931 = vmul.f32 %v644, %v883
      %v932 = vmul.f32 %v645, %v885
      %v933 = vmul.f32 %v646, %v887
      %v934 = vmul.f32 %v647, %v889
      %v935 = vmul.f32 %v648, %v891
      %v936 = vmul.f32 %v649, %v893
      %v937 = vmul.f32 %v650, %v895
      %v938 = vmul.f32 %v651, %v897
      %939 = vst.msk [vmem:[#allocation2] sm:$0xff] %vm363, %v898
      %940 = vst.msk [vmem:[#allocation2 + $0x8] sm:$0xff] %vm363, %v899
      %941 = vst.msk [vmem:[#allocation2 + $0x10] sm:$0xff] %vm363, %v900
      %942 = vst.msk [vmem:[#allocation2 + $0x18] sm:$0xff] %vm363, %v901
      %943 = vst.msk [vmem:[#allocation2 + $0x20] sm:$0xff] %vm363, %v902
      %944 = vst.msk [vmem:[#allocation2 + $0x28] sm:$0xff] %vm363, %v903
      %945 = vst.msk [vmem:[#allocation2 + $0x30] sm:$0xff] %vm363, %v904
      %946 = vst.msk [vmem:[#allocation2 + $0x38] sm:$0xff] %vm363, %v905
      %947 = vst.msk [vmem:[#allocation2 + $0x40] sm:$0xff] %vm363, %v906
      %948 = vst.msk [vmem:[#allocation2 + $0x48] sm:$0xff] %vm363, %v907
      %949 = vst.msk [vmem:[#allocation2 + $0x50] sm:$0xff] %vm363, %v908
      %950 = vst.msk [vmem:[#allocation2 + $0x58] sm:$0xff] %vm363, %v909
      %951 = vst.msk [vmem:[#allocation2 + $0x60] sm:$0xff] %vm363, %v910
      %952 = vst.msk [vmem:[#allocation2 + $0x68] sm:$0xff] %vm363, %v911
      %953 = vst.msk [vmem:[#allocation2 + $0x70] sm:$0xff] %vm363, %v912
      %954 = vst.msk [vmem:[#allocation2 + $0x78] sm:$0xff] %vm363, %v913
      %955 = vst.msk [vmem:[#allocation2 + $0x80] sm:$0xff] %vm363, %v914
      %956 = vst.msk [vmem:[#allocation2 + $0x88] sm:$0xff] %vm363, %v915
      %957 = vst.msk [vmem:[#allocation2 + $0x90] sm:$0xff] %vm363, %v916
      %958 = vst.msk [vmem:[#allocation2 + $0x98] sm:$0xff] %vm363, %v917
      %959 = vst.msk [vmem:[#allocation2 + $0xa0] sm:$0xff] %vm363, %v918
      %960 = vst.msk [vmem:[#allocation2 + $0xa8] sm:$0xff] %vm363, %v919
      %961 = vst.msk [vmem:[#allocation2 + $0xb0] sm:$0xff] %vm363, %v920
      %962 = vst.msk [vmem:[#allocation2 + $0xb8] sm:$0xff] %vm363, %v921
      %963 = vst.msk [vmem:[#allocation2 + $0xc0] sm:$0xff] %vm363, %v922
      %964 = vst.msk [vmem:[#allocation2 + $0xc8] sm:$0xff] %vm363, %v923
      %965 = vst.msk [vmem:[#allocation2 + $0xd0] sm:$0xff] %vm363, %v924
      %966 = vst.msk [vmem:[#allocation2 + $0xd8] sm:$0xff] %vm363, %v925
      %967 = vst.msk [vmem:[#allocation2 + $0xe0] sm:$0xff] %vm363, %v926
      %968 = vst.msk [vmem:[#allocation2 + $0xe8] sm:$0xff] %vm363, %v927
      %969 = vst.msk [vmem:[#allocation2 + $0xf0] sm:$0xff] %vm363, %v928
      %970 = vst.msk [vmem:[#allocation2 + $0xf8] sm:$0xff] %vm363, %v929
      %971 = vst.msk [vmem:[#allocation2 + $0x100] sm:$0xff] %vm363, %v930
      %972 = vst.msk [vmem:[#allocation2 + $0x108] sm:$0xff] %vm363, %v931
      %973 = vst.msk [vmem:[#allocation2 + $0x110] sm:$0xff] %vm363, %v932
      %974 = vst.msk [vmem:[#allocation2 + $0x118] sm:$0xff] %vm363, %v933
      %975 = vst.msk [vmem:[#allocation2 + $0x120] sm:$0xff] %vm363, %v934
      %976 = vst.msk [vmem:[#allocation2 + $0x128] sm:$0xff] %vm363, %v935
      %977 = vst.msk [vmem:[#allocation2 + $0x130] sm:$0xff] %vm363, %v936
      %978 = vst.msk [vmem:[#allocation2 + $0x138] sm:$0xff] %vm363, %v937
      %979 = vst.msk [vmem:[#allocation2 + $0x140] sm:$0xff] %vm363, %v938
      %vm980 = vcmask 64515
      %981 = vst.msk [vmem:[%s238 - $0x3] sm:$0xf8] %vm980, %v613
      %982 = vst.msk [vmem:[%s238 + $0x5] sm:$0xff] %vm363, %v614
      %983 = vst.msk [vmem:[%s238 + $0xd] sm:$0xff] %vm363, %v615
      %984 = vst.msk [vmem:[%s238 + $0x15] sm:$0xff] %vm363, %v616
      %985 = vst.msk [vmem:[%s238 + $0x1d] sm:$0xff] %vm363, %v617
      %986 = vst.msk [vmem:[%s238 + $0x25] sm:$0xff] %vm363, %v618
      %987 = vst.msk [vmem:[%s238 + $0x2d] sm:$0xff] %vm363, %v619
      %988 = vst.msk [vmem:[%s238 + $0x35] sm:$0xff] %vm363, %v620
      %989 = vst.msk [vmem:[%s238 + $0x3d] sm:$0xff] %vm363, %v621
      %990 = vst.msk [vmem:[%s238 + $0x45] sm:$0xff] %vm363, %v622
      %991 = vst.msk [vmem:[%s238 + $0x4d] sm:$0xff] %vm363, %v623
      %992 = vst.msk [vmem:[%s238 + $0x55] sm:$0xff] %vm363, %v624
      %993 = vst.msk [vmem:[%s238 + $0x5d] sm:$0xff] %vm363, %v625
      %994 = vst.msk [vmem:[%s238 + $0x65] sm:$0xff] %vm363, %v626
      %995 = vst.msk [vmem:[%s238 + $0x6d] sm:$0xff] %vm363, %v627
      %996 = vst.msk [vmem:[%s238 + $0x75] sm:$0xff] %vm363, %v628
      %997 = vst.msk [vmem:[%s238 + $0x7d] sm:$0xff] %vm363, %v629
      %998 = vst.msk [vmem:[%s238 + $0x85] sm:$0xff] %vm363, %v630
      %999 = vst.msk [vmem:[%s238 + $0x8d] sm:$0xff] %vm363, %v631
      %1000 = vst.msk [vmem:[%s238 + $0x95] sm:$0xff] %vm363, %v632
      %1001 = vst.msk [vmem:[%s238 + $0x9d] sm:$0xff] %vm363, %v633
      %1002 = vst.msk [vmem:[%s238 + $0xa5] sm:$0xff] %vm363, %v634
      %1003 = vst.msk [vmem:[%s238 + $0xad] sm:$0xff] %vm363, %v635
      %1004 = vst.msk [vmem:[%s238 + $0xb5] sm:$0xff] %vm363, %v636
      %1005 = vst.msk [vmem:[%s238 + $0xbd] sm:$0xff] %vm363, %v637
      %1006 = vst.msk [vmem:[%s238 + $0xc5] sm:$0xff] %vm363, %v638
      %1007 = vst.msk [vmem:[%s238 + $0xcd] sm:$0xff] %vm363, %v639
      %1008 = vst.msk [vmem:[%s238 + $0xd5] sm:$0xff] %vm363, %v640
      %1009 = vst.msk [vmem:[%s238 + $0xdd] sm:$0xff] %vm363, %v641
      %1010 = vst.msk [vmem:[%s238 + $0xe5] sm:$0xff] %vm363, %v642
      %1011 = vst.msk [vmem:[%s238 + $0xed] sm:$0xff] %vm363, %v643
      %1012 = vst.msk [vmem:[%s238 + $0xf5] sm:$0xff] %vm363, %v644
      %1013 = vst.msk [vmem:[%s238 + $0xfd] sm:$0xff] %vm363, %v645
      %1014 = vst.msk [vmem:[%s238 + $0x105] sm:$0xff] %vm363, %v646
      %1015 = vst.msk [vmem:[%s238 + $0x10d] sm:$0xff] %vm363, %v647
      %1016 = vst.msk [vmem:[%s238 + $0x115] sm:$0xff] %vm363, %v648
      %vm1017 = vcmask 59392
      %1018 = vst.msk [vmem:[%s238 + $0x11d] sm:$0x7] %vm1017, %v649
      %v1019 = vld [vmem:[#allocation2] sm:$0xff]
      %v1020 = vld [vmem:[#allocation2 + $0x8] sm:$0xff]
      %v1021 = vld [vmem:[#allocation2 + $0x10] sm:$0xff]
      %v1022 = vld [vmem:[#allocation2 + $0x18] sm:$0xff]
      %v1023 = vld [vmem:[#allocation2 + $0x20] sm:$0xff]
      %v1024 = vld [vmem:[#allocation2 + $0x28] sm:$0xff]
      %v1025 = vld [vmem:[#allocation2 + $0x30] sm:$0xff]
      %v1026 = vld [vmem:[#allocation2 + $0x38] sm:$0xff]
      %v1027 = vld [vmem:[#allocation2 + $0x40] sm:$0xff]
      %v1028 = vld [vmem:[#allocation2 + $0x48] sm:$0xff]
      %v1029 = vld [vmem:[#allocation2 + $0x50] sm:$0xff]
      %v1030 = vld [vmem:[#allocation2 + $0x58] sm:$0xff]
      %v1031 = vld [vmem:[#allocation2 + $0x60] sm:$0xff]
      %v1032 = vld [vmem:[#allocation2 + $0x68] sm:$0xff]
      %v1033 = vld [vmem:[#allocation2 + $0x70] sm:$0xff]
      %v1034 = vld [vmem:[#allocation2 + $0x78] sm:$0xff]
      %v1035 = vld [vmem:[#allocation2 + $0x80] sm:$0xff]
      %v1036 = vld [vmem:[#allocation2 + $0x88] sm:$0xff]
      %v1037 = vld [vmem:[#allocation2 + $0x90] sm:$0xff]
      %v1038 = vld [vmem:[#allocation2 + $0x98] sm:$0xff]
      %v1039 = vld [vmem:[#allocation2 + $0xa0] sm:$0xff]
      %v1040 = vld [vmem:[#allocation2 + $0xa8] sm:$0xff]
      %v1041 = vld [vmem:[#allocation2 + $0xb0] sm:$0xff]
      %v1042 = vld [vmem:[#allocation2 + $0xb8] sm:$0xff]
      %v1043 = vld [vmem:[#allocation2 + $0xc0] sm:$0xff]
      %v1044 = vld [vmem:[#allocation2 + $0xc8] sm:$0xff]
      %v1045 = vld [vmem:[#allocation2 + $0xd0] sm:$0xff]
      %v1046 = vld [vmem:[#allocation2 + $0xd8] sm:$0xff]
      %v1047 = vld [vmem:[#allocation2 + $0xe0] sm:$0xff]
      %v1048 = vld [vmem:[#allocation2 + $0xe8] sm:$0xff]
      %v1049 = vld [vmem:[#allocation2 + $0xf0] sm:$0xff]
      %v1050 = vld [vmem:[#allocation2 + $0xf8] sm:$0xff]
      %v1051 = vld [vmem:[#allocation2 + $0x100] sm:$0xff]
      %v1052 = vld [vmem:[#allocation2 + $0x108] sm:$0xff]
      %v1053 = vld [vmem:[#allocation2 + $0x110] sm:$0xff]
      %v1054 = vld [vmem:[#allocation2 + $0x118] sm:$0xff]
      %v1055 = vpack.c.bf16 %v1020, %v1019
      %v1056 = vpack.c.bf16 %v1022, %v1021
      %v1057 = vpack.c.bf16 %v1024, %v1023
      %v1058 = vpack.c.bf16 %v1026, %v1025
      %v1059 = vpack.c.bf16 %v1028, %v1027
      %v1060 = vpack.c.bf16 %v1030, %v1029
      %v1061 = vpack.c.bf16 %v1032, %v1031
      %v1062 = vpack.c.bf16 %v1034, %v1033
      %v1063 = vpack.c.bf16 %v1036, %v1035
      %v1064 = vpack.c.bf16 %v1038, %v1037
      %v1065 = vpack.c.bf16 %v1040, %v1039
      %v1066 = vpack.c.bf16 %v1042, %v1041
      %v1067 = vpack.c.bf16 %v1044, %v1043
      %v1068 = vpack.c.bf16 %v1046, %v1045
      %v1069 = vpack.c.bf16 %v1048, %v1047
      %v1070 = vpack.c.bf16 %v1050, %v1049
      %v1071 = vpack.c.bf16 %v1052, %v1051
      %v1072 = vpack.c.bf16 %v1054, %v1053
      %v1073 = vld [vmem:[%s2] sm:$0xf]
      %v1074 = vld [vmem:[#allocation2 + $0x1] sm:$0xff]
      %v1075 = vld [vmem:[#allocation2 + $0x9] sm:$0xff]
      %v1076 = vld [vmem:[#allocation2 + $0x11] sm:$0xff]
      %v1077 = vld [vmem:[#allocation2 + $0x19] sm:$0xff]
      %v1078 = vld [vmem:[#allocation2 + $0x21] sm:$0xff]
      %v1079 = vld [vmem:[#allocation2 + $0x29] sm:$0xff]
      %v1080 = vld [vmem:[#allocation2 + $0x31] sm:$0xff]
      %v1081 = vld [vmem:[#allocation2 + $0x39] sm:$0xff]
      %v1082 = vld [vmem:[#allocation2 + $0x41] sm:$0xff]
      %v1083 = vld [vmem:[#allocation2 + $0x49] sm:$0xff]
      %v1084 = vld [vmem:[#allocation2 + $0x51] sm:$0xff]
      %v1085 = vld [vmem:[#allocation2 + $0x59] sm:$0xff]
      %v1086 = vld [vmem:[#allocation2 + $0x61] sm:$0xff]
      %v1087 = vld [vmem:[#allocation2 + $0x69] sm:$0xff]
      %v1088 = vld [vmem:[#allocation2 + $0x71] sm:$0xff]
      %v1089 = vld [vmem:[#allocation2 + $0x79] sm:$0xff]
      %v1090 = vld [vmem:[#allocation2 + $0x81] sm:$0xff]
      %v1091 = vld [vmem:[#allocation2 + $0x89] sm:$0xff]
      %v1092 = vld [vmem:[#allocation2 + $0x91] sm:$0xff]
      %v1093 = vld [vmem:[#allocation2 + $0x99] sm:$0xff]
      %v1094 = vld [vmem:[#allocation2 + $0xa1] sm:$0xff]
      %v1095 = vld [vmem:[#allocation2 + $0xa9] sm:$0xff]
      %v1096 = vld [vmem:[#allocation2 + $0xb1] sm:$0xff]
      %v1097 = vld [vmem:[#allocation2 + $0xb9] sm:$0xff]
      %v1098 = vld [vmem:[#allocation2 + $0xc1] sm:$0xff]
      %v1099 = vld [vmem:[#allocation2 + $0xc9] sm:$0xff]
      %v1100 = vld [vmem:[#allocation2 + $0xd1] sm:$0xff]
      %v1101 = vld [vmem:[#allocation2 + $0xd9] sm:$0xff]
      %v1102 = vld [vmem:[#allocation2 + $0xe1] sm:$0xff]
      %v1103 = vld [vmem:[#allocation2 + $0xe9] sm:$0xff]
      %v1104 = vld [vmem:[#allocation2 + $0xf1] sm:$0xff]
      %v1105 = vld [vmem:[#allocation2 + $0xf9] sm:$0xff]
      %v1106 = vld [vmem:[#allocation2 + $0x101] sm:$0xff]
      %v1107 = vld [vmem:[#allocation2 + $0x109] sm:$0xff]
      %v1108 = vld [vmem:[#allocation2 + $0x111] sm:$0xff]
      %v1109 = vld [vmem:[#allocation2 + $0x119] sm:$0xff]
      %v1110 = vpack.c.bf16 %v1075, %v1074
      %v1111 = vpack.c.bf16 %v1077, %v1076
      %v1112 = vpack.c.bf16 %v1079, %v1078
      %v1113 = vpack.c.bf16 %v1081, %v1080
      %v1114 = vpack.c.bf16 %v1083, %v1082
      %v1115 = vpack.c.bf16 %v1085, %v1084
      %v1116 = vpack.c.bf16 %v1087, %v1086
      %v1117 = vpack.c.bf16 %v1089, %v1088
      %v1118 = vpack.c.bf16 %v1091, %v1090
      %v1119 = vpack.c.bf16 %v1093, %v1092
      %v1120 = vpack.c.bf16 %v1095, %v1094
      %v1121 = vpack.c.bf16 %v1097, %v1096
      %v1122 = vpack.c.bf16 %v1099, %v1098
      %v1123 = vpack.c.bf16 %v1101, %v1100
      %v1124 = vpack.c.bf16 %v1103, %v1102
      %v1125 = vpack.c.bf16 %v1105, %v1104
      %v1126 = vpack.c.bf16 %v1107, %v1106
      %v1127 = vpack.c.bf16 %v1109, %v1108
      %s1128 = scalar_lea.vmem %s2, 4
      %v1129 = vld [vmem:[%s1128] sm:$0xf]
      %v1131 = vsel %vm363, %v1110, 0
      %v1134 = vsel %vm363, %v1111, 0
      %v1137 = vsel %vm363, %v1112, 0
      %v1140 = vsel %vm363, %v1113, 0
      %v1143 = vsel %vm363, %v1114, 0
      %v1146 = vsel %vm363, %v1115, 0
      %v1149 = vsel %vm363, %v1116, 0
      %v1152 = vsel %vm363, %v1117, 0
      %v1155 = vsel %vm363, %v1118, 0
      %v1158 = vsel %vm363, %v1119, 0
      %v1161 = vsel %vm363, %v1120, 0
      %v1164 = vsel %vm363, %v1121, 0
      %v1167 = vsel %vm363, %v1122, 0
      %v1170 = vsel %vm363, %v1123, 0
      %v1173 = vsel %vm363, %v1124, 0
      %v1176 = vsel %vm363, %v1125, 0
      %v1179 = vsel %vm363, %v1126, 0
      %v1182 = vsel %vm363, %v1127, 0
      %vm1184 = vcmask 1043456
      %v1186 = vsel %vm1184, %v1129, 0
      %1188 = vmatprep.subr.bf16.mxu0 0
      %1189 = vmatpush1.bf16.msra.mxu0 0
      %1190 = vmatprep.subr.bf16.mxu0 0
      %1191 = vmatpush1.bf16.msra.mxu0 0
      %1192 = vmatprep.subr.bf16.mxu0 0
      %1193 = vmatpush1.bf16.msra.mxu0 0
      %1194 = vmatprep.subr.bf16.mxu0 0
      %1195 = vmatpush1.bf16.msra.mxu0 0
      %1196 = vmatprep.subr.bf16.mxu0 0
      %1197 = vmatpush1.bf16.msra.mxu0 0
      %1198 = vmatprep.subr.bf16.mxu0 0
      %1199 = vmatpush1.bf16.msra.mxu0 0
      %1200 = vmatprep.subr.bf16.mxu0 0
      %1201 = vmatpush1.bf16.msra.mxu0 0
      %1202 = vmatprep.subr.bf16.mxu0 0
      %1203 = vmatpush1.bf16.msra.mxu0 %v1186
      %1204 = vmatprep.subr.bf16.mxu0 0
      %1205 = vmatpush2.bf16.msra.mxu0 0
      %1206 = vmatprep.subr.bf16.mxu0 0
      %1207 = vmatpush2.bf16.msra.mxu0 0
      %1208 = vmatprep.subr.bf16.mxu0 0
      %1209 = vmatpush2.bf16.msra.mxu0 0
      %1210 = vmatprep.subr.bf16.mxu0 0
      %1211 = vmatpush2.bf16.msra.mxu0 0
      %1212 = vmatprep.subr.bf16.mxu0 0
      %1213 = vmatpush2.bf16.msra.mxu0 0
      %1214 = vmatprep.subr.bf16.mxu0 0
      %1215 = vmatpush2.bf16.msra.mxu0 0
      %1216 = vmatprep.subr.bf16.mxu0 0
      %1217 = vmatpush2.bf16.msra.mxu0 0
      %1218 = vmatprep.subr.bf16.mxu0 0
      %1219 = vmatpush2.bf16.msra.mxu0 0
      %1220 = vmatprep.mubr.bf16.mxu0 0
      %1221 = vmatmul.mubr.bf16.gmra.mxu0 %v1131
      %v1222 = vpop.f32.mrf.mxu0
      %v1223 = vadd.f32 0.0, %v1222
      %v1224 = vpop.f32.mrf.mxu0
      %v1225 = vpop.f32.mrf.mxu0
      %v1226 = vadd.f32 0.0, %v1225
      %v1227 = vpop.f32.mrf.mxu0
      %1228 = vmatprep.mubr.bf16.mxu0 0
      %1229 = vmatmul.mubr.bf16.gmra.mxu0 %v1134
      %v1230 = vpop.f32.mrf.mxu0
      %v1231 = vadd.f32 0.0, %v1230
      %v1232 = vpop.f32.mrf.mxu0
      %v1233 = vpop.f32.mrf.mxu0
      %v1234 = vadd.f32 0.0, %v1233
      %v1235 = vpop.f32.mrf.mxu0
      %1236 = vmatprep.mubr.bf16.mxu0 0
      %1237 = vmatmul.mubr.bf16.gmra.mxu0 %v1137
      %v1238 = vpop.f32.mrf.mxu0
      %v1239 = vadd.f32 0.0, %v1238
      %v1240 = vpop.f32.mrf.mxu0
      %v1241 = vpop.f32.mrf.mxu0
      %v1242 = vadd.f32 0.0, %v1241
      %v1243 = vpop.f32.mrf.mxu0
      %1244 = vmatprep.mubr.bf16.mxu0 0
      %1245 = vmatmul.mubr.bf16.gmra.mxu0 %v1140
      %v1246 = vpop.f32.mrf.mxu0
      %v1247 = vadd.f32 0.0, %v1246
      %v1248 = vpop.f32.mrf.mxu0
      %v1249 = vpop.f32.mrf.mxu0
      %v1250 = vadd.f32 0.0, %v1249
      %v1251 = vpop.f32.mrf.mxu0
      %1252 = vmatprep.mubr.bf16.mxu0 0
      %1253 = vmatmul.mubr.bf16.gmra.mxu0 %v1143
      %v1254 = vpop.f32.mrf.mxu0
      %v1255 = vadd.f32 0.0, %v1254
      %v1256 = vpop.f32.mrf.mxu0
      %v1257 = vpop.f32.mrf.mxu0
      %v1258 = vadd.f32 0.0, %v1257
      %v1259 = vpop.f32.mrf.mxu0
      %1260 = vmatprep.mubr.bf16.mxu0 0
      %1261 = vmatmul.mubr.bf16.gmra.mxu0 %v1146
      %v1262 = vpop.f32.mrf.mxu0
      %v1263 = vadd.f32 0.0, %v1262
      %v1264 = vpop.f32.mrf.mxu0
      %v1265 = vpop.f32.mrf.mxu0
      %v1266 = vadd.f32 0.0, %v1265
      %v1267 = vpop.f32.mrf.mxu0
      %1268 = vmatprep.mubr.bf16.mxu0 0
      %1269 = vmatmul.mubr.bf16.gmra.mxu0 %v1149
      %v1270 = vpop.f32.mrf.mxu0
      %v1271 = vadd.f32 0.0, %v1270
      %v1272 = vpop.f32.mrf.mxu0
      %v1273 = vpop.f32.mrf.mxu0
      %v1274 = vadd.f32 0.0, %v1273
      %v1275 = vpop.f32.mrf.mxu0
      %1276 = vmatprep.mubr.bf16.mxu0 0
      %1277 = vmatmul.mubr.bf16.gmra.mxu0 %v1152
      %v1278 = vpop.f32.mrf.mxu0
      %v1279 = vadd.f32 0.0, %v1278
      %v1280 = vpop.f32.mrf.mxu0
      %v1281 = vpop.f32.mrf.mxu0
      %v1282 = vadd.f32 0.0, %v1281
      %v1283 = vpop.f32.mrf.mxu0
      %1284 = vmatprep.mubr.bf16.mxu0 0
      %1285 = vmatmul.mubr.bf16.gmra.mxu0 %v1155
      %v1286 = vpop.f32.mrf.mxu0
      %v1287 = vadd.f32 0.0, %v1286
      %v1288 = vpop.f32.mrf.mxu0
      %v1289 = vpop.f32.mrf.mxu0
      %v1290 = vadd.f32 0.0, %v1289
      %v1291 = vpop.f32.mrf.mxu0
      %1292 = vmatprep.mubr.bf16.mxu0 0
      %1293 = vmatmul.mubr.bf16.gmra.mxu0 %v1158
      %v1294 = vpop.f32.mrf.mxu0
      %v1295 = vadd.f32 0.0, %v1294
      %v1296 = vpop.f32.mrf.mxu0
      %v1297 = vpop.f32.mrf.mxu0
      %v1298 = vadd.f32 0.0, %v1297
      %v1299 = vpop.f32.mrf.mxu0
      %1300 = vmatprep.mubr.bf16.mxu0 0
      %1301 = vmatmul.mubr.bf16.gmra.mxu0 %v1161
      %v1302 = vpop.f32.mrf.mxu0
      %v1303 = vadd.f32 0.0, %v1302
      %v1304 = vpop.f32.mrf.mxu0
      %v1305 = vpop.f32.mrf.mxu0
      %v1306 = vadd.f32 0.0, %v1305
      %v1307 = vpop.f32.mrf.mxu0
      %1308 = vmatprep.mubr.bf16.mxu0 0
      %1309 = vmatmul.mubr.bf16.gmra.mxu0 %v1164
      %v1310 = vpop.f32.mrf.mxu0
      %v1311 = vadd.f32 0.0, %v1310
      %v1312 = vpop.f32.mrf.mxu0
      %v1313 = vpop.f32.mrf.mxu0
      %v1314 = vadd.f32 0.0, %v1313
      %v1315 = vpop.f32.mrf.mxu0
      %1316 = vmatprep.mubr.bf16.mxu0 0
      %1317 = vmatmul.mubr.bf16.gmra.mxu0 %v1167
      %v1318 = vpop.f32.mrf.mxu0
      %v1319 = vadd.f32 0.0, %v1318
      %v1320 = vpop.f32.mrf.mxu0
      %v1321 = vpop.f32.mrf.mxu0
      %v1322 = vadd.f32 0.0, %v1321
      %v1323 = vpop.f32.mrf.mxu0
      %1324 = vmatprep.mubr.bf16.mxu0 0
      %1325 = vmatmul.mubr.bf16.gmra.mxu0 %v1170
      %v1326 = vpop.f32.mrf.mxu0
      %v1327 = vadd.f32 0.0, %v1326
      %v1328 = vpop.f32.mrf.mxu0
      %v1329 = vpop.f32.mrf.mxu0
      %v1330 = vadd.f32 0.0, %v1329
      %v1331 = vpop.f32.mrf.mxu0
      %1332 = vmatprep.mubr.bf16.mxu0 0
      %1333 = vmatmul.mubr.bf16.gmra.mxu0 %v1173
      %v1334 = vpop.f32.mrf.mxu0
      %v1335 = vadd.f32 0.0, %v1334
      %v1336 = vpop.f32.mrf.mxu0
      %v1337 = vpop.f32.mrf.mxu0
      %v1338 = vadd.f32 0.0, %v1337
      %v1339 = vpop.f32.mrf.mxu0
      %1340 = vmatprep.mubr.bf16.mxu0 0
      %1341 = vmatmul.mubr.bf16.gmra.mxu0 %v1176
      %v1342 = vpop.f32.mrf.mxu0
      %v1343 = vadd.f32 0.0, %v1342
      %v1344 = vpop.f32.mrf.mxu0
      %v1345 = vpop.f32.mrf.mxu0
      %v1346 = vadd.f32 0.0, %v1345
      %v1347 = vpop.f32.mrf.mxu0
      %1348 = vmatprep.mubr.bf16.mxu0 0
      %1349 = vmatmul.mubr.bf16.gmra.mxu0 %v1179
      %v1350 = vpop.f32.mrf.mxu0
      %v1351 = vadd.f32 0.0, %v1350
      %v1352 = vpop.f32.mrf.mxu0
      %v1353 = vpop.f32.mrf.mxu0
      %v1354 = vadd.f32 0.0, %v1353
      %v1355 = vpop.f32.mrf.mxu0
      %1356 = vmatprep.mubr.bf16.mxu0 0
      %1357 = vmatmul.mubr.bf16.gmra.mxu0 %v1182
      %v1358 = vpop.f32.mrf.mxu0
      %v1359 = vadd.f32 0.0, %v1358
      %v1360 = vpop.f32.mrf.mxu0
      %v1361 = vpop.f32.mrf.mxu0
      %v1362 = vadd.f32 0.0, %v1361
      %v1363 = vpop.f32.mrf.mxu0
      %1364 = vdwg.mxu0
      %v1366 = vsel %vm363, %v1055, 0
      %v1369 = vsel %vm363, %v1056, 0
      %v1372 = vsel %vm363, %v1057, 0
      %v1375 = vsel %vm363, %v1058, 0
      %v1378 = vsel %vm363, %v1059, 0
      %v1381 = vsel %vm363, %v1060, 0
      %v1384 = vsel %vm363, %v1061, 0
      %v1387 = vsel %vm363, %v1062, 0
      %v1390 = vsel %vm363, %v1063, 0
      %v1393 = vsel %vm363, %v1064, 0
      %v1396 = vsel %vm363, %v1065, 0
      %v1399 = vsel %vm363, %v1066, 0
      %v1402 = vsel %vm363, %v1067, 0
      %v1405 = vsel %vm363, %v1068, 0
      %v1408 = vsel %vm363, %v1069, 0
      %v1411 = vsel %vm363, %v1070, 0
      %v1414 = vsel %vm363, %v1071, 0
      %v1417 = vsel %vm363, %v1072, 0
      %v1420 = vsel %vm1184, %v1073, 0
      %1422 = vmatprep.subr.bf16.mxu0 0
      %1423 = vmatpush1.bf16.msra.mxu0 0
      %1424 = vmatprep.subr.bf16.mxu0 0
      %1425 = vmatpush1.bf16.msra.mxu0 0
      %1426 = vmatprep.subr.bf16.mxu0 0
      %1427 = vmatpush1.bf16.msra.mxu0 0
      %1428 = vmatprep.subr.bf16.mxu0 0
      %1429 = vmatpush1.bf16.msra.mxu0 0
      %1430 = vmatprep.subr.bf16.mxu0 0
      %1431 = vmatpush1.bf16.msra.mxu0 0
      %1432 = vmatprep.subr.bf16.mxu0 0
      %1433 = vmatpush1.bf16.msra.mxu0 0
      %1434 = vmatprep.subr.bf16.mxu0 0
      %1435 = vmatpush1.bf16.msra.mxu0 0
      %1436 = vmatprep.subr.bf16.mxu0 0
      %1437 = vmatpush1.bf16.msra.mxu0 %v1420
      %1438 = vmatprep.subr.bf16.mxu0 0
      %1439 = vmatpush2.bf16.msra.mxu0 0
      %1440 = vmatprep.subr.bf16.mxu0 0
      %1441 = vmatpush2.bf16.msra.mxu0 0
      %1442 = vmatprep.subr.bf16.mxu0 0
      %1443 = vmatpush2.bf16.msra.mxu0 0
      %1444 = vmatprep.subr.bf16.mxu0 0
      %1445 = vmatpush2.bf16.msra.mxu0 0
      %1446 = vmatprep.subr.bf16.mxu0 0
      %1447 = vmatpush2.bf16.msra.mxu0 0
      %1448 = vmatprep.subr.bf16.mxu0 0
      %1449 = vmatpush2.bf16.msra.mxu0 0
      %1450 = vmatprep.subr.bf16.mxu0 0
      %1451 = vmatpush2.bf16.msra.mxu0 0
      %1452 = vmatprep.subr.bf16.mxu0 0
      %1453 = vmatpush2.bf16.msra.mxu0 0
      %1454 = vmatprep.mubr.bf16.mxu0 0
      %1455 = vmatmul.mubr.bf16.gmra.mxu0 %v1366
      %v1456 = vpop.f32.mrf.mxu0
      %v1457 = vadd.f32 %v1223, %v1456
      %v1458 = vpop.f32.mrf.mxu0
      %v1459 = vpop.f32.mrf.mxu0
      %v1460 = vadd.f32 %v1226, %v1459
      %v1461 = vpop.f32.mrf.mxu0
      %1462 = vmatprep.mubr.bf16.mxu0 0
      %1463 = vmatmul.mubr.bf16.gmra.mxu0 %v1369
      %v1464 = vpop.f32.mrf.mxu0
      %v1465 = vadd.f32 %v1231, %v1464
      %v1466 = vpop.f32.mrf.mxu0
      %v1467 = vpop.f32.mrf.mxu0
      %v1468 = vadd.f32 %v1234, %v1467
      %v1469 = vpop.f32.mrf.mxu0
      %1470 = vmatprep.mubr.bf16.mxu0 0
      %1471 = vmatmul.mubr.bf16.gmra.mxu0 %v1372
      %v1472 = vpop.f32.mrf.mxu0
      %v1473 = vadd.f32 %v1239, %v1472
      %v1474 = vpop.f32.mrf.mxu0
      %v1475 = vpop.f32.mrf.mxu0
      %v1476 = vadd.f32 %v1242, %v1475
      %v1477 = vpop.f32.mrf.mxu0
      %1478 = vmatprep.mubr.bf16.mxu0 0
      %1479 = vmatmul.mubr.bf16.gmra.mxu0 %v1375
      %v1480 = vpop.f32.mrf.mxu0
      %v1481 = vadd.f32 %v1247, %v1480
      %v1482 = vpop.f32.mrf.mxu0
      %v1483 = vpop.f32.mrf.mxu0
      %v1484 = vadd.f32 %v1250, %v1483
      %v1485 = vpop.f32.mrf.mxu0
      %1486 = vmatprep.mubr.bf16.mxu0 0
      %1487 = vmatmul.mubr.bf16.gmra.mxu0 %v1378
      %v1488 = vpop.f32.mrf.mxu0
      %v1489 = vadd.f32 %v1255, %v1488
      %v1490 = vpop.f32.mrf.mxu0
      %v1491 = vpop.f32.mrf.mxu0
      %v1492 = vadd.f32 %v1258, %v1491
      %v1493 = vpop.f32.mrf.mxu0
      %1494 = vmatprep.mubr.bf16.mxu0 0
      %1495 = vmatmul.mubr.bf16.gmra.mxu0 %v1381
      %v1496 = vpop.f32.mrf.mxu0
      %v1497 = vadd.f32 %v1263, %v1496
      %v1498 = vpop.f32.mrf.mxu0
      %v1499 = vpop.f32.mrf.mxu0
      %v1500 = vadd.f32 %v1266, %v1499
      %v1501 = vpop.f32.mrf.mxu0
      %1502 = vmatprep.mubr.bf16.mxu0 0
      %1503 = vmatmul.mubr.bf16.gmra.mxu0 %v1384
      %v1504 = vpop.f32.mrf.mxu0
      %v1505 = vadd.f32 %v1271, %v1504
      %v1506 = vpop.f32.mrf.mxu0
      %v1507 = vpop.f32.mrf.mxu0
      %v1508 = vadd.f32 %v1274, %v1507
      %v1509 = vpop.f32.mrf.mxu0
      %1510 = vmatprep.mubr.bf16.mxu0 0
      %1511 = vmatmul.mubr.bf16.gmra.mxu0 %v1387
      %v1512 = vpop.f32.mrf.mxu0
      %v1513 = vadd.f32 %v1279, %v1512
      %v1514 = vpop.f32.mrf.mxu0
      %v1515 = vpop.f32.mrf.mxu0
      %v1516 = vadd.f32 %v1282, %v1515
      %v1517 = vpop.f32.mrf.mxu0
      %1518 = vmatprep.mubr.bf16.mxu0 0
      %1519 = vmatmul.mubr.bf16.gmra.mxu0 %v1390
      %v1520 = vpop.f32.mrf.mxu0
      %v1521 = vadd.f32 %v1287, %v1520
      %v1522 = vpop.f32.mrf.mxu0
      %v1523 = vpop.f32.mrf.mxu0
      %v1524 = vadd.f32 %v1290, %v1523
      %v1525 = vpop.f32.mrf.mxu0
      %1526 = vmatprep.mubr.bf16.mxu0 0
      %1527 = vmatmul.mubr.bf16.gmra.mxu0 %v1393
      %v1528 = vpop.f32.mrf.mxu0
      %v1529 = vadd.f32 %v1295, %v1528
      %v1530 = vpop.f32.mrf.mxu0
      %v1531 = vpop.f32.mrf.mxu0
      %v1532 = vadd.f32 %v1298, %v1531
      %v1533 = vpop.f32.mrf.mxu0
      %1534 = vmatprep.mubr.bf16.mxu0 0
      %1535 = vmatmul.mubr.bf16.gmra.mxu0 %v1396
      %v1536 = vpop.f32.mrf.mxu0
      %v1537 = vadd.f32 %v1303, %v1536
      %v1538 = vpop.f32.mrf.mxu0
      %v1539 = vpop.f32.mrf.mxu0
      %v1540 = vadd.f32 %v1306, %v1539
      %v1541 = vpop.f32.mrf.mxu0
      %1542 = vmatprep.mubr.bf16.mxu0 0
      %1543 = vmatmul.mubr.bf16.gmra.mxu0 %v1399
      %v1544 = vpop.f32.mrf.mxu0
      %v1545 = vadd.f32 %v1311, %v1544
      %v1546 = vpop.f32.mrf.mxu0
      %v1547 = vpop.f32.mrf.mxu0
      %v1548 = vadd.f32 %v1314, %v1547
      %v1549 = vpop.f32.mrf.mxu0
      %1550 = vmatprep.mubr.bf16.mxu0 0
      %1551 = vmatmul.mubr.bf16.gmra.mxu0 %v1402
      %v1552 = vpop.f32.mrf.mxu0
      %v1553 = vadd.f32 %v1319, %v1552
      %v1554 = vpop.f32.mrf.mxu0
      %v1555 = vpop.f32.mrf.mxu0
      %v1556 = vadd.f32 %v1322, %v1555
      %v1557 = vpop.f32.mrf.mxu0
      %1558 = vmatprep.mubr.bf16.mxu0 0
      %1559 = vmatmul.mubr.bf16.gmra.mxu0 %v1405
      %v1560 = vpop.f32.mrf.mxu0
      %v1561 = vadd.f32 %v1327, %v1560
      %v1562 = vpop.f32.mrf.mxu0
      %v1563 = vpop.f32.mrf.mxu0
      %v1564 = vadd.f32 %v1330, %v1563
      %v1565 = vpop.f32.mrf.mxu0
      %1566 = vmatprep.mubr.bf16.mxu0 0
      %1567 = vmatmul.mubr.bf16.gmra.mxu0 %v1408
      %v1568 = vpop.f32.mrf.mxu0
      %v1569 = vadd.f32 %v1335, %v1568
      %v1570 = vpop.f32.mrf.mxu0
      %v1571 = vpop.f32.mrf.mxu0
      %v1572 = vadd.f32 %v1338, %v1571
      %v1573 = vpop.f32.mrf.mxu0
      %1574 = vmatprep.mubr.bf16.mxu0 0
      %1575 = vmatmul.mubr.bf16.gmra.mxu0 %v1411
      %v1576 = vpop.f32.mrf.mxu0
      %v1577 = vadd.f32 %v1343, %v1576
      %v1578 = vpop.f32.mrf.mxu0
      %v1579 = vpop.f32.mrf.mxu0
      %v1580 = vadd.f32 %v1346, %v1579
      %v1581 = vpop.f32.mrf.mxu0
      %1582 = vmatprep.mubr.bf16.mxu0 0
      %1583 = vmatmul.mubr.bf16.gmra.mxu0 %v1414
      %v1584 = vpop.f32.mrf.mxu0
      %v1585 = vadd.f32 %v1351, %v1584
      %v1586 = vpop.f32.mrf.mxu0
      %v1587 = vpop.f32.mrf.mxu0
      %v1588 = vadd.f32 %v1354, %v1587
      %v1589 = vpop.f32.mrf.mxu0
      %1590 = vmatprep.mubr.bf16.mxu0 0
      %1591 = vmatmul.mubr.bf16.gmra.mxu0 %v1417
      %v1592 = vpop.f32.mrf.mxu0
      %v1593 = vadd.f32 %v1359, %v1592
      %v1594 = vpop.f32.mrf.mxu0
      %v1595 = vpop.f32.mrf.mxu0
      %v1596 = vadd.f32 %v1362, %v1595
      %v1597 = vpop.f32.mrf.mxu0
      %1598 = vdwg.mxu0
      %v1599 = vld [vmem:[#allocation2 + $0x2] sm:$0xff]
      %v1600 = vld [vmem:[#allocation2 + $0xa] sm:$0xff]
      %v1601 = vld [vmem:[#allocation2 + $0x12] sm:$0xff]
      %v1602 = vld [vmem:[#allocation2 + $0x1a] sm:$0xff]
      %v1603 = vld [vmem:[#allocation2 + $0x22] sm:$0xff]
      %v1604 = vld [vmem:[#allocation2 + $0x2a] sm:$0xff]
      %v1605 = vld [vmem:[#allocation2 + $0x32] sm:$0xff]
      %v1606 = vld [vmem:[#allocation2 + $0x3a] sm:$0xff]
      %v1607 = vld [vmem:[#allocation2 + $0x42] sm:$0xff]
      %v1608 = vld [vmem:[#allocation2 + $0x4a] sm:$0xff]
      %v1609 = vld [vmem:[#allocation2 + $0x52] sm:$0xff]
      %v1610 = vld [vmem:[#allocation2 + $0x5a] sm:$0xff]
      %v1611 = vld [vmem:[#allocation2 + $0x62] sm:$0xff]
      %v1612 = vld [vmem:[#allocation2 + $0x6a] sm:$0xff]
      %v1613 = vld [vmem:[#allocation2 + $0x72] sm:$0xff]
      %v1614 = vld [vmem:[#allocation2 + $0x7a] sm:$0xff]
      %v1615 = vld [vmem:[#allocation2 + $0x82] sm:$0xff]
      %v1616 = vld [vmem:[#allocation2 + $0x8a] sm:$0xff]
      %v1617 = vld [vmem:[#allocation2 + $0x92] sm:$0xff]
      %v1618 = vld [vmem:[#allocation2 + $0x9a] sm:$0xff]
      %v1619 = vld [vmem:[#allocation2 + $0xa2] sm:$0xff]
      %v1620 = vld [vmem:[#allocation2 + $0xaa] sm:$0xff]
      %v1621 = vld [vmem:[#allocation2 + $0xb2] sm:$0xff]
      %v1622 = vld [vmem:[#allocation2 + $0xba] sm:$0xff]
      %v1623 = vld [vmem:[#allocation2 + $0xc2] sm:$0xff]
      %v1624 = vld [vmem:[#allocation2 + $0xca] sm:$0xff]
      %v1625 = vld [vmem:[#allocation2 + $0xd2] sm:$0xff]
      %v1626 = vld [vmem:[#allocation2 + $0xda] sm:$0xff]
      %v1627 = vld [vmem:[#allocation2 + $0xe2] sm:$0xff]
      %v1628 = vld [vmem:[#allocation2 + $0xea] sm:$0xff]
      %v1629 = vld [vmem:[#allocation2 + $0xf2] sm:$0xff]
      %v1630 = vld [vmem:[#allocation2 + $0xfa] sm:$0xff]
      %v1631 = vld [vmem:[#allocation2 + $0x102] sm:$0xff]
      %v1632 = vld [vmem:[#allocation2 + $0x10a] sm:$0xff]
      %v1633 = vld [vmem:[#allocation2 + $0x112] sm:$0xff]
      %v1634 = vld [vmem:[#allocation2 + $0x11a] sm:$0xff]
      %v1635 = vpack.c.bf16 %v1600, %v1599
      %v1636 = vpack.c.bf16 %v1602, %v1601
      %v1637 = vpack.c.bf16 %v1604, %v1603
      %v1638 = vpack.c.bf16 %v1606, %v1605
      %v1639 = vpack.c.bf16 %v1608, %v1607
      %v1640 = vpack.c.bf16 %v1610, %v1609
      %v1641 = vpack.c.bf16 %v1612, %v1611
      %v1642 = vpack.c.bf16 %v1614, %v1613
      %v1643 = vpack.c.bf16 %v1616, %v1615
      %v1644 = vpack.c.bf16 %v1618, %v1617
      %v1645 = vpack.c.bf16 %v1620, %v1619
      %v1646 = vpack.c.bf16 %v1622, %v1621
      %v1647 = vpack.c.bf16 %v1624, %v1623
      %v1648 = vpack.c.bf16 %v1626, %v1625
      %v1649 = vpack.c.bf16 %v1628, %v1627
      %v1650 = vpack.c.bf16 %v1630, %v1629
      %v1651 = vpack.c.bf16 %v1632, %v1631
      %v1652 = vpack.c.bf16 %v1634, %v1633
      %s1653 = scalar_lea.vmem %s2, 8
      %v1654 = vld [vmem:[%s1653] sm:$0xf]
      %v1656 = vsel %vm363, %v1635, 0
      %v1659 = vsel %vm363, %v1636, 0
      %v1662 = vsel %vm363, %v1637, 0
      %v1665 = vsel %vm363, %v1638, 0
      %v1668 = vsel %vm363, %v1639, 0
      %v1671 = vsel %vm363, %v1640, 0
      %v1674 = vsel %vm363, %v1641, 0
      %v1677 = vsel %vm363, %v1642, 0
      %v1680 = vsel %vm363, %v1643, 0
      %v1683 = vsel %vm363, %v1644, 0
      %v1686 = vsel %vm363, %v1645, 0
      %v1689 = vsel %vm363, %v1646, 0
      %v1692 = vsel %vm363, %v1647, 0
      %v1695 = vsel %vm363, %v1648, 0
      %v1698 = vsel %vm363, %v1649, 0
      %v1701 = vsel %vm363, %v1650, 0
      %v1704 = vsel %vm363, %v1651, 0
      %v1707 = vsel %vm363, %v1652, 0
      %v1710 = vsel %vm1184, %v1654, 0
      %1712 = vmatprep.subr.bf16.mxu0 0
      %1713 = vmatpush1.bf16.msra.mxu0 0
      %1714 = vmatprep.subr.bf16.mxu0 0
      %1715 = vmatpush1.bf16.msra.mxu0 0
      %1716 = vmatprep.subr.bf16.mxu0 0
      %1717 = vmatpush1.bf16.msra.mxu0 0
      %1718 = vmatprep.subr.bf16.mxu0 0
      %1719 = vmatpush1.bf16.msra.mxu0 0
      %1720 = vmatprep.subr.bf16.mxu0 0
      %1721 = vmatpush1.bf16.msra.mxu0 0
      %1722 = vmatprep.subr.bf16.mxu0 0
      %1723 = vmatpush1.bf16.msra.mxu0 0
      %1724 = vmatprep.subr.bf16.mxu0 0
      %1725 = vmatpush1.bf16.msra.mxu0 0
      %1726 = vmatprep.subr.bf16.mxu0 0
      %1727 = vmatpush1.bf16.msra.mxu0 %v1710
      %1728 = vmatprep.subr.bf16.mxu0 0
      %1729 = vmatpush2.bf16.msra.mxu0 0
      %1730 = vmatprep.subr.bf16.mxu0 0
      %1731 = vmatpush2.bf16.msra.mxu0 0
      %1732 = vmatprep.subr.bf16.mxu0 0
      %1733 = vmatpush2.bf16.msra.mxu0 0
      %1734 = vmatprep.subr.bf16.mxu0 0
      %1735 = vmatpush2.bf16.msra.mxu0 0
      %1736 = vmatprep.subr.bf16.mxu0 0
      %1737 = vmatpush2.bf16.msra.mxu0 0
      %1738 = vmatprep.subr.bf16.mxu0 0
      %1739 = vmatpush2.bf16.msra.mxu0 0
      %1740 = vmatprep.subr.bf16.mxu0 0
      %1741 = vmatpush2.bf16.msra.mxu0 0
      %1742 = vmatprep.subr.bf16.mxu0 0
      %1743 = vmatpush2.bf16.msra.mxu0 0
      %1744 = vmatprep.mubr.bf16.mxu0 0
      %1745 = vmatmul.mubr.bf16.gmra.mxu0 %v1656
      %v1746 = vpop.f32.mrf.mxu0
      %v1747 = vadd.f32 0.0, %v1746
      %v1748 = vpop.f32.mrf.mxu0
      %v1749 = vpop.f32.mrf.mxu0
      %v1750 = vadd.f32 0.0, %v1749
      %v1751 = vpop.f32.mrf.mxu0
      %1752 = vmatprep.mubr.bf16.mxu0 0
      %1753 = vmatmul.mubr.bf16.gmra.mxu0 %v1659
      %v1754 = vpop.f32.mrf.mxu0
      %v1755 = vadd.f32 0.0, %v1754
      %v1756 = vpop.f32.mrf.mxu0
      %v1757 = vpop.f32.mrf.mxu0
      %v1758 = vadd.f32 0.0, %v1757
      %v1759 = vpop.f32.mrf.mxu0
      %1760 = vmatprep.mubr.bf16.mxu0 0
      %1761 = vmatmul.mubr.bf16.gmra.mxu0 %v1662
      %v1762 = vpop.f32.mrf.mxu0
      %v1763 = vadd.f32 0.0, %v1762
      %v1764 = vpop.f32.mrf.mxu0
      %v1765 = vpop.f32.mrf.mxu0
      %v1766 = vadd.f32 0.0, %v1765
      %v1767 = vpop.f32.mrf.mxu0
      %1768 = vmatprep.mubr.bf16.mxu0 0
      %1769 = vmatmul.mubr.bf16.gmra.mxu0 %v1665
      %v1770 = vpop.f32.mrf.mxu0
      %v1771 = vadd.f32 0.0, %v1770
      %v1772 = vpop.f32.mrf.mxu0
      %v1773 = vpop.f32.mrf.mxu0
      %v1774 = vadd.f32 0.0, %v1773
      %v1775 = vpop.f32.mrf.mxu0
      %1776 = vmatprep.mubr.bf16.mxu0 0
      %1777 = vmatmul.mubr.bf16.gmra.mxu0 %v1668
      %v1778 = vpop.f32.mrf.mxu0
      %v1779 = vadd.f32 0.0, %v1778
      %v1780 = vpop.f32.mrf.mxu0
      %v1781 = vpop.f32.mrf.mxu0
      %v1782 = vadd.f32 0.0, %v1781
      %v1783 = vpop.f32.mrf.mxu0
      %1784 = vmatprep.mubr.bf16.mxu0 0
      %1785 = vmatmul.mubr.bf16.gmra.mxu0 %v1671
      %v1786 = vpop.f32.mrf.mxu0
      %v1787 = vadd.f32 0.0, %v1786
      %v1788 = vpop.f32.mrf.mxu0
      %v1789 = vpop.f32.mrf.mxu0
      %v1790 = vadd.f32 0.0, %v1789
      %v1791 = vpop.f32.mrf.mxu0
      %1792 = vmatprep.mubr.bf16.mxu0 0
      %1793 = vmatmul.mubr.bf16.gmra.mxu0 %v1674
      %v1794 = vpop.f32.mrf.mxu0
      %v1795 = vadd.f32 0.0, %v1794
      %v1796 = vpop.f32.mrf.mxu0
      %v1797 = vpop.f32.mrf.mxu0
      %v1798 = vadd.f32 0.0, %v1797
      %v1799 = vpop.f32.mrf.mxu0
      %1800 = vmatprep.mubr.bf16.mxu0 0
      %1801 = vmatmul.mubr.bf16.gmra.mxu0 %v1677
      %v1802 = vpop.f32.mrf.mxu0
      %v1803 = vadd.f32 0.0, %v1802
      %v1804 = vpop.f32.mrf.mxu0
      %v1805 = vpop.f32.mrf.mxu0
      %v1806 = vadd.f32 0.0, %v1805
      %v1807 = vpop.f32.mrf.mxu0
      %1808 = vmatprep.mubr.bf16.mxu0 0
      %1809 = vmatmul.mubr.bf16.gmra.mxu0 %v1680
      %v1810 = vpop.f32.mrf.mxu0
      %v1811 = vadd.f32 0.0, %v1810
      %v1812 = vpop.f32.mrf.mxu0
      %v1813 = vpop.f32.mrf.mxu0
      %v1814 = vadd.f32 0.0, %v1813
      %v1815 = vpop.f32.mrf.mxu0
      %1816 = vmatprep.mubr.bf16.mxu0 0
      %1817 = vmatmul.mubr.bf16.gmra.mxu0 %v1683
      %v1818 = vpop.f32.mrf.mxu0
      %v1819 = vadd.f32 0.0, %v1818
      %v1820 = vpop.f32.mrf.mxu0
      %v1821 = vpop.f32.mrf.mxu0
      %v1822 = vadd.f32 0.0, %v1821
      %v1823 = vpop.f32.mrf.mxu0
      %1824 = vmatprep.mubr.bf16.mxu0 0
      %1825 = vmatmul.mubr.bf16.gmra.mxu0 %v1686
      %v1826 = vpop.f32.mrf.mxu0
      %v1827 = vadd.f32 0.0, %v1826
      %v1828 = vpop.f32.mrf.mxu0
      %v1829 = vpop.f32.mrf.mxu0
      %v1830 = vadd.f32 0.0, %v1829
      %v1831 = vpop.f32.mrf.mxu0
      %1832 = vmatprep.mubr.bf16.mxu0 0
      %1833 = vmatmul.mubr.bf16.gmra.mxu0 %v1689
      %v1834 = vpop.f32.mrf.mxu0
      %v1835 = vadd.f32 0.0, %v1834
      %v1836 = vpop.f32.mrf.mxu0
      %v1837 = vpop.f32.mrf.mxu0
      %v1838 = vadd.f32 0.0, %v1837
      %v1839 = vpop.f32.mrf.mxu0
      %1840 = vmatprep.mubr.bf16.mxu0 0
      %1841 = vmatmul.mubr.bf16.gmra.mxu0 %v1692
      %v1842 = vpop.f32.mrf.mxu0
      %v1843 = vadd.f32 0.0, %v1842
      %v1844 = vpop.f32.mrf.mxu0
      %v1845 = vpop.f32.mrf.mxu0
      %v1846 = vadd.f32 0.0, %v1845
      %v1847 = vpop.f32.mrf.mxu0
      %1848 = vmatprep.mubr.bf16.mxu0 0
      %1849 = vmatmul.mubr.bf16.gmra.mxu0 %v1695
      %v1850 = vpop.f32.mrf.mxu0
      %v1851 = vadd.f32 0.0, %v1850
      %v1852 = vpop.f32.mrf.mxu0
      %v1853 = vpop.f32.mrf.mxu0
      %v1854 = vadd.f32 0.0, %v1853
      %v1855 = vpop.f32.mrf.mxu0
      %1856 = vmatprep.mubr.bf16.mxu0 0
      %1857 = vmatmul.mubr.bf16.gmra.mxu0 %v1698
      %v1858 = vpop.f32.mrf.mxu0
      %v1859 = vadd.f32 0.0, %v1858
      %v1860 = vpop.f32.mrf.mxu0
      %v1861 = vpop.f32.mrf.mxu0
      %v1862 = vadd.f32 0.0, %v1861
      %v1863 = vpop.f32.mrf.mxu0
      %1864 = vmatprep.mubr.bf16.mxu0 0
      %1865 = vmatmul.mubr.bf16.gmra.mxu0 %v1701
      %v1866 = vpop.f32.mrf.mxu0
      %v1867 = vadd.f32 0.0, %v1866
      %v1868 = vpop.f32.mrf.mxu0
      %v1869 = vpop.f32.mrf.mxu0
      %v1870 = vadd.f32 0.0, %v1869
      %v1871 = vpop.f32.mrf.mxu0
      %1872 = vmatprep.mubr.bf16.mxu0 0
      %1873 = vmatmul.mubr.bf16.gmra.mxu0 %v1704
      %v1874 = vpop.f32.mrf.mxu0
      %v1875 = vadd.f32 0.0, %v1874
      %v1876 = vpop.f32.mrf.mxu0
      %v1877 = vpop.f32.mrf.mxu0
      %v1878 = vadd.f32 0.0, %v1877
      %v1879 = vpop.f32.mrf.mxu0
      %1880 = vmatprep.mubr.bf16.mxu0 0
      %1881 = vmatmul.mubr.bf16.gmra.mxu0 %v1707
      %v1882 = vpop.f32.mrf.mxu0
      %v1883 = vadd.f32 0.0, %v1882
      %v1884 = vpop.f32.mrf.mxu0
      %v1885 = vpop.f32.mrf.mxu0
      %v1886 = vadd.f32 0.0, %v1885
      %v1887 = vpop.f32.mrf.mxu0
      %1888 = vdwg.mxu0
      %v1889 = vadd.f32 %v1457, %v1747
      %v1890 = vadd.f32 %v1460, %v1750
      %v1891 = vadd.f32 %v1465, %v1755
      %v1892 = vadd.f32 %v1468, %v1758
      %v1893 = vadd.f32 %v1473, %v1763
      %v1894 = vadd.f32 %v1476, %v1766
      %v1895 = vadd.f32 %v1481, %v1771
      %v1896 = vadd.f32 %v1484, %v1774
      %v1897 = vadd.f32 %v1489, %v1779
      %v1898 = vadd.f32 %v1492, %v1782
      %v1899 = vadd.f32 %v1497, %v1787
      %v1900 = vadd.f32 %v1500, %v1790
      %v1901 = vadd.f32 %v1505, %v1795
      %v1902 = vadd.f32 %v1508, %v1798
      %v1903 = vadd.f32 %v1513, %v1803
      %v1904 = vadd.f32 %v1516, %v1806
      %v1905 = vadd.f32 %v1521, %v1811
      %v1906 = vadd.f32 %v1524, %v1814
      %v1907 = vadd.f32 %v1529, %v1819
      %v1908 = vadd.f32 %v1532, %v1822
      %v1909 = vadd.f32 %v1537, %v1827
      %v1910 = vadd.f32 %v1540, %v1830
      %v1911 = vadd.f32 %v1545, %v1835
      %v1912 = vadd.f32 %v1548, %v1838
      %v1913 = vadd.f32 %v1553, %v1843
      %v1914 = vadd.f32 %v1556, %v1846
      %v1915 = vadd.f32 %v1561, %v1851
      %v1916 = vadd.f32 %v1564, %v1854
      %v1917 = vadd.f32 %v1569, %v1859
      %v1918 = vadd.f32 %v1572, %v1862
      %v1919 = vadd.f32 %v1577, %v1867
      %v1920 = vadd.f32 %v1580, %v1870
      %v1921 = vadd.f32 %v1585, %v1875
      %v1922 = vadd.f32 %v1588, %v1878
      %v1923 = vadd.f32 %v1593, %v1883
      %v1924 = vadd.f32 %v1596, %v1886
      %v1925 = vld [vmem:[#allocation2 + $0x12] sm:$0xff]
      %v1926 = vld [vmem:[#allocation2 + $0x1a] sm:$0xff]
      %v1927 = vld [vmem:[#allocation2 + $0x22] sm:$0xff]
      %v1928 = vld [vmem:[#allocation2 + $0x2a] sm:$0xff]
      %v1929 = vld [vmem:[#allocation2 + $0x32] sm:$0xff]
      %v1930 = vld [vmem:[#allocation2 + $0x3a] sm:$0xff]
      %v1931 = vld [vmem:[#allocation2 + $0x42] sm:$0xff]
      %v1932 = vld [vmem:[#allocation2 + $0x4a] sm:$0xff]
      %v1933 = vld [vmem:[#allocation2 + $0x52] sm:$0xff]
      %v1934 = vld [vmem:[#allocation2 + $0x5a] sm:$0xff]
      %v1935 = vld [vmem:[#allocation2 + $0x62] sm:$0xff]
      %v1936 = vld [vmem:[#allocation2 + $0x6a] sm:$0xff]
      %v1937 = vld [vmem:[#allocation2 + $0x72] sm:$0xff]
      %v1938 = vld [vmem:[#allocation2 + $0x7a] sm:$0xff]
      %v1939 = vld [vmem:[#allocation2 + $0x82] sm:$0xff]
      %v1940 = vld [vmem:[#allocation2 + $0x8a] sm:$0xff]
      %v1941 = vld [vmem:[#allocation2 + $0x92] sm:$0xff]
      %v1942 = vld [vmem:[#allocation2 + $0x9a] sm:$0xff]
      %v1943 = vld [vmem:[#allocation2 + $0xa2] sm:$0xff]
      %v1944 = vld [vmem:[#allocation2 + $0xaa] sm:$0xff]
      %v1945 = vld [vmem:[#allocation2 + $0xb2] sm:$0xff]
      %v1946 = vld [vmem:[#allocation2 + $0xba] sm:$0xff]
      %v1947 = vld [vmem:[#allocation2 + $0xc2] sm:$0xff]
      %v1948 = vld [vmem:[#allocation2 + $0xca] sm:$0xff]
      %v1949 = vld [vmem:[#allocation2 + $0xd2] sm:$0xff]
      %v1950 = vld [vmem:[#allocation2 + $0xda] sm:$0xff]
      %v1951 = vld [vmem:[#allocation2 + $0xe2] sm:$0xff]
      %v1952 = vld [vmem:[#allocation2 + $0xea] sm:$0xff]
      %v1953 = vld [vmem:[#allocation2 + $0xf2] sm:$0xff]
      %v1954 = vld [vmem:[#allocation2 + $0xfa] sm:$0xff]
      %v1955 = vld [vmem:[#allocation2 + $0x102] sm:$0xff]
      %v1956 = vld [vmem:[#allocation2 + $0x10a] sm:$0xff]
      %v1957 = vld [vmem:[#allocation2 + $0x112] sm:$0xff]
      %v1958 = vld [vmem:[#allocation2 + $0x11a] sm:$0xff]
      %v1959 = vld [vmem:[#allocation2 + $0x122] sm:$0xff]
      %v1960 = vld [vmem:[#allocation2 + $0x12a] sm:$0xff]
      %v1961 = vpack.c.bf16 %v1926, %v1925
      %v1962 = vpack.c.bf16 %v1928, %v1927
      %v1963 = vpack.c.bf16 %v1930, %v1929
      %v1964 = vpack.c.bf16 %v1932, %v1931
      %v1965 = vpack.c.bf16 %v1934, %v1933
      %v1966 = vpack.c.bf16 %v1936, %v1935
      %v1967 = vpack.c.bf16 %v1938, %v1937
      %v1968 = vpack.c.bf16 %v1940, %v1939
      %v1969 = vpack.c.bf16 %v1942, %v1941
      %v1970 = vpack.c.bf16 %v1944, %v1943
      %v1971 = vpack.c.bf16 %v1946, %v1945
      %v1972 = vpack.c.bf16 %v1948, %v1947
      %v1973 = vpack.c.bf16 %v1950, %v1949
      %v1974 = vpack.c.bf16 %v1952, %v1951
      %v1975 = vpack.c.bf16 %v1954, %v1953
      %v1976 = vpack.c.bf16 %v1956, %v1955
      %v1977 = vpack.c.bf16 %v1958, %v1957
      %v1978 = vpack.c.bf16 %v1960, %v1959
      %s1979 = scalar_lea.vmem %s2, 12
      %v1980 = vld [vmem:[%s1979] sm:$0xf]
      %v1982 = vsel %vm363, %v1961, 0
      %v1985 = vsel %vm363, %v1962, 0
      %v1988 = vsel %vm363, %v1963, 0
      %v1991 = vsel %vm363, %v1964, 0
      %v1994 = vsel %vm363, %v1965, 0
      %v1997 = vsel %vm363, %v1966, 0
      %v2000 = vsel %vm363, %v1967, 0
      %v2003 = vsel %vm363, %v1968, 0
      %v2006 = vsel %vm363, %v1969, 0
      %v2009 = vsel %vm363, %v1970, 0
      %v2012 = vsel %vm363, %v1971, 0
      %v2015 = vsel %vm363, %v1972, 0
      %v2018 = vsel %vm363, %v1973, 0
      %v2021 = vsel %vm363, %v1974, 0
      %v2024 = vsel %vm363, %v1975, 0
      %v2027 = vsel %vm363, %v1976, 0
      %v2030 = vsel %vm363, %v1977, 0
      %v2033 = vsel %vm363, %v1978, 0
      %v2036 = vsel %vm1184, %v1980, 0
      %2038 = vmatprep.subr.bf16.mxu0 0
      %2039 = vmatpush1.bf16.msra.mxu0 0
      %2040 = vmatprep.subr.bf16.mxu0 0
      %2041 = vmatpush1.bf16.msra.mxu0 0
      %2042 = vmatprep.subr.bf16.mxu0 0
      %2043 = vmatpush1.bf16.msra.mxu0 0
      %2044 = vmatprep.subr.bf16.mxu0 0
      %2045 = vmatpush1.bf16.msra.mxu0 0
      %2046 = vmatprep.subr.bf16.mxu0 0
      %2047 = vmatpush1.bf16.msra.mxu0 0
      %2048 = vmatprep.subr.bf16.mxu0 0
      %2049 = vmatpush1.bf16.msra.mxu0 0
      %2050 = vmatprep.subr.bf16.mxu0 0
      %2051 = vmatpush1.bf16.msra.mxu0 0
      %2052 = vmatprep.subr.bf16.mxu0 0
      %2053 = vmatpush1.bf16.msra.mxu0 %v2036
      %2054 = vmatprep.subr.bf16.mxu0 0
      %2055 = vmatpush2.bf16.msra.mxu0 0
      %2056 = vmatprep.subr.bf16.mxu0 0
      %2057 = vmatpush2.bf16.msra.mxu0 0
      %2058 = vmatprep.subr.bf16.mxu0 0
      %2059 = vmatpush2.bf16.msra.mxu0 0
      %2060 = vmatprep.subr.bf16.mxu0 0
      %2061 = vmatpush2.bf16.msra.mxu0 0
      %2062 = vmatprep.subr.bf16.mxu0 0
      %2063 = vmatpush2.bf16.msra.mxu0 0
      %2064 = vmatprep.subr.bf16.mxu0 0
      %2065 = vmatpush2.bf16.msra.mxu0 0
      %2066 = vmatprep.subr.bf16.mxu0 0
      %2067 = vmatpush2.bf16.msra.mxu0 0
      %2068 = vmatprep.subr.bf16.mxu0 0
      %2069 = vmatpush2.bf16.msra.mxu0 0
      %2070 = vmatprep.mubr.bf16.mxu0 0
      %2071 = vmatmul.mubr.bf16.gmra.mxu0 %v1982
      %v2072 = vpop.f32.mrf.mxu0
      %v2073 = vadd.f32 0.0, %v2072
      %v2074 = vpop.f32.mrf.mxu0
      %v2075 = vpop.f32.mrf.mxu0
      %v2076 = vadd.f32 0.0, %v2075
      %v2077 = vpop.f32.mrf.mxu0
      %2078 = vmatprep.mubr.bf16.mxu0 0
      %2079 = vmatmul.mubr.bf16.gmra.mxu0 %v1985
      %v2080 = vpop.f32.mrf.mxu0
      %v2081 = vadd.f32 0.0, %v2080
      %v2082 = vpop.f32.mrf.mxu0
      %v2083 = vpop.f32.mrf.mxu0
      %v2084 = vadd.f32 0.0, %v2083
      %v2085 = vpop.f32.mrf.mxu0
      %2086 = vmatprep.mubr.bf16.mxu0 0
      %2087 = vmatmul.mubr.bf16.gmra.mxu0 %v1988
      %v2088 = vpop.f32.mrf.mxu0
      %v2089 = vadd.f32 0.0, %v2088
      %v2090 = vpop.f32.mrf.mxu0
      %v2091 = vpop.f32.mrf.mxu0
      %v2092 = vadd.f32 0.0, %v2091
      %v2093 = vpop.f32.mrf.mxu0
      %2094 = vmatprep.mubr.bf16.mxu0 0
      %2095 = vmatmul.mubr.bf16.gmra.mxu0 %v1991
      %v2096 = vpop.f32.mrf.mxu0
      %v2097 = vadd.f32 0.0, %v2096
      %v2098 = vpop.f32.mrf.mxu0
      %v2099 = vpop.f32.mrf.mxu0
      %v2100 = vadd.f32 0.0, %v2099
      %v2101 = vpop.f32.mrf.mxu0
      %2102 = vmatprep.mubr.bf16.mxu0 0
      %2103 = vmatmul.mubr.bf16.gmra.mxu0 %v1994
      %v2104 = vpop.f32.mrf.mxu0
      %v2105 = vadd.f32 0.0, %v2104
      %v2106 = vpop.f32.mrf.mxu0
      %v2107 = vpop.f32.mrf.mxu0
      %v2108 = vadd.f32 0.0, %v2107
      %v2109 = vpop.f32.mrf.mxu0
      %2110 = vmatprep.mubr.bf16.mxu0 0
      %2111 = vmatmul.mubr.bf16.gmra.mxu0 %v1997
      %v2112 = vpop.f32.mrf.mxu0
      %v2113 = vadd.f32 0.0, %v2112
      %v2114 = vpop.f32.mrf.mxu0
      %v2115 = vpop.f32.mrf.mxu0
      %v2116 = vadd.f32 0.0, %v2115
      %v2117 = vpop.f32.mrf.mxu0
      %2118 = vmatprep.mubr.bf16.mxu0 0
      %2119 = vmatmul.mubr.bf16.gmra.mxu0 %v2000
      %v2120 = vpop.f32.mrf.mxu0
      %v2121 = vadd.f32 0.0, %v2120
      %v2122 = vpop.f32.mrf.mxu0
      %v2123 = vpop.f32.mrf.mxu0
      %v2124 = vadd.f32 0.0, %v2123
      %v2125 = vpop.f32.mrf.mxu0
      %2126 = vmatprep.mubr.bf16.mxu0 0
      %2127 = vmatmul.mubr.bf16.gmra.mxu0 %v2003
      %v2128 = vpop.f32.mrf.mxu0
      %v2129 = vadd.f32 0.0, %v2128
      %v2130 = vpop.f32.mrf.mxu0
      %v2131 = vpop.f32.mrf.mxu0
      %v2132 = vadd.f32 0.0, %v2131
      %v2133 = vpop.f32.mrf.mxu0
      %2134 = vmatprep.mubr.bf16.mxu0 0
      %2135 = vmatmul.mubr.bf16.gmra.mxu0 %v2006
      %v2136 = vpop.f32.mrf.mxu0
      %v2137 = vadd.f32 0.0, %v2136
      %v2138 = vpop.f32.mrf.mxu0
      %v2139 = vpop.f32.mrf.mxu0
      %v2140 = vadd.f32 0.0, %v2139
      %v2141 = vpop.f32.mrf.mxu0
      %2142 = vmatprep.mubr.bf16.mxu0 0
      %2143 = vmatmul.mubr.bf16.gmra.mxu0 %v2009
      %v2144 = vpop.f32.mrf.mxu0
      %v2145 = vadd.f32 0.0, %v2144
      %v2146 = vpop.f32.mrf.mxu0
      %v2147 = vpop.f32.mrf.mxu0
      %v2148 = vadd.f32 0.0, %v2147
      %v2149 = vpop.f32.mrf.mxu0
      %2150 = vmatprep.mubr.bf16.mxu0 0
      %2151 = vmatmul.mubr.bf16.gmra.mxu0 %v2012
      %v2152 = vpop.f32.mrf.mxu0
      %v2153 = vadd.f32 0.0, %v2152
      %v2154 = vpop.f32.mrf.mxu0
      %v2155 = vpop.f32.mrf.mxu0
      %v2156 = vadd.f32 0.0, %v2155
      %v2157 = vpop.f32.mrf.mxu0
      %2158 = vmatprep.mubr.bf16.mxu0 0
      %2159 = vmatmul.mubr.bf16.gmra.mxu0 %v2015
      %v2160 = vpop.f32.mrf.mxu0
      %v2161 = vadd.f32 0.0, %v2160
      %v2162 = vpop.f32.mrf.mxu0
      %v2163 = vpop.f32.mrf.mxu0
      %v2164 = vadd.f32 0.0, %v2163
      %v2165 = vpop.f32.mrf.mxu0
      %2166 = vmatprep.mubr.bf16.mxu0 0
      %2167 = vmatmul.mubr.bf16.gmra.mxu0 %v2018
      %v2168 = vpop.f32.mrf.mxu0
      %v2169 = vadd.f32 0.0, %v2168
      %v2170 = vpop.f32.mrf.mxu0
      %v2171 = vpop.f32.mrf.mxu0
      %v2172 = vadd.f32 0.0, %v2171
      %v2173 = vpop.f32.mrf.mxu0
      %2174 = vmatprep.mubr.bf16.mxu0 0
      %2175 = vmatmul.mubr.bf16.gmra.mxu0 %v2021
      %v2176 = vpop.f32.mrf.mxu0
      %v2177 = vadd.f32 0.0, %v2176
      %v2178 = vpop.f32.mrf.mxu0
      %v2179 = vpop.f32.mrf.mxu0
      %v2180 = vadd.f32 0.0, %v2179
      %v2181 = vpop.f32.mrf.mxu0
      %2182 = vmatprep.mubr.bf16.mxu0 0
      %2183 = vmatmul.mubr.bf16.gmra.mxu0 %v2024
      %v2184 = vpop.f32.mrf.mxu0
      %v2185 = vadd.f32 0.0, %v2184
      %v2186 = vpop.f32.mrf.mxu0
      %v2187 = vpop.f32.mrf.mxu0
      %v2188 = vadd.f32 0.0, %v2187
      %v2189 = vpop.f32.mrf.mxu0
      %2190 = vmatprep.mubr.bf16.mxu0 0
      %2191 = vmatmul.mubr.bf16.gmra.mxu0 %v2027
      %v2192 = vpop.f32.mrf.mxu0
      %v2193 = vadd.f32 0.0, %v2192
      %v2194 = vpop.f32.mrf.mxu0
      %v2195 = vpop.f32.mrf.mxu0
      %v2196 = vadd.f32 0.0, %v2195
      %v2197 = vpop.f32.mrf.mxu0
      %2198 = vmatprep.mubr.bf16.mxu0 0
      %2199 = vmatmul.mubr.bf16.gmra.mxu0 %v2030
      %v2200 = vpop.f32.mrf.mxu0
      %v2201 = vadd.f32 0.0, %v2200
      %v2202 = vpop.f32.mrf.mxu0
      %v2203 = vpop.f32.mrf.mxu0
      %v2204 = vadd.f32 0.0, %v2203
      %v2205 = vpop.f32.mrf.mxu0
      %2206 = vmatprep.mubr.bf16.mxu0 0
      %2207 = vmatmul.mubr.bf16.gmra.mxu0 %v2033
      %v2208 = vpop.f32.mrf.mxu0
      %v2209 = vadd.f32 0.0, %v2208
      %v2210 = vpop.f32.mrf.mxu0
      %v2211 = vpop.f32.mrf.mxu0
      %v2212 = vadd.f32 0.0, %v2211
      %v2213 = vpop.f32.mrf.mxu0
      %2214 = vdwg.mxu0
      %v2215 = vadd.f32 %v1889, %v2073
      %v2216 = vadd.f32 %v1890, %v2076
      %v2217 = vadd.f32 %v1891, %v2081
      %v2218 = vadd.f32 %v1892, %v2084
      %v2219 = vadd.f32 %v1893, %v2089
      %v2220 = vadd.f32 %v1894, %v2092
      %v2221 = vadd.f32 %v1895, %v2097
      %v2222 = vadd.f32 %v1896, %v2100
      %v2223 = vadd.f32 %v1897, %v2105
      %v2224 = vadd.f32 %v1898, %v2108
      %v2225 = vadd.f32 %v1899, %v2113
      %v2226 = vadd.f32 %v1900, %v2116
      %v2227 = vadd.f32 %v1901, %v2121
      %v2228 = vadd.f32 %v1902, %v2124
      %v2229 = vadd.f32 %v1903, %v2129
      %v2230 = vadd.f32 %v1904, %v2132
      %v2231 = vadd.f32 %v1905, %v2137
      %v2232 = vadd.f32 %v1906, %v2140
      %v2233 = vadd.f32 %v1907, %v2145
      %v2234 = vadd.f32 %v1908, %v2148
      %v2235 = vadd.f32 %v1909, %v2153
      %v2236 = vadd.f32 %v1910, %v2156
      %v2237 = vadd.f32 %v1911, %v2161
      %v2238 = vadd.f32 %v1912, %v2164
      %v2239 = vadd.f32 %v1913, %v2169
      %v2240 = vadd.f32 %v1914, %v2172
      %v2241 = vadd.f32 %v1915, %v2177
      %v2242 = vadd.f32 %v1916, %v2180
      %v2243 = vadd.f32 %v1917, %v2185
      %v2244 = vadd.f32 %v1918, %v2188
      %v2245 = vadd.f32 %v1919, %v2193
      %v2246 = vadd.f32 %v1920, %v2196
      %v2247 = vadd.f32 %v1921, %v2201
      %v2248 = vadd.f32 %v1922, %v2204
      %v2249 = vadd.f32 %v1923, %v2209
      %v2250 = vadd.f32 %v1924, %v2212
      %v2251 = vld [vmem:[#allocation2 + $0x13] sm:$0xff]
      %v2252 = vld [vmem:[#allocation2 + $0x1b] sm:$0xff]
      %v2253 = vld [vmem:[#allocation2 + $0x23] sm:$0xff]
      %v2254 = vld [vmem:[#allocation2 + $0x2b] sm:$0xff]
      %v2255 = vld [vmem:[#allocation2 + $0x33] sm:$0xff]
      %v2256 = vld [vmem:[#allocation2 + $0x3b] sm:$0xff]
      %v2257 = vld [vmem:[#allocation2 + $0x43] sm:$0xff]
      %v2258 = vld [vmem:[#allocation2 + $0x4b] sm:$0xff]
      %v2259 = vld [vmem:[#allocation2 + $0x53] sm:$0xff]
      %v2260 = vld [vmem:[#allocation2 + $0x5b] sm:$0xff]
      %v2261 = vld [vmem:[#allocation2 + $0x63] sm:$0xff]
      %v2262 = vld [vmem:[#allocation2 + $0x6b] sm:$0xff]
      %v2263 = vld [vmem:[#allocation2 + $0x73] sm:$0xff]
      %v2264 = vld [vmem:[#allocation2 + $0x7b] sm:$0xff]
      %v2265 = vld [vmem:[#allocation2 + $0x83] sm:$0xff]
      %v2266 = vld [vmem:[#allocation2 + $0x8b] sm:$0xff]
      %v2267 = vld [vmem:[#allocation2 + $0x93] sm:$0xff]
      %v2268 = vld [vmem:[#allocation2 + $0x9b] sm:$0xff]
      %v2269 = vld [vmem:[#allocation2 + $0xa3] sm:$0xff]
      %v2270 = vld [vmem:[#allocation2 + $0xab] sm:$0xff]
      %v2271 = vld [vmem:[#allocation2 + $0xb3] sm:$0xff]
      %v2272 = vld [vmem:[#allocation2 + $0xbb] sm:$0xff]
      %v2273 = vld [vmem:[#allocation2 + $0xc3] sm:$0xff]
      %v2274 = vld [vmem:[#allocation2 + $0xcb] sm:$0xff]
      %v2275 = vld [vmem:[#allocation2 + $0xd3] sm:$0xff]
      %v2276 = vld [vmem:[#allocation2 + $0xdb] sm:$0xff]
      %v2277 = vld [vmem:[#allocation2 + $0xe3] sm:$0xff]
      %v2278 = vld [vmem:[#allocation2 + $0xeb] sm:$0xff]
      %v2279 = vld [vmem:[#allocation2 + $0xf3] sm:$0xff]
      %v2280 = vld [vmem:[#allocation2 + $0xfb] sm:$0xff]
      %v2281 = vld [vmem:[#allocation2 + $0x103] sm:$0xff]
      %v2282 = vld [vmem:[#allocation2 + $0x10b] sm:$0xff]
      %v2283 = vld [vmem:[#allocation2 + $0x113] sm:$0xff]
      %v2284 = vld [vmem:[#allocation2 + $0x11b] sm:$0xff]
      %v2285 = vld [vmem:[#allocation2 + $0x123] sm:$0xff]
      %v2286 = vld [vmem:[#allocation2 + $0x12b] sm:$0xff]
      %v2287 = vpack.c.bf16 %v2252, %v2251
      %v2288 = vpack.c.bf16 %v2254, %v2253
      %v2289 = vpack.c.bf16 %v2256, %v2255
      %v2290 = vpack.c.bf16 %v2258, %v2257
      %v2291 = vpack.c.bf16 %v2260, %v2259
      %v2292 = vpack.c.bf16 %v2262, %v2261
      %v2293 = vpack.c.bf16 %v2264, %v2263
      %v2294 = vpack.c.bf16 %v2266, %v2265
      %v2295 = vpack.c.bf16 %v2268, %v2267
      %v2296 = vpack.c.bf16 %v2270, %v2269
      %v2297 = vpack.c.bf16 %v2272, %v2271
      %v2298 = vpack.c.bf16 %v2274, %v2273
      %v2299 = vpack.c.bf16 %v2276, %v2275
      %v2300 = vpack.c.bf16 %v2278, %v2277
      %v2301 = vpack.c.bf16 %v2280, %v2279
      %v2302 = vpack.c.bf16 %v2282, %v2281
      %v2303 = vpack.c.bf16 %v2284, %v2283
      %v2304 = vpack.c.bf16 %v2286, %v2285
      %s2305 = scalar_lea.vmem %s2, 16
      %v2306 = vld [vmem:[%s2305] sm:$0xf]
      %v2308 = vsel %vm363, %v2287, 0
      %v2311 = vsel %vm363, %v2288, 0
      %v2314 = vsel %vm363, %v2289, 0
      %v2317 = vsel %vm363, %v2290, 0
      %v2320 = vsel %vm363, %v2291, 0
      %v2323 = vsel %vm363, %v2292, 0
      %v2326 = vsel %vm363, %v2293, 0
      %v2329 = vsel %vm363, %v2294, 0
      %v2332 = vsel %vm363, %v2295, 0
      %v2335 = vsel %vm363, %v2296, 0
      %v2338 = vsel %vm363, %v2297, 0
      %v2341 = vsel %vm363, %v2298, 0
      %v2344 = vsel %vm363, %v2299, 0
      %v2347 = vsel %vm363, %v2300, 0
      %v2350 = vsel %vm363, %v2301, 0
      %v2353 = vsel %vm363, %v2302, 0
      %v2356 = vsel %vm363, %v2303, 0
      %v2359 = vsel %vm363, %v2304, 0
      %v2362 = vsel %vm1184, %v2306, 0
      %2364 = vmatprep.subr.bf16.mxu0 0
      %2365 = vmatpush1.bf16.msra.mxu0 0
      %2366 = vmatprep.subr.bf16.mxu0 0
      %2367 = vmatpush1.bf16.msra.mxu0 0
      %2368 = vmatprep.subr.bf16.mxu0 0
      %2369 = vmatpush1.bf16.msra.mxu0 0
      %2370 = vmatprep.subr.bf16.mxu0 0
      %2371 = vmatpush1.bf16.msra.mxu0 0
      %2372 = vmatprep.subr.bf16.mxu0 0
      %2373 = vmatpush1.bf16.msra.mxu0 0
      %2374 = vmatprep.subr.bf16.mxu0 0
      %2375 = vmatpush1.bf16.msra.mxu0 0
      %2376 = vmatprep.subr.bf16.mxu0 0
      %2377 = vmatpush1.bf16.msra.mxu0 0
      %2378 = vmatprep.subr.bf16.mxu0 0
      %2379 = vmatpush1.bf16.msra.mxu0 %v2362
      %2380 = vmatprep.subr.bf16.mxu0 0
      %2381 = vmatpush2.bf16.msra.mxu0 0
      %2382 = vmatprep.subr.bf16.mxu0 0
      %2383 = vmatpush2.bf16.msra.mxu0 0
      %2384 = vmatprep.subr.bf16.mxu0 0
      %2385 = vmatpush2.bf16.msra.mxu0 0
      %2386 = vmatprep.subr.bf16.mxu0 0
      %2387 = vmatpush2.bf16.msra.mxu0 0
      %2388 = vmatprep.subr.bf16.mxu0 0
      %2389 = vmatpush2.bf16.msra.mxu0 0
      %2390 = vmatprep.subr.bf16.mxu0 0
      %2391 = vmatpush2.bf16.msra.mxu0 0
      %2392 = vmatprep.subr.bf16.mxu0 0
      %2393 = vmatpush2.bf16.msra.mxu0 0
      %2394 = vmatprep.subr.bf16.mxu0 0
      %2395 = vmatpush2.bf16.msra.mxu0 0
      %2396 = vmatprep.mubr.bf16.mxu0 0
      %2397 = vmatmul.mubr.bf16.gmra.mxu0 %v2308
      %v2398 = vpop.f32.mrf.mxu0
      %v2399 = vadd.f32 0.0, %v2398
      %v2400 = vpop.f32.mrf.mxu0
      %v2401 = vpop.f32.mrf.mxu0
      %v2402 = vadd.f32 0.0, %v2401
      %v2403 = vpop.f32.mrf.mxu0
      %2404 = vmatprep.mubr.bf16.mxu0 0
      %2405 = vmatmul.mubr.bf16.gmra.mxu0 %v2311
      %v2406 = vpop.f32.mrf.mxu0
      %v2407 = vadd.f32 0.0, %v2406
      %v2408 = vpop.f32.mrf.mxu0
      %v2409 = vpop.f32.mrf.mxu0
      %v2410 = vadd.f32 0.0, %v2409
      %v2411 = vpop.f32.mrf.mxu0
      %2412 = vmatprep.mubr.bf16.mxu0 0
      %2413 = vmatmul.mubr.bf16.gmra.mxu0 %v2314
      %v2414 = vpop.f32.mrf.mxu0
      %v2415 = vadd.f32 0.0, %v2414
      %v2416 = vpop.f32.mrf.mxu0
      %v2417 = vpop.f32.mrf.mxu0
      %v2418 = vadd.f32 0.0, %v2417
      %v2419 = vpop.f32.mrf.mxu0
      %2420 = vmatprep.mubr.bf16.mxu0 0
      %2421 = vmatmul.mubr.bf16.gmra.mxu0 %v2317
      %v2422 = vpop.f32.mrf.mxu0
      %v2423 = vadd.f32 0.0, %v2422
      %v2424 = vpop.f32.mrf.mxu0
      %v2425 = vpop.f32.mrf.mxu0
      %v2426 = vadd.f32 0.0, %v2425
      %v2427 = vpop.f32.mrf.mxu0
      %2428 = vmatprep.mubr.bf16.mxu0 0
      %2429 = vmatmul.mubr.bf16.gmra.mxu0 %v2320
      %v2430 = vpop.f32.mrf.mxu0
      %v2431 = vadd.f32 0.0, %v2430
      %v2432 = vpop.f32.mrf.mxu0
      %v2433 = vpop.f32.mrf.mxu0
      %v2434 = vadd.f32 0.0, %v2433
      %v2435 = vpop.f32.mrf.mxu0
      %2436 = vmatprep.mubr.bf16.mxu0 0
      %2437 = vmatmul.mubr.bf16.gmra.mxu0 %v2323
      %v2438 = vpop.f32.mrf.mxu0
      %v2439 = vadd.f32 0.0, %v2438
      %v2440 = vpop.f32.mrf.mxu0
      %v2441 = vpop.f32.mrf.mxu0
      %v2442 = vadd.f32 0.0, %v2441
      %v2443 = vpop.f32.mrf.mxu0
      %2444 = vmatprep.mubr.bf16.mxu0 0
      %2445 = vmatmul.mubr.bf16.gmra.mxu0 %v2326
      %v2446 = vpop.f32.mrf.mxu0
      %v2447 = vadd.f32 0.0, %v2446
      %v2448 = vpop.f32.mrf.mxu0
      %v2449 = vpop.f32.mrf.mxu0
      %v2450 = vadd.f32 0.0, %v2449
      %v2451 = vpop.f32.mrf.mxu0
      %2452 = vmatprep.mubr.bf16.mxu0 0
      %2453 = vmatmul.mubr.bf16.gmra.mxu0 %v2329
      %v2454 = vpop.f32.mrf.mxu0
      %v2455 = vadd.f32 0.0, %v2454
      %v2456 = vpop.f32.mrf.mxu0
      %v2457 = vpop.f32.mrf.mxu0
      %v2458 = vadd.f32 0.0, %v2457
      %v2459 = vpop.f32.mrf.mxu0
      %2460 = vmatprep.mubr.bf16.mxu0 0
      %2461 = vmatmul.mubr.bf16.gmra.mxu0 %v2332
      %v2462 = vpop.f32.mrf.mxu0
      %v2463 = vadd.f32 0.0, %v2462
      %v2464 = vpop.f32.mrf.mxu0
      %v2465 = vpop.f32.mrf.mxu0
      %v2466 = vadd.f32 0.0, %v2465
      %v2467 = vpop.f32.mrf.mxu0
      %2468 = vmatprep.mubr.bf16.mxu0 0
      %2469 = vmatmul.mubr.bf16.gmra.mxu0 %v2335
      %v2470 = vpop.f32.mrf.mxu0
      %v2471 = vadd.f32 0.0, %v2470
      %v2472 = vpop.f32.mrf.mxu0
      %v2473 = vpop.f32.mrf.mxu0
      %v2474 = vadd.f32 0.0, %v2473
      %v2475 = vpop.f32.mrf.mxu0
      %2476 = vmatprep.mubr.bf16.mxu0 0
      %2477 = vmatmul.mubr.bf16.gmra.mxu0 %v2338
      %v2478 = vpop.f32.mrf.mxu0
      %v2479 = vadd.f32 0.0, %v2478
      %v2480 = vpop.f32.mrf.mxu0
      %v2481 = vpop.f32.mrf.mxu0
      %v2482 = vadd.f32 0.0, %v2481
      %v2483 = vpop.f32.mrf.mxu0
      %2484 = vmatprep.mubr.bf16.mxu0 0
      %2485 = vmatmul.mubr.bf16.gmra.mxu0 %v2341
      %v2486 = vpop.f32.mrf.mxu0
      %v2487 = vadd.f32 0.0, %v2486
      %v2488 = vpop.f32.mrf.mxu0
      %v2489 = vpop.f32.mrf.mxu0
      %v2490 = vadd.f32 0.0, %v2489
      %v2491 = vpop.f32.mrf.mxu0
      %2492 = vmatprep.mubr.bf16.mxu0 0
      %2493 = vmatmul.mubr.bf16.gmra.mxu0 %v2344
      %v2494 = vpop.f32.mrf.mxu0
      %v2495 = vadd.f32 0.0, %v2494
      %v2496 = vpop.f32.mrf.mxu0
      %v2497 = vpop.f32.mrf.mxu0
      %v2498 = vadd.f32 0.0, %v2497
      %v2499 = vpop.f32.mrf.mxu0
      %2500 = vmatprep.mubr.bf16.mxu0 0
      %2501 = vmatmul.mubr.bf16.gmra.mxu0 %v2347
      %v2502 = vpop.f32.mrf.mxu0
      %v2503 = vadd.f32 0.0, %v2502
      %v2504 = vpop.f32.mrf.mxu0
      %v2505 = vpop.f32.mrf.mxu0
      %v2506 = vadd.f32 0.0, %v2505
      %v2507 = vpop.f32.mrf.mxu0
      %2508 = vmatprep.mubr.bf16.mxu0 0
      %2509 = vmatmul.mubr.bf16.gmra.mxu0 %v2350
      %v2510 = vpop.f32.mrf.mxu0
      %v2511 = vadd.f32 0.0, %v2510
      %v2512 = vpop.f32.mrf.mxu0
      %v2513 = vpop.f32.mrf.mxu0
      %v2514 = vadd.f32 0.0, %v2513
      %v2515 = vpop.f32.mrf.mxu0
      %2516 = vmatprep.mubr.bf16.mxu0 0
      %2517 = vmatmul.mubr.bf16.gmra.mxu0 %v2353
      %v2518 = vpop.f32.mrf.mxu0
      %v2519 = vadd.f32 0.0, %v2518
      %v2520 = vpop.f32.mrf.mxu0
      %v2521 = vpop.f32.mrf.mxu0
      %v2522 = vadd.f32 0.0, %v2521
      %v2523 = vpop.f32.mrf.mxu0
      %2524 = vmatprep.mubr.bf16.mxu0 0
      %2525 = vmatmul.mubr.bf16.gmra.mxu0 %v2356
      %v2526 = vpop.f32.mrf.mxu0
      %v2527 = vadd.f32 0.0, %v2526
      %v2528 = vpop.f32.mrf.mxu0
      %v2529 = vpop.f32.mrf.mxu0
      %v2530 = vadd.f32 0.0, %v2529
      %v2531 = vpop.f32.mrf.mxu0
      %2532 = vmatprep.mubr.bf16.mxu0 0
      %2533 = vmatmul.mubr.bf16.gmra.mxu0 %v2359
      %v2534 = vpop.f32.mrf.mxu0
      %v2535 = vadd.f32 0.0, %v2534
      %v2536 = vpop.f32.mrf.mxu0
      %v2537 = vpop.f32.mrf.mxu0
      %v2538 = vadd.f32 0.0, %v2537
      %v2539 = vpop.f32.mrf.mxu0
      %2540 = vdwg.mxu0
      %v2541 = vadd.f32 %v2215, %v2399
      %v2542 = vadd.f32 %v2216, %v2402
      %v2543 = vadd.f32 %v2217, %v2407
      %v2544 = vadd.f32 %v2218, %v2410
      %v2545 = vadd.f32 %v2219, %v2415
      %v2546 = vadd.f32 %v2220, %v2418
      %v2547 = vadd.f32 %v2221, %v2423
      %v2548 = vadd.f32 %v2222, %v2426
      %v2549 = vadd.f32 %v2223, %v2431
      %v2550 = vadd.f32 %v2224, %v2434
      %v2551 = vadd.f32 %v2225, %v2439
      %v2552 = vadd.f32 %v2226, %v2442
      %v2553 = vadd.f32 %v2227, %v2447
      %v2554 = vadd.f32 %v2228, %v2450
      %v2555 = vadd.f32 %v2229, %v2455
      %v2556 = vadd.f32 %v2230, %v2458
      %v2557 = vadd.f32 %v2231, %v2463
      %v2558 = vadd.f32 %v2232, %v2466
      %v2559 = vadd.f32 %v2233, %v2471
      %v2560 = vadd.f32 %v2234, %v2474
      %v2561 = vadd.f32 %v2235, %v2479
      %v2562 = vadd.f32 %v2236, %v2482
      %v2563 = vadd.f32 %v2237, %v2487
      %v2564 = vadd.f32 %v2238, %v2490
      %v2565 = vadd.f32 %v2239, %v2495
      %v2566 = vadd.f32 %v2240, %v2498
      %v2567 = vadd.f32 %v2241, %v2503
      %v2568 = vadd.f32 %v2242, %v2506
      %v2569 = vadd.f32 %v2243, %v2511
      %v2570 = vadd.f32 %v2244, %v2514
      %v2571 = vadd.f32 %v2245, %v2519
      %v2572 = vadd.f32 %v2246, %v2522
      %v2573 = vadd.f32 %v2247, %v2527
      %v2574 = vadd.f32 %v2248, %v2530
      %v2575 = vadd.f32 %v2249, %v2535
      %v2576 = vadd.f32 %v2250, %v2538
      %v2577 = vld [vmem:[#allocation2 + $0x14] sm:$0xff]
      %v2578 = vld [vmem:[#allocation2 + $0x1c] sm:$0xff]
      %v2579 = vld [vmem:[#allocation2 + $0x24] sm:$0xff]
      %v2580 = vld [vmem:[#allocation2 + $0x2c] sm:$0xff]
      %v2581 = vld [vmem:[#allocation2 + $0x34] sm:$0xff]
      %v2582 = vld [vmem:[#allocation2 + $0x3c] sm:$0xff]
      %v2583 = vld [vmem:[#allocation2 + $0x44] sm:$0xff]
      %v2584 = vld [vmem:[#allocation2 + $0x4c] sm:$0xff]
      %v2585 = vld [vmem:[#allocation2 + $0x54] sm:$0xff]
      %v2586 = vld [vmem:[#allocation2 + $0x5c] sm:$0xff]
      %v2587 = vld [vmem:[#allocation2 + $0x64] sm:$0xff]
      %v2588 = vld [vmem:[#allocation2 + $0x6c] sm:$0xff]
      %v2589 = vld [vmem:[#allocation2 + $0x74] sm:$0xff]
      %v2590 = vld [vmem:[#allocation2 + $0x7c] sm:$0xff]
      %v2591 = vld [vmem:[#allocation2 + $0x84] sm:$0xff]
      %v2592 = vld [vmem:[#allocation2 + $0x8c] sm:$0xff]
      %v2593 = vld [vmem:[#allocation2 + $0x94] sm:$0xff]
      %v2594 = vld [vmem:[#allocation2 + $0x9c] sm:$0xff]
      %v2595 = vld [vmem:[#allocation2 + $0xa4] sm:$0xff]
      %v2596 = vld [vmem:[#allocation2 + $0xac] sm:$0xff]
      %v2597 = vld [vmem:[#allocation2 + $0xb4] sm:$0xff]
      %v2598 = vld [vmem:[#allocation2 + $0xbc] sm:$0xff]
      %v2599 = vld [vmem:[#allocation2 + $0xc4] sm:$0xff]
      %v2600 = vld [vmem:[#allocation2 + $0xcc] sm:$0xff]
      %v2601 = vld [vmem:[#allocation2 + $0xd4] sm:$0xff]
      %v2602 = vld [vmem:[#allocation2 + $0xdc] sm:$0xff]
      %v2603 = vld [vmem:[#allocation2 + $0xe4] sm:$0xff]
      %v2604 = vld [vmem:[#allocation2 + $0xec] sm:$0xff]
      %v2605 = vld [vmem:[#allocation2 + $0xf4] sm:$0xff]
      %v2606 = vld [vmem:[#allocation2 + $0xfc] sm:$0xff]
      %v2607 = vld [vmem:[#allocation2 + $0x104] sm:$0xff]
      %v2608 = vld [vmem:[#allocation2 + $0x10c] sm:$0xff]
      %v2609 = vld [vmem:[#allocation2 + $0x114] sm:$0xff]
      %v2610 = vld [vmem:[#allocation2 + $0x11c] sm:$0xff]
      %v2611 = vld [vmem:[#allocation2 + $0x124] sm:$0xff]
      %v2612 = vld [vmem:[#allocation2 + $0x12c] sm:$0xff]
      %v2613 = vpack.c.bf16 %v2578, %v2577
      %v2614 = vpack.c.bf16 %v2580, %v2579
      %v2615 = vpack.c.bf16 %v2582, %v2581
      %v2616 = vpack.c.bf16 %v2584, %v2583
      %v2617 = vpack.c.bf16 %v2586, %v2585
      %v2618 = vpack.c.bf16 %v2588, %v2587
      %v2619 = vpack.c.bf16 %v2590, %v2589
      %v2620 = vpack.c.bf16 %v2592, %v2591
      %v2621 = vpack.c.bf16 %v2594, %v2593
      %v2622 = vpack.c.bf16 %v2596, %v2595
      %v2623 = vpack.c.bf16 %v2598, %v2597
      %v2624 = vpack.c.bf16 %v2600, %v2599
      %v2625 = vpack.c.bf16 %v2602, %v2601
      %v2626 = vpack.c.bf16 %v2604, %v2603
      %v2627 = vpack.c.bf16 %v2606, %v2605
      %v2628 = vpack.c.bf16 %v2608, %v2607
      %v2629 = vpack.c.bf16 %v2610, %v2609
      %v2630 = vpack.c.bf16 %v2612, %v2611
      %s2631 = scalar_lea.vmem %s2, 20
      %v2632 = vld [vmem:[%s2631] sm:$0xf]
      %v2634 = vsel %vm363, %v2613, 0
      %v2637 = vsel %vm363, %v2614, 0
      %v2640 = vsel %vm363, %v2615, 0
      %v2643 = vsel %vm363, %v2616, 0
      %v2646 = vsel %vm363, %v2617, 0
      %v2649 = vsel %vm363, %v2618, 0
      %v2652 = vsel %vm363, %v2619, 0
      %v2655 = vsel %vm363, %v2620, 0
      %v2658 = vsel %vm363, %v2621, 0
      %v2661 = vsel %vm363, %v2622, 0
      %v2664 = vsel %vm363, %v2623, 0
      %v2667 = vsel %vm363, %v2624, 0
      %v2670 = vsel %vm363, %v2625, 0
      %v2673 = vsel %vm363, %v2626, 0
      %v2676 = vsel %vm363, %v2627, 0
      %v2679 = vsel %vm363, %v2628, 0
      %v2682 = vsel %vm363, %v2629, 0
      %v2685 = vsel %vm363, %v2630, 0
      %v2688 = vsel %vm1184, %v2632, 0
      %2690 = vmatprep.subr.bf16.mxu0 0
      %2691 = vmatpush1.bf16.msra.mxu0 0
      %2692 = vmatprep.subr.bf16.mxu0 0
      %2693 = vmatpush1.bf16.msra.mxu0 0
      %2694 = vmatprep.subr.bf16.mxu0 0
      %2695 = vmatpush1.bf16.msra.mxu0 0
      %2696 = vmatprep.subr.bf16.mxu0 0
      %2697 = vmatpush1.bf16.msra.mxu0 0
      %2698 = vmatprep.subr.bf16.mxu0 0
      %2699 = vmatpush1.bf16.msra.mxu0 0
      %2700 = vmatprep.subr.bf16.mxu0 0
      %2701 = vmatpush1.bf16.msra.mxu0 0
      %2702 = vmatprep.subr.bf16.mxu0 0
      %2703 = vmatpush1.bf16.msra.mxu0 0
      %2704 = vmatprep.subr.bf16.mxu0 0
      %2705 = vmatpush1.bf16.msra.mxu0 %v2688
      %2706 = vmatprep.subr.bf16.mxu0 0
      %2707 = vmatpush2.bf16.msra.mxu0 0
      %2708 = vmatprep.subr.bf16.mxu0 0
      %2709 = vmatpush2.bf16.msra.mxu0 0
      %2710 = vmatprep.subr.bf16.mxu0 0
      %2711 = vmatpush2.bf16.msra.mxu0 0
      %2712 = vmatprep.subr.bf16.mxu0 0
      %2713 = vmatpush2.bf16.msra.mxu0 0
      %2714 = vmatprep.subr.bf16.mxu0 0
      %2715 = vmatpush2.bf16.msra.mxu0 0
      %2716 = vmatprep.subr.bf16.mxu0 0
      %2717 = vmatpush2.bf16.msra.mxu0 0
      %2718 = vmatprep.subr.bf16.mxu0 0
      %2719 = vmatpush2.bf16.msra.mxu0 0
      %2720 = vmatprep.subr.bf16.mxu0 0
      %2721 = vmatpush2.bf16.msra.mxu0 0
      %2722 = vmatprep.mubr.bf16.mxu0 0
      %2723 = vmatmul.mubr.bf16.gmra.mxu0 %v2634
      %v2724 = vpop.f32.mrf.mxu0
      %v2725 = vadd.f32 0.0, %v2724
      %v2726 = vpop.f32.mrf.mxu0
      %v2727 = vpop.f32.mrf.mxu0
      %v2728 = vadd.f32 0.0, %v2727
      %v2729 = vpop.f32.mrf.mxu0
      %2730 = vmatprep.mubr.bf16.mxu0 0
      %2731 = vmatmul.mubr.bf16.gmra.mxu0 %v2637
      %v2732 = vpop.f32.mrf.mxu0
      %v2733 = vadd.f32 0.0, %v2732
      %v2734 = vpop.f32.mrf.mxu0
      %v2735 = vpop.f32.mrf.mxu0
      %v2736 = vadd.f32 0.0, %v2735
      %v2737 = vpop.f32.mrf.mxu0
      %2738 = vmatprep.mubr.bf16.mxu0 0
      %2739 = vmatmul.mubr.bf16.gmra.mxu0 %v2640
      %v2740 = vpop.f32.mrf.mxu0
      %v2741 = vadd.f32 0.0, %v2740
      %v2742 = vpop.f32.mrf.mxu0
      %v2743 = vpop.f32.mrf.mxu0
      %v2744 = vadd.f32 0.0, %v2743
      %v2745 = vpop.f32.mrf.mxu0
      %2746 = vmatprep.mubr.bf16.mxu0 0
      %2747 = vmatmul.mubr.bf16.gmra.mxu0 %v2643
      %v2748 = vpop.f32.mrf.mxu0
      %v2749 = vadd.f32 0.0, %v2748
      %v2750 = vpop.f32.mrf.mxu0
      %v2751 = vpop.f32.mrf.mxu0
      %v2752 = vadd.f32 0.0, %v2751
      %v2753 = vpop.f32.mrf.mxu0
      %2754 = vmatprep.mubr.bf16.mxu0 0
      %2755 = vmatmul.mubr.bf16.gmra.mxu0 %v2646
      %v2756 = vpop.f32.mrf.mxu0
      %v2757 = vadd.f32 0.0, %v2756
      %v2758 = vpop.f32.mrf.mxu0
      %v2759 = vpop.f32.mrf.mxu0
      %v2760 = vadd.f32 0.0, %v2759
      %v2761 = vpop.f32.mrf.mxu0
      %2762 = vmatprep.mubr.bf16.mxu0 0
      %2763 = vmatmul.mubr.bf16.gmra.mxu0 %v2649
      %v2764 = vpop.f32.mrf.mxu0
      %v2765 = vadd.f32 0.0, %v2764
      %v2766 = vpop.f32.mrf.mxu0
      %v2767 = vpop.f32.mrf.mxu0
      %v2768 = vadd.f32 0.0, %v2767
      %v2769 = vpop.f32.mrf.mxu0
      %2770 = vmatprep.mubr.bf16.mxu0 0
      %2771 = vmatmul.mubr.bf16.gmra.mxu0 %v2652
      %v2772 = vpop.f32.mrf.mxu0
      %v2773 = vadd.f32 0.0, %v2772
      %v2774 = vpop.f32.mrf.mxu0
      %v2775 = vpop.f32.mrf.mxu0
      %v2776 = vadd.f32 0.0, %v2775
      %v2777 = vpop.f32.mrf.mxu0
      %2778 = vmatprep.mubr.bf16.mxu0 0
      %2779 = vmatmul.mubr.bf16.gmra.mxu0 %v2655
      %v2780 = vpop.f32.mrf.mxu0
      %v2781 = vadd.f32 0.0, %v2780
      %v2782 = vpop.f32.mrf.mxu0
      %v2783 = vpop.f32.mrf.mxu0
      %v2784 = vadd.f32 0.0, %v2783
      %v2785 = vpop.f32.mrf.mxu0
      %2786 = vmatprep.mubr.bf16.mxu0 0
      %2787 = vmatmul.mubr.bf16.gmra.mxu0 %v2658
      %v2788 = vpop.f32.mrf.mxu0
      %v2789 = vadd.f32 0.0, %v2788
      %v2790 = vpop.f32.mrf.mxu0
      %v2791 = vpop.f32.mrf.mxu0
      %v2792 = vadd.f32 0.0, %v2791
      %v2793 = vpop.f32.mrf.mxu0
      %2794 = vmatprep.mubr.bf16.mxu0 0
      %2795 = vmatmul.mubr.bf16.gmra.mxu0 %v2661
      %v2796 = vpop.f32.mrf.mxu0
      %v2797 = vadd.f32 0.0, %v2796
      %v2798 = vpop.f32.mrf.mxu0
      %v2799 = vpop.f32.mrf.mxu0
      %v2800 = vadd.f32 0.0, %v2799
      %v2801 = vpop.f32.mrf.mxu0
      %2802 = vmatprep.mubr.bf16.mxu0 0
      %2803 = vmatmul.mubr.bf16.gmra.mxu0 %v2664
      %v2804 = vpop.f32.mrf.mxu0
      %v2805 = vadd.f32 0.0, %v2804
      %v2806 = vpop.f32.mrf.mxu0
      %v2807 = vpop.f32.mrf.mxu0
      %v2808 = vadd.f32 0.0, %v2807
      %v2809 = vpop.f32.mrf.mxu0
      %2810 = vmatprep.mubr.bf16.mxu0 0
      %2811 = vmatmul.mubr.bf16.gmra.mxu0 %v2667
      %v2812 = vpop.f32.mrf.mxu0
      %v2813 = vadd.f32 0.0, %v2812
      %v2814 = vpop.f32.mrf.mxu0
      %v2815 = vpop.f32.mrf.mxu0
      %v2816 = vadd.f32 0.0, %v2815
      %v2817 = vpop.f32.mrf.mxu0
      %2818 = vmatprep.mubr.bf16.mxu0 0
      %2819 = vmatmul.mubr.bf16.gmra.mxu0 %v2670
      %v2820 = vpop.f32.mrf.mxu0
      %v2821 = vadd.f32 0.0, %v2820
      %v2822 = vpop.f32.mrf.mxu0
      %v2823 = vpop.f32.mrf.mxu0
      %v2824 = vadd.f32 0.0, %v2823
      %v2825 = vpop.f32.mrf.mxu0
      %2826 = vmatprep.mubr.bf16.mxu0 0
      %2827 = vmatmul.mubr.bf16.gmra.mxu0 %v2673
      %v2828 = vpop.f32.mrf.mxu0
      %v2829 = vadd.f32 0.0, %v2828
      %v2830 = vpop.f32.mrf.mxu0
      %v2831 = vpop.f32.mrf.mxu0
      %v2832 = vadd.f32 0.0, %v2831
      %v2833 = vpop.f32.mrf.mxu0
      %2834 = vmatprep.mubr.bf16.mxu0 0
      %2835 = vmatmul.mubr.bf16.gmra.mxu0 %v2676
      %v2836 = vpop.f32.mrf.mxu0
      %v2837 = vadd.f32 0.0, %v2836
      %v2838 = vpop.f32.mrf.mxu0
      %v2839 = vpop.f32.mrf.mxu0
      %v2840 = vadd.f32 0.0, %v2839
      %v2841 = vpop.f32.mrf.mxu0
      %2842 = vmatprep.mubr.bf16.mxu0 0
      %2843 = vmatmul.mubr.bf16.gmra.mxu0 %v2679
      %v2844 = vpop.f32.mrf.mxu0
      %v2845 = vadd.f32 0.0, %v2844
      %v2846 = vpop.f32.mrf.mxu0
      %v2847 = vpop.f32.mrf.mxu0
      %v2848 = vadd.f32 0.0, %v2847
      %v2849 = vpop.f32.mrf.mxu0
      %2850 = vmatprep.mubr.bf16.mxu0 0
      %2851 = vmatmul.mubr.bf16.gmra.mxu0 %v2682
      %v2852 = vpop.f32.mrf.mxu0
      %v2853 = vadd.f32 0.0, %v2852
      %v2854 = vpop.f32.mrf.mxu0
      %v2855 = vpop.f32.mrf.mxu0
      %v2856 = vadd.f32 0.0, %v2855
      %v2857 = vpop.f32.mrf.mxu0
      %2858 = vmatprep.mubr.bf16.mxu0 0
      %2859 = vmatmul.mubr.bf16.gmra.mxu0 %v2685
      %v2860 = vpop.f32.mrf.mxu0
      %v2861 = vadd.f32 0.0, %v2860
      %v2862 = vpop.f32.mrf.mxu0
      %v2863 = vpop.f32.mrf.mxu0
      %v2864 = vadd.f32 0.0, %v2863
      %v2865 = vpop.f32.mrf.mxu0
      %2866 = vdwg.mxu0
      %v2867 = vadd.f32 %v2541, %v2725
      %v2868 = vadd.f32 %v2542, %v2728
      %v2869 = vadd.f32 %v2543, %v2733
      %v2870 = vadd.f32 %v2544, %v2736
      %v2871 = vadd.f32 %v2545, %v2741
      %v2872 = vadd.f32 %v2546, %v2744
      %v2873 = vadd.f32 %v2547, %v2749
      %v2874 = vadd.f32 %v2548, %v2752
      %v2875 = vadd.f32 %v2549, %v2757
      %v2876 = vadd.f32 %v2550, %v2760
      %v2877 = vadd.f32 %v2551, %v2765
      %v2878 = vadd.f32 %v2552, %v2768
      %v2879 = vadd.f32 %v2553, %v2773
      %v2880 = vadd.f32 %v2554, %v2776
      %v2881 = vadd.f32 %v2555, %v2781
      %v2882 = vadd.f32 %v2556, %v2784
      %v2883 = vadd.f32 %v2557, %v2789
      %v2884 = vadd.f32 %v2558, %v2792
      %v2885 = vadd.f32 %v2559, %v2797
      %v2886 = vadd.f32 %v2560, %v2800
      %v2887 = vadd.f32 %v2561, %v2805
      %v2888 = vadd.f32 %v2562, %v2808
      %v2889 = vadd.f32 %v2563, %v2813
      %v2890 = vadd.f32 %v2564, %v2816
      %v2891 = vadd.f32 %v2565, %v2821
      %v2892 = vadd.f32 %v2566, %v2824
      %v2893 = vadd.f32 %v2567, %v2829
      %v2894 = vadd.f32 %v2568, %v2832
      %v2895 = vadd.f32 %v2569, %v2837
      %v2896 = vadd.f32 %v2570, %v2840
      %v2897 = vadd.f32 %v2571, %v2845
      %v2898 = vadd.f32 %v2572, %v2848
      %v2899 = vadd.f32 %v2573, %v2853
      %v2900 = vadd.f32 %v2574, %v2856
      %v2901 = vadd.f32 %v2575, %v2861
      %v2902 = vadd.f32 %v2576, %v2864
      %v2903 = vld [vmem:[#allocation2 + $0x24] sm:$0xff]
      %v2904 = vld [vmem:[#allocation2 + $0x2c] sm:$0xff]
      %v2905 = vld [vmem:[#allocation2 + $0x34] sm:$0xff]
      %v2906 = vld [vmem:[#allocation2 + $0x3c] sm:$0xff]
      %v2907 = vld [vmem:[#allocation2 + $0x44] sm:$0xff]
      %v2908 = vld [vmem:[#allocation2 + $0x4c] sm:$0xff]
      %v2909 = vld [vmem:[#allocation2 + $0x54] sm:$0xff]
      %v2910 = vld [vmem:[#allocation2 + $0x5c] sm:$0xff]
      %v2911 = vld [vmem:[#allocation2 + $0x64] sm:$0xff]
      %v2912 = vld [vmem:[#allocation2 + $0x6c] sm:$0xff]
      %v2913 = vld [vmem:[#allocation2 + $0x74] sm:$0xff]
      %v2914 = vld [vmem:[#allocation2 + $0x7c] sm:$0xff]
      %v2915 = vld [vmem:[#allocation2 + $0x84] sm:$0xff]
      %v2916 = vld [vmem:[#allocation2 + $0x8c] sm:$0xff]
      %v2917 = vld [vmem:[#allocation2 + $0x94] sm:$0xff]
      %v2918 = vld [vmem:[#allocation2 + $0x9c] sm:$0xff]
      %v2919 = vld [vmem:[#allocation2 + $0xa4] sm:$0xff]
      %v2920 = vld [vmem:[#allocation2 + $0xac] sm:$0xff]
      %v2921 = vld [vmem:[#allocation2 + $0xb4] sm:$0xff]
      %v2922 = vld [vmem:[#allocation2 + $0xbc] sm:$0xff]
      %v2923 = vld [vmem:[#allocation2 + $0xc4] sm:$0xff]
      %v2924 = vld [vmem:[#allocation2 + $0xcc] sm:$0xff]
      %v2925 = vld [vmem:[#allocation2 + $0xd4] sm:$0xff]
      %v2926 = vld [vmem:[#allocation2 + $0xdc] sm:$0xff]
      %v2927 = vld [vmem:[#allocation2 + $0xe4] sm:$0xff]
      %v2928 = vld [vmem:[#allocation2 + $0xec] sm:$0xff]
      %v2929 = vld [vmem:[#allocation2 + $0xf4] sm:$0xff]
      %v2930 = vld [vmem:[#allocation2 + $0xfc] sm:$0xff]
      %v2931 = vld [vmem:[#allocation2 + $0x104] sm:$0xff]
      %v2932 = vld [vmem:[#allocation2 + $0x10c] sm:$0xff]
      %v2933 = vld [vmem:[#allocation2 + $0x114] sm:$0xff]
      %v2934 = vld [vmem:[#allocation2 + $0x11c] sm:$0xff]
      %v2935 = vld [vmem:[#allocation2 + $0x124] sm:$0xff]
      %v2936 = vld [vmem:[#allocation2 + $0x12c] sm:$0xff]
      %v2937 = vld [vmem:[#allocation2 + $0x134] sm:$0xff]
      %v2938 = vld [vmem:[#allocation2 + $0x13c] sm:$0xff]
      %v2939 = vpack.c.bf16 %v2904, %v2903
      %v2940 = vpack.c.bf16 %v2906, %v2905
      %v2941 = vpack.c.bf16 %v2908, %v2907
      %v2942 = vpack.c.bf16 %v2910, %v2909
      %v2943 = vpack.c.bf16 %v2912, %v2911
      %v2944 = vpack.c.bf16 %v2914, %v2913
      %v2945 = vpack.c.bf16 %v2916, %v2915
      %v2946 = vpack.c.bf16 %v2918, %v2917
      %v2947 = vpack.c.bf16 %v2920, %v2919
      %v2948 = vpack.c.bf16 %v2922, %v2921
      %v2949 = vpack.c.bf16 %v2924, %v2923
      %v2950 = vpack.c.bf16 %v2926, %v2925
      %v2951 = vpack.c.bf16 %v2928, %v2927
      %v2952 = vpack.c.bf16 %v2930, %v2929
      %v2953 = vpack.c.bf16 %v2932, %v2931
      %v2954 = vpack.c.bf16 %v2934, %v2933
      %v2955 = vpack.c.bf16 %v2936, %v2935
      %v2956 = vpack.c.bf16 %v2938, %v2937
      %s2957 = scalar_lea.vmem %s2, 24
      %v2958 = vld [vmem:[%s2957] sm:$0xf]
      %v2960 = vsel %vm363, %v2939, 0
      %v2963 = vsel %vm363, %v2940, 0
      %v2966 = vsel %vm363, %v2941, 0
      %v2969 = vsel %vm363, %v2942, 0
      %v2972 = vsel %vm363, %v2943, 0
      %v2975 = vsel %vm363, %v2944, 0
      %v2978 = vsel %vm363, %v2945, 0
      %v2981 = vsel %vm363, %v2946, 0
      %v2984 = vsel %vm363, %v2947, 0
      %v2987 = vsel %vm363, %v2948, 0
      %v2990 = vsel %vm363, %v2949, 0
      %v2993 = vsel %vm363, %v2950, 0
      %v2996 = vsel %vm363, %v2951, 0
      %v2999 = vsel %vm363, %v2952, 0
      %v3002 = vsel %vm363, %v2953, 0
      %v3005 = vsel %vm363, %v2954, 0
      %v3008 = vsel %vm363, %v2955, 0
      %v3011 = vsel %vm363, %v2956, 0
      %v3014 = vsel %vm1184, %v2958, 0
      %3016 = vmatprep.subr.bf16.mxu0 0
      %3017 = vmatpush1.bf16.msra.mxu0 0
      %3018 = vmatprep.subr.bf16.mxu0 0
      %3019 = vmatpush1.bf16.msra.mxu0 0
      %3020 = vmatprep.subr.bf16.mxu0 0
      %3021 = vmatpush1.bf16.msra.mxu0 0
      %3022 = vmatprep.subr.bf16.mxu0 0
      %3023 = vmatpush1.bf16.msra.mxu0 0
      %3024 = vmatprep.subr.bf16.mxu0 0
      %3025 = vmatpush1.bf16.msra.mxu0 0
      %3026 = vmatprep.subr.bf16.mxu0 0
      %3027 = vmatpush1.bf16.msra.mxu0 0
      %3028 = vmatprep.subr.bf16.mxu0 0
      %3029 = vmatpush1.bf16.msra.mxu0 0
      %3030 = vmatprep.subr.bf16.mxu0 0
      %3031 = vmatpush1.bf16.msra.mxu0 %v3014
      %3032 = vmatprep.subr.bf16.mxu0 0
      %3033 = vmatpush2.bf16.msra.mxu0 0
      %3034 = vmatprep.subr.bf16.mxu0 0
      %3035 = vmatpush2.bf16.msra.mxu0 0
      %3036 = vmatprep.subr.bf16.mxu0 0
      %3037 = vmatpush2.bf16.msra.mxu0 0
      %3038 = vmatprep.subr.bf16.mxu0 0
      %3039 = vmatpush2.bf16.msra.mxu0 0
      %3040 = vmatprep.subr.bf16.mxu0 0
      %3041 = vmatpush2.bf16.msra.mxu0 0
      %3042 = vmatprep.subr.bf16.mxu0 0
      %3043 = vmatpush2.bf16.msra.mxu0 0
      %3044 = vmatprep.subr.bf16.mxu0 0
      %3045 = vmatpush2.bf16.msra.mxu0 0
      %3046 = vmatprep.subr.bf16.mxu0 0
      %3047 = vmatpush2.bf16.msra.mxu0 0
      %3048 = vmatprep.mubr.bf16.mxu0 0
      %3049 = vmatmul.mubr.bf16.gmra.mxu0 %v2960
      %v3050 = vpop.f32.mrf.mxu0
      %v3051 = vadd.f32 0.0, %v3050
      %v3052 = vpop.f32.mrf.mxu0
      %v3053 = vpop.f32.mrf.mxu0
      %v3054 = vadd.f32 0.0, %v3053
      %v3055 = vpop.f32.mrf.mxu0
      %3056 = vmatprep.mubr.bf16.mxu0 0
      %3057 = vmatmul.mubr.bf16.gmra.mxu0 %v2963
      %v3058 = vpop.f32.mrf.mxu0
      %v3059 = vadd.f32 0.0, %v3058
      %v3060 = vpop.f32.mrf.mxu0
      %v3061 = vpop.f32.mrf.mxu0
      %v3062 = vadd.f32 0.0, %v3061
      %v3063 = vpop.f32.mrf.mxu0
      %3064 = vmatprep.mubr.bf16.mxu0 0
      %3065 = vmatmul.mubr.bf16.gmra.mxu0 %v2966
      %v3066 = vpop.f32.mrf.mxu0
      %v3067 = vadd.f32 0.0, %v3066
      %v3068 = vpop.f32.mrf.mxu0
      %v3069 = vpop.f32.mrf.mxu0
      %v3070 = vadd.f32 0.0, %v3069
      %v3071 = vpop.f32.mrf.mxu0
      %3072 = vmatprep.mubr.bf16.mxu0 0
      %3073 = vmatmul.mubr.bf16.gmra.mxu0 %v2969
      %v3074 = vpop.f32.mrf.mxu0
      %v3075 = vadd.f32 0.0, %v3074
      %v3076 = vpop.f32.mrf.mxu0
      %v3077 = vpop.f32.mrf.mxu0
      %v3078 = vadd.f32 0.0, %v3077
      %v3079 = vpop.f32.mrf.mxu0
      %3080 = vmatprep.mubr.bf16.mxu0 0
      %3081 = vmatmul.mubr.bf16.gmra.mxu0 %v2972
      %v3082 = vpop.f32.mrf.mxu0
      %v3083 = vadd.f32 0.0, %v3082
      %v3084 = vpop.f32.mrf.mxu0
      %v3085 = vpop.f32.mrf.mxu0
      %v3086 = vadd.f32 0.0, %v3085
      %v3087 = vpop.f32.mrf.mxu0
      %3088 = vmatprep.mubr.bf16.mxu0 0
      %3089 = vmatmul.mubr.bf16.gmra.mxu0 %v2975
      %v3090 = vpop.f32.mrf.mxu0
      %v3091 = vadd.f32 0.0, %v3090
      %v3092 = vpop.f32.mrf.mxu0
      %v3093 = vpop.f32.mrf.mxu0
      %v3094 = vadd.f32 0.0, %v3093
      %v3095 = vpop.f32.mrf.mxu0
      %3096 = vmatprep.mubr.bf16.mxu0 0
      %3097 = vmatmul.mubr.bf16.gmra.mxu0 %v2978
      %v3098 = vpop.f32.mrf.mxu0
      %v3099 = vadd.f32 0.0, %v3098
      %v3100 = vpop.f32.mrf.mxu0
      %v3101 = vpop.f32.mrf.mxu0
      %v3102 = vadd.f32 0.0, %v3101
      %v3103 = vpop.f32.mrf.mxu0
      %3104 = vmatprep.mubr.bf16.mxu0 0
      %3105 = vmatmul.mubr.bf16.gmra.mxu0 %v2981
      %v3106 = vpop.f32.mrf.mxu0
      %v3107 = vadd.f32 0.0, %v3106
      %v3108 = vpop.f32.mrf.mxu0
      %v3109 = vpop.f32.mrf.mxu0
      %v3110 = vadd.f32 0.0, %v3109
      %v3111 = vpop.f32.mrf.mxu0
      %3112 = vmatprep.mubr.bf16.mxu0 0
      %3113 = vmatmul.mubr.bf16.gmra.mxu0 %v2984
      %v3114 = vpop.f32.mrf.mxu0
      %v3115 = vadd.f32 0.0, %v3114
      %v3116 = vpop.f32.mrf.mxu0
      %v3117 = vpop.f32.mrf.mxu0
      %v3118 = vadd.f32 0.0, %v3117
      %v3119 = vpop.f32.mrf.mxu0
      %3120 = vmatprep.mubr.bf16.mxu0 0
      %3121 = vmatmul.mubr.bf16.gmra.mxu0 %v2987
      %v3122 = vpop.f32.mrf.mxu0
      %v3123 = vadd.f32 0.0, %v3122
      %v3124 = vpop.f32.mrf.mxu0
      %v3125 = vpop.f32.mrf.mxu0
      %v3126 = vadd.f32 0.0, %v3125
      %v3127 = vpop.f32.mrf.mxu0
      %3128 = vmatprep.mubr.bf16.mxu0 0
      %3129 = vmatmul.mubr.bf16.gmra.mxu0 %v2990
      %v3130 = vpop.f32.mrf.mxu0
      %v3131 = vadd.f32 0.0, %v3130
      %v3132 = vpop.f32.mrf.mxu0
      %v3133 = vpop.f32.mrf.mxu0
      %v3134 = vadd.f32 0.0, %v3133
      %v3135 = vpop.f32.mrf.mxu0
      %3136 = vmatprep.mubr.bf16.mxu0 0
      %3137 = vmatmul.mubr.bf16.gmra.mxu0 %v2993
      %v3138 = vpop.f32.mrf.mxu0
      %v3139 = vadd.f32 0.0, %v3138
      %v3140 = vpop.f32.mrf.mxu0
      %v3141 = vpop.f32.mrf.mxu0
      %v3142 = vadd.f32 0.0, %v3141
      %v3143 = vpop.f32.mrf.mxu0
      %3144 = vmatprep.mubr.bf16.mxu0 0
      %3145 = vmatmul.mubr.bf16.gmra.mxu0 %v2996
      %v3146 = vpop.f32.mrf.mxu0
      %v3147 = vadd.f32 0.0, %v3146
      %v3148 = vpop.f32.mrf.mxu0
      %v3149 = vpop.f32.mrf.mxu0
      %v3150 = vadd.f32 0.0, %v3149
      %v3151 = vpop.f32.mrf.mxu0
      %3152 = vmatprep.mubr.bf16.mxu0 0
      %3153 = vmatmul.mubr.bf16.gmra.mxu0 %v2999
      %v3154 = vpop.f32.mrf.mxu0
      %v3155 = vadd.f32 0.0, %v3154
      %v3156 = vpop.f32.mrf.mxu0
      %v3157 = vpop.f32.mrf.mxu0
      %v3158 = vadd.f32 0.0, %v3157
      %v3159 = vpop.f32.mrf.mxu0
      %3160 = vmatprep.mubr.bf16.mxu0 0
      %3161 = vmatmul.mubr.bf16.gmra.mxu0 %v3002
      %v3162 = vpop.f32.mrf.mxu0
      %v3163 = vadd.f32 0.0, %v3162
      %v3164 = vpop.f32.mrf.mxu0
      %v3165 = vpop.f32.mrf.mxu0
      %v3166 = vadd.f32 0.0, %v3165
      %v3167 = vpop.f32.mrf.mxu0
      %3168 = vmatprep.mubr.bf16.mxu0 0
      %3169 = vmatmul.mubr.bf16.gmra.mxu0 %v3005
      %v3170 = vpop.f32.mrf.mxu0
      %v3171 = vadd.f32 0.0, %v3170
      %v3172 = vpop.f32.mrf.mxu0
      %v3173 = vpop.f32.mrf.mxu0
      %v3174 = vadd.f32 0.0, %v3173
      %v3175 = vpop.f32.mrf.mxu0
      %3176 = vmatprep.mubr.bf16.mxu0 0
      %3177 = vmatmul.mubr.bf16.gmra.mxu0 %v3008
      %v3178 = vpop.f32.mrf.mxu0
      %v3179 = vadd.f32 0.0, %v3178
      %v3180 = vpop.f32.mrf.mxu0
      %v3181 = vpop.f32.mrf.mxu0
      %v3182 = vadd.f32 0.0, %v3181
      %v3183 = vpop.f32.mrf.mxu0
      %3184 = vmatprep.mubr.bf16.mxu0 0
      %3185 = vmatmul.mubr.bf16.gmra.mxu0 %v3011
      %v3186 = vpop.f32.mrf.mxu0
      %v3187 = vadd.f32 0.0, %v3186
      %v3188 = vpop.f32.mrf.mxu0
      %v3189 = vpop.f32.mrf.mxu0
      %v3190 = vadd.f32 0.0, %v3189
      %v3191 = vpop.f32.mrf.mxu0
      %3192 = vdwg.mxu0
      %v3193 = vadd.f32 %v2867, %v3051
      %v3194 = vadd.f32 %v2868, %v3054
      %v3195 = vadd.f32 %v2869, %v3059
      %v3196 = vadd.f32 %v2870, %v3062
      %v3197 = vadd.f32 %v2871, %v3067
      %v3198 = vadd.f32 %v2872, %v3070
      %v3199 = vadd.f32 %v2873, %v3075
      %v3200 = vadd.f32 %v2874, %v3078
      %v3201 = vadd.f32 %v2875, %v3083
      %v3202 = vadd.f32 %v2876, %v3086
      %v3203 = vadd.f32 %v2877, %v3091
      %v3204 = vadd.f32 %v2878, %v3094
      %v3205 = vadd.f32 %v2879, %v3099
      %v3206 = vadd.f32 %v2880, %v3102
      %v3207 = vadd.f32 %v2881, %v3107
      %v3208 = vadd.f32 %v2882, %v3110
      %v3209 = vadd.f32 %v2883, %v3115
      %v3210 = vadd.f32 %v2884, %v3118
      %v3211 = vadd.f32 %v2885, %v3123
      %v3212 = vadd.f32 %v2886, %v3126
      %v3213 = vadd.f32 %v2887, %v3131
      %v3214 = vadd.f32 %v2888, %v3134
      %v3215 = vadd.f32 %v2889, %v3139
      %v3216 = vadd.f32 %v2890, %v3142
      %v3217 = vadd.f32 %v2891, %v3147
      %v3218 = vadd.f32 %v2892, %v3150
      %v3219 = vadd.f32 %v2893, %v3155
      %v3220 = vadd.f32 %v2894, %v3158
      %v3221 = vadd.f32 %v2895, %v3163
      %v3222 = vadd.f32 %v2896, %v3166
      %v3223 = vadd.f32 %v2897, %v3171
      %v3224 = vadd.f32 %v2898, %v3174
      %v3225 = vadd.f32 %v2899, %v3179
      %v3226 = vadd.f32 %v2900, %v3182
      %v3227 = vadd.f32 %v2901, %v3187
      %v3228 = vadd.f32 %v2902, %v3190
      %v3229 = vld [vmem:[#allocation2 + $0x25] sm:$0xff]
      %v3230 = vld [vmem:[#allocation2 + $0x2d] sm:$0xff]
      %v3231 = vld [vmem:[#allocation2 + $0x35] sm:$0xff]
      %v3232 = vld [vmem:[#allocation2 + $0x3d] sm:$0xff]
      %v3233 = vld [vmem:[#allocation2 + $0x45] sm:$0xff]
      %v3234 = vld [vmem:[#allocation2 + $0x4d] sm:$0xff]
      %v3235 = vld [vmem:[#allocation2 + $0x55] sm:$0xff]
      %v3236 = vld [vmem:[#allocation2 + $0x5d] sm:$0xff]
      %v3237 = vld [vmem:[#allocation2 + $0x65] sm:$0xff]
      %v3238 = vld [vmem:[#allocation2 + $0x6d] sm:$0xff]
      %v3239 = vld [vmem:[#allocation2 + $0x75] sm:$0xff]
      %v3240 = vld [vmem:[#allocation2 + $0x7d] sm:$0xff]
      %v3241 = vld [vmem:[#allocation2 + $0x85] sm:$0xff]
      %v3242 = vld [vmem:[#allocation2 + $0x8d] sm:$0xff]
      %v3243 = vld [vmem:[#allocation2 + $0x95] sm:$0xff]
      %v3244 = vld [vmem:[#allocation2 + $0x9d] sm:$0xff]
      %v3245 = vld [vmem:[#allocation2 + $0xa5] sm:$0xff]
      %v3246 = vld [vmem:[#allocation2 + $0xad] sm:$0xff]
      %v3247 = vld [vmem:[#allocation2 + $0xb5] sm:$0xff]
      %v3248 = vld [vmem:[#allocation2 + $0xbd] sm:$0xff]
      %v3249 = vld [vmem:[#allocation2 + $0xc5] sm:$0xff]
      %v3250 = vld [vmem:[#allocation2 + $0xcd] sm:$0xff]
      %v3251 = vld [vmem:[#allocation2 + $0xd5] sm:$0xff]
      %v3252 = vld [vmem:[#allocation2 + $0xdd] sm:$0xff]
      %v3253 = vld [vmem:[#allocation2 + $0xe5] sm:$0xff]
      %v3254 = vld [vmem:[#allocation2 + $0xed] sm:$0xff]
      %v3255 = vld [vmem:[#allocation2 + $0xf5] sm:$0xff]
      %v3256 = vld [vmem:[#allocation2 + $0xfd] sm:$0xff]
      %v3257 = vld [vmem:[#allocation2 + $0x105] sm:$0xff]
      %v3258 = vld [vmem:[#allocation2 + $0x10d] sm:$0xff]
      %v3259 = vld [vmem:[#allocation2 + $0x115] sm:$0xff]
      %v3260 = vld [vmem:[#allocation2 + $0x11d] sm:$0xff]
      %v3261 = vld [vmem:[#allocation2 + $0x125] sm:$0xff]
      %v3262 = vld [vmem:[#allocation2 + $0x12d] sm:$0xff]
      %v3263 = vld [vmem:[#allocation2 + $0x135] sm:$0xff]
      %v3264 = vld [vmem:[#allocation2 + $0x13d] sm:$0xff]
      %v3265 = vpack.c.bf16 %v3230, %v3229
      %v3266 = vpack.c.bf16 %v3232, %v3231
      %v3267 = vpack.c.bf16 %v3234, %v3233
      %v3268 = vpack.c.bf16 %v3236, %v3235
      %v3269 = vpack.c.bf16 %v3238, %v3237
      %v3270 = vpack.c.bf16 %v3240, %v3239
      %v3271 = vpack.c.bf16 %v3242, %v3241
      %v3272 = vpack.c.bf16 %v3244, %v3243
      %v3273 = vpack.c.bf16 %v3246, %v3245
      %v3274 = vpack.c.bf16 %v3248, %v3247
      %v3275 = vpack.c.bf16 %v3250, %v3249
      %v3276 = vpack.c.bf16 %v3252, %v3251
      %v3277 = vpack.c.bf16 %v3254, %v3253
      %v3278 = vpack.c.bf16 %v3256, %v3255
      %v3279 = vpack.c.bf16 %v3258, %v3257
      %v3280 = vpack.c.bf16 %v3260, %v3259
      %v3281 = vpack.c.bf16 %v3262, %v3261
      %v3282 = vpack.c.bf16 %v3264, %v3263
      %s3283 = scalar_lea.vmem %s2, 28
      %v3284 = vld [vmem:[%s3283] sm:$0xf]
      %v3286 = vsel %vm363, %v3265, 0
      %v3289 = vsel %vm363, %v3266, 0
      %v3292 = vsel %vm363, %v3267, 0
      %v3295 = vsel %vm363, %v3268, 0
      %v3298 = vsel %vm363, %v3269, 0
      %v3301 = vsel %vm363, %v3270, 0
      %v3304 = vsel %vm363, %v3271, 0
      %v3307 = vsel %vm363, %v3272, 0
      %v3310 = vsel %vm363, %v3273, 0
      %v3313 = vsel %vm363, %v3274, 0
      %v3316 = vsel %vm363, %v3275, 0
      %v3319 = vsel %vm363, %v3276, 0
      %v3322 = vsel %vm363, %v3277, 0
      %v3325 = vsel %vm363, %v3278, 0
      %v3328 = vsel %vm363, %v3279, 0
      %v3331 = vsel %vm363, %v3280, 0
      %v3334 = vsel %vm363, %v3281, 0
      %v3337 = vsel %vm363, %v3282, 0
      %v3340 = vsel %vm1184, %v3284, 0
      %3342 = vmatprep.subr.bf16.mxu0 0
      %3343 = vmatpush1.bf16.msra.mxu0 0
      %3344 = vmatprep.subr.bf16.mxu0 0
      %3345 = vmatpush1.bf16.msra.mxu0 0
      %3346 = vmatprep.subr.bf16.mxu0 0
      %3347 = vmatpush1.bf16.msra.mxu0 0
      %3348 = vmatprep.subr.bf16.mxu0 0
      %3349 = vmatpush1.bf16.msra.mxu0 0
      %3350 = vmatprep.subr.bf16.mxu0 0
      %3351 = vmatpush1.bf16.msra.mxu0 0
      %3352 = vmatprep.subr.bf16.mxu0 0
      %3353 = vmatpush1.bf16.msra.mxu0 0
      %3354 = vmatprep.subr.bf16.mxu0 0
      %3355 = vmatpush1.bf16.msra.mxu0 0
      %3356 = vmatprep.subr.bf16.mxu0 0
      %3357 = vmatpush1.bf16.msra.mxu0 %v3340
      %3358 = vmatprep.subr.bf16.mxu0 0
      %3359 = vmatpush2.bf16.msra.mxu0 0
      %3360 = vmatprep.subr.bf16.mxu0 0
      %3361 = vmatpush2.bf16.msra.mxu0 0
      %3362 = vmatprep.subr.bf16.mxu0 0
      %3363 = vmatpush2.bf16.msra.mxu0 0
      %3364 = vmatprep.subr.bf16.mxu0 0
      %3365 = vmatpush2.bf16.msra.mxu0 0
      %3366 = vmatprep.subr.bf16.mxu0 0
      %3367 = vmatpush2.bf16.msra.mxu0 0
      %3368 = vmatprep.subr.bf16.mxu0 0
      %3369 = vmatpush2.bf16.msra.mxu0 0
      %3370 = vmatprep.subr.bf16.mxu0 0
      %3371 = vmatpush2.bf16.msra.mxu0 0
      %3372 = vmatprep.subr.bf16.mxu0 0
      %3373 = vmatpush2.bf16.msra.mxu0 0
      %3374 = vmatprep.mubr.bf16.mxu0 0
      %3375 = vmatmul.mubr.bf16.gmra.mxu0 %v3286
      %v3376 = vpop.f32.mrf.mxu0
      %v3377 = vadd.f32 0.0, %v3376
      %v3378 = vpop.f32.mrf.mxu0
      %v3379 = vpop.f32.mrf.mxu0
      %v3380 = vadd.f32 0.0, %v3379
      %v3381 = vpop.f32.mrf.mxu0
      %3382 = vmatprep.mubr.bf16.mxu0 0
      %3383 = vmatmul.mubr.bf16.gmra.mxu0 %v3289
      %v3384 = vpop.f32.mrf.mxu0
      %v3385 = vadd.f32 0.0, %v3384
      %v3386 = vpop.f32.mrf.mxu0
      %v3387 = vpop.f32.mrf.mxu0
      %v3388 = vadd.f32 0.0, %v3387
      %v3389 = vpop.f32.mrf.mxu0
      %3390 = vmatprep.mubr.bf16.mxu0 0
      %3391 = vmatmul.mubr.bf16.gmra.mxu0 %v3292
      %v3392 = vpop.f32.mrf.mxu0
      %v3393 = vadd.f32 0.0, %v3392
      %v3394 = vpop.f32.mrf.mxu0
      %v3395 = vpop.f32.mrf.mxu0
      %v3396 = vadd.f32 0.0, %v3395
      %v3397 = vpop.f32.mrf.mxu0
      %3398 = vmatprep.mubr.bf16.mxu0 0
      %3399 = vmatmul.mubr.bf16.gmra.mxu0 %v3295
      %v3400 = vpop.f32.mrf.mxu0
      %v3401 = vadd.f32 0.0, %v3400
      %v3402 = vpop.f32.mrf.mxu0
      %v3403 = vpop.f32.mrf.mxu0
      %v3404 = vadd.f32 0.0, %v3403
      %v3405 = vpop.f32.mrf.mxu0
      %3406 = vmatprep.mubr.bf16.mxu0 0
      %3407 = vmatmul.mubr.bf16.gmra.mxu0 %v3298
      %v3408 = vpop.f32.mrf.mxu0
      %v3409 = vadd.f32 0.0, %v3408
      %v3410 = vpop.f32.mrf.mxu0
      %v3411 = vpop.f32.mrf.mxu0
      %v3412 = vadd.f32 0.0, %v3411
      %v3413 = vpop.f32.mrf.mxu0
      %3414 = vmatprep.mubr.bf16.mxu0 0
      %3415 = vmatmul.mubr.bf16.gmra.mxu0 %v3301
      %v3416 = vpop.f32.mrf.mxu0
      %v3417 = vadd.f32 0.0, %v3416
      %v3418 = vpop.f32.mrf.mxu0
      %v3419 = vpop.f32.mrf.mxu0
      %v3420 = vadd.f32 0.0, %v3419
      %v3421 = vpop.f32.mrf.mxu0
      %3422 = vmatprep.mubr.bf16.mxu0 0
      %3423 = vmatmul.mubr.bf16.gmra.mxu0 %v3304
      %v3424 = vpop.f32.mrf.mxu0
      %v3425 = vadd.f32 0.0, %v3424
      %v3426 = vpop.f32.mrf.mxu0
      %v3427 = vpop.f32.mrf.mxu0
      %v3428 = vadd.f32 0.0, %v3427
      %v3429 = vpop.f32.mrf.mxu0
      %3430 = vmatprep.mubr.bf16.mxu0 0
      %3431 = vmatmul.mubr.bf16.gmra.mxu0 %v3307
      %v3432 = vpop.f32.mrf.mxu0
      %v3433 = vadd.f32 0.0, %v3432
      %v3434 = vpop.f32.mrf.mxu0
      %v3435 = vpop.f32.mrf.mxu0
      %v3436 = vadd.f32 0.0, %v3435
      %v3437 = vpop.f32.mrf.mxu0
      %3438 = vmatprep.mubr.bf16.mxu0 0
      %3439 = vmatmul.mubr.bf16.gmra.mxu0 %v3310
      %v3440 = vpop.f32.mrf.mxu0
      %v3441 = vadd.f32 0.0, %v3440
      %v3442 = vpop.f32.mrf.mxu0
      %v3443 = vpop.f32.mrf.mxu0
      %v3444 = vadd.f32 0.0, %v3443
      %v3445 = vpop.f32.mrf.mxu0
      %3446 = vmatprep.mubr.bf16.mxu0 0
      %3447 = vmatmul.mubr.bf16.gmra.mxu0 %v3313
      %v3448 = vpop.f32.mrf.mxu0
      %v3449 = vadd.f32 0.0, %v3448
      %v3450 = vpop.f32.mrf.mxu0
      %v3451 = vpop.f32.mrf.mxu0
      %v3452 = vadd.f32 0.0, %v3451
      %v3453 = vpop.f32.mrf.mxu0
      %3454 = vmatprep.mubr.bf16.mxu0 0
      %3455 = vmatmul.mubr.bf16.gmra.mxu0 %v3316
      %v3456 = vpop.f32.mrf.mxu0
      %v3457 = vadd.f32 0.0, %v3456
      %v3458 = vpop.f32.mrf.mxu0
      %v3459 = vpop.f32.mrf.mxu0
      %v3460 = vadd.f32 0.0, %v3459
      %v3461 = vpop.f32.mrf.mxu0
      %3462 = vmatprep.mubr.bf16.mxu0 0
      %3463 = vmatmul.mubr.bf16.gmra.mxu0 %v3319
      %v3464 = vpop.f32.mrf.mxu0
      %v3465 = vadd.f32 0.0, %v3464
      %v3466 = vpop.f32.mrf.mxu0
      %v3467 = vpop.f32.mrf.mxu0
      %v3468 = vadd.f32 0.0, %v3467
      %v3469 = vpop.f32.mrf.mxu0
      %3470 = vmatprep.mubr.bf16.mxu0 0
      %3471 = vmatmul.mubr.bf16.gmra.mxu0 %v3322
      %v3472 = vpop.f32.mrf.mxu0
      %v3473 = vadd.f32 0.0, %v3472
      %v3474 = vpop.f32.mrf.mxu0
      %v3475 = vpop.f32.mrf.mxu0
      %v3476 = vadd.f32 0.0, %v3475
      %v3477 = vpop.f32.mrf.mxu0
      %3478 = vmatprep.mubr.bf16.mxu0 0
      %3479 = vmatmul.mubr.bf16.gmra.mxu0 %v3325
      %v3480 = vpop.f32.mrf.mxu0
      %v3481 = vadd.f32 0.0, %v3480
      %v3482 = vpop.f32.mrf.mxu0
      %v3483 = vpop.f32.mrf.mxu0
      %v3484 = vadd.f32 0.0, %v3483
      %v3485 = vpop.f32.mrf.mxu0
      %3486 = vmatprep.mubr.bf16.mxu0 0
      %3487 = vmatmul.mubr.bf16.gmra.mxu0 %v3328
      %v3488 = vpop.f32.mrf.mxu0
      %v3489 = vadd.f32 0.0, %v3488
      %v3490 = vpop.f32.mrf.mxu0
      %v3491 = vpop.f32.mrf.mxu0
      %v3492 = vadd.f32 0.0, %v3491
      %v3493 = vpop.f32.mrf.mxu0
      %3494 = vmatprep.mubr.bf16.mxu0 0
      %3495 = vmatmul.mubr.bf16.gmra.mxu0 %v3331
      %v3496 = vpop.f32.mrf.mxu0
      %v3497 = vadd.f32 0.0, %v3496
      %v3498 = vpop.f32.mrf.mxu0
      %v3499 = vpop.f32.mrf.mxu0
      %v3500 = vadd.f32 0.0, %v3499
      %v3501 = vpop.f32.mrf.mxu0
      %3502 = vmatprep.mubr.bf16.mxu0 0
      %3503 = vmatmul.mubr.bf16.gmra.mxu0 %v3334
      %v3504 = vpop.f32.mrf.mxu0
      %v3505 = vadd.f32 0.0, %v3504
      %v3506 = vpop.f32.mrf.mxu0
      %v3507 = vpop.f32.mrf.mxu0
      %v3508 = vadd.f32 0.0, %v3507
      %v3509 = vpop.f32.mrf.mxu0
      %3510 = vmatprep.mubr.bf16.mxu0 0
      %3511 = vmatmul.mubr.bf16.gmra.mxu0 %v3337
      %v3512 = vpop.f32.mrf.mxu0
      %v3513 = vadd.f32 0.0, %v3512
      %v3514 = vpop.f32.mrf.mxu0
      %v3515 = vpop.f32.mrf.mxu0
      %v3516 = vadd.f32 0.0, %v3515
      %v3517 = vpop.f32.mrf.mxu0
      %3518 = vdwg.mxu0
      %v3519 = vadd.f32 %v3193, %v3377
      %v3520 = vadd.f32 %v3194, %v3380
      %v3521 = vadd.f32 %v3195, %v3385
      %v3522 = vadd.f32 %v3196, %v3388
      %v3523 = vadd.f32 %v3197, %v3393
      %v3524 = vadd.f32 %v3198, %v3396
      %v3525 = vadd.f32 %v3199, %v3401
      %v3526 = vadd.f32 %v3200, %v3404
      %v3527 = vadd.f32 %v3201, %v3409
      %v3528 = vadd.f32 %v3202, %v3412
      %v3529 = vadd.f32 %v3203, %v3417
      %v3530 = vadd.f32 %v3204, %v3420
      %v3531 = vadd.f32 %v3205, %v3425
      %v3532 = vadd.f32 %v3206, %v3428
      %v3533 = vadd.f32 %v3207, %v3433
      %v3534 = vadd.f32 %v3208, %v3436
      %v3535 = vadd.f32 %v3209, %v3441
      %v3536 = vadd.f32 %v3210, %v3444
      %v3537 = vadd.f32 %v3211, %v3449
      %v3538 = vadd.f32 %v3212, %v3452
      %v3539 = vadd.f32 %v3213, %v3457
      %v3540 = vadd.f32 %v3214, %v3460
      %v3541 = vadd.f32 %v3215, %v3465
      %v3542 = vadd.f32 %v3216, %v3468
      %v3543 = vadd.f32 %v3217, %v3473
      %v3544 = vadd.f32 %v3218, %v3476
      %v3545 = vadd.f32 %v3219, %v3481
      %v3546 = vadd.f32 %v3220, %v3484
      %v3547 = vadd.f32 %v3221, %v3489
      %v3548 = vadd.f32 %v3222, %v3492
      %v3549 = vadd.f32 %v3223, %v3497
      %v3550 = vadd.f32 %v3224, %v3500
      %v3551 = vadd.f32 %v3225, %v3505
      %v3552 = vadd.f32 %v3226, %v3508
      %v3553 = vadd.f32 %v3227, %v3513
      %v3554 = vadd.f32 %v3228, %v3516
      %v3555 = vld [vmem:[#allocation2 + $0x26] sm:$0xff]
      %v3556 = vld [vmem:[#allocation2 + $0x2e] sm:$0xff]
      %v3557 = vld [vmem:[#allocation2 + $0x36] sm:$0xff]
      %v3558 = vld [vmem:[#allocation2 + $0x3e] sm:$0xff]
      %v3559 = vld [vmem:[#allocation2 + $0x46] sm:$0xff]
      %v3560 = vld [vmem:[#allocation2 + $0x4e] sm:$0xff]
      %v3561 = vld [vmem:[#allocation2 + $0x56] sm:$0xff]
      %v3562 = vld [vmem:[#allocation2 + $0x5e] sm:$0xff]
      %v3563 = vld [vmem:[#allocation2 + $0x66] sm:$0xff]
      %v3564 = vld [vmem:[#allocation2 + $0x6e] sm:$0xff]
      %v3565 = vld [vmem:[#allocation2 + $0x76] sm:$0xff]
      %v3566 = vld [vmem:[#allocation2 + $0x7e] sm:$0xff]
      %v3567 = vld [vmem:[#allocation2 + $0x86] sm:$0xff]
      %v3568 = vld [vmem:[#allocation2 + $0x8e] sm:$0xff]
      %v3569 = vld [vmem:[#allocation2 + $0x96] sm:$0xff]
      %v3570 = vld [vmem:[#allocation2 + $0x9e] sm:$0xff]
      %v3571 = vld [vmem:[#allocation2 + $0xa6] sm:$0xff]
      %v3572 = vld [vmem:[#allocation2 + $0xae] sm:$0xff]
      %v3573 = vld [vmem:[#allocation2 + $0xb6] sm:$0xff]
      %v3574 = vld [vmem:[#allocation2 + $0xbe] sm:$0xff]
      %v3575 = vld [vmem:[#allocation2 + $0xc6] sm:$0xff]
      %v3576 = vld [vmem:[#allocation2 + $0xce] sm:$0xff]
      %v3577 = vld [vmem:[#allocation2 + $0xd6] sm:$0xff]
      %v3578 = vld [vmem:[#allocation2 + $0xde] sm:$0xff]
      %v3579 = vld [vmem:[#allocation2 + $0xe6] sm:$0xff]
      %v3580 = vld [vmem:[#allocation2 + $0xee] sm:$0xff]
      %v3581 = vld [vmem:[#allocation2 + $0xf6] sm:$0xff]
      %v3582 = vld [vmem:[#allocation2 + $0xfe] sm:$0xff]
      %v3583 = vld [vmem:[#allocation2 + $0x106] sm:$0xff]
      %v3584 = vld [vmem:[#allocation2 + $0x10e] sm:$0xff]
      %v3585 = vld [vmem:[#allocation2 + $0x116] sm:$0xff]
      %v3586 = vld [vmem:[#allocation2 + $0x11e] sm:$0xff]
      %v3587 = vld [vmem:[#allocation2 + $0x126] sm:$0xff]
      %v3588 = vld [vmem:[#allocation2 + $0x12e] sm:$0xff]
      %v3589 = vld [vmem:[#allocation2 + $0x136] sm:$0xff]
      %v3590 = vld [vmem:[#allocation2 + $0x13e] sm:$0xff]
      %v3591 = vpack.c.bf16 %v3556, %v3555
      %v3592 = vpack.c.bf16 %v3558, %v3557
      %v3593 = vpack.c.bf16 %v3560, %v3559
      %v3594 = vpack.c.bf16 %v3562, %v3561
      %v3595 = vpack.c.bf16 %v3564, %v3563
      %v3596 = vpack.c.bf16 %v3566, %v3565
      %v3597 = vpack.c.bf16 %v3568, %v3567
      %v3598 = vpack.c.bf16 %v3570, %v3569
      %v3599 = vpack.c.bf16 %v3572, %v3571
      %v3600 = vpack.c.bf16 %v3574, %v3573
      %v3601 = vpack.c.bf16 %v3576, %v3575
      %v3602 = vpack.c.bf16 %v3578, %v3577
      %v3603 = vpack.c.bf16 %v3580, %v3579
      %v3604 = vpack.c.bf16 %v3582, %v3581
      %v3605 = vpack.c.bf16 %v3584, %v3583
      %v3606 = vpack.c.bf16 %v3586, %v3585
      %v3607 = vpack.c.bf16 %v3588, %v3587
      %v3608 = vpack.c.bf16 %v3590, %v3589
      %s3609 = scalar_lea.vmem %s2, 32
      %v3610 = vld [vmem:[%s3609] sm:$0xf]
      %v3612 = vsel %vm363, %v3591, 0
      %v3615 = vsel %vm363, %v3592, 0
      %v3618 = vsel %vm363, %v3593, 0
      %v3621 = vsel %vm363, %v3594, 0
      %v3624 = vsel %vm363, %v3595, 0
      %v3627 = vsel %vm363, %v3596, 0
      %v3630 = vsel %vm363, %v3597, 0
      %v3633 = vsel %vm363, %v3598, 0
      %v3636 = vsel %vm363, %v3599, 0
      %v3639 = vsel %vm363, %v3600, 0
      %v3642 = vsel %vm363, %v3601, 0
      %v3645 = vsel %vm363, %v3602, 0
      %v3648 = vsel %vm363, %v3603, 0
      %v3651 = vsel %vm363, %v3604, 0
      %v3654 = vsel %vm363, %v3605, 0
      %v3657 = vsel %vm363, %v3606, 0
      %v3660 = vsel %vm363, %v3607, 0
      %v3663 = vsel %vm363, %v3608, 0
      %v3666 = vsel %vm1184, %v3610, 0
      %3668 = vmatprep.subr.bf16.mxu0 0
      %3669 = vmatpush1.bf16.msra.mxu0 0
      %3670 = vmatprep.subr.bf16.mxu0 0
      %3671 = vmatpush1.bf16.msra.mxu0 0
      %3672 = vmatprep.subr.bf16.mxu0 0
      %3673 = vmatpush1.bf16.msra.mxu0 0
      %3674 = vmatprep.subr.bf16.mxu0 0
      %3675 = vmatpush1.bf16.msra.mxu0 0
      %3676 = vmatprep.subr.bf16.mxu0 0
      %3677 = vmatpush1.bf16.msra.mxu0 0
      %3678 = vmatprep.subr.bf16.mxu0 0
      %3679 = vmatpush1.bf16.msra.mxu0 0
      %3680 = vmatprep.subr.bf16.mxu0 0
      %3681 = vmatpush1.bf16.msra.mxu0 0
      %3682 = vmatprep.subr.bf16.mxu0 0
      %3683 = vmatpush1.bf16.msra.mxu0 %v3666
      %3684 = vmatprep.subr.bf16.mxu0 0
      %3685 = vmatpush2.bf16.msra.mxu0 0
      %3686 = vmatprep.subr.bf16.mxu0 0
      %3687 = vmatpush2.bf16.msra.mxu0 0
      %3688 = vmatprep.subr.bf16.mxu0 0
      %3689 = vmatpush2.bf16.msra.mxu0 0
      %3690 = vmatprep.subr.bf16.mxu0 0
      %3691 = vmatpush2.bf16.msra.mxu0 0
      %3692 = vmatprep.subr.bf16.mxu0 0
      %3693 = vmatpush2.bf16.msra.mxu0 0
      %3694 = vmatprep.subr.bf16.mxu0 0
      %3695 = vmatpush2.bf16.msra.mxu0 0
      %3696 = vmatprep.subr.bf16.mxu0 0
      %3697 = vmatpush2.bf16.msra.mxu0 0
      %3698 = vmatprep.subr.bf16.mxu0 0
      %3699 = vmatpush2.bf16.msra.mxu0 0
      %3700 = vmatprep.mubr.bf16.mxu0 0
      %3701 = vmatmul.mubr.bf16.gmra.mxu0 %v3612
      %v3702 = vpop.f32.mrf.mxu0
      %v3703 = vadd.f32 0.0, %v3702
      %v3704 = vpop.f32.mrf.mxu0
      %v3705 = vpop.f32.mrf.mxu0
      %v3706 = vadd.f32 0.0, %v3705
      %v3707 = vpop.f32.mrf.mxu0
      %3708 = vmatprep.mubr.bf16.mxu0 0
      %3709 = vmatmul.mubr.bf16.gmra.mxu0 %v3615
      %v3710 = vpop.f32.mrf.mxu0
      %v3711 = vadd.f32 0.0, %v3710
      %v3712 = vpop.f32.mrf.mxu0
      %v3713 = vpop.f32.mrf.mxu0
      %v3714 = vadd.f32 0.0, %v3713
      %v3715 = vpop.f32.mrf.mxu0
      %3716 = vmatprep.mubr.bf16.mxu0 0
      %3717 = vmatmul.mubr.bf16.gmra.mxu0 %v3618
      %v3718 = vpop.f32.mrf.mxu0
      %v3719 = vadd.f32 0.0, %v3718
      %v3720 = vpop.f32.mrf.mxu0
      %v3721 = vpop.f32.mrf.mxu0
      %v3722 = vadd.f32 0.0, %v3721
      %v3723 = vpop.f32.mrf.mxu0
      %3724 = vmatprep.mubr.bf16.mxu0 0
      %3725 = vmatmul.mubr.bf16.gmra.mxu0 %v3621
      %v3726 = vpop.f32.mrf.mxu0
      %v3727 = vadd.f32 0.0, %v3726
      %v3728 = vpop.f32.mrf.mxu0
      %v3729 = vpop.f32.mrf.mxu0
      %v3730 = vadd.f32 0.0, %v3729
      %v3731 = vpop.f32.mrf.mxu0
      %3732 = vmatprep.mubr.bf16.mxu0 0
      %3733 = vmatmul.mubr.bf16.gmra.mxu0 %v3624
      %v3734 = vpop.f32.mrf.mxu0
      %v3735 = vadd.f32 0.0, %v3734
      %v3736 = vpop.f32.mrf.mxu0
      %v3737 = vpop.f32.mrf.mxu0
      %v3738 = vadd.f32 0.0, %v3737
      %v3739 = vpop.f32.mrf.mxu0
      %3740 = vmatprep.mubr.bf16.mxu0 0
      %3741 = vmatmul.mubr.bf16.gmra.mxu0 %v3627
      %v3742 = vpop.f32.mrf.mxu0
      %v3743 = vadd.f32 0.0, %v3742
      %v3744 = vpop.f32.mrf.mxu0
      %v3745 = vpop.f32.mrf.mxu0
      %v3746 = vadd.f32 0.0, %v3745
      %v3747 = vpop.f32.mrf.mxu0
      %3748 = vmatprep.mubr.bf16.mxu0 0
      %3749 = vmatmul.mubr.bf16.gmra.mxu0 %v3630
      %v3750 = vpop.f32.mrf.mxu0
      %v3751 = vadd.f32 0.0, %v3750
      %v3752 = vpop.f32.mrf.mxu0
      %v3753 = vpop.f32.mrf.mxu0
      %v3754 = vadd.f32 0.0, %v3753
      %v3755 = vpop.f32.mrf.mxu0
      %3756 = vmatprep.mubr.bf16.mxu0 0
      %3757 = vmatmul.mubr.bf16.gmra.mxu0 %v3633
      %v3758 = vpop.f32.mrf.mxu0
      %v3759 = vadd.f32 0.0, %v3758
      %v3760 = vpop.f32.mrf.mxu0
      %v3761 = vpop.f32.mrf.mxu0
      %v3762 = vadd.f32 0.0, %v3761
      %v3763 = vpop.f32.mrf.mxu0
      %3764 = vmatprep.mubr.bf16.mxu0 0
      %3765 = vmatmul.mubr.bf16.gmra.mxu0 %v3636
      %v3766 = vpop.f32.mrf.mxu0
      %v3767 = vadd.f32 0.0, %v3766
      %v3768 = vpop.f32.mrf.mxu0
      %v3769 = vpop.f32.mrf.mxu0
      %v3770 = vadd.f32 0.0, %v3769
      %v3771 = vpop.f32.mrf.mxu0
      %3772 = vmatprep.mubr.bf16.mxu0 0
      %3773 = vmatmul.mubr.bf16.gmra.mxu0 %v3639
      %v3774 = vpop.f32.mrf.mxu0
      %v3775 = vadd.f32 0.0, %v3774
      %v3776 = vpop.f32.mrf.mxu0
      %v3777 = vpop.f32.mrf.mxu0
      %v3778 = vadd.f32 0.0, %v3777
      %v3779 = vpop.f32.mrf.mxu0
      %3780 = vmatprep.mubr.bf16.mxu0 0
      %3781 = vmatmul.mubr.bf16.gmra.mxu0 %v3642
      %v3782 = vpop.f32.mrf.mxu0
      %v3783 = vadd.f32 0.0, %v3782
      %v3784 = vpop.f32.mrf.mxu0
      %v3785 = vpop.f32.mrf.mxu0
      %v3786 = vadd.f32 0.0, %v3785
      %v3787 = vpop.f32.mrf.mxu0
      %3788 = vmatprep.mubr.bf16.mxu0 0
      %3789 = vmatmul.mubr.bf16.gmra.mxu0 %v3645
      %v3790 = vpop.f32.mrf.mxu0
      %v3791 = vadd.f32 0.0, %v3790
      %v3792 = vpop.f32.mrf.mxu0
      %v3793 = vpop.f32.mrf.mxu0
      %v3794 = vadd.f32 0.0, %v3793
      %v3795 = vpop.f32.mrf.mxu0
      %3796 = vmatprep.mubr.bf16.mxu0 0
      %3797 = vmatmul.mubr.bf16.gmra.mxu0 %v3648
      %v3798 = vpop.f32.mrf.mxu0
      %v3799 = vadd.f32 0.0, %v3798
      %v3800 = vpop.f32.mrf.mxu0
      %v3801 = vpop.f32.mrf.mxu0
      %v3802 = vadd.f32 0.0, %v3801
      %v3803 = vpop.f32.mrf.mxu0
      %3804 = vmatprep.mubr.bf16.mxu0 0
      %3805 = vmatmul.mubr.bf16.gmra.mxu0 %v3651
      %v3806 = vpop.f32.mrf.mxu0
      %v3807 = vadd.f32 0.0, %v3806
      %v3808 = vpop.f32.mrf.mxu0
      %v3809 = vpop.f32.mrf.mxu0
      %v3810 = vadd.f32 0.0, %v3809
      %v3811 = vpop.f32.mrf.mxu0
      %3812 = vmatprep.mubr.bf16.mxu0 0
      %3813 = vmatmul.mubr.bf16.gmra.mxu0 %v3654
      %v3814 = vpop.f32.mrf.mxu0
      %v3815 = vadd.f32 0.0, %v3814
      %v3816 = vpop.f32.mrf.mxu0
      %v3817 = vpop.f32.mrf.mxu0
      %v3818 = vadd.f32 0.0, %v3817
      %v3819 = vpop.f32.mrf.mxu0
      %3820 = vmatprep.mubr.bf16.mxu0 0
      %3821 = vmatmul.mubr.bf16.gmra.mxu0 %v3657
      %v3822 = vpop.f32.mrf.mxu0
      %v3823 = vadd.f32 0.0, %v3822
      %v3824 = vpop.f32.mrf.mxu0
      %v3825 = vpop.f32.mrf.mxu0
      %v3826 = vadd.f32 0.0, %v3825
      %v3827 = vpop.f32.mrf.mxu0
      %3828 = vmatprep.mubr.bf16.mxu0 0
      %3829 = vmatmul.mubr.bf16.gmra.mxu0 %v3660
      %v3830 = vpop.f32.mrf.mxu0
      %v3831 = vadd.f32 0.0, %v3830
      %v3832 = vpop.f32.mrf.mxu0
      %v3833 = vpop.f32.mrf.mxu0
      %v3834 = vadd.f32 0.0, %v3833
      %v3835 = vpop.f32.mrf.mxu0
      %3836 = vmatprep.mubr.bf16.mxu0 0
      %3837 = vmatmul.mubr.bf16.gmra.mxu0 %v3663
      %v3838 = vpop.f32.mrf.mxu0
      %v3839 = vadd.f32 0.0, %v3838
      %v3840 = vpop.f32.mrf.mxu0
      %v3841 = vpop.f32.mrf.mxu0
      %v3842 = vadd.f32 0.0, %v3841
      %v3843 = vpop.f32.mrf.mxu0
      %3844 = vdwg.mxu0
      %v3845 = vadd.f32 %v3519, %v3703
      %v3846 = vadd.f32 %v3520, %v3706
      %v3847 = vadd.f32 %v3521, %v3711
      %v3848 = vadd.f32 %v3522, %v3714
      %v3849 = vadd.f32 %v3523, %v3719
      %v3850 = vadd.f32 %v3524, %v3722
      %v3851 = vadd.f32 %v3525, %v3727
      %v3852 = vadd.f32 %v3526, %v3730
      %v3853 = vadd.f32 %v3527, %v3735
      %v3854 = vadd.f32 %v3528, %v3738
      %v3855 = vadd.f32 %v3529, %v3743
      %v3856 = vadd.f32 %v3530, %v3746
      %v3857 = vadd.f32 %v3531, %v3751
      %v3858 = vadd.f32 %v3532, %v3754
      %v3859 = vadd.f32 %v3533, %v3759
      %v3860 = vadd.f32 %v3534, %v3762
      %v3861 = vadd.f32 %v3535, %v3767
      %v3862 = vadd.f32 %v3536, %v3770
      %v3863 = vadd.f32 %v3537, %v3775
      %v3864 = vadd.f32 %v3538, %v3778
      %v3865 = vadd.f32 %v3539, %v3783
      %v3866 = vadd.f32 %v3540, %v3786
      %v3867 = vadd.f32 %v3541, %v3791
      %v3868 = vadd.f32 %v3542, %v3794
      %v3869 = vadd.f32 %v3543, %v3799
      %v3870 = vadd.f32 %v3544, %v3802
      %v3871 = vadd.f32 %v3545, %v3807
      %v3872 = vadd.f32 %v3546, %v3810
      %v3873 = vadd.f32 %v3547, %v3815
      %v3874 = vadd.f32 %v3548, %v3818
      %v3875 = vadd.f32 %v3549, %v3823
      %v3876 = vadd.f32 %v3550, %v3826
      %v3877 = vadd.f32 %v3551, %v3831
      %v3878 = vadd.f32 %v3552, %v3834
      %v3879 = vadd.f32 %v3553, %v3839
      %v3880 = vadd.f32 %v3554, %v3842
      %v3881 = vld [vmem:[%s233] sm:$0x1]
      %v3883 = vlaneseq
      %v3884 = vshrl.u32 %v3883, 7
      %v3885 = vsub.s32 0, %v3884
      %v3886 = vrot.slane %v3881, %v3885
      %v3888 = vmul.f32 %v3845, %v3886
      %v3889 = vmul.f32 %v3846, %v3886
      %v3890 = vmul.f32 %v3847, %v3886
      %v3891 = vmul.f32 %v3848, %v3886
      %v3892 = vmul.f32 %v3849, %v3886
      %v3893 = vmul.f32 %v3850, %v3886
      %v3894 = vmul.f32 %v3851, %v3886
      %v3895 = vmul.f32 %v3852, %v3886
      %v3896 = vmul.f32 %v3853, %v3886
      %v3897 = vmul.f32 %v3854, %v3886
      %v3898 = vmul.f32 %v3855, %v3886
      %v3899 = vmul.f32 %v3856, %v3886
      %v3900 = vmul.f32 %v3857, %v3886
      %v3901 = vmul.f32 %v3858, %v3886
      %v3902 = vmul.f32 %v3859, %v3886
      %v3903 = vmul.f32 %v3860, %v3886
      %v3904 = vmul.f32 %v3861, %v3886
      %v3905 = vmul.f32 %v3862, %v3886
      %v3906 = vmul.f32 %v3863, %v3886
      %v3907 = vmul.f32 %v3864, %v3886
      %v3908 = vmul.f32 %v3865, %v3886
      %v3909 = vmul.f32 %v3866, %v3886
      %v3910 = vmul.f32 %v3867, %v3886
      %v3911 = vmul.f32 %v3868, %v3886
      %v3912 = vmul.f32 %v3869, %v3886
      %v3913 = vmul.f32 %v3870, %v3886
      %v3914 = vmul.f32 %v3871, %v3886
      %v3915 = vmul.f32 %v3872, %v3886
      %v3916 = vmul.f32 %v3873, %v3886
      %v3917 = vmul.f32 %v3874, %v3886
      %v3918 = vmul.f32 %v3875, %v3886
      %v3919 = vmul.f32 %v3876, %v3886
      %v3920 = vmul.f32 %v3877, %v3886
      %v3921 = vmul.f32 %v3878, %v3886
      %v3922 = vmul.f32 %v3879, %v3886
      %v3923 = vmul.f32 %v3880, %v3886
      %v3924 = vxor.u32 %v3888, 2147483648
      %v3925 = vxor.u32 %v3889, 2147483648
      %v3926 = vxor.u32 %v3890, 2147483648
      %v3927 = vxor.u32 %v3891, 2147483648
      %v3928 = vxor.u32 %v3892, 2147483648
      %v3929 = vxor.u32 %v3893, 2147483648
      %v3930 = vxor.u32 %v3894, 2147483648
      %v3931 = vxor.u32 %v3895, 2147483648
      %v3932 = vxor.u32 %v3896, 2147483648
      %v3933 = vxor.u32 %v3897, 2147483648
      %v3934 = vxor.u32 %v3898, 2147483648
      %v3935 = vxor.u32 %v3899, 2147483648
      %v3936 = vxor.u32 %v3900, 2147483648
      %v3937 = vxor.u32 %v3901, 2147483648
      %v3938 = vxor.u32 %v3902, 2147483648
      %v3939 = vxor.u32 %v3903, 2147483648
      %v3940 = vxor.u32 %v3904, 2147483648
      %v3941 = vxor.u32 %v3905, 2147483648
      %v3942 = vxor.u32 %v3906, 2147483648
      %v3943 = vxor.u32 %v3907, 2147483648
      %v3944 = vxor.u32 %v3908, 2147483648
      %v3945 = vxor.u32 %v3909, 2147483648
      %v3946 = vxor.u32 %v3910, 2147483648
      %v3947 = vxor.u32 %v3911, 2147483648
      %v3948 = vxor.u32 %v3912, 2147483648
      %v3949 = vxor.u32 %v3913, 2147483648
      %v3950 = vxor.u32 %v3914, 2147483648
      %v3951 = vxor.u32 %v3915, 2147483648
      %v3952 = vxor.u32 %v3916, 2147483648
      %v3953 = vxor.u32 %v3917, 2147483648
      %v3954 = vxor.u32 %v3918, 2147483648
      %v3955 = vxor.u32 %v3919, 2147483648
      %v3956 = vxor.u32 %v3920, 2147483648
      %v3957 = vxor.u32 %v3921, 2147483648
      %v3958 = vxor.u32 %v3922, 2147483648
      %v3959 = vxor.u32 %v3923, 2147483648
      %v3960 = vmul.f32 %v3924, 1.442695
      %v3961 = vpow.pop %v3960
      %v3962 = vmul.f32 %v3925, 1.442695
      %v3963 = vpow.pop %v3962
      %v3964 = vmul.f32 %v3926, 1.442695
      %v3965 = vpow.pop %v3964
      %v3966 = vmul.f32 %v3927, 1.442695
      %v3967 = vpow.pop %v3966
      %v3968 = vmul.f32 %v3928, 1.442695
      %v3969 = vpow.pop %v3968
      %v3970 = vmul.f32 %v3929, 1.442695
      %v3971 = vpow.pop %v3970
      %v3972 = vmul.f32 %v3930, 1.442695
      %v3973 = vpow.pop %v3972
      %v3974 = vmul.f32 %v3931, 1.442695
      %v3975 = vpow.pop %v3974
      %v3976 = vmul.f32 %v3932, 1.442695
      %v3977 = vpow.pop %v3976
      %v3978 = vmul.f32 %v3933, 1.442695
      %v3979 = vpow.pop %v3978
      %v3980 = vmul.f32 %v3934, 1.442695
      %v3981 = vpow.pop %v3980
      %v3982 = vmul.f32 %v3935, 1.442695
      %v3983 = vpow.pop %v3982
      %v3984 = vmul.f32 %v3936, 1.442695
      %v3985 = vpow.pop %v3984
      %v3986 = vmul.f32 %v3937, 1.442695
      %v3987 = vpow.pop %v3986
      %v3988 = vmul.f32 %v3938, 1.442695
      %v3989 = vpow.pop %v3988
      %v3990 = vmul.f32 %v3939, 1.442695
      %v3991 = vpow.pop %v3990
      %v3992 = vmul.f32 %v3940, 1.442695
      %v3993 = vpow.pop %v3992
      %v3994 = vmul.f32 %v3941, 1.442695
      %v3995 = vpow.pop %v3994
      %v3996 = vmul.f32 %v3942, 1.442695
      %v3997 = vpow.pop %v3996
      %v3998 = vmul.f32 %v3943, 1.442695
      %v3999 = vpow.pop %v3998
      %v4000 = vmul.f32 %v3944, 1.442695
      %v4001 = vpow.pop %v4000
      %v4002 = vmul.f32 %v3945, 1.442695
      %v4003 = vpow.pop %v4002
      %v4004 = vmul.f32 %v3946, 1.442695
      %v4005 = vpow.pop %v4004
      %v4006 = vmul.f32 %v3947, 1.442695
      %v4007 = vpow.pop %v4006
      %v4008 = vmul.f32 %v3948, 1.442695
      %v4009 = vpow.pop %v4008
      %v4010 = vmul.f32 %v3949, 1.442695
      %v4011 = vpow.pop %v4010
      %v4012 = vmul.f32 %v3950, 1.442695
      %v4013 = vpow.pop %v4012
      %v4014 = vmul.f32 %v3951, 1.442695
      %v4015 = vpow.pop %v4014
      %v4016 = vmul.f32 %v3952, 1.442695
      %v4017 = vpow.pop %v4016
      %v4018 = vmul.f32 %v3953, 1.442695
      %v4019 = vpow.pop %v4018
      %v4020 = vmul.f32 %v3954, 1.442695
      %v4021 = vpow.pop %v4020
      %v4022 = vmul.f32 %v3955, 1.442695
      %v4023 = vpow.pop %v4022
      %v4024 = vmul.f32 %v3956, 1.442695
      %v4025 = vpow.pop %v4024
      %v4026 = vmul.f32 %v3957, 1.442695
      %v4027 = vpow.pop %v4026
      %v4028 = vmul.f32 %v3958, 1.442695
      %v4029 = vpow.pop %v4028
      %v4030 = vmul.f32 %v3959, 1.442695
      %v4031 = vpow.pop %v4030
      %v4032 = vadd.f32 %v3961, 1.0
      %v4033 = vadd.f32 %v3963, 1.0
      %v4034 = vadd.f32 %v3965, 1.0
      %v4035 = vadd.f32 %v3967, 1.0
      %v4036 = vadd.f32 %v3969, 1.0
      %v4037 = vadd.f32 %v3971, 1.0
      %v4038 = vadd.f32 %v3973, 1.0
      %v4039 = vadd.f32 %v3975, 1.0
      %v4040 = vadd.f32 %v3977, 1.0
      %v4041 = vadd.f32 %v3979, 1.0
      %v4042 = vadd.f32 %v3981, 1.0
      %v4043 = vadd.f32 %v3983, 1.0
      %v4044 = vadd.f32 %v3985, 1.0
      %v4045 = vadd.f32 %v3987, 1.0
      %v4046 = vadd.f32 %v3989, 1.0
      %v4047 = vadd.f32 %v3991, 1.0
      %v4048 = vadd.f32 %v3993, 1.0
      %v4049 = vadd.f32 %v3995, 1.0
      %v4050 = vadd.f32 %v3997, 1.0
      %v4051 = vadd.f32 %v3999, 1.0
      %v4052 = vadd.f32 %v4001, 1.0
      %v4053 = vadd.f32 %v4003, 1.0
      %v4054 = vadd.f32 %v4005, 1.0
      %v4055 = vadd.f32 %v4007, 1.0
      %v4056 = vadd.f32 %v4009, 1.0
      %v4057 = vadd.f32 %v4011, 1.0
      %v4058 = vadd.f32 %v4013, 1.0
      %v4059 = vadd.f32 %v4015, 1.0
      %v4060 = vadd.f32 %v4017, 1.0
      %v4061 = vadd.f32 %v4019, 1.0
      %v4062 = vadd.f32 %v4021, 1.0
      %v4063 = vadd.f32 %v4023, 1.0
      %v4064 = vadd.f32 %v4025, 1.0
      %v4065 = vadd.f32 %v4027, 1.0
      %v4066 = vadd.f32 %v4029, 1.0
      %v4067 = vadd.f32 %v4031, 1.0
      %v4068 = vrcp.pop %v4032
      %v4069 = vmul.f32 1.0, %v4068
      %v4070 = vrcp.pop %v4033
      %v4071 = vmul.f32 1.0, %v4070
      %v4072 = vrcp.pop %v4034
      %v4073 = vmul.f32 1.0, %v4072
      %v4074 = vrcp.pop %v4035
      %v4075 = vmul.f32 1.0, %v4074
      %v4076 = vrcp.pop %v4036
      %v4077 = vmul.f32 1.0, %v4076
      %v4078 = vrcp.pop %v4037
      %v4079 = vmul.f32 1.0, %v4078
      %v4080 = vrcp.pop %v4038
      %v4081 = vmul.f32 1.0, %v4080
      %v4082 = vrcp.pop %v4039
      %v4083 = vmul.f32 1.0, %v4082
      %v4084 = vrcp.pop %v4040
      %v4085 = vmul.f32 1.0, %v4084
      %v4086 = vrcp.pop %v4041
      %v4087 = vmul.f32 1.0, %v4086
      %v4088 = vrcp.pop %v4042
      %v4089 = vmul.f32 1.0, %v4088
      %v4090 = vrcp.pop %v4043
      %v4091 = vmul.f32 1.0, %v4090
      %v4092 = vrcp.pop %v4044
      %v4093 = vmul.f32 1.0, %v4092
      %v4094 = vrcp.pop %v4045
      %v4095 = vmul.f32 1.0, %v4094
      %v4096 = vrcp.pop %v4046
      %v4097 = vmul.f32 1.0, %v4096
      %v4098 = vrcp.pop %v4047
      %v4099 = vmul.f32 1.0, %v4098
      %v4100 = vrcp.pop %v4048
      %v4101 = vmul.f32 1.0, %v4100
      %v4102 = vrcp.pop %v4049
      %v4103 = vmul.f32 1.0, %v4102
      %v4104 = vrcp.pop %v4050
      %v4105 = vmul.f32 1.0, %v4104
      %v4106 = vrcp.pop %v4051
      %v4107 = vmul.f32 1.0, %v4106
      %v4108 = vrcp.pop %v4052
      %v4109 = vmul.f32 1.0, %v4108
      %v4110 = vrcp.pop %v4053
      %v4111 = vmul.f32 1.0, %v4110
      %v4112 = vrcp.pop %v4054
      %v4113 = vmul.f32 1.0, %v4112
      %v4114 = vrcp.pop %v4055
      %v4115 = vmul.f32 1.0, %v4114
      %v4116 = vrcp.pop %v4056
      %v4117 = vmul.f32 1.0, %v4116
      %v4118 = vrcp.pop %v4057
      %v4119 = vmul.f32 1.0, %v4118
      %v4120 = vrcp.pop %v4058
      %v4121 = vmul.f32 1.0, %v4120
      %v4122 = vrcp.pop %v4059
      %v4123 = vmul.f32 1.0, %v4122
      %v4124 = vrcp.pop %v4060
      %v4125 = vmul.f32 1.0, %v4124
      %v4126 = vrcp.pop %v4061
      %v4127 = vmul.f32 1.0, %v4126
      %v4128 = vrcp.pop %v4062
      %v4129 = vmul.f32 1.0, %v4128
      %v4130 = vrcp.pop %v4063
      %v4131 = vmul.f32 1.0, %v4130
      %v4132 = vrcp.pop %v4064
      %v4133 = vmul.f32 1.0, %v4132
      %v4134 = vrcp.pop %v4065
      %v4135 = vmul.f32 1.0, %v4134
      %v4136 = vrcp.pop %v4066
      %v4137 = vmul.f32 1.0, %v4136
      %v4138 = vrcp.pop %v4067
      %v4139 = vmul.f32 1.0, %v4138
      %v4140 = vmul.f32 %v3888, %v4069
      %v4141 = vmul.f32 %v3889, %v4071
      %v4142 = vmul.f32 %v3890, %v4073
      %v4143 = vmul.f32 %v3891, %v4075
      %v4144 = vmul.f32 %v3892, %v4077
      %v4145 = vmul.f32 %v3893, %v4079
      %v4146 = vmul.f32 %v3894, %v4081
      %v4147 = vmul.f32 %v3895, %v4083
      %v4148 = vmul.f32 %v3896, %v4085
      %v4149 = vmul.f32 %v3897, %v4087
      %v4150 = vmul.f32 %v3898, %v4089
      %v4151 = vmul.f32 %v3899, %v4091
      %v4152 = vmul.f32 %v3900, %v4093
      %v4153 = vmul.f32 %v3901, %v4095
      %v4154 = vmul.f32 %v3902, %v4097
      %v4155 = vmul.f32 %v3903, %v4099
      %v4156 = vmul.f32 %v3904, %v4101
      %v4157 = vmul.f32 %v3905, %v4103
      %v4158 = vmul.f32 %v3906, %v4105
      %v4159 = vmul.f32 %v3907, %v4107
      %v4160 = vmul.f32 %v3908, %v4109
      %v4161 = vmul.f32 %v3909, %v4111
      %v4162 = vmul.f32 %v3910, %v4113
      %v4163 = vmul.f32 %v3911, %v4115
      %v4164 = vmul.f32 %v3912, %v4117
      %v4165 = vmul.f32 %v3913, %v4119
      %v4166 = vmul.f32 %v3914, %v4121
      %v4167 = vmul.f32 %v3915, %v4123
      %v4168 = vmul.f32 %v3916, %v4125
      %v4169 = vmul.f32 %v3917, %v4127
      %v4170 = vmul.f32 %v3918, %v4129
      %v4171 = vmul.f32 %v3919, %v4131
      %v4172 = vmul.f32 %v3920, %v4133
      %v4173 = vmul.f32 %v3921, %v4135
      %v4174 = vmul.f32 %v3922, %v4137
      %v4175 = vmul.f32 %v3923, %v4139
      %v4176 = vld [vmem:[%s4] sm:$0xff]
      %v4177 = vld [vmem:[%s4 + $0x8] sm:$0xff]
      %v4178 = vld [vmem:[%s4 + $0x10] sm:$0xff]
      %v4179 = vld [vmem:[%s4 + $0x18] sm:$0xff]
      %v4180 = vld [vmem:[%s4 + $0x20] sm:$0xff]
      %v4181 = vld [vmem:[%s4 + $0x28] sm:$0xff]
      %v4182 = vld [vmem:[%s4 + $0x30] sm:$0xff]
      %v4183 = vld [vmem:[%s4 + $0x38] sm:$0xff]
      %v4184 = vld [vmem:[%s4 + $0x40] sm:$0xff]
      %v4185 = vld [vmem:[%s4 + $0x48] sm:$0xff]
      %v4186 = vld [vmem:[%s4 + $0x50] sm:$0xff]
      %v4187 = vld [vmem:[%s4 + $0x58] sm:$0xff]
      %v4188 = vld [vmem:[%s4 + $0x60] sm:$0xff]
      %v4189 = vld [vmem:[%s4 + $0x68] sm:$0xff]
      %v4190 = vld [vmem:[%s4 + $0x70] sm:$0xff]
      %v4191 = vld [vmem:[%s4 + $0x78] sm:$0xff]
      %v4192 = vld [vmem:[%s4 + $0x80] sm:$0xff]
      %v4193 = vld [vmem:[%s4 + $0x88] sm:$0xff]
      %v4194 = vld [vmem:[%s4 + $0x90] sm:$0xff]
      %v4195 = vld [vmem:[%s4 + $0x98] sm:$0xff]
      %v4196 = vld [vmem:[%s4 + $0xa0] sm:$0xff]
      %v4197 = vld [vmem:[%s4 + $0xa8] sm:$0xff]
      %v4198 = vld [vmem:[%s4 + $0xb0] sm:$0xff]
      %v4199 = vld [vmem:[%s4 + $0xb8] sm:$0xff]
      %v4200 = vld [vmem:[%s4 + $0xc0] sm:$0xff]
      %v4201 = vld [vmem:[%s4 + $0xc8] sm:$0xff]
      %v4202 = vld [vmem:[%s4 + $0xd0] sm:$0xff]
      %v4203 = vld [vmem:[%s4 + $0xd8] sm:$0xff]
      %v4204 = vld [vmem:[%s4 + $0xe0] sm:$0xff]
      %v4205 = vld [vmem:[%s4 + $0xe8] sm:$0xff]
      %v4206 = vld [vmem:[%s4 + $0xf0] sm:$0xff]
      %v4207 = vld [vmem:[%s4 + $0xf8] sm:$0xff]
      %v4208 = vld [vmem:[%s4 + $0x100] sm:$0xff]
      %v4209 = vld [vmem:[%s4 + $0x108] sm:$0xff]
      %v4210 = vld [vmem:[%s4 + $0x110] sm:$0xff]
      %v4211 = vld [vmem:[%s4 + $0x118] sm:$0xff]
      %4213 = vset.pattern.permute.xlu0 0
      %4214 = vperm.xlu0 %4213, %v4176
      %v4215 = vpop.permute.xlu0 %4214
      %4218 = vset.pattern.permute.xlu0 0
      %4219 = vperm.xlu0 %4218, %v4177
      %v4220 = vpop.permute.xlu0 %4219
      %4223 = vset.pattern.permute.xlu0 0
      %4224 = vperm.xlu0 %4223, %v4178
      %v4225 = vpop.permute.xlu0 %4224
      %4228 = vset.pattern.permute.xlu0 0
      %4229 = vperm.xlu0 %4228, %v4179
      %v4230 = vpop.permute.xlu0 %4229
      %4233 = vset.pattern.permute.xlu0 0
      %4234 = vperm.xlu0 %4233, %v4180
      %v4235 = vpop.permute.xlu0 %4234
      %4238 = vset.pattern.permute.xlu0 0
      %4239 = vperm.xlu0 %4238, %v4181
      %v4240 = vpop.permute.xlu0 %4239
      %4243 = vset.pattern.permute.xlu0 0
      %4244 = vperm.xlu0 %4243, %v4182
      %v4245 = vpop.permute.xlu0 %4244
      %4248 = vset.pattern.permute.xlu0 0
      %4249 = vperm.xlu0 %4248, %v4183
      %v4250 = vpop.permute.xlu0 %4249
      %4253 = vset.pattern.permute.xlu0 0
      %4254 = vperm.xlu0 %4253, %v4184
      %v4255 = vpop.permute.xlu0 %4254
      %4258 = vset.pattern.permute.xlu0 0
      %4259 = vperm.xlu0 %4258, %v4185
      %v4260 = vpop.permute.xlu0 %4259
      %4263 = vset.pattern.permute.xlu0 0
      %4264 = vperm.xlu0 %4263, %v4186
      %v4265 = vpop.permute.xlu0 %4264
      %4268 = vset.pattern.permute.xlu0 0
      %4269 = vperm.xlu0 %4268, %v4187
      %v4270 = vpop.permute.xlu0 %4269
      %4273 = vset.pattern.permute.xlu0 0
      %4274 = vperm.xlu0 %4273, %v4188
      %v4275 = vpop.permute.xlu0 %4274
      %4278 = vset.pattern.permute.xlu0 0
      %4279 = vperm.xlu0 %4278, %v4189
      %v4280 = vpop.permute.xlu0 %4279
      %4283 = vset.pattern.permute.xlu0 0
      %4284 = vperm.xlu0 %4283, %v4190
      %v4285 = vpop.permute.xlu0 %4284
      %4288 = vset.pattern.permute.xlu0 0
      %4289 = vperm.xlu0 %4288, %v4191
      %v4290 = vpop.permute.xlu0 %4289
      %4293 = vset.pattern.permute.xlu0 0
      %4294 = vperm.xlu0 %4293, %v4192
      %v4295 = vpop.permute.xlu0 %4294
      %4298 = vset.pattern.permute.xlu0 0
      %4299 = vperm.xlu0 %4298, %v4193
      %v4300 = vpop.permute.xlu0 %4299
      %4303 = vset.pattern.permute.xlu0 0
      %4304 = vperm.xlu0 %4303, %v4194
      %v4305 = vpop.permute.xlu0 %4304
      %4308 = vset.pattern.permute.xlu0 0
      %4309 = vperm.xlu0 %4308, %v4195
      %v4310 = vpop.permute.xlu0 %4309
      %4313 = vset.pattern.permute.xlu0 0
      %4314 = vperm.xlu0 %4313, %v4196
      %v4315 = vpop.permute.xlu0 %4314
      %4318 = vset.pattern.permute.xlu0 0
      %4319 = vperm.xlu0 %4318, %v4197
      %v4320 = vpop.permute.xlu0 %4319
      %4323 = vset.pattern.permute.xlu0 0
      %4324 = vperm.xlu0 %4323, %v4198
      %v4325 = vpop.permute.xlu0 %4324
      %4328 = vset.pattern.permute.xlu0 0
      %4329 = vperm.xlu0 %4328, %v4199
      %v4330 = vpop.permute.xlu0 %4329
      %4333 = vset.pattern.permute.xlu0 0
      %4334 = vperm.xlu0 %4333, %v4200
      %v4335 = vpop.permute.xlu0 %4334
      %4338 = vset.pattern.permute.xlu0 0
      %4339 = vperm.xlu0 %4338, %v4201
      %v4340 = vpop.permute.xlu0 %4339
      %4343 = vset.pattern.permute.xlu0 0
      %4344 = vperm.xlu0 %4343, %v4202
      %v4345 = vpop.permute.xlu0 %4344
      %4348 = vset.pattern.permute.xlu0 0
      %4349 = vperm.xlu0 %4348, %v4203
      %v4350 = vpop.permute.xlu0 %4349
      %4353 = vset.pattern.permute.xlu0 0
      %4354 = vperm.xlu0 %4353, %v4204
      %v4355 = vpop.permute.xlu0 %4354
      %4358 = vset.pattern.permute.xlu0 0
      %4359 = vperm.xlu0 %4358, %v4205
      %v4360 = vpop.permute.xlu0 %4359
      %4363 = vset.pattern.permute.xlu0 0
      %4364 = vperm.xlu0 %4363, %v4206
      %v4365 = vpop.permute.xlu0 %4364
      %4368 = vset.pattern.permute.xlu0 0
      %4369 = vperm.xlu0 %4368, %v4207
      %v4370 = vpop.permute.xlu0 %4369
      %4373 = vset.pattern.permute.xlu0 0
      %4374 = vperm.xlu0 %4373, %v4208
      %v4375 = vpop.permute.xlu0 %4374
      %4378 = vset.pattern.permute.xlu0 0
      %4379 = vperm.xlu0 %4378, %v4209
      %v4380 = vpop.permute.xlu0 %4379
      %4383 = vset.pattern.permute.xlu0 0
      %4384 = vperm.xlu0 %4383, %v4210
      %v4385 = vpop.permute.xlu0 %4384
      %4388 = vset.pattern.permute.xlu0 0
      %4389 = vperm.xlu0 %4388, %v4211
      %v4390 = vpop.permute.xlu0 %4389
      %v4392 = vmul.f32 %v4140, %v4215
      %v4393 = vmul.f32 %v4141, %v4220
      %v4394 = vmul.f32 %v4142, %v4225
      %v4395 = vmul.f32 %v4143, %v4230
      %v4396 = vmul.f32 %v4144, %v4235
      %v4397 = vmul.f32 %v4145, %v4240
      %v4398 = vmul.f32 %v4146, %v4245
      %v4399 = vmul.f32 %v4147, %v4250
      %v4400 = vmul.f32 %v4148, %v4255
      %v4401 = vmul.f32 %v4149, %v4260
      %v4402 = vmul.f32 %v4150, %v4265
      %v4403 = vmul.f32 %v4151, %v4270
      %v4404 = vmul.f32 %v4152, %v4275
      %v4405 = vmul.f32 %v4153, %v4280
      %v4406 = vmul.f32 %v4154, %v4285
      %v4407 = vmul.f32 %v4155, %v4290
      %v4408 = vmul.f32 %v4156, %v4295
      %v4409 = vmul.f32 %v4157, %v4300
      %v4410 = vmul.f32 %v4158, %v4305
      %v4411 = vmul.f32 %v4159, %v4310
      %v4412 = vmul.f32 %v4160, %v4315
      %v4413 = vmul.f32 %v4161, %v4320
      %v4414 = vmul.f32 %v4162, %v4325
      %v4415 = vmul.f32 %v4163, %v4330
      %v4416 = vmul.f32 %v4164, %v4335
      %v4417 = vmul.f32 %v4165, %v4340
      %v4418 = vmul.f32 %v4166, %v4345
      %v4419 = vmul.f32 %v4167, %v4350
      %v4420 = vmul.f32 %v4168, %v4355
      %v4421 = vmul.f32 %v4169, %v4360
      %v4422 = vmul.f32 %v4170, %v4365
      %v4423 = vmul.f32 %v4171, %v4370
      %v4424 = vmul.f32 %v4172, %v4375
      %v4425 = vmul.f32 %v4173, %v4380
      %v4426 = vmul.f32 %v4174, %v4385
      %v4427 = vmul.f32 %v4175, %v4390
      %4428 = vst.msk [vmem:[#allocation2 + $0x13] sm:$0xff] %vm363, %v4392
      %4429 = vst.msk [vmem:[#allocation2 + $0x1b] sm:$0xff] %vm363, %v4393
      %4430 = vst.msk [vmem:[#allocation2 + $0x23] sm:$0xff] %vm363, %v4394
      %4431 = vst.msk [vmem:[#allocation2 + $0x2b] sm:$0xff] %vm363, %v4395
      %4432 = vst.msk [vmem:[#allocation2 + $0x33] sm:$0xff] %vm363, %v4396
      %4433 = vst.msk [vmem:[#allocation2 + $0x3b] sm:$0xff] %vm363, %v4397
      %4434 = vst.msk [vmem:[#allocation2 + $0x43] sm:$0xff] %vm363, %v4398
      %4435 = vst.msk [vmem:[#allocation2 + $0x4b] sm:$0xff] %vm363, %v4399
      %4436 = vst.msk [vmem:[#allocation2 + $0x53] sm:$0xff] %vm363, %v4400
      %4437 = vst.msk [vmem:[#allocation2 + $0x5b] sm:$0xff] %vm363, %v4401
      %4438 = vst.msk [vmem:[#allocation2 + $0x63] sm:$0xff] %vm363, %v4402
      %4439 = vst.msk [vmem:[#allocation2 + $0x6b] sm:$0xff] %vm363, %v4403
      %4440 = vst.msk [vmem:[#allocation2 + $0x73] sm:$0xff] %vm363, %v4404
      %4441 = vst.msk [vmem:[#allocation2 + $0x7b] sm:$0xff] %vm363, %v4405
      %4442 = vst.msk [vmem:[#allocation2 + $0x83] sm:$0xff] %vm363, %v4406
      %4443 = vst.msk [vmem:[#allocation2 + $0x8b] sm:$0xff] %vm363, %v4407
      %4444 = vst.msk [vmem:[#allocation2 + $0x93] sm:$0xff] %vm363, %v4408
      %4445 = vst.msk [vmem:[#allocation2 + $0x9b] sm:$0xff] %vm363, %v4409
      %4446 = vst.msk [vmem:[#allocation2 + $0xa3] sm:$0xff] %vm363, %v4410
      %4447 = vst.msk [vmem:[#allocation2 + $0xab] sm:$0xff] %vm363, %v4411
      %4448 = vst.msk [vmem:[#allocation2 + $0xb3] sm:$0xff] %vm363, %v4412
      %4449 = vst.msk [vmem:[#allocation2 + $0xbb] sm:$0xff] %vm363, %v4413
      %4450 = vst.msk [vmem:[#allocation2 + $0xc3] sm:$0xff] %vm363, %v4414
      %4451 = vst.msk [vmem:[#allocation2 + $0xcb] sm:$0xff] %vm363, %v4415
      %4452 = vst.msk [vmem:[#allocation2 + $0xd3] sm:$0xff] %vm363, %v4416
      %4453 = vst.msk [vmem:[#allocation2 + $0xdb] sm:$0xff] %vm363, %v4417
      %4454 = vst.msk [vmem:[#allocation2 + $0xe3] sm:$0xff] %vm363, %v4418
      %4455 = vst.msk [vmem:[#allocation2 + $0xeb] sm:$0xff] %vm363, %v4419
      %4456 = vst.msk [vmem:[#allocation2 + $0xf3] sm:$0xff] %vm363, %v4420
      %4457 = vst.msk [vmem:[#allocation2 + $0xfb] sm:$0xff] %vm363, %v4421
      %4458 = vst.msk [vmem:[#allocation2 + $0x103] sm:$0xff] %vm363, %v4422
      %4459 = vst.msk [vmem:[#allocation2 + $0x10b] sm:$0xff] %vm363, %v4423
      %4460 = vst.msk [vmem:[#allocation2 + $0x113] sm:$0xff] %vm363, %v4424
      %4461 = vst.msk [vmem:[#allocation2 + $0x11b] sm:$0xff] %vm363, %v4425
      %4462 = vst.msk [vmem:[#allocation2 + $0x123] sm:$0xff] %vm363, %v4426
      %4463 = vst.msk [vmem:[#allocation2 + $0x12b] sm:$0xff] %vm363, %v4427
      %v4464 = vld [vmem:[#allocation2] sm:$0xff]
      %v4465 = vld [vmem:[#allocation2 + $0x8] sm:$0xff]
      %v4466 = vld [vmem:[#allocation2 + $0x10] sm:$0xff]
      %v4467 = vld [vmem:[#allocation2 + $0x18] sm:$0xff]
      %v4468 = vld [vmem:[#allocation2 + $0x20] sm:$0xff]
      %v4469 = vld [vmem:[#allocation2 + $0x28] sm:$0xff]
      %v4470 = vld [vmem:[#allocation2 + $0x30] sm:$0xff]
      %v4471 = vld [vmem:[#allocation2 + $0x38] sm:$0xff]
      %v4472 = vld [vmem:[#allocation2 + $0x40] sm:$0xff]
      %v4473 = vld [vmem:[#allocation2 + $0x48] sm:$0xff]
      %v4474 = vld [vmem:[#allocation2 + $0x50] sm:$0xff]
      %v4475 = vld [vmem:[#allocation2 + $0x58] sm:$0xff]
      %v4476 = vld [vmem:[#allocation2 + $0x60] sm:$0xff]
      %v4477 = vld [vmem:[#allocation2 + $0x68] sm:$0xff]
      %v4478 = vld [vmem:[#allocation2 + $0x70] sm:$0xff]
      %v4479 = vld [vmem:[#allocation2 + $0x78] sm:$0xff]
      %v4480 = vld [vmem:[#allocation2 + $0x80] sm:$0xff]
      %v4481 = vld [vmem:[#allocation2 + $0x88] sm:$0xff]
      %v4482 = vld [vmem:[#allocation2 + $0x90] sm:$0xff]
      %v4483 = vld [vmem:[#allocation2 + $0x98] sm:$0xff]
      %v4484 = vld [vmem:[#allocation2 + $0xa0] sm:$0xff]
      %v4485 = vld [vmem:[#allocation2 + $0xa8] sm:$0xff]
      %v4486 = vld [vmem:[#allocation2 + $0xb0] sm:$0xff]
      %v4487 = vld [vmem:[#allocation2 + $0xb8] sm:$0xff]
      %v4488 = vld [vmem:[#allocation2 + $0xc0] sm:$0xff]
      %v4489 = vld [vmem:[#allocation2 + $0xc8] sm:$0xff]
      %v4490 = vld [vmem:[#allocation2 + $0xd0] sm:$0xff]
      %v4491 = vld [vmem:[#allocation2 + $0xd8] sm:$0xff]
      %v4492 = vld [vmem:[#allocation2 + $0xe0] sm:$0xff]
      %v4493 = vld [vmem:[#allocation2 + $0xe8] sm:$0xff]
      %v4494 = vld [vmem:[#allocation2 + $0xf0] sm:$0xff]
      %v4495 = vld [vmem:[#allocation2 + $0xf8] sm:$0xff]
      %v4496 = vld [vmem:[#allocation2 + $0x100] sm:$0xff]
      %v4497 = vld [vmem:[#allocation2 + $0x108] sm:$0xff]
      %v4498 = vld [vmem:[#allocation2 + $0x110] sm:$0xff]
      %v4499 = vld [vmem:[#allocation2 + $0x118] sm:$0xff]
      %v4500 = vpack.c.bf16 %v4465, %v4464
      %v4501 = vpack.c.bf16 %v4467, %v4466
      %v4502 = vpack.c.bf16 %v4469, %v4468
      %v4503 = vpack.c.bf16 %v4471, %v4470
      %v4504 = vpack.c.bf16 %v4473, %v4472
      %v4505 = vpack.c.bf16 %v4475, %v4474
      %v4506 = vpack.c.bf16 %v4477, %v4476
      %v4507 = vpack.c.bf16 %v4479, %v4478
      %v4508 = vpack.c.bf16 %v4481, %v4480
      %v4509 = vpack.c.bf16 %v4483, %v4482
      %v4510 = vpack.c.bf16 %v4485, %v4484
      %v4511 = vpack.c.bf16 %v4487, %v4486
      %v4512 = vpack.c.bf16 %v4489, %v4488
      %v4513 = vpack.c.bf16 %v4491, %v4490
      %v4514 = vpack.c.bf16 %v4493, %v4492
      %v4515 = vpack.c.bf16 %v4495, %v4494
      %v4516 = vpack.c.bf16 %v4497, %v4496
      %v4517 = vpack.c.bf16 %v4499, %v4498
      %v4518 = vld [vmem:[%s3] sm:$0xf]
      %v4519 = vld [vmem:[#allocation2 + $0x1] sm:$0xff]
      %v4520 = vld [vmem:[#allocation2 + $0x9] sm:$0xff]
      %v4521 = vld [vmem:[#allocation2 + $0x11] sm:$0xff]
      %v4522 = vld [vmem:[#allocation2 + $0x19] sm:$0xff]
      %v4523 = vld [vmem:[#allocation2 + $0x21] sm:$0xff]
      %v4524 = vld [vmem:[#allocation2 + $0x29] sm:$0xff]
      %v4525 = vld [vmem:[#allocation2 + $0x31] sm:$0xff]
      %v4526 = vld [vmem:[#allocation2 + $0x39] sm:$0xff]
      %v4527 = vld [vmem:[#allocation2 + $0x41] sm:$0xff]
      %v4528 = vld [vmem:[#allocation2 + $0x49] sm:$0xff]
      %v4529 = vld [vmem:[#allocation2 + $0x51] sm:$0xff]
      %v4530 = vld [vmem:[#allocation2 + $0x59] sm:$0xff]
      %v4531 = vld [vmem:[#allocation2 + $0x61] sm:$0xff]
      %v4532 = vld [vmem:[#allocation2 + $0x69] sm:$0xff]
      %v4533 = vld [vmem:[#allocation2 + $0x71] sm:$0xff]
      %v4534 = vld [vmem:[#allocation2 + $0x79] sm:$0xff]
      %v4535 = vld [vmem:[#allocation2 + $0x81] sm:$0xff]
      %v4536 = vld [vmem:[#allocation2 + $0x89] sm:$0xff]
      %v4537 = vld [vmem:[#allocation2 + $0x91] sm:$0xff]
      %v4538 = vld [vmem:[#allocation2 + $0x99] sm:$0xff]
      %v4539 = vld [vmem:[#allocation2 + $0xa1] sm:$0xff]
      %v4540 = vld [vmem:[#allocation2 + $0xa9] sm:$0xff]
      %v4541 = vld [vmem:[#allocation2 + $0xb1] sm:$0xff]
      %v4542 = vld [vmem:[#allocation2 + $0xb9] sm:$0xff]
      %v4543 = vld [vmem:[#allocation2 + $0xc1] sm:$0xff]
      %v4544 = vld [vmem:[#allocation2 + $0xc9] sm:$0xff]
      %v4545 = vld [vmem:[#allocation2 + $0xd1] sm:$0xff]
      %v4546 = vld [vmem:[#allocation2 + $0xd9] sm:$0xff]
      %v4547 = vld [vmem:[#allocation2 + $0xe1] sm:$0xff]
      %v4548 = vld [vmem:[#allocation2 + $0xe9] sm:$0xff]
      %v4549 = vld [vmem:[#allocation2 + $0xf1] sm:$0xff]
      %v4550 = vld [vmem:[#allocation2 + $0xf9] sm:$0xff]
      %v4551 = vld [vmem:[#allocation2 + $0x101] sm:$0xff]
      %v4552 = vld [vmem:[#allocation2 + $0x109] sm:$0xff]
      %v4553 = vld [vmem:[#allocation2 + $0x111] sm:$0xff]
      %v4554 = vld [vmem:[#allocation2 + $0x119] sm:$0xff]
      %v4555 = vpack.c.bf16 %v4520, %v4519
      %v4556 = vpack.c.bf16 %v4522, %v4521
      %v4557 = vpack.c.bf16 %v4524, %v4523
      %v4558 = vpack.c.bf16 %v4526, %v4525
      %v4559 = vpack.c.bf16 %v4528, %v4527
      %v4560 = vpack.c.bf16 %v4530, %v4529
      %v4561 = vpack.c.bf16 %v4532, %v4531
      %v4562 = vpack.c.bf16 %v4534, %v4533
      %v4563 = vpack.c.bf16 %v4536, %v4535
      %v4564 = vpack.c.bf16 %v4538, %v4537
      %v4565 = vpack.c.bf16 %v4540, %v4539
      %v4566 = vpack.c.bf16 %v4542, %v4541
      %v4567 = vpack.c.bf16 %v4544, %v4543
      %v4568 = vpack.c.bf16 %v4546, %v4545
      %v4569 = vpack.c.bf16 %v4548, %v4547
      %v4570 = vpack.c.bf16 %v4550, %v4549
      %v4571 = vpack.c.bf16 %v4552, %v4551
      %v4572 = vpack.c.bf16 %v4554, %v4553
      %s4573 = scalar_lea.vmem %s3, 4
      %v4574 = vld [vmem:[%s4573] sm:$0xf]
      %v4576 = vsel %vm363, %v4555, 0
      %v4579 = vsel %vm363, %v4556, 0
      %v4582 = vsel %vm363, %v4557, 0
      %v4585 = vsel %vm363, %v4558, 0
      %v4588 = vsel %vm363, %v4559, 0
      %v4591 = vsel %vm363, %v4560, 0
      %v4594 = vsel %vm363, %v4561, 0
      %v4597 = vsel %vm363, %v4562, 0
      %v4600 = vsel %vm363, %v4563, 0
      %v4603 = vsel %vm363, %v4564, 0
      %v4606 = vsel %vm363, %v4565, 0
      %v4609 = vsel %vm363, %v4566, 0
      %v4612 = vsel %vm363, %v4567, 0
      %v4615 = vsel %vm363, %v4568, 0
      %v4618 = vsel %vm363, %v4569, 0
      %v4621 = vsel %vm363, %v4570, 0
      %v4624 = vsel %vm363, %v4571, 0
      %v4627 = vsel %vm363, %v4572, 0
      %v4630 = vsel %vm1184, %v4574, 0
      %4632 = vmatprep.subr.bf16.mxu0 0
      %4633 = vmatpush1.bf16.msra.mxu0 0
      %4634 = vmatprep.subr.bf16.mxu0 0
      %4635 = vmatpush1.bf16.msra.mxu0 0
      %4636 = vmatprep.subr.bf16.mxu0 0
      %4637 = vmatpush1.bf16.msra.mxu0 0
      %4638 = vmatprep.subr.bf16.mxu0 0
      %4639 = vmatpush1.bf16.msra.mxu0 0
      %4640 = vmatprep.subr.bf16.mxu0 0
      %4641 = vmatpush1.bf16.msra.mxu0 0
      %4642 = vmatprep.subr.bf16.mxu0 0
      %4643 = vmatpush1.bf16.msra.mxu0 0
      %4644 = vmatprep.subr.bf16.mxu0 0
      %4645 = vmatpush1.bf16.msra.mxu0 0
      %4646 = vmatprep.subr.bf16.mxu0 0
      %4647 = vmatpush1.bf16.msra.mxu0 %v4630
      %4648 = vmatprep.subr.bf16.mxu0 0
      %4649 = vmatpush2.bf16.msra.mxu0 0
      %4650 = vmatprep.subr.bf16.mxu0 0
      %4651 = vmatpush2.bf16.msra.mxu0 0
      %4652 = vmatprep.subr.bf16.mxu0 0
      %4653 = vmatpush2.bf16.msra.mxu0 0
      %4654 = vmatprep.subr.bf16.mxu0 0
      %4655 = vmatpush2.bf16.msra.mxu0 0
      %4656 = vmatprep.subr.bf16.mxu0 0
      %4657 = vmatpush2.bf16.msra.mxu0 0
      %4658 = vmatprep.subr.bf16.mxu0 0
      %4659 = vmatpush2.bf16.msra.mxu0 0
      %4660 = vmatprep.subr.bf16.mxu0 0
      %4661 = vmatpush2.bf16.msra.mxu0 0
      %4662 = vmatprep.subr.bf16.mxu0 0
      %4663 = vmatpush2.bf16.msra.mxu0 0
      %4664 = vmatprep.mubr.bf16.mxu0 0
      %4665 = vmatmul.mubr.bf16.gmra.mxu0 %v4576
      %v4666 = vpop.f32.mrf.mxu0
      %v4667 = vadd.f32 0.0, %v4666
      %v4668 = vpop.f32.mrf.mxu0
      %v4669 = vpop.f32.mrf.mxu0
      %v4670 = vadd.f32 0.0, %v4669
      %v4671 = vpop.f32.mrf.mxu0
      %4672 = vmatprep.mubr.bf16.mxu0 0
      %4673 = vmatmul.mubr.bf16.gmra.mxu0 %v4579
      %v4674 = vpop.f32.mrf.mxu0
      %v4675 = vadd.f32 0.0, %v4674
      %v4676 = vpop.f32.mrf.mxu0
      %v4677 = vpop.f32.mrf.mxu0
      %v4678 = vadd.f32 0.0, %v4677
      %v4679 = vpop.f32.mrf.mxu0
      %4680 = vmatprep.mubr.bf16.mxu0 0
      %4681 = vmatmul.mubr.bf16.gmra.mxu0 %v4582
      %v4682 = vpop.f32.mrf.mxu0
      %v4683 = vadd.f32 0.0, %v4682
      %v4684 = vpop.f32.mrf.mxu0
      %v4685 = vpop.f32.mrf.mxu0
      %v4686 = vadd.f32 0.0, %v4685
      %v4687 = vpop.f32.mrf.mxu0
      %4688 = vmatprep.mubr.bf16.mxu0 0
      %4689 = vmatmul.mubr.bf16.gmra.mxu0 %v4585
      %v4690 = vpop.f32.mrf.mxu0
      %v4691 = vadd.f32 0.0, %v4690
      %v4692 = vpop.f32.mrf.mxu0
      %v4693 = vpop.f32.mrf.mxu0
      %v4694 = vadd.f32 0.0, %v4693
      %v4695 = vpop.f32.mrf.mxu0
      %4696 = vmatprep.mubr.bf16.mxu0 0
      %4697 = vmatmul.mubr.bf16.gmra.mxu0 %v4588
      %v4698 = vpop.f32.mrf.mxu0
      %v4699 = vadd.f32 0.0, %v4698
      %v4700 = vpop.f32.mrf.mxu0
      %v4701 = vpop.f32.mrf.mxu0
      %v4702 = vadd.f32 0.0, %v4701
      %v4703 = vpop.f32.mrf.mxu0
      %4704 = vmatprep.mubr.bf16.mxu0 0
      %4705 = vmatmul.mubr.bf16.gmra.mxu0 %v4591
      %v4706 = vpop.f32.mrf.mxu0
      %v4707 = vadd.f32 0.0, %v4706
      %v4708 = vpop.f32.mrf.mxu0
      %v4709 = vpop.f32.mrf.mxu0
      %v4710 = vadd.f32 0.0, %v4709
      %v4711 = vpop.f32.mrf.mxu0
      %4712 = vmatprep.mubr.bf16.mxu0 0
      %4713 = vmatmul.mubr.bf16.gmra.mxu0 %v4594
      %v4714 = vpop.f32.mrf.mxu0
      %v4715 = vadd.f32 0.0, %v4714
      %v4716 = vpop.f32.mrf.mxu0
      %v4717 = vpop.f32.mrf.mxu0
      %v4718 = vadd.f32 0.0, %v4717
      %v4719 = vpop.f32.mrf.mxu0
      %4720 = vmatprep.mubr.bf16.mxu0 0
      %4721 = vmatmul.mubr.bf16.gmra.mxu0 %v4597
      %v4722 = vpop.f32.mrf.mxu0
      %v4723 = vadd.f32 0.0, %v4722
      %v4724 = vpop.f32.mrf.mxu0
      %v4725 = vpop.f32.mrf.mxu0
      %v4726 = vadd.f32 0.0, %v4725
      %v4727 = vpop.f32.mrf.mxu0
      %4728 = vmatprep.mubr.bf16.mxu0 0
      %4729 = vmatmul.mubr.bf16.gmra.mxu0 %v4600
      %v4730 = vpop.f32.mrf.mxu0
      %v4731 = vadd.f32 0.0, %v4730
      %v4732 = vpop.f32.mrf.mxu0
      %v4733 = vpop.f32.mrf.mxu0
      %v4734 = vadd.f32 0.0, %v4733
      %v4735 = vpop.f32.mrf.mxu0
      %4736 = vmatprep.mubr.bf16.mxu0 0
      %4737 = vmatmul.mubr.bf16.gmra.mxu0 %v4603
      %v4738 = vpop.f32.mrf.mxu0
      %v4739 = vadd.f32 0.0, %v4738
      %v4740 = vpop.f32.mrf.mxu0
      %v4741 = vpop.f32.mrf.mxu0
      %v4742 = vadd.f32 0.0, %v4741
      %v4743 = vpop.f32.mrf.mxu0
      %4744 = vmatprep.mubr.bf16.mxu0 0
      %4745 = vmatmul.mubr.bf16.gmra.mxu0 %v4606
      %v4746 = vpop.f32.mrf.mxu0
      %v4747 = vadd.f32 0.0, %v4746
      %v4748 = vpop.f32.mrf.mxu0
      %v4749 = vpop.f32.mrf.mxu0
      %v4750 = vadd.f32 0.0, %v4749
      %v4751 = vpop.f32.mrf.mxu0
      %4752 = vmatprep.mubr.bf16.mxu0 0
      %4753 = vmatmul.mubr.bf16.gmra.mxu0 %v4609
      %v4754 = vpop.f32.mrf.mxu0
      %v4755 = vadd.f32 0.0, %v4754
      %v4756 = vpop.f32.mrf.mxu0
      %v4757 = vpop.f32.mrf.mxu0
      %v4758 = vadd.f32 0.0, %v4757
      %v4759 = vpop.f32.mrf.mxu0
      %4760 = vmatprep.mubr.bf16.mxu0 0
      %4761 = vmatmul.mubr.bf16.gmra.mxu0 %v4612
      %v4762 = vpop.f32.mrf.mxu0
      %v4763 = vadd.f32 0.0, %v4762
      %v4764 = vpop.f32.mrf.mxu0
      %v4765 = vpop.f32.mrf.mxu0
      %v4766 = vadd.f32 0.0, %v4765
      %v4767 = vpop.f32.mrf.mxu0
      %4768 = vmatprep.mubr.bf16.mxu0 0
      %4769 = vmatmul.mubr.bf16.gmra.mxu0 %v4615
      %v4770 = vpop.f32.mrf.mxu0
      %v4771 = vadd.f32 0.0, %v4770
      %v4772 = vpop.f32.mrf.mxu0
      %v4773 = vpop.f32.mrf.mxu0
      %v4774 = vadd.f32 0.0, %v4773
      %v4775 = vpop.f32.mrf.mxu0
      %4776 = vmatprep.mubr.bf16.mxu0 0
      %4777 = vmatmul.mubr.bf16.gmra.mxu0 %v4618
      %v4778 = vpop.f32.mrf.mxu0
      %v4779 = vadd.f32 0.0, %v4778
      %v4780 = vpop.f32.mrf.mxu0
      %v4781 = vpop.f32.mrf.mxu0
      %v4782 = vadd.f32 0.0, %v4781
      %v4783 = vpop.f32.mrf.mxu0
      %4784 = vmatprep.mubr.bf16.mxu0 0
      %4785 = vmatmul.mubr.bf16.gmra.mxu0 %v4621
      %v4786 = vpop.f32.mrf.mxu0
      %v4787 = vadd.f32 0.0, %v4786
      %v4788 = vpop.f32.mrf.mxu0
      %v4789 = vpop.f32.mrf.mxu0
      %v4790 = vadd.f32 0.0, %v4789
      %v4791 = vpop.f32.mrf.mxu0
      %4792 = vmatprep.mubr.bf16.mxu0 0
      %4793 = vmatmul.mubr.bf16.gmra.mxu0 %v4624
      %v4794 = vpop.f32.mrf.mxu0
      %v4795 = vadd.f32 0.0, %v4794
      %v4796 = vpop.f32.mrf.mxu0
      %v4797 = vpop.f32.mrf.mxu0
      %v4798 = vadd.f32 0.0, %v4797
      %v4799 = vpop.f32.mrf.mxu0
      %4800 = vmatprep.mubr.bf16.mxu0 0
      %4801 = vmatmul.mubr.bf16.gmra.mxu0 %v4627
      %v4802 = vpop.f32.mrf.mxu0
      %v4803 = vadd.f32 0.0, %v4802
      %v4804 = vpop.f32.mrf.mxu0
      %v4805 = vpop.f32.mrf.mxu0
      %v4806 = vadd.f32 0.0, %v4805
      %v4807 = vpop.f32.mrf.mxu0
      %4808 = vdwg.mxu0
      %v4810 = vsel %vm363, %v4500, 0
      %v4813 = vsel %vm363, %v4501, 0
      %v4816 = vsel %vm363, %v4502, 0
      %v4819 = vsel %vm363, %v4503, 0
      %v4822 = vsel %vm363, %v4504, 0
      %v4825 = vsel %vm363, %v4505, 0
      %v4828 = vsel %vm363, %v4506, 0
      %v4831 = vsel %vm363, %v4507, 0
      %v4834 = vsel %vm363, %v4508, 0
      %v4837 = vsel %vm363, %v4509, 0
      %v4840 = vsel %vm363, %v4510, 0
      %v4843 = vsel %vm363, %v4511, 0
      %v4846 = vsel %vm363, %v4512, 0
      %v4849 = vsel %vm363, %v4513, 0
      %v4852 = vsel %vm363, %v4514, 0
      %v4855 = vsel %vm363, %v4515, 0
      %v4858 = vsel %vm363, %v4516, 0
      %v4861 = vsel %vm363, %v4517, 0
      %v4864 = vsel %vm1184, %v4518, 0
      %4866 = vmatprep.subr.bf16.mxu0 0
      %4867 = vmatpush1.bf16.msra.mxu0 0
      %4868 = vmatprep.subr.bf16.mxu0 0
      %4869 = vmatpush1.bf16.msra.mxu0 0
      %4870 = vmatprep.subr.bf16.mxu0 0
      %4871 = vmatpush1.bf16.msra.mxu0 0
      %4872 = vmatprep.subr.bf16.mxu0 0
      %4873 = vmatpush1.bf16.msra.mxu0 0
      %4874 = vmatprep.subr.bf16.mxu0 0
      %4875 = vmatpush1.bf16.msra.mxu0 0
      %4876 = vmatprep.subr.bf16.mxu0 0
      %4877 = vmatpush1.bf16.msra.mxu0 0
      %4878 = vmatprep.subr.bf16.mxu0 0
      %4879 = vmatpush1.bf16.msra.mxu0 0
      %4880 = vmatprep.subr.bf16.mxu0 0
      %4881 = vmatpush1.bf16.msra.mxu0 %v4864
      %4882 = vmatprep.subr.bf16.mxu0 0
      %4883 = vmatpush2.bf16.msra.mxu0 0
      %4884 = vmatprep.subr.bf16.mxu0 0
      %4885 = vmatpush2.bf16.msra.mxu0 0
      %4886 = vmatprep.subr.bf16.mxu0 0
      %4887 = vmatpush2.bf16.msra.mxu0 0
      %4888 = vmatprep.subr.bf16.mxu0 0
      %4889 = vmatpush2.bf16.msra.mxu0 0
      %4890 = vmatprep.subr.bf16.mxu0 0
      %4891 = vmatpush2.bf16.msra.mxu0 0
      %4892 = vmatprep.subr.bf16.mxu0 0
      %4893 = vmatpush2.bf16.msra.mxu0 0
      %4894 = vmatprep.subr.bf16.mxu0 0
      %4895 = vmatpush2.bf16.msra.mxu0 0
      %4896 = vmatprep.subr.bf16.mxu0 0
      %4897 = vmatpush2.bf16.msra.mxu0 0
      %4898 = vmatprep.mubr.bf16.mxu0 0
      %4899 = vmatmul.mubr.bf16.gmra.mxu0 %v4810
      %v4900 = vpop.f32.mrf.mxu0
      %v4901 = vadd.f32 %v4667, %v4900
      %v4902 = vpop.f32.mrf.mxu0
      %v4903 = vpop.f32.mrf.mxu0
      %v4904 = vadd.f32 %v4670, %v4903
      %v4905 = vpop.f32.mrf.mxu0
      %4906 = vmatprep.mubr.bf16.mxu0 0
      %4907 = vmatmul.mubr.bf16.gmra.mxu0 %v4813
      %v4908 = vpop.f32.mrf.mxu0
      %v4909 = vadd.f32 %v4675, %v4908
      %v4910 = vpop.f32.mrf.mxu0
      %v4911 = vpop.f32.mrf.mxu0
      %v4912 = vadd.f32 %v4678, %v4911
      %v4913 = vpop.f32.mrf.mxu0
      %4914 = vmatprep.mubr.bf16.mxu0 0
      %4915 = vmatmul.mubr.bf16.gmra.mxu0 %v4816
      %v4916 = vpop.f32.mrf.mxu0
      %v4917 = vadd.f32 %v4683, %v4916
      %v4918 = vpop.f32.mrf.mxu0
      %v4919 = vpop.f32.mrf.mxu0
      %v4920 = vadd.f32 %v4686, %v4919
      %v4921 = vpop.f32.mrf.mxu0
      %4922 = vmatprep.mubr.bf16.mxu0 0
      %4923 = vmatmul.mubr.bf16.gmra.mxu0 %v4819
      %v4924 = vpop.f32.mrf.mxu0
      %v4925 = vadd.f32 %v4691, %v4924
      %v4926 = vpop.f32.mrf.mxu0
      %v4927 = vpop.f32.mrf.mxu0
      %v4928 = vadd.f32 %v4694, %v4927
      %v4929 = vpop.f32.mrf.mxu0
      %4930 = vmatprep.mubr.bf16.mxu0 0
      %4931 = vmatmul.mubr.bf16.gmra.mxu0 %v4822
      %v4932 = vpop.f32.mrf.mxu0
      %v4933 = vadd.f32 %v4699, %v4932
      %v4934 = vpop.f32.mrf.mxu0
      %v4935 = vpop.f32.mrf.mxu0
      %v4936 = vadd.f32 %v4702, %v4935
      %v4937 = vpop.f32.mrf.mxu0
      %4938 = vmatprep.mubr.bf16.mxu0 0
      %4939 = vmatmul.mubr.bf16.gmra.mxu0 %v4825
      %v4940 = vpop.f32.mrf.mxu0
      %v4941 = vadd.f32 %v4707, %v4940
      %v4942 = vpop.f32.mrf.mxu0
      %v4943 = vpop.f32.mrf.mxu0
      %v4944 = vadd.f32 %v4710, %v4943
      %v4945 = vpop.f32.mrf.mxu0
      %4946 = vmatprep.mubr.bf16.mxu0 0
      %4947 = vmatmul.mubr.bf16.gmra.mxu0 %v4828
      %v4948 = vpop.f32.mrf.mxu0
      %v4949 = vadd.f32 %v4715, %v4948
      %v4950 = vpop.f32.mrf.mxu0
      %v4951 = vpop.f32.mrf.mxu0
      %v4952 = vadd.f32 %v4718, %v4951
      %v4953 = vpop.f32.mrf.mxu0
      %4954 = vmatprep.mubr.bf16.mxu0 0
      %4955 = vmatmul.mubr.bf16.gmra.mxu0 %v4831
      %v4956 = vpop.f32.mrf.mxu0
      %v4957 = vadd.f32 %v4723, %v4956
      %v4958 = vpop.f32.mrf.mxu0
      %v4959 = vpop.f32.mrf.mxu0
      %v4960 = vadd.f32 %v4726, %v4959
      %v4961 = vpop.f32.mrf.mxu0
      %4962 = vmatprep.mubr.bf16.mxu0 0
      %4963 = vmatmul.mubr.bf16.gmra.mxu0 %v4834
      %v4964 = vpop.f32.mrf.mxu0
      %v4965 = vadd.f32 %v4731, %v4964
      %v4966 = vpop.f32.mrf.mxu0
      %v4967 = vpop.f32.mrf.mxu0
      %v4968 = vadd.f32 %v4734, %v4967
      %v4969 = vpop.f32.mrf.mxu0
      %4970 = vmatprep.mubr.bf16.mxu0 0
      %4971 = vmatmul.mubr.bf16.gmra.mxu0 %v4837
      %v4972 = vpop.f32.mrf.mxu0
      %v4973 = vadd.f32 %v4739, %v4972
      %v4974 = vpop.f32.mrf.mxu0
      %v4975 = vpop.f32.mrf.mxu0
      %v4976 = vadd.f32 %v4742, %v4975
      %v4977 = vpop.f32.mrf.mxu0
      %4978 = vmatprep.mubr.bf16.mxu0 0
      %4979 = vmatmul.mubr.bf16.gmra.mxu0 %v4840
      %v4980 = vpop.f32.mrf.mxu0
      %v4981 = vadd.f32 %v4747, %v4980
      %v4982 = vpop.f32.mrf.mxu0
      %v4983 = vpop.f32.mrf.mxu0
      %v4984 = vadd.f32 %v4750, %v4983
      %v4985 = vpop.f32.mrf.mxu0
      %4986 = vmatprep.mubr.bf16.mxu0 0
      %4987 = vmatmul.mubr.bf16.gmra.mxu0 %v4843
      %v4988 = vpop.f32.mrf.mxu0
      %v4989 = vadd.f32 %v4755, %v4988
      %v4990 = vpop.f32.mrf.mxu0
      %v4991 = vpop.f32.mrf.mxu0
      %v4992 = vadd.f32 %v4758, %v4991
      %v4993 = vpop.f32.mrf.mxu0
      %4994 = vmatprep.mubr.bf16.mxu0 0
      %4995 = vmatmul.mubr.bf16.gmra.mxu0 %v4846
      %v4996 = vpop.f32.mrf.mxu0
      %v4997 = vadd.f32 %v4763, %v4996
      %v4998 = vpop.f32.mrf.mxu0
      %v4999 = vpop.f32.mrf.mxu0
      %v5000 = vadd.f32 %v4766, %v4999
      %v5001 = vpop.f32.mrf.mxu0
      %5002 = vmatprep.mubr.bf16.mxu0 0
      %5003 = vmatmul.mubr.bf16.gmra.mxu0 %v4849
      %v5004 = vpop.f32.mrf.mxu0
      %v5005 = vadd.f32 %v4771, %v5004
      %v5006 = vpop.f32.mrf.mxu0
      %v5007 = vpop.f32.mrf.mxu0
      %v5008 = vadd.f32 %v4774, %v5007
      %v5009 = vpop.f32.mrf.mxu0
      %5010 = vmatprep.mubr.bf16.mxu0 0
      %5011 = vmatmul.mubr.bf16.gmra.mxu0 %v4852
      %v5012 = vpop.f32.mrf.mxu0
      %v5013 = vadd.f32 %v4779, %v5012
      %v5014 = vpop.f32.mrf.mxu0
      %v5015 = vpop.f32.mrf.mxu0
      %v5016 = vadd.f32 %v4782, %v5015
      %v5017 = vpop.f32.mrf.mxu0
      %5018 = vmatprep.mubr.bf16.mxu0 0
      %5019 = vmatmul.mubr.bf16.gmra.mxu0 %v4855
      %v5020 = vpop.f32.mrf.mxu0
      %v5021 = vadd.f32 %v4787, %v5020
      %v5022 = vpop.f32.mrf.mxu0
      %v5023 = vpop.f32.mrf.mxu0
      %v5024 = vadd.f32 %v4790, %v5023
      %v5025 = vpop.f32.mrf.mxu0
      %5026 = vmatprep.mubr.bf16.mxu0 0
      %5027 = vmatmul.mubr.bf16.gmra.mxu0 %v4858
      %v5028 = vpop.f32.mrf.mxu0
      %v5029 = vadd.f32 %v4795, %v5028
      %v5030 = vpop.f32.mrf.mxu0
      %v5031 = vpop.f32.mrf.mxu0
      %v5032 = vadd.f32 %v4798, %v5031
      %v5033 = vpop.f32.mrf.mxu0
      %5034 = vmatprep.mubr.bf16.mxu0 0
      %5035 = vmatmul.mubr.bf16.gmra.mxu0 %v4861
      %v5036 = vpop.f32.mrf.mxu0
      %v5037 = vadd.f32 %v4803, %v5036
      %v5038 = vpop.f32.mrf.mxu0
      %v5039 = vpop.f32.mrf.mxu0
      %v5040 = vadd.f32 %v4806, %v5039
      %v5041 = vpop.f32.mrf.mxu0
      %5042 = vdwg.mxu0
      %v5043 = vld [vmem:[#allocation2 + $0x2] sm:$0xff]
      %v5044 = vld [vmem:[#allocation2 + $0xa] sm:$0xff]
      %v5045 = vld [vmem:[#allocation2 + $0x12] sm:$0xff]
      %v5046 = vld [vmem:[#allocation2 + $0x1a] sm:$0xff]
      %v5047 = vld [vmem:[#allocation2 + $0x22] sm:$0xff]
      %v5048 = vld [vmem:[#allocation2 + $0x2a] sm:$0xff]
      %v5049 = vld [vmem:[#allocation2 + $0x32] sm:$0xff]
      %v5050 = vld [vmem:[#allocation2 + $0x3a] sm:$0xff]
      %v5051 = vld [vmem:[#allocation2 + $0x42] sm:$0xff]
      %v5052 = vld [vmem:[#allocation2 + $0x4a] sm:$0xff]
      %v5053 = vld [vmem:[#allocation2 + $0x52] sm:$0xff]
      %v5054 = vld [vmem:[#allocation2 + $0x5a] sm:$0xff]
      %v5055 = vld [vmem:[#allocation2 + $0x62] sm:$0xff]
      %v5056 = vld [vmem:[#allocation2 + $0x6a] sm:$0xff]
      %v5057 = vld [vmem:[#allocation2 + $0x72] sm:$0xff]
      %v5058 = vld [vmem:[#allocation2 + $0x7a] sm:$0xff]
      %v5059 = vld [vmem:[#allocation2 + $0x82] sm:$0xff]
      %v5060 = vld [vmem:[#allocation2 + $0x8a] sm:$0xff]
      %v5061 = vld [vmem:[#allocation2 + $0x92] sm:$0xff]
      %v5062 = vld [vmem:[#allocation2 + $0x9a] sm:$0xff]
      %v5063 = vld [vmem:[#allocation2 + $0xa2] sm:$0xff]
      %v5064 = vld [vmem:[#allocation2 + $0xaa] sm:$0xff]
      %v5065 = vld [vmem:[#allocation2 + $0xb2] sm:$0xff]
      %v5066 = vld [vmem:[#allocation2 + $0xba] sm:$0xff]
      %v5067 = vld [vmem:[#allocation2 + $0xc2] sm:$0xff]
      %v5068 = vld [vmem:[#allocation2 + $0xca] sm:$0xff]
      %v5069 = vld [vmem:[#allocation2 + $0xd2] sm:$0xff]
      %v5070 = vld [vmem:[#allocation2 + $0xda] sm:$0xff]
      %v5071 = vld [vmem:[#allocation2 + $0xe2] sm:$0xff]
      %v5072 = vld [vmem:[#allocation2 + $0xea] sm:$0xff]
      %v5073 = vld [vmem:[#allocation2 + $0xf2] sm:$0xff]
      %v5074 = vld [vmem:[#allocation2 + $0xfa] sm:$0xff]
      %v5075 = vld [vmem:[#allocation2 + $0x102] sm:$0xff]
      %v5076 = vld [vmem:[#allocation2 + $0x10a] sm:$0xff]
      %v5077 = vld [vmem:[#allocation2 + $0x112] sm:$0xff]
      %v5078 = vld [vmem:[#allocation2 + $0x11a] sm:$0xff]
      %v5079 = vpack.c.bf16 %v5044, %v5043
      %v5080 = vpack.c.bf16 %v5046, %v5045
      %v5081 = vpack.c.bf16 %v5048, %v5047
      %v5082 = vpack.c.bf16 %v5050, %v5049
      %v5083 = vpack.c.bf16 %v5052, %v5051
      %v5084 = vpack.c.bf16 %v5054, %v5053
      %v5085 = vpack.c.bf16 %v5056, %v5055
      %v5086 = vpack.c.bf16 %v5058, %v5057
      %v5087 = vpack.c.bf16 %v5060, %v5059
      %v5088 = vpack.c.bf16 %v5062, %v5061
      %v5089 = vpack.c.bf16 %v5064, %v5063
      %v5090 = vpack.c.bf16 %v5066, %v5065
      %v5091 = vpack.c.bf16 %v5068, %v5067
      %v5092 = vpack.c.bf16 %v5070, %v5069
      %v5093 = vpack.c.bf16 %v5072, %v5071
      %v5094 = vpack.c.bf16 %v5074, %v5073
      %v5095 = vpack.c.bf16 %v5076, %v5075
      %v5096 = vpack.c.bf16 %v5078, %v5077
      %s5097 = scalar_lea.vmem %s3, 8
      %v5098 = vld [vmem:[%s5097] sm:$0xf]
      %v5100 = vsel %vm363, %v5079, 0
      %v5103 = vsel %vm363, %v5080, 0
      %v5106 = vsel %vm363, %v5081, 0
      %v5109 = vsel %vm363, %v5082, 0
      %v5112 = vsel %vm363, %v5083, 0
      %v5115 = vsel %vm363, %v5084, 0
      %v5118 = vsel %vm363, %v5085, 0
      %v5121 = vsel %vm363, %v5086, 0
      %v5124 = vsel %vm363, %v5087, 0
      %v5127 = vsel %vm363, %v5088, 0
      %v5130 = vsel %vm363, %v5089, 0
      %v5133 = vsel %vm363, %v5090, 0
      %v5136 = vsel %vm363, %v5091, 0
      %v5139 = vsel %vm363, %v5092, 0
      %v5142 = vsel %vm363, %v5093, 0
      %v5145 = vsel %vm363, %v5094, 0
      %v5148 = vsel %vm363, %v5095, 0
      %v5151 = vsel %vm363, %v5096, 0
      %v5154 = vsel %vm1184, %v5098, 0
      %5156 = vmatprep.subr.bf16.mxu0 0
      %5157 = vmatpush1.bf16.msra.mxu0 0
      %5158 = vmatprep.subr.bf16.mxu0 0
      %5159 = vmatpush1.bf16.msra.mxu0 0
      %5160 = vmatprep.subr.bf16.mxu0 0
      %5161 = vmatpush1.bf16.msra.mxu0 0
      %5162 = vmatprep.subr.bf16.mxu0 0
      %5163 = vmatpush1.bf16.msra.mxu0 0
      %5164 = vmatprep.subr.bf16.mxu0 0
      %5165 = vmatpush1.bf16.msra.mxu0 0
      %5166 = vmatprep.subr.bf16.mxu0 0
      %5167 = vmatpush1.bf16.msra.mxu0 0
      %5168 = vmatprep.subr.bf16.mxu0 0
      %5169 = vmatpush1.bf16.msra.mxu0 0
      %5170 = vmatprep.subr.bf16.mxu0 0
      %5171 = vmatpush1.bf16.msra.mxu0 %v5154
      %5172 = vmatprep.subr.bf16.mxu0 0
      %5173 = vmatpush2.bf16.msra.mxu0 0
      %5174 = vmatprep.subr.bf16.mxu0 0
      %5175 = vmatpush2.bf16.msra.mxu0 0
      %5176 = vmatprep.subr.bf16.mxu0 0
      %5177 = vmatpush2.bf16.msra.mxu0 0
      %5178 = vmatprep.subr.bf16.mxu0 0
      %5179 = vmatpush2.bf16.msra.mxu0 0
      %5180 = vmatprep.subr.bf16.mxu0 0
      %5181 = vmatpush2.bf16.msra.mxu0 0
      %5182 = vmatprep.subr.bf16.mxu0 0
      %5183 = vmatpush2.bf16.msra.mxu0 0
      %5184 = vmatprep.subr.bf16.mxu0 0
      %5185 = vmatpush2.bf16.msra.mxu0 0
      %5186 = vmatprep.subr.bf16.mxu0 0
      %5187 = vmatpush2.bf16.msra.mxu0 0
      %5188 = vmatprep.mubr.bf16.mxu0 0
      %5189 = vmatmul.mubr.bf16.gmra.mxu0 %v5100
      %v5190 = vpop.f32.mrf.mxu0
      %v5191 = vadd.f32 0.0, %v5190
      %v5192 = vpop.f32.mrf.mxu0
      %v5193 = vpop.f32.mrf.mxu0
      %v5194 = vadd.f32 0.0, %v5193
      %v5195 = vpop.f32.mrf.mxu0
      %5196 = vmatprep.mubr.bf16.mxu0 0
      %5197 = vmatmul.mubr.bf16.gmra.mxu0 %v5103
      %v5198 = vpop.f32.mrf.mxu0
      %v5199 = vadd.f32 0.0, %v5198
      %v5200 = vpop.f32.mrf.mxu0
      %v5201 = vpop.f32.mrf.mxu0
      %v5202 = vadd.f32 0.0, %v5201
      %v5203 = vpop.f32.mrf.mxu0
      %5204 = vmatprep.mubr.bf16.mxu0 0
      %5205 = vmatmul.mubr.bf16.gmra.mxu0 %v5106
      %v5206 = vpop.f32.mrf.mxu0
      %v5207 = vadd.f32 0.0, %v5206
      %v5208 = vpop.f32.mrf.mxu0
      %v5209 = vpop.f32.mrf.mxu0
      %v5210 = vadd.f32 0.0, %v5209
      %v5211 = vpop.f32.mrf.mxu0
      %5212 = vmatprep.mubr.bf16.mxu0 0
      %5213 = vmatmul.mubr.bf16.gmra.mxu0 %v5109
      %v5214 = vpop.f32.mrf.mxu0
      %v5215 = vadd.f32 0.0, %v5214
      %v5216 = vpop.f32.mrf.mxu0
      %v5217 = vpop.f32.mrf.mxu0
      %v5218 = vadd.f32 0.0, %v5217
      %v5219 = vpop.f32.mrf.mxu0
      %5220 = vmatprep.mubr.bf16.mxu0 0
      %5221 = vmatmul.mubr.bf16.gmra.mxu0 %v5112
      %v5222 = vpop.f32.mrf.mxu0
      %v5223 = vadd.f32 0.0, %v5222
      %v5224 = vpop.f32.mrf.mxu0
      %v5225 = vpop.f32.mrf.mxu0
      %v5226 = vadd.f32 0.0, %v5225
      %v5227 = vpop.f32.mrf.mxu0
      %5228 = vmatprep.mubr.bf16.mxu0 0
      %5229 = vmatmul.mubr.bf16.gmra.mxu0 %v5115
      %v5230 = vpop.f32.mrf.mxu0
      %v5231 = vadd.f32 0.0, %v5230
      %v5232 = vpop.f32.mrf.mxu0
      %v5233 = vpop.f32.mrf.mxu0
      %v5234 = vadd.f32 0.0, %v5233
      %v5235 = vpop.f32.mrf.mxu0
      %5236 = vmatprep.mubr.bf16.mxu0 0
      %5237 = vmatmul.mubr.bf16.gmra.mxu0 %v5118
      %v5238 = vpop.f32.mrf.mxu0
      %v5239 = vadd.f32 0.0, %v5238
      %v5240 = vpop.f32.mrf.mxu0
      %v5241 = vpop.f32.mrf.mxu0
      %v5242 = vadd.f32 0.0, %v5241
      %v5243 = vpop.f32.mrf.mxu0
      %5244 = vmatprep.mubr.bf16.mxu0 0
      %5245 = vmatmul.mubr.bf16.gmra.mxu0 %v5121
      %v5246 = vpop.f32.mrf.mxu0
      %v5247 = vadd.f32 0.0, %v5246
      %v5248 = vpop.f32.mrf.mxu0
      %v5249 = vpop.f32.mrf.mxu0
      %v5250 = vadd.f32 0.0, %v5249
      %v5251 = vpop.f32.mrf.mxu0
      %5252 = vmatprep.mubr.bf16.mxu0 0
      %5253 = vmatmul.mubr.bf16.gmra.mxu0 %v5124
      %v5254 = vpop.f32.mrf.mxu0
      %v5255 = vadd.f32 0.0, %v5254
      %v5256 = vpop.f32.mrf.mxu0
      %v5257 = vpop.f32.mrf.mxu0
      %v5258 = vadd.f32 0.0, %v5257
      %v5259 = vpop.f32.mrf.mxu0
      %5260 = vmatprep.mubr.bf16.mxu0 0
      %5261 = vmatmul.mubr.bf16.gmra.mxu0 %v5127
      %v5262 = vpop.f32.mrf.mxu0
      %v5263 = vadd.f32 0.0, %v5262
      %v5264 = vpop.f32.mrf.mxu0
      %v5265 = vpop.f32.mrf.mxu0
      %v5266 = vadd.f32 0.0, %v5265
      %v5267 = vpop.f32.mrf.mxu0
      %5268 = vmatprep.mubr.bf16.mxu0 0
      %5269 = vmatmul.mubr.bf16.gmra.mxu0 %v5130
      %v5270 = vpop.f32.mrf.mxu0
      %v5271 = vadd.f32 0.0, %v5270
      %v5272 = vpop.f32.mrf.mxu0
      %v5273 = vpop.f32.mrf.mxu0
      %v5274 = vadd.f32 0.0, %v5273
      %v5275 = vpop.f32.mrf.mxu0
      %5276 = vmatprep.mubr.bf16.mxu0 0
      %5277 = vmatmul.mubr.bf16.gmra.mxu0 %v5133
      %v5278 = vpop.f32.mrf.mxu0
      %v5279 = vadd.f32 0.0, %v5278
      %v5280 = vpop.f32.mrf.mxu0
      %v5281 = vpop.f32.mrf.mxu0
      %v5282 = vadd.f32 0.0, %v5281
      %v5283 = vpop.f32.mrf.mxu0
      %5284 = vmatprep.mubr.bf16.mxu0 0
      %5285 = vmatmul.mubr.bf16.gmra.mxu0 %v5136
      %v5286 = vpop.f32.mrf.mxu0
      %v5287 = vadd.f32 0.0, %v5286
      %v5288 = vpop.f32.mrf.mxu0
      %v5289 = vpop.f32.mrf.mxu0
      %v5290 = vadd.f32 0.0, %v5289
      %v5291 = vpop.f32.mrf.mxu0
      %5292 = vmatprep.mubr.bf16.mxu0 0
      %5293 = vmatmul.mubr.bf16.gmra.mxu0 %v5139
      %v5294 = vpop.f32.mrf.mxu0
      %v5295 = vadd.f32 0.0, %v5294
      %v5296 = vpop.f32.mrf.mxu0
      %v5297 = vpop.f32.mrf.mxu0
      %v5298 = vadd.f32 0.0, %v5297
      %v5299 = vpop.f32.mrf.mxu0
      %5300 = vmatprep.mubr.bf16.mxu0 0
      %5301 = vmatmul.mubr.bf16.gmra.mxu0 %v5142
      %v5302 = vpop.f32.mrf.mxu0
      %v5303 = vadd.f32 0.0, %v5302
      %v5304 = vpop.f32.mrf.mxu0
      %v5305 = vpop.f32.mrf.mxu0
      %v5306 = vadd.f32 0.0, %v5305
      %v5307 = vpop.f32.mrf.mxu0
      %5308 = vmatprep.mubr.bf16.mxu0 0
      %5309 = vmatmul.mubr.bf16.gmra.mxu0 %v5145
      %v5310 = vpop.f32.mrf.mxu0
      %v5311 = vadd.f32 0.0, %v5310
      %v5312 = vpop.f32.mrf.mxu0
      %v5313 = vpop.f32.mrf.mxu0
      %v5314 = vadd.f32 0.0, %v5313
      %v5315 = vpop.f32.mrf.mxu0
      %5316 = vmatprep.mubr.bf16.mxu0 0
      %5317 = vmatmul.mubr.bf16.gmra.mxu0 %v5148
      %v5318 = vpop.f32.mrf.mxu0
      %v5319 = vadd.f32 0.0, %v5318
      %v5320 = vpop.f32.mrf.mxu0
      %v5321 = vpop.f32.mrf.mxu0
      %v5322 = vadd.f32 0.0, %v5321
      %v5323 = vpop.f32.mrf.mxu0
      %5324 = vmatprep.mubr.bf16.mxu0 0
      %5325 = vmatmul.mubr.bf16.gmra.mxu0 %v5151
      %v5326 = vpop.f32.mrf.mxu0
      %v5327 = vadd.f32 0.0, %v5326
      %v5328 = vpop.f32.mrf.mxu0
      %v5329 = vpop.f32.mrf.mxu0
      %v5330 = vadd.f32 0.0, %v5329
      %v5331 = vpop.f32.mrf.mxu0
      %5332 = vdwg.mxu0
      %v5333 = vadd.f32 %v4901, %v5191
      %v5334 = vadd.f32 %v4904, %v5194
      %v5335 = vadd.f32 %v4909, %v5199
      %v5336 = vadd.f32 %v4912, %v5202
      %v5337 = vadd.f32 %v4917, %v5207
      %v5338 = vadd.f32 %v4920, %v5210
      %v5339 = vadd.f32 %v4925, %v5215
      %v5340 = vadd.f32 %v4928, %v5218
      %v5341 = vadd.f32 %v4933, %v5223
      %v5342 = vadd.f32 %v4936, %v5226
      %v5343 = vadd.f32 %v4941, %v5231
      %v5344 = vadd.f32 %v4944, %v5234
      %v5345 = vadd.f32 %v4949, %v5239
      %v5346 = vadd.f32 %v4952, %v5242
      %v5347 = vadd.f32 %v4957, %v5247
      %v5348 = vadd.f32 %v4960, %v5250
      %v5349 = vadd.f32 %v4965, %v5255
      %v5350 = vadd.f32 %v4968, %v5258
      %v5351 = vadd.f32 %v4973, %v5263
      %v5352 = vadd.f32 %v4976, %v5266
      %v5353 = vadd.f32 %v4981, %v5271
      %v5354 = vadd.f32 %v4984, %v5274
      %v5355 = vadd.f32 %v4989, %v5279
      %v5356 = vadd.f32 %v4992, %v5282
      %v5357 = vadd.f32 %v4997, %v5287
      %v5358 = vadd.f32 %v5000, %v5290
      %v5359 = vadd.f32 %v5005, %v5295
      %v5360 = vadd.f32 %v5008, %v5298
      %v5361 = vadd.f32 %v5013, %v5303
      %v5362 = vadd.f32 %v5016, %v5306
      %v5363 = vadd.f32 %v5021, %v5311
      %v5364 = vadd.f32 %v5024, %v5314
      %v5365 = vadd.f32 %v5029, %v5319
      %v5366 = vadd.f32 %v5032, %v5322
      %v5367 = vadd.f32 %v5037, %v5327
      %v5368 = vadd.f32 %v5040, %v5330
      %v5369 = vld [vmem:[#allocation2 + $0x12] sm:$0xff]
      %v5370 = vld [vmem:[#allocation2 + $0x1a] sm:$0xff]
      %v5371 = vld [vmem:[#allocation2 + $0x22] sm:$0xff]
      %v5372 = vld [vmem:[#allocation2 + $0x2a] sm:$0xff]
      %v5373 = vld [vmem:[#allocation2 + $0x32] sm:$0xff]
      %v5374 = vld [vmem:[#allocation2 + $0x3a] sm:$0xff]
      %v5375 = vld [vmem:[#allocation2 + $0x42] sm:$0xff]
      %v5376 = vld [vmem:[#allocation2 + $0x4a] sm:$0xff]
      %v5377 = vld [vmem:[#allocation2 + $0x52] sm:$0xff]
      %v5378 = vld [vmem:[#allocation2 + $0x5a] sm:$0xff]
      %v5379 = vld [vmem:[#allocation2 + $0x62] sm:$0xff]
      %v5380 = vld [vmem:[#allocation2 + $0x6a] sm:$0xff]
      %v5381 = vld [vmem:[#allocation2 + $0x72] sm:$0xff]
      %v5382 = vld [vmem:[#allocation2 + $0x7a] sm:$0xff]
      %v5383 = vld [vmem:[#allocation2 + $0x82] sm:$0xff]
      %v5384 = vld [vmem:[#allocation2 + $0x8a] sm:$0xff]
      %v5385 = vld [vmem:[#allocation2 + $0x92] sm:$0xff]
      %v5386 = vld [vmem:[#allocation2 + $0x9a] sm:$0xff]
      %v5387 = vld [vmem:[#allocation2 + $0xa2] sm:$0xff]
      %v5388 = vld [vmem:[#allocation2 + $0xaa] sm:$0xff]
      %v5389 = vld [vmem:[#allocation2 + $0xb2] sm:$0xff]
      %v5390 = vld [vmem:[#allocation2 + $0xba] sm:$0xff]
      %v5391 = vld [vmem:[#allocation2 + $0xc2] sm:$0xff]
      %v5392 = vld [vmem:[#allocation2 + $0xca] sm:$0xff]
      %v5393 = vld [vmem:[#allocation2 + $0xd2] sm:$0xff]
      %v5394 = vld [vmem:[#allocation2 + $0xda] sm:$0xff]
      %v5395 = vld [vmem:[#allocation2 + $0xe2] sm:$0xff]
      %v5396 = vld [vmem:[#allocation2 + $0xea] sm:$0xff]
      %v5397 = vld [vmem:[#allocation2 + $0xf2] sm:$0xff]
      %v5398 = vld [vmem:[#allocation2 + $0xfa] sm:$0xff]
      %v5399 = vld [vmem:[#allocation2 + $0x102] sm:$0xff]
      %v5400 = vld [vmem:[#allocation2 + $0x10a] sm:$0xff]
      %v5401 = vld [vmem:[#allocation2 + $0x112] sm:$0xff]
      %v5402 = vld [vmem:[#allocation2 + $0x11a] sm:$0xff]
      %v5403 = vld [vmem:[#allocation2 + $0x122] sm:$0xff]
      %v5404 = vld [vmem:[#allocation2 + $0x12a] sm:$0xff]
      %v5405 = vpack.c.bf16 %v5370, %v5369
      %v5406 = vpack.c.bf16 %v5372, %v5371
      %v5407 = vpack.c.bf16 %v5374, %v5373
      %v5408 = vpack.c.bf16 %v5376, %v5375
      %v5409 = vpack.c.bf16 %v5378, %v5377
      %v5410 = vpack.c.bf16 %v5380, %v5379
      %v5411 = vpack.c.bf16 %v5382, %v5381
      %v5412 = vpack.c.bf16 %v5384, %v5383
      %v5413 = vpack.c.bf16 %v5386, %v5385
      %v5414 = vpack.c.bf16 %v5388, %v5387
      %v5415 = vpack.c.bf16 %v5390, %v5389
      %v5416 = vpack.c.bf16 %v5392, %v5391
      %v5417 = vpack.c.bf16 %v5394, %v5393
      %v5418 = vpack.c.bf16 %v5396, %v5395
      %v5419 = vpack.c.bf16 %v5398, %v5397
      %v5420 = vpack.c.bf16 %v5400, %v5399
      %v5421 = vpack.c.bf16 %v5402, %v5401
      %v5422 = vpack.c.bf16 %v5404, %v5403
      %s5423 = scalar_lea.vmem %s3, 12
      %v5424 = vld [vmem:[%s5423] sm:$0xf]
      %v5426 = vsel %vm363, %v5405, 0
      %v5429 = vsel %vm363, %v5406, 0
      %v5432 = vsel %vm363, %v5407, 0
      %v5435 = vsel %vm363, %v5408, 0
      %v5438 = vsel %vm363, %v5409, 0
      %v5441 = vsel %vm363, %v5410, 0
      %v5444 = vsel %vm363, %v5411, 0
      %v5447 = vsel %vm363, %v5412, 0
      %v5450 = vsel %vm363, %v5413, 0
      %v5453 = vsel %vm363, %v5414, 0
      %v5456 = vsel %vm363, %v5415, 0
      %v5459 = vsel %vm363, %v5416, 0
      %v5462 = vsel %vm363, %v5417, 0
      %v5465 = vsel %vm363, %v5418, 0
      %v5468 = vsel %vm363, %v5419, 0
      %v5471 = vsel %vm363, %v5420, 0
      %v5474 = vsel %vm363, %v5421, 0
      %v5477 = vsel %vm363, %v5422, 0
      %v5480 = vsel %vm1184, %v5424, 0
      %5482 = vmatprep.subr.bf16.mxu0 0
      %5483 = vmatpush1.bf16.msra.mxu0 0
      %5484 = vmatprep.subr.bf16.mxu0 0
      %5485 = vmatpush1.bf16.msra.mxu0 0
      %5486 = vmatprep.subr.bf16.mxu0 0
      %5487 = vmatpush1.bf16.msra.mxu0 0
      %5488 = vmatprep.subr.bf16.mxu0 0
      %5489 = vmatpush1.bf16.msra.mxu0 0
      %5490 = vmatprep.subr.bf16.mxu0 0
      %5491 = vmatpush1.bf16.msra.mxu0 0
      %5492 = vmatprep.subr.bf16.mxu0 0
      %5493 = vmatpush1.bf16.msra.mxu0 0
      %5494 = vmatprep.subr.bf16.mxu0 0
      %5495 = vmatpush1.bf16.msra.mxu0 0
      %5496 = vmatprep.subr.bf16.mxu0 0
      %5497 = vmatpush1.bf16.msra.mxu0 %v5480
      %5498 = vmatprep.subr.bf16.mxu0 0
      %5499 = vmatpush2.bf16.msra.mxu0 0
      %5500 = vmatprep.subr.bf16.mxu0 0
      %5501 = vmatpush2.bf16.msra.mxu0 0
      %5502 = vmatprep.subr.bf16.mxu0 0
      %5503 = vmatpush2.bf16.msra.mxu0 0
      %5504 = vmatprep.subr.bf16.mxu0 0
      %5505 = vmatpush2.bf16.msra.mxu0 0
      %5506 = vmatprep.subr.bf16.mxu0 0
      %5507 = vmatpush2.bf16.msra.mxu0 0
      %5508 = vmatprep.subr.bf16.mxu0 0
      %5509 = vmatpush2.bf16.msra.mxu0 0
      %5510 = vmatprep.subr.bf16.mxu0 0
      %5511 = vmatpush2.bf16.msra.mxu0 0
      %5512 = vmatprep.subr.bf16.mxu0 0
      %5513 = vmatpush2.bf16.msra.mxu0 0
      %5514 = vmatprep.mubr.bf16.mxu0 0
      %5515 = vmatmul.mubr.bf16.gmra.mxu0 %v5426
      %v5516 = vpop.f32.mrf.mxu0
      %v5517 = vadd.f32 0.0, %v5516
      %v5518 = vpop.f32.mrf.mxu0
      %v5519 = vpop.f32.mrf.mxu0
      %v5520 = vadd.f32 0.0, %v5519
      %v5521 = vpop.f32.mrf.mxu0
      %5522 = vmatprep.mubr.bf16.mxu0 0
      %5523 = vmatmul.mubr.bf16.gmra.mxu0 %v5429
      %v5524 = vpop.f32.mrf.mxu0
      %v5525 = vadd.f32 0.0, %v5524
      %v5526 = vpop.f32.mrf.mxu0
      %v5527 = vpop.f32.mrf.mxu0
      %v5528 = vadd.f32 0.0, %v5527
      %v5529 = vpop.f32.mrf.mxu0
      %5530 = vmatprep.mubr.bf16.mxu0 0
      %5531 = vmatmul.mubr.bf16.gmra.mxu0 %v5432
      %v5532 = vpop.f32.mrf.mxu0
      %v5533 = vadd.f32 0.0, %v5532
      %v5534 = vpop.f32.mrf.mxu0
      %v5535 = vpop.f32.mrf.mxu0
      %v5536 = vadd.f32 0.0, %v5535
      %v5537 = vpop.f32.mrf.mxu0
      %5538 = vmatprep.mubr.bf16.mxu0 0
      %5539 = vmatmul.mubr.bf16.gmra.mxu0 %v5435
      %v5540 = vpop.f32.mrf.mxu0
      %v5541 = vadd.f32 0.0, %v5540
      %v5542 = vpop.f32.mrf.mxu0
      %v5543 = vpop.f32.mrf.mxu0
      %v5544 = vadd.f32 0.0, %v5543
      %v5545 = vpop.f32.mrf.mxu0
      %5546 = vmatprep.mubr.bf16.mxu0 0
      %5547 = vmatmul.mubr.bf16.gmra.mxu0 %v5438
      %v5548 = vpop.f32.mrf.mxu0
      %v5549 = vadd.f32 0.0, %v5548
      %v5550 = vpop.f32.mrf.mxu0
      %v5551 = vpop.f32.mrf.mxu0
      %v5552 = vadd.f32 0.0, %v5551
      %v5553 = vpop.f32.mrf.mxu0
      %5554 = vmatprep.mubr.bf16.mxu0 0
      %5555 = vmatmul.mubr.bf16.gmra.mxu0 %v5441
      %v5556 = vpop.f32.mrf.mxu0
      %v5557 = vadd.f32 0.0, %v5556
      %v5558 = vpop.f32.mrf.mxu0
      %v5559 = vpop.f32.mrf.mxu0
      %v5560 = vadd.f32 0.0, %v5559
      %v5561 = vpop.f32.mrf.mxu0
      %5562 = vmatprep.mubr.bf16.mxu0 0
      %5563 = vmatmul.mubr.bf16.gmra.mxu0 %v5444
      %v5564 = vpop.f32.mrf.mxu0
      %v5565 = vadd.f32 0.0, %v5564
      %v5566 = vpop.f32.mrf.mxu0
      %v5567 = vpop.f32.mrf.mxu0
      %v5568 = vadd.f32 0.0, %v5567
      %v5569 = vpop.f32.mrf.mxu0
      %5570 = vmatprep.mubr.bf16.mxu0 0
      %5571 = vmatmul.mubr.bf16.gmra.mxu0 %v5447
      %v5572 = vpop.f32.mrf.mxu0
      %v5573 = vadd.f32 0.0, %v5572
      %v5574 = vpop.f32.mrf.mxu0
      %v5575 = vpop.f32.mrf.mxu0
      %v5576 = vadd.f32 0.0, %v5575
      %v5577 = vpop.f32.mrf.mxu0
      %5578 = vmatprep.mubr.bf16.mxu0 0
      %5579 = vmatmul.mubr.bf16.gmra.mxu0 %v5450
      %v5580 = vpop.f32.mrf.mxu0
      %v5581 = vadd.f32 0.0, %v5580
      %v5582 = vpop.f32.mrf.mxu0
      %v5583 = vpop.f32.mrf.mxu0
      %v5584 = vadd.f32 0.0, %v5583
      %v5585 = vpop.f32.mrf.mxu0
      %5586 = vmatprep.mubr.bf16.mxu0 0
      %5587 = vmatmul.mubr.bf16.gmra.mxu0 %v5453
      %v5588 = vpop.f32.mrf.mxu0
      %v5589 = vadd.f32 0.0, %v5588
      %v5590 = vpop.f32.mrf.mxu0
      %v5591 = vpop.f32.mrf.mxu0
      %v5592 = vadd.f32 0.0, %v5591
      %v5593 = vpop.f32.mrf.mxu0
      %5594 = vmatprep.mubr.bf16.mxu0 0
      %5595 = vmatmul.mubr.bf16.gmra.mxu0 %v5456
      %v5596 = vpop.f32.mrf.mxu0
      %v5597 = vadd.f32 0.0, %v5596
      %v5598 = vpop.f32.mrf.mxu0
      %v5599 = vpop.f32.mrf.mxu0
      %v5600 = vadd.f32 0.0, %v5599
      %v5601 = vpop.f32.mrf.mxu0
      %5602 = vmatprep.mubr.bf16.mxu0 0
      %5603 = vmatmul.mubr.bf16.gmra.mxu0 %v5459
      %v5604 = vpop.f32.mrf.mxu0
      %v5605 = vadd.f32 0.0, %v5604
      %v5606 = vpop.f32.mrf.mxu0
      %v5607 = vpop.f32.mrf.mxu0
      %v5608 = vadd.f32 0.0, %v5607
      %v5609 = vpop.f32.mrf.mxu0
      %5610 = vmatprep.mubr.bf16.mxu0 0
      %5611 = vmatmul.mubr.bf16.gmra.mxu0 %v5462
      %v5612 = vpop.f32.mrf.mxu0
      %v5613 = vadd.f32 0.0, %v5612
      %v5614 = vpop.f32.mrf.mxu0
      %v5615 = vpop.f32.mrf.mxu0
      %v5616 = vadd.f32 0.0, %v5615
      %v5617 = vpop.f32.mrf.mxu0
      %5618 = vmatprep.mubr.bf16.mxu0 0
      %5619 = vmatmul.mubr.bf16.gmra.mxu0 %v5465
      %v5620 = vpop.f32.mrf.mxu0
      %v5621 = vadd.f32 0.0, %v5620
      %v5622 = vpop.f32.mrf.mxu0
      %v5623 = vpop.f32.mrf.mxu0
      %v5624 = vadd.f32 0.0, %v5623
      %v5625 = vpop.f32.mrf.mxu0
      %5626 = vmatprep.mubr.bf16.mxu0 0
      %5627 = vmatmul.mubr.bf16.gmra.mxu0 %v5468
      %v5628 = vpop.f32.mrf.mxu0
      %v5629 = vadd.f32 0.0, %v5628
      %v5630 = vpop.f32.mrf.mxu0
      %v5631 = vpop.f32.mrf.mxu0
      %v5632 = vadd.f32 0.0, %v5631
      %v5633 = vpop.f32.mrf.mxu0
      %5634 = vmatprep.mubr.bf16.mxu0 0
      %5635 = vmatmul.mubr.bf16.gmra.mxu0 %v5471
      %v5636 = vpop.f32.mrf.mxu0
      %v5637 = vadd.f32 0.0, %v5636
      %v5638 = vpop.f32.mrf.mxu0
      %v5639 = vpop.f32.mrf.mxu0
      %v5640 = vadd.f32 0.0, %v5639
      %v5641 = vpop.f32.mrf.mxu0
      %5642 = vmatprep.mubr.bf16.mxu0 0
      %5643 = vmatmul.mubr.bf16.gmra.mxu0 %v5474
      %v5644 = vpop.f32.mrf.mxu0
      %v5645 = vadd.f32 0.0, %v5644
      %v5646 = vpop.f32.mrf.mxu0
      %v5647 = vpop.f32.mrf.mxu0
      %v5648 = vadd.f32 0.0, %v5647
      %v5649 = vpop.f32.mrf.mxu0
      %5650 = vmatprep.mubr.bf16.mxu0 0
      %5651 = vmatmul.mubr.bf16.gmra.mxu0 %v5477
      %v5652 = vpop.f32.mrf.mxu0
      %v5653 = vadd.f32 0.0, %v5652
      %v5654 = vpop.f32.mrf.mxu0
      %v5655 = vpop.f32.mrf.mxu0
      %v5656 = vadd.f32 0.0, %v5655
      %v5657 = vpop.f32.mrf.mxu0
      %5658 = vdwg.mxu0
      %v5659 = vadd.f32 %v5333, %v5517
      %v5660 = vadd.f32 %v5334, %v5520
      %v5661 = vadd.f32 %v5335, %v5525
      %v5662 = vadd.f32 %v5336, %v5528
      %v5663 = vadd.f32 %v5337, %v5533
      %v5664 = vadd.f32 %v5338, %v5536
      %v5665 = vadd.f32 %v5339, %v5541
      %v5666 = vadd.f32 %v5340, %v5544
      %v5667 = vadd.f32 %v5341, %v5549
      %v5668 = vadd.f32 %v5342, %v5552
      %v5669 = vadd.f32 %v5343, %v5557
      %v5670 = vadd.f32 %v5344, %v5560
      %v5671 = vadd.f32 %v5345, %v5565
      %v5672 = vadd.f32 %v5346, %v5568
      %v5673 = vadd.f32 %v5347, %v5573
      %v5674 = vadd.f32 %v5348, %v5576
      %v5675 = vadd.f32 %v5349, %v5581
      %v5676 = vadd.f32 %v5350, %v5584
      %v5677 = vadd.f32 %v5351, %v5589
      %v5678 = vadd.f32 %v5352, %v5592
      %v5679 = vadd.f32 %v5353, %v5597
      %v5680 = vadd.f32 %v5354, %v5600
      %v5681 = vadd.f32 %v5355, %v5605
      %v5682 = vadd.f32 %v5356, %v5608
      %v5683 = vadd.f32 %v5357, %v5613
      %v5684 = vadd.f32 %v5358, %v5616
      %v5685 = vadd.f32 %v5359, %v5621
      %v5686 = vadd.f32 %v5360, %v5624
      %v5687 = vadd.f32 %v5361, %v5629
      %v5688 = vadd.f32 %v5362, %v5632
      %v5689 = vadd.f32 %v5363, %v5637
      %v5690 = vadd.f32 %v5364, %v5640
      %v5691 = vadd.f32 %v5365, %v5645
      %v5692 = vadd.f32 %v5366, %v5648
      %v5693 = vadd.f32 %v5367, %v5653
      %v5694 = vadd.f32 %v5368, %v5656
      %v5695 = vld [vmem:[#allocation2 + $0x13] sm:$0xff]
      %v5696 = vld [vmem:[#allocation2 + $0x1b] sm:$0xff]
      %v5697 = vld [vmem:[#allocation2 + $0x23] sm:$0xff]
      %v5698 = vld [vmem:[#allocation2 + $0x2b] sm:$0xff]
      %v5699 = vld [vmem:[#allocation2 + $0x33] sm:$0xff]
      %v5700 = vld [vmem:[#allocation2 + $0x3b] sm:$0xff]
      %v5701 = vld [vmem:[#allocation2 + $0x43] sm:$0xff]
      %v5702 = vld [vmem:[#allocation2 + $0x4b] sm:$0xff]
      %v5703 = vld [vmem:[#allocation2 + $0x53] sm:$0xff]
      %v5704 = vld [vmem:[#allocation2 + $0x5b] sm:$0xff]
      %v5705 = vld [vmem:[#allocation2 + $0x63] sm:$0xff]
      %v5706 = vld [vmem:[#allocation2 + $0x6b] sm:$0xff]
      %v5707 = vld [vmem:[#allocation2 + $0x73] sm:$0xff]
      %v5708 = vld [vmem:[#allocation2 + $0x7b] sm:$0xff]
      %v5709 = vld [vmem:[#allocation2 + $0x83] sm:$0xff]
      %v5710 = vld [vmem:[#allocation2 + $0x8b] sm:$0xff]
      %v5711 = vld [vmem:[#allocation2 + $0x93] sm:$0xff]
      %v5712 = vld [vmem:[#allocation2 + $0x9b] sm:$0xff]
      %v5713 = vld [vmem:[#allocation2 + $0xa3] sm:$0xff]
      %v5714 = vld [vmem:[#allocation2 + $0xab] sm:$0xff]
      %v5715 = vld [vmem:[#allocation2 + $0xb3] sm:$0xff]
      %v5716 = vld [vmem:[#allocation2 + $0xbb] sm:$0xff]
      %v5717 = vld [vmem:[#allocation2 + $0xc3] sm:$0xff]
      %v5718 = vld [vmem:[#allocation2 + $0xcb] sm:$0xff]
      %v5719 = vld [vmem:[#allocation2 + $0xd3] sm:$0xff]
      %v5720 = vld [vmem:[#allocation2 + $0xdb] sm:$0xff]
      %v5721 = vld [vmem:[#allocation2 + $0xe3] sm:$0xff]
      %v5722 = vld [vmem:[#allocation2 + $0xeb] sm:$0xff]
      %v5723 = vld [vmem:[#allocation2 + $0xf3] sm:$0xff]
      %v5724 = vld [vmem:[#allocation2 + $0xfb] sm:$0xff]
      %v5725 = vld [vmem:[#allocation2 + $0x103] sm:$0xff]
      %v5726 = vld [vmem:[#allocation2 + $0x10b] sm:$0xff]
      %v5727 = vld [vmem:[#allocation2 + $0x113] sm:$0xff]
      %v5728 = vld [vmem:[#allocation2 + $0x11b] sm:$0xff]
      %v5729 = vld [vmem:[#allocation2 + $0x123] sm:$0xff]
      %v5730 = vld [vmem:[#allocation2 + $0x12b] sm:$0xff]
      %v5731 = vpack.c.bf16 %v5696, %v5695
      %v5732 = vpack.c.bf16 %v5698, %v5697
      %v5733 = vpack.c.bf16 %v5700, %v5699
      %v5734 = vpack.c.bf16 %v5702, %v5701
      %v5735 = vpack.c.bf16 %v5704, %v5703
      %v5736 = vpack.c.bf16 %v5706, %v5705
      %v5737 = vpack.c.bf16 %v5708, %v5707
      %v5738 = vpack.c.bf16 %v5710, %v5709
      %v5739 = vpack.c.bf16 %v5712, %v5711
      %v5740 = vpack.c.bf16 %v5714, %v5713
      %v5741 = vpack.c.bf16 %v5716, %v5715
      %v5742 = vpack.c.bf16 %v5718, %v5717
      %v5743 = vpack.c.bf16 %v5720, %v5719
      %v5744 = vpack.c.bf16 %v5722, %v5721
      %v5745 = vpack.c.bf16 %v5724, %v5723
      %v5746 = vpack.c.bf16 %v5726, %v5725
      %v5747 = vpack.c.bf16 %v5728, %v5727
      %v5748 = vpack.c.bf16 %v5730, %v5729
      %s5749 = scalar_lea.vmem %s3, 16
      %v5750 = vld [vmem:[%s5749] sm:$0xf]
      %v5752 = vsel %vm363, %v5731, 0
      %v5755 = vsel %vm363, %v5732, 0
      %v5758 = vsel %vm363, %v5733, 0
      %v5761 = vsel %vm363, %v5734, 0
      %v5764 = vsel %vm363, %v5735, 0
      %v5767 = vsel %vm363, %v5736, 0
      %v5770 = vsel %vm363, %v5737, 0
      %v5773 = vsel %vm363, %v5738, 0
      %v5776 = vsel %vm363, %v5739, 0
      %v5779 = vsel %vm363, %v5740, 0
      %v5782 = vsel %vm363, %v5741, 0
      %v5785 = vsel %vm363, %v5742, 0
      %v5788 = vsel %vm363, %v5743, 0
      %v5791 = vsel %vm363, %v5744, 0
      %v5794 = vsel %vm363, %v5745, 0
      %v5797 = vsel %vm363, %v5746, 0
      %v5800 = vsel %vm363, %v5747, 0
      %v5803 = vsel %vm363, %v5748, 0
      %v5806 = vsel %vm1184, %v5750, 0
      %5808 = vmatprep.subr.bf16.mxu0 0
      %5809 = vmatpush1.bf16.msra.mxu0 0
      %5810 = vmatprep.subr.bf16.mxu0 0
      %5811 = vmatpush1.bf16.msra.mxu0 0
      %5812 = vmatprep.subr.bf16.mxu0 0
      %5813 = vmatpush1.bf16.msra.mxu0 0
      %5814 = vmatprep.subr.bf16.mxu0 0
      %5815 = vmatpush1.bf16.msra.mxu0 0
      %5816 = vmatprep.subr.bf16.mxu0 0
      %5817 = vmatpush1.bf16.msra.mxu0 0
      %5818 = vmatprep.subr.bf16.mxu0 0
      %5819 = vmatpush1.bf16.msra.mxu0 0
      %5820 = vmatprep.subr.bf16.mxu0 0
      %5821 = vmatpush1.bf16.msra.mxu0 0
      %5822 = vmatprep.subr.bf16.mxu0 0
      %5823 = vmatpush1.bf16.msra.mxu0 %v5806
      %5824 = vmatprep.subr.bf16.mxu0 0
      %5825 = vmatpush2.bf16.msra.mxu0 0
      %5826 = vmatprep.subr.bf16.mxu0 0
      %5827 = vmatpush2.bf16.msra.mxu0 0
      %5828 = vmatprep.subr.bf16.mxu0 0
      %5829 = vmatpush2.bf16.msra.mxu0 0
      %5830 = vmatprep.subr.bf16.mxu0 0
      %5831 = vmatpush2.bf16.msra.mxu0 0
      %5832 = vmatprep.subr.bf16.mxu0 0
      %5833 = vmatpush2.bf16.msra.mxu0 0
      %5834 = vmatprep.subr.bf16.mxu0 0
      %5835 = vmatpush2.bf16.msra.mxu0 0
      %5836 = vmatprep.subr.bf16.mxu0 0
      %5837 = vmatpush2.bf16.msra.mxu0 0
      %5838 = vmatprep.subr.bf16.mxu0 0
      %5839 = vmatpush2.bf16.msra.mxu0 0
      %5840 = vmatprep.mubr.bf16.mxu0 0
      %5841 = vmatmul.mubr.bf16.gmra.mxu0 %v5752
      %v5842 = vpop.f32.mrf.mxu0
      %v5843 = vadd.f32 0.0, %v5842
      %v5844 = vpop.f32.mrf.mxu0
      %v5845 = vpop.f32.mrf.mxu0
      %v5846 = vadd.f32 0.0, %v5845
      %v5847 = vpop.f32.mrf.mxu0
      %5848 = vmatprep.mubr.bf16.mxu0 0
      %5849 = vmatmul.mubr.bf16.gmra.mxu0 %v5755
      %v5850 = vpop.f32.mrf.mxu0
      %v5851 = vadd.f32 0.0, %v5850
      %v5852 = vpop.f32.mrf.mxu0
      %v5853 = vpop.f32.mrf.mxu0
      %v5854 = vadd.f32 0.0, %v5853
      %v5855 = vpop.f32.mrf.mxu0
      %5856 = vmatprep.mubr.bf16.mxu0 0
      %5857 = vmatmul.mubr.bf16.gmra.mxu0 %v5758
      %v5858 = vpop.f32.mrf.mxu0
      %v5859 = vadd.f32 0.0, %v5858
      %v5860 = vpop.f32.mrf.mxu0
      %v5861 = vpop.f32.mrf.mxu0
      %v5862 = vadd.f32 0.0, %v5861
      %v5863 = vpop.f32.mrf.mxu0
      %5864 = vmatprep.mubr.bf16.mxu0 0
      %5865 = vmatmul.mubr.bf16.gmra.mxu0 %v5761
      %v5866 = vpop.f32.mrf.mxu0
      %v5867 = vadd.f32 0.0, %v5866
      %v5868 = vpop.f32.mrf.mxu0
      %v5869 = vpop.f32.mrf.mxu0
      %v5870 = vadd.f32 0.0, %v5869
      %v5871 = vpop.f32.mrf.mxu0
      %5872 = vmatprep.mubr.bf16.mxu0 0
      %5873 = vmatmul.mubr.bf16.gmra.mxu0 %v5764
      %v5874 = vpop.f32.mrf.mxu0
      %v5875 = vadd.f32 0.0, %v5874
      %v5876 = vpop.f32.mrf.mxu0
      %v5877 = vpop.f32.mrf.mxu0
      %v5878 = vadd.f32 0.0, %v5877
      %v5879 = vpop.f32.mrf.mxu0
      %5880 = vmatprep.mubr.bf16.mxu0 0
      %5881 = vmatmul.mubr.bf16.gmra.mxu0 %v5767
      %v5882 = vpop.f32.mrf.mxu0
      %v5883 = vadd.f32 0.0, %v5882
      %v5884 = vpop.f32.mrf.mxu0
      %v5885 = vpop.f32.mrf.mxu0
      %v5886 = vadd.f32 0.0, %v5885
      %v5887 = vpop.f32.mrf.mxu0
      %5888 = vmatprep.mubr.bf16.mxu0 0
      %5889 = vmatmul.mubr.bf16.gmra.mxu0 %v5770
      %v5890 = vpop.f32.mrf.mxu0
      %v5891 = vadd.f32 0.0, %v5890
      %v5892 = vpop.f32.mrf.mxu0
      %v5893 = vpop.f32.mrf.mxu0
      %v5894 = vadd.f32 0.0, %v5893
      %v5895 = vpop.f32.mrf.mxu0
      %5896 = vmatprep.mubr.bf16.mxu0 0
      %5897 = vmatmul.mubr.bf16.gmra.mxu0 %v5773
      %v5898 = vpop.f32.mrf.mxu0
      %v5899 = vadd.f32 0.0, %v5898
      %v5900 = vpop.f32.mrf.mxu0
      %v5901 = vpop.f32.mrf.mxu0
      %v5902 = vadd.f32 0.0, %v5901
      %v5903 = vpop.f32.mrf.mxu0
      %5904 = vmatprep.mubr.bf16.mxu0 0
      %5905 = vmatmul.mubr.bf16.gmra.mxu0 %v5776
      %v5906 = vpop.f32.mrf.mxu0
      %v5907 = vadd.f32 0.0, %v5906
      %v5908 = vpop.f32.mrf.mxu0
      %v5909 = vpop.f32.mrf.mxu0
      %v5910 = vadd.f32 0.0, %v5909
      %v5911 = vpop.f32.mrf.mxu0
      %5912 = vmatprep.mubr.bf16.mxu0 0
      %5913 = vmatmul.mubr.bf16.gmra.mxu0 %v5779
      %v5914 = vpop.f32.mrf.mxu0
      %v5915 = vadd.f32 0.0, %v5914
      %v5916 = vpop.f32.mrf.mxu0
      %v5917 = vpop.f32.mrf.mxu0
      %v5918 = vadd.f32 0.0, %v5917
      %v5919 = vpop.f32.mrf.mxu0
      %5920 = vmatprep.mubr.bf16.mxu0 0
      %5921 = vmatmul.mubr.bf16.gmra.mxu0 %v5782
      %v5922 = vpop.f32.mrf.mxu0
      %v5923 = vadd.f32 0.0, %v5922
      %v5924 = vpop.f32.mrf.mxu0
      %v5925 = vpop.f32.mrf.mxu0
      %v5926 = vadd.f32 0.0, %v5925
      %v5927 = vpop.f32.mrf.mxu0
      %5928 = vmatprep.mubr.bf16.mxu0 0
      %5929 = vmatmul.mubr.bf16.gmra.mxu0 %v5785
      %v5930 = vpop.f32.mrf.mxu0
      %v5931 = vadd.f32 0.0, %v5930
      %v5932 = vpop.f32.mrf.mxu0
      %v5933 = vpop.f32.mrf.mxu0
      %v5934 = vadd.f32 0.0, %v5933
      %v5935 = vpop.f32.mrf.mxu0
      %5936 = vmatprep.mubr.bf16.mxu0 0
      %5937 = vmatmul.mubr.bf16.gmra.mxu0 %v5788
      %v5938 = vpop.f32.mrf.mxu0
      %v5939 = vadd.f32 0.0, %v5938
      %v5940 = vpop.f32.mrf.mxu0
      %v5941 = vpop.f32.mrf.mxu0
      %v5942 = vadd.f32 0.0, %v5941
      %v5943 = vpop.f32.mrf.mxu0
      %5944 = vmatprep.mubr.bf16.mxu0 0
      %5945 = vmatmul.mubr.bf16.gmra.mxu0 %v5791
      %v5946 = vpop.f32.mrf.mxu0
      %v5947 = vadd.f32 0.0, %v5946
      %v5948 = vpop.f32.mrf.mxu0
      %v5949 = vpop.f32.mrf.mxu0
      %v5950 = vadd.f32 0.0, %v5949
      %v5951 = vpop.f32.mrf.mxu0
      %5952 = vmatprep.mubr.bf16.mxu0 0
      %5953 = vmatmul.mubr.bf16.gmra.mxu0 %v5794
      %v5954 = vpop.f32.mrf.mxu0
      %v5955 = vadd.f32 0.0, %v5954
      %v5956 = vpop.f32.mrf.mxu0
      %v5957 = vpop.f32.mrf.mxu0
      %v5958 = vadd.f32 0.0, %v5957
      %v5959 = vpop.f32.mrf.mxu0
      %5960 = vmatprep.mubr.bf16.mxu0 0
      %5961 = vmatmul.mubr.bf16.gmra.mxu0 %v5797
      %v5962 = vpop.f32.mrf.mxu0
      %v5963 = vadd.f32 0.0, %v5962
      %v5964 = vpop.f32.mrf.mxu0
      %v5965 = vpop.f32.mrf.mxu0
      %v5966 = vadd.f32 0.0, %v5965
      %v5967 = vpop.f32.mrf.mxu0
      %5968 = vmatprep.mubr.bf16.mxu0 0
      %5969 = vmatmul.mubr.bf16.gmra.mxu0 %v5800
      %v5970 = vpop.f32.mrf.mxu0
      %v5971 = vadd.f32 0.0, %v5970
      %v5972 = vpop.f32.mrf.mxu0
      %v5973 = vpop.f32.mrf.mxu0
      %v5974 = vadd.f32 0.0, %v5973
      %v5975 = vpop.f32.mrf.mxu0
      %5976 = vmatprep.mubr.bf16.mxu0 0
      %5977 = vmatmul.mubr.bf16.gmra.mxu0 %v5803
      %v5978 = vpop.f32.mrf.mxu0
      %v5979 = vadd.f32 0.0, %v5978
      %v5980 = vpop.f32.mrf.mxu0
      %v5981 = vpop.f32.mrf.mxu0
      %v5982 = vadd.f32 0.0, %v5981
      %v5983 = vpop.f32.mrf.mxu0
      %5984 = vdwg.mxu0
      %v5985 = vadd.f32 %v5659, %v5843
      %v5986 = vadd.f32 %v5660, %v5846
      %v5987 = vadd.f32 %v5661, %v5851
      %v5988 = vadd.f32 %v5662, %v5854
      %v5989 = vadd.f32 %v5663, %v5859
      %v5990 = vadd.f32 %v5664, %v5862
      %v5991 = vadd.f32 %v5665, %v5867
      %v5992 = vadd.f32 %v5666, %v5870
      %v5993 = vadd.f32 %v5667, %v5875
      %v5994 = vadd.f32 %v5668, %v5878
      %v5995 = vadd.f32 %v5669, %v5883
      %v5996 = vadd.f32 %v5670, %v5886
      %v5997 = vadd.f32 %v5671, %v5891
      %v5998 = vadd.f32 %v5672, %v5894
      %v5999 = vadd.f32 %v5673, %v5899
      %v6000 = vadd.f32 %v5674, %v5902
      %v6001 = vadd.f32 %v5675, %v5907
      %v6002 = vadd.f32 %v5676, %v5910
      %v6003 = vadd.f32 %v5677, %v5915
      %v6004 = vadd.f32 %v5678, %v5918
      %v6005 = vadd.f32 %v5679, %v5923
      %v6006 = vadd.f32 %v5680, %v5926
      %v6007 = vadd.f32 %v5681, %v5931
      %v6008 = vadd.f32 %v5682, %v5934
      %v6009 = vadd.f32 %v5683, %v5939
      %v6010 = vadd.f32 %v5684, %v5942
      %v6011 = vadd.f32 %v5685, %v5947
      %v6012 = vadd.f32 %v5686, %v5950
      %v6013 = vadd.f32 %v5687, %v5955
      %v6014 = vadd.f32 %v5688, %v5958
      %v6015 = vadd.f32 %v5689, %v5963
      %v6016 = vadd.f32 %v5690, %v5966
      %v6017 = vadd.f32 %v5691, %v5971
      %v6018 = vadd.f32 %v5692, %v5974
      %v6019 = vadd.f32 %v5693, %v5979
      %v6020 = vadd.f32 %v5694, %v5982
      %v6021 = vld [vmem:[#allocation2 + $0x14] sm:$0xff]
      %v6022 = vld [vmem:[#allocation2 + $0x1c] sm:$0xff]
      %v6023 = vld [vmem:[#allocation2 + $0x24] sm:$0xff]
      %v6024 = vld [vmem:[#allocation2 + $0x2c] sm:$0xff]
      %v6025 = vld [vmem:[#allocation2 + $0x34] sm:$0xff]
      %v6026 = vld [vmem:[#allocation2 + $0x3c] sm:$0xff]
      %v6027 = vld [vmem:[#allocation2 + $0x44] sm:$0xff]
      %v6028 = vld [vmem:[#allocation2 + $0x4c] sm:$0xff]
      %v6029 = vld [vmem:[#allocation2 + $0x54] sm:$0xff]
      %v6030 = vld [vmem:[#allocation2 + $0x5c] sm:$0xff]
      %v6031 = vld [vmem:[#allocation2 + $0x64] sm:$0xff]
      %v6032 = vld [vmem:[#allocation2 + $0x6c] sm:$0xff]
      %v6033 = vld [vmem:[#allocation2 + $0x74] sm:$0xff]
      %v6034 = vld [vmem:[#allocation2 + $0x7c] sm:$0xff]
      %v6035 = vld [vmem:[#allocation2 + $0x84] sm:$0xff]
      %v6036 = vld [vmem:[#allocation2 + $0x8c] sm:$0xff]
      %v6037 = vld [vmem:[#allocation2 + $0x94] sm:$0xff]
      %v6038 = vld [vmem:[#allocation2 + $0x9c] sm:$0xff]
      %v6039 = vld [vmem:[#allocation2 + $0xa4] sm:$0xff]
      %v6040 = vld [vmem:[#allocation2 + $0xac] sm:$0xff]
      %v6041 = vld [vmem:[#allocation2 + $0xb4] sm:$0xff]
      %v6042 = vld [vmem:[#allocation2 + $0xbc] sm:$0xff]
      %v6043 = vld [vmem:[#allocation2 + $0xc4] sm:$0xff]
      %v6044 = vld [vmem:[#allocation2 + $0xcc] sm:$0xff]
      %v6045 = vld [vmem:[#allocation2 + $0xd4] sm:$0xff]
      %v6046 = vld [vmem:[#allocation2 + $0xdc] sm:$0xff]
      %v6047 = vld [vmem:[#allocation2 + $0xe4] sm:$0xff]
      %v6048 = vld [vmem:[#allocation2 + $0xec] sm:$0xff]
      %v6049 = vld [vmem:[#allocation2 + $0xf4] sm:$0xff]
      %v6050 = vld [vmem:[#allocation2 + $0xfc] sm:$0xff]
      %v6051 = vld [vmem:[#allocation2 + $0x104] sm:$0xff]
      %v6052 = vld [vmem:[#allocation2 + $0x10c] sm:$0xff]
      %v6053 = vld [vmem:[#allocation2 + $0x114] sm:$0xff]
      %v6054 = vld [vmem:[#allocation2 + $0x11c] sm:$0xff]
      %v6055 = vld [vmem:[#allocation2 + $0x124] sm:$0xff]
      %v6056 = vld [vmem:[#allocation2 + $0x12c] sm:$0xff]
      %v6057 = vpack.c.bf16 %v6022, %v6021
      %v6058 = vpack.c.bf16 %v6024, %v6023
      %v6059 = vpack.c.bf16 %v6026, %v6025
      %v6060 = vpack.c.bf16 %v6028, %v6027
      %v6061 = vpack.c.bf16 %v6030, %v6029
      %v6062 = vpack.c.bf16 %v6032, %v6031
      %v6063 = vpack.c.bf16 %v6034, %v6033
      %v6064 = vpack.c.bf16 %v6036, %v6035
      %v6065 = vpack.c.bf16 %v6038, %v6037
      %v6066 = vpack.c.bf16 %v6040, %v6039
      %v6067 = vpack.c.bf16 %v6042, %v6041
      %v6068 = vpack.c.bf16 %v6044, %v6043
      %v6069 = vpack.c.bf16 %v6046, %v6045
      %v6070 = vpack.c.bf16 %v6048, %v6047
      %v6071 = vpack.c.bf16 %v6050, %v6049
      %v6072 = vpack.c.bf16 %v6052, %v6051
      %v6073 = vpack.c.bf16 %v6054, %v6053
      %v6074 = vpack.c.bf16 %v6056, %v6055
      %s6075 = scalar_lea.vmem %s3, 20
      %v6076 = vld [vmem:[%s6075] sm:$0xf]
      %v6078 = vsel %vm363, %v6057, 0
      %v6081 = vsel %vm363, %v6058, 0
      %v6084 = vsel %vm363, %v6059, 0
      %v6087 = vsel %vm363, %v6060, 0
      %v6090 = vsel %vm363, %v6061, 0
      %v6093 = vsel %vm363, %v6062, 0
      %v6096 = vsel %vm363, %v6063, 0
      %v6099 = vsel %vm363, %v6064, 0
      %v6102 = vsel %vm363, %v6065, 0
      %v6105 = vsel %vm363, %v6066, 0
      %v6108 = vsel %vm363, %v6067, 0
      %v6111 = vsel %vm363, %v6068, 0
      %v6114 = vsel %vm363, %v6069, 0
      %v6117 = vsel %vm363, %v6070, 0
      %v6120 = vsel %vm363, %v6071, 0
      %v6123 = vsel %vm363, %v6072, 0
      %v6126 = vsel %vm363, %v6073, 0
      %v6129 = vsel %vm363, %v6074, 0
      %v6132 = vsel %vm1184, %v6076, 0
      %6134 = vmatprep.subr.bf16.mxu0 0
      %6135 = vmatpush1.bf16.msra.mxu0 0
      %6136 = vmatprep.subr.bf16.mxu0 0
      %6137 = vmatpush1.bf16.msra.mxu0 0
      %6138 = vmatprep.subr.bf16.mxu0 0
      %6139 = vmatpush1.bf16.msra.mxu0 0
      %6140 = vmatprep.subr.bf16.mxu0 0
      %6141 = vmatpush1.bf16.msra.mxu0 0
      %6142 = vmatprep.subr.bf16.mxu0 0
      %6143 = vmatpush1.bf16.msra.mxu0 0
      %6144 = vmatprep.subr.bf16.mxu0 0
      %6145 = vmatpush1.bf16.msra.mxu0 0
      %6146 = vmatprep.subr.bf16.mxu0 0
      %6147 = vmatpush1.bf16.msra.mxu0 0
      %6148 = vmatprep.subr.bf16.mxu0 0
      %6149 = vmatpush1.bf16.msra.mxu0 %v6132
      %6150 = vmatprep.subr.bf16.mxu0 0
      %6151 = vmatpush2.bf16.msra.mxu0 0
      %6152 = vmatprep.subr.bf16.mxu0 0
      %6153 = vmatpush2.bf16.msra.mxu0 0
      %6154 = vmatprep.subr.bf16.mxu0 0
      %6155 = vmatpush2.bf16.msra.mxu0 0
      %6156 = vmatprep.subr.bf16.mxu0 0
      %6157 = vmatpush2.bf16.msra.mxu0 0
      %6158 = vmatprep.subr.bf16.mxu0 0
      %6159 = vmatpush2.bf16.msra.mxu0 0
      %6160 = vmatprep.subr.bf16.mxu0 0
      %6161 = vmatpush2.bf16.msra.mxu0 0
      %6162 = vmatprep.subr.bf16.mxu0 0
      %6163 = vmatpush2.bf16.msra.mxu0 0
      %6164 = vmatprep.subr.bf16.mxu0 0
      %6165 = vmatpush2.bf16.msra.mxu0 0
      %6166 = vmatprep.mubr.bf16.mxu0 0
      %6167 = vmatmul.mubr.bf16.gmra.mxu0 %v6078
      %v6168 = vpop.f32.mrf.mxu0
      %v6169 = vadd.f32 0.0, %v6168
      %v6170 = vpop.f32.mrf.mxu0
      %v6171 = vpop.f32.mrf.mxu0
      %v6172 = vadd.f32 0.0, %v6171
      %v6173 = vpop.f32.mrf.mxu0
      %6174 = vmatprep.mubr.bf16.mxu0 0
      %6175 = vmatmul.mubr.bf16.gmra.mxu0 %v6081
      %v6176 = vpop.f32.mrf.mxu0
      %v6177 = vadd.f32 0.0, %v6176
      %v6178 = vpop.f32.mrf.mxu0
      %v6179 = vpop.f32.mrf.mxu0
      %v6180 = vadd.f32 0.0, %v6179
      %v6181 = vpop.f32.mrf.mxu0
      %6182 = vmatprep.mubr.bf16.mxu0 0
      %6183 = vmatmul.mubr.bf16.gmra.mxu0 %v6084
      %v6184 = vpop.f32.mrf.mxu0
      %v6185 = vadd.f32 0.0, %v6184
      %v6186 = vpop.f32.mrf.mxu0
      %v6187 = vpop.f32.mrf.mxu0
      %v6188 = vadd.f32 0.0, %v6187
      %v6189 = vpop.f32.mrf.mxu0
      %6190 = vmatprep.mubr.bf16.mxu0 0
      %6191 = vmatmul.mubr.bf16.gmra.mxu0 %v6087
      %v6192 = vpop.f32.mrf.mxu0
      %v6193 = vadd.f32 0.0, %v6192
      %v6194 = vpop.f32.mrf.mxu0
      %v6195 = vpop.f32.mrf.mxu0
      %v6196 = vadd.f32 0.0, %v6195
      %v6197 = vpop.f32.mrf.mxu0
      %6198 = vmatprep.mubr.bf16.mxu0 0
      %6199 = vmatmul.mubr.bf16.gmra.mxu0 %v6090
      %v6200 = vpop.f32.mrf.mxu0
      %v6201 = vadd.f32 0.0, %v6200
      %v6202 = vpop.f32.mrf.mxu0
      %v6203 = vpop.f32.mrf.mxu0
      %v6204 = vadd.f32 0.0, %v6203
      %v6205 = vpop.f32.mrf.mxu0
      %6206 = vmatprep.mubr.bf16.mxu0 0
      %6207 = vmatmul.mubr.bf16.gmra.mxu0 %v6093
      %v6208 = vpop.f32.mrf.mxu0
      %v6209 = vadd.f32 0.0, %v6208
      %v6210 = vpop.f32.mrf.mxu0
      %v6211 = vpop.f32.mrf.mxu0
      %v6212 = vadd.f32 0.0, %v6211
      %v6213 = vpop.f32.mrf.mxu0
      %6214 = vmatprep.mubr.bf16.mxu0 0
      %6215 = vmatmul.mubr.bf16.gmra.mxu0 %v6096
      %v6216 = vpop.f32.mrf.mxu0
      %v6217 = vadd.f32 0.0, %v6216
      %v6218 = vpop.f32.mrf.mxu0
      %v6219 = vpop.f32.mrf.mxu0
      %v6220 = vadd.f32 0.0, %v6219
      %v6221 = vpop.f32.mrf.mxu0
      %6222 = vmatprep.mubr.bf16.mxu0 0
      %6223 = vmatmul.mubr.bf16.gmra.mxu0 %v6099
      %v6224 = vpop.f32.mrf.mxu0
      %v6225 = vadd.f32 0.0, %v6224
      %v6226 = vpop.f32.mrf.mxu0
      %v6227 = vpop.f32.mrf.mxu0
      %v6228 = vadd.f32 0.0, %v6227
      %v6229 = vpop.f32.mrf.mxu0
      %6230 = vmatprep.mubr.bf16.mxu0 0
      %6231 = vmatmul.mubr.bf16.gmra.mxu0 %v6102
      %v6232 = vpop.f32.mrf.mxu0
      %v6233 = vadd.f32 0.0, %v6232
      %v6234 = vpop.f32.mrf.mxu0
      %v6235 = vpop.f32.mrf.mxu0
      %v6236 = vadd.f32 0.0, %v6235
      %v6237 = vpop.f32.mrf.mxu0
      %6238 = vmatprep.mubr.bf16.mxu0 0
      %6239 = vmatmul.mubr.bf16.gmra.mxu0 %v6105
      %v6240 = vpop.f32.mrf.mxu0
      %v6241 = vadd.f32 0.0, %v6240
      %v6242 = vpop.f32.mrf.mxu0
      %v6243 = vpop.f32.mrf.mxu0
      %v6244 = vadd.f32 0.0, %v6243
      %v6245 = vpop.f32.mrf.mxu0
      %6246 = vmatprep.mubr.bf16.mxu0 0
      %6247 = vmatmul.mubr.bf16.gmra.mxu0 %v6108
      %v6248 = vpop.f32.mrf.mxu0
      %v6249 = vadd.f32 0.0, %v6248
      %v6250 = vpop.f32.mrf.mxu0
      %v6251 = vpop.f32.mrf.mxu0
      %v6252 = vadd.f32 0.0, %v6251
      %v6253 = vpop.f32.mrf.mxu0
      %6254 = vmatprep.mubr.bf16.mxu0 0
      %6255 = vmatmul.mubr.bf16.gmra.mxu0 %v6111
      %v6256 = vpop.f32.mrf.mxu0
      %v6257 = vadd.f32 0.0, %v6256
      %v6258 = vpop.f32.mrf.mxu0
      %v6259 = vpop.f32.mrf.mxu0
      %v6260 = vadd.f32 0.0, %v6259
      %v6261 = vpop.f32.mrf.mxu0
      %6262 = vmatprep.mubr.bf16.mxu0 0
      %6263 = vmatmul.mubr.bf16.gmra.mxu0 %v6114
      %v6264 = vpop.f32.mrf.mxu0
      %v6265 = vadd.f32 0.0, %v6264
      %v6266 = vpop.f32.mrf.mxu0
      %v6267 = vpop.f32.mrf.mxu0
      %v6268 = vadd.f32 0.0, %v6267
      %v6269 = vpop.f32.mrf.mxu0
      %6270 = vmatprep.mubr.bf16.mxu0 0
      %6271 = vmatmul.mubr.bf16.gmra.mxu0 %v6117
      %v6272 = vpop.f32.mrf.mxu0
      %v6273 = vadd.f32 0.0, %v6272
      %v6274 = vpop.f32.mrf.mxu0
      %v6275 = vpop.f32.mrf.mxu0
      %v6276 = vadd.f32 0.0, %v6275
      %v6277 = vpop.f32.mrf.mxu0
      %6278 = vmatprep.mubr.bf16.mxu0 0
      %6279 = vmatmul.mubr.bf16.gmra.mxu0 %v6120
      %v6280 = vpop.f32.mrf.mxu0
      %v6281 = vadd.f32 0.0, %v6280
      %v6282 = vpop.f32.mrf.mxu0
      %v6283 = vpop.f32.mrf.mxu0
      %v6284 = vadd.f32 0.0, %v6283
      %v6285 = vpop.f32.mrf.mxu0
      %6286 = vmatprep.mubr.bf16.mxu0 0
      %6287 = vmatmul.mubr.bf16.gmra.mxu0 %v6123
      %v6288 = vpop.f32.mrf.mxu0
      %v6289 = vadd.f32 0.0, %v6288
      %v6290 = vpop.f32.mrf.mxu0
      %v6291 = vpop.f32.mrf.mxu0
      %v6292 = vadd.f32 0.0, %v6291
      %v6293 = vpop.f32.mrf.mxu0
      %6294 = vmatprep.mubr.bf16.mxu0 0
      %6295 = vmatmul.mubr.bf16.gmra.mxu0 %v6126
      %v6296 = vpop.f32.mrf.mxu0
      %v6297 = vadd.f32 0.0, %v6296
      %v6298 = vpop.f32.mrf.mxu0
      %v6299 = vpop.f32.mrf.mxu0
      %v6300 = vadd.f32 0.0, %v6299
      %v6301 = vpop.f32.mrf.mxu0
      %6302 = vmatprep.mubr.bf16.mxu0 0
      %6303 = vmatmul.mubr.bf16.gmra.mxu0 %v6129
      %v6304 = vpop.f32.mrf.mxu0
      %v6305 = vadd.f32 0.0, %v6304
      %v6306 = vpop.f32.mrf.mxu0
      %v6307 = vpop.f32.mrf.mxu0
      %v6308 = vadd.f32 0.0, %v6307
      %v6309 = vpop.f32.mrf.mxu0
      %6310 = vdwg.mxu0
      %v6311 = vadd.f32 %v5985, %v6169
      %v6312 = vadd.f32 %v5986, %v6172
      %v6313 = vadd.f32 %v5987, %v6177
      %v6314 = vadd.f32 %v5988, %v6180
      %v6315 = vadd.f32 %v5989, %v6185
      %v6316 = vadd.f32 %v5990, %v6188
      %v6317 = vadd.f32 %v5991, %v6193
      %v6318 = vadd.f32 %v5992, %v6196
      %v6319 = vadd.f32 %v5993, %v6201
      %v6320 = vadd.f32 %v5994, %v6204
      %v6321 = vadd.f32 %v5995, %v6209
      %v6322 = vadd.f32 %v5996, %v6212
      %v6323 = vadd.f32 %v5997, %v6217
      %v6324 = vadd.f32 %v5998, %v6220
      %v6325 = vadd.f32 %v5999, %v6225
      %v6326 = vadd.f32 %v6000, %v6228
      %v6327 = vadd.f32 %v6001, %v6233
      %v6328 = vadd.f32 %v6002, %v6236
      %v6329 = vadd.f32 %v6003, %v6241
      %v6330 = vadd.f32 %v6004, %v6244
      %v6331 = vadd.f32 %v6005, %v6249
      %v6332 = vadd.f32 %v6006, %v6252
      %v6333 = vadd.f32 %v6007, %v6257
      %v6334 = vadd.f32 %v6008, %v6260
      %v6335 = vadd.f32 %v6009, %v6265
      %v6336 = vadd.f32 %v6010, %v6268
      %v6337 = vadd.f32 %v6011, %v6273
      %v6338 = vadd.f32 %v6012, %v6276
      %v6339 = vadd.f32 %v6013, %v6281
      %v6340 = vadd.f32 %v6014, %v6284
      %v6341 = vadd.f32 %v6015, %v6289
      %v6342 = vadd.f32 %v6016, %v6292
      %v6343 = vadd.f32 %v6017, %v6297
      %v6344 = vadd.f32 %v6018, %v6300
      %v6345 = vadd.f32 %v6019, %v6305
      %v6346 = vadd.f32 %v6020, %v6308
      %v6347 = vld [vmem:[#allocation2 + $0x24] sm:$0xff]
      %v6348 = vld [vmem:[#allocation2 + $0x2c] sm:$0xff]
      %v6349 = vld [vmem:[#allocation2 + $0x34] sm:$0xff]
      %v6350 = vld [vmem:[#allocation2 + $0x3c] sm:$0xff]
      %v6351 = vld [vmem:[#allocation2 + $0x44] sm:$0xff]
      %v6352 = vld [vmem:[#allocation2 + $0x4c] sm:$0xff]
      %v6353 = vld [vmem:[#allocation2 + $0x54] sm:$0xff]
      %v6354 = vld [vmem:[#allocation2 + $0x5c] sm:$0xff]
      %v6355 = vld [vmem:[#allocation2 + $0x64] sm:$0xff]
      %v6356 = vld [vmem:[#allocation2 + $0x6c] sm:$0xff]
      %v6357 = vld [vmem:[#allocation2 + $0x74] sm:$0xff]
      %v6358 = vld [vmem:[#allocation2 + $0x7c] sm:$0xff]
      %v6359 = vld [vmem:[#allocation2 + $0x84] sm:$0xff]
      %v6360 = vld [vmem:[#allocation2 + $0x8c] sm:$0xff]
      %v6361 = vld [vmem:[#allocation2 + $0x94] sm:$0xff]
      %v6362 = vld [vmem:[#allocation2 + $0x9c] sm:$0xff]
      %v6363 = vld [vmem:[#allocation2 + $0xa4] sm:$0xff]
      %v6364 = vld [vmem:[#allocation2 + $0xac] sm:$0xff]
      %v6365 = vld [vmem:[#allocation2 + $0xb4] sm:$0xff]
      %v6366 = vld [vmem:[#allocation2 + $0xbc] sm:$0xff]
      %v6367 = vld [vmem:[#allocation2 + $0xc4] sm:$0xff]
      %v6368 = vld [vmem:[#allocation2 + $0xcc] sm:$0xff]
      %v6369 = vld [vmem:[#allocation2 + $0xd4] sm:$0xff]
      %v6370 = vld [vmem:[#allocation2 + $0xdc] sm:$0xff]
      %v6371 = vld [vmem:[#allocation2 + $0xe4] sm:$0xff]
      %v6372 = vld [vmem:[#allocation2 + $0xec] sm:$0xff]
      %v6373 = vld [vmem:[#allocation2 + $0xf4] sm:$0xff]
      %v6374 = vld [vmem:[#allocation2 + $0xfc] sm:$0xff]
      %v6375 = vld [vmem:[#allocation2 + $0x104] sm:$0xff]
      %v6376 = vld [vmem:[#allocation2 + $0x10c] sm:$0xff]
      %v6377 = vld [vmem:[#allocation2 + $0x114] sm:$0xff]
      %v6378 = vld [vmem:[#allocation2 + $0x11c] sm:$0xff]
      %v6379 = vld [vmem:[#allocation2 + $0x124] sm:$0xff]
      %v6380 = vld [vmem:[#allocation2 + $0x12c] sm:$0xff]
      %v6381 = vld [vmem:[#allocation2 + $0x134] sm:$0xff]
      %v6382 = vld [vmem:[#allocation2 + $0x13c] sm:$0xff]
      %v6383 = vpack.c.bf16 %v6348, %v6347
      %v6384 = vpack.c.bf16 %v6350, %v6349
      %v6385 = vpack.c.bf16 %v6352, %v6351
      %v6386 = vpack.c.bf16 %v6354, %v6353
      %v6387 = vpack.c.bf16 %v6356, %v6355
      %v6388 = vpack.c.bf16 %v6358, %v6357
      %v6389 = vpack.c.bf16 %v6360, %v6359
      %v6390 = vpack.c.bf16 %v6362, %v6361
      %v6391 = vpack.c.bf16 %v6364, %v6363
      %v6392 = vpack.c.bf16 %v6366, %v6365
      %v6393 = vpack.c.bf16 %v6368, %v6367
      %v6394 = vpack.c.bf16 %v6370, %v6369
      %v6395 = vpack.c.bf16 %v6372, %v6371
      %v6396 = vpack.c.bf16 %v6374, %v6373
      %v6397 = vpack.c.bf16 %v6376, %v6375
      %v6398 = vpack.c.bf16 %v6378, %v6377
      %v6399 = vpack.c.bf16 %v6380, %v6379
      %v6400 = vpack.c.bf16 %v6382, %v6381
      %s6401 = scalar_lea.vmem %s3, 24
      %v6402 = vld [vmem:[%s6401] sm:$0xf]
      %v6404 = vsel %vm363, %v6383, 0
      %v6407 = vsel %vm363, %v6384, 0
      %v6410 = vsel %vm363, %v6385, 0
      %v6413 = vsel %vm363, %v6386, 0
      %v6416 = vsel %vm363, %v6387, 0
      %v6419 = vsel %vm363, %v6388, 0
      %v6422 = vsel %vm363, %v6389, 0
      %v6425 = vsel %vm363, %v6390, 0
      %v6428 = vsel %vm363, %v6391, 0
      %v6431 = vsel %vm363, %v6392, 0
      %v6434 = vsel %vm363, %v6393, 0
      %v6437 = vsel %vm363, %v6394, 0
      %v6440 = vsel %vm363, %v6395, 0
      %v6443 = vsel %vm363, %v6396, 0
      %v6446 = vsel %vm363, %v6397, 0
      %v6449 = vsel %vm363, %v6398, 0
      %v6452 = vsel %vm363, %v6399, 0
      %v6455 = vsel %vm363, %v6400, 0
      %v6458 = vsel %vm1184, %v6402, 0
      %6460 = vmatprep.subr.bf16.mxu0 0
      %6461 = vmatpush1.bf16.msra.mxu0 0
      %6462 = vmatprep.subr.bf16.mxu0 0
      %6463 = vmatpush1.bf16.msra.mxu0 0
      %6464 = vmatprep.subr.bf16.mxu0 0
      %6465 = vmatpush1.bf16.msra.mxu0 0
      %6466 = vmatprep.subr.bf16.mxu0 0
      %6467 = vmatpush1.bf16.msra.mxu0 0
      %6468 = vmatprep.subr.bf16.mxu0 0
      %6469 = vmatpush1.bf16.msra.mxu0 0
      %6470 = vmatprep.subr.bf16.mxu0 0
      %6471 = vmatpush1.bf16.msra.mxu0 0
      %6472 = vmatprep.subr.bf16.mxu0 0
      %6473 = vmatpush1.bf16.msra.mxu0 0
      %6474 = vmatprep.subr.bf16.mxu0 0
      %6475 = vmatpush1.bf16.msra.mxu0 %v6458
      %6476 = vmatprep.subr.bf16.mxu0 0
      %6477 = vmatpush2.bf16.msra.mxu0 0
      %6478 = vmatprep.subr.bf16.mxu0 0
      %6479 = vmatpush2.bf16.msra.mxu0 0
      %6480 = vmatprep.subr.bf16.mxu0 0
      %6481 = vmatpush2.bf16.msra.mxu0 0
      %6482 = vmatprep.subr.bf16.mxu0 0
      %6483 = vmatpush2.bf16.msra.mxu0 0
      %6484 = vmatprep.subr.bf16.mxu0 0
      %6485 = vmatpush2.bf16.msra.mxu0 0
      %6486 = vmatprep.subr.bf16.mxu0 0
      %6487 = vmatpush2.bf16.msra.mxu0 0
      %6488 = vmatprep.subr.bf16.mxu0 0
      %6489 = vmatpush2.bf16.msra.mxu0 0
      %6490 = vmatprep.subr.bf16.mxu0 0
      %6491 = vmatpush2.bf16.msra.mxu0 0
      %6492 = vmatprep.mubr.bf16.mxu0 0
      %6493 = vmatmul.mubr.bf16.gmra.mxu0 %v6404
      %v6494 = vpop.f32.mrf.mxu0
      %v6495 = vadd.f32 0.0, %v6494
      %v6496 = vpop.f32.mrf.mxu0
      %v6497 = vpop.f32.mrf.mxu0
      %v6498 = vadd.f32 0.0, %v6497
      %v6499 = vpop.f32.mrf.mxu0
      %6500 = vmatprep.mubr.bf16.mxu0 0
      %6501 = vmatmul.mubr.bf16.gmra.mxu0 %v6407
      %v6502 = vpop.f32.mrf.mxu0
      %v6503 = vadd.f32 0.0, %v6502
      %v6504 = vpop.f32.mrf.mxu0
      %v6505 = vpop.f32.mrf.mxu0
      %v6506 = vadd.f32 0.0, %v6505
      %v6507 = vpop.f32.mrf.mxu0
      %6508 = vmatprep.mubr.bf16.mxu0 0
      %6509 = vmatmul.mubr.bf16.gmra.mxu0 %v6410
      %v6510 = vpop.f32.mrf.mxu0
      %v6511 = vadd.f32 0.0, %v6510
      %v6512 = vpop.f32.mrf.mxu0
      %v6513 = vpop.f32.mrf.mxu0
      %v6514 = vadd.f32 0.0, %v6513
      %v6515 = vpop.f32.mrf.mxu0
      %6516 = vmatprep.mubr.bf16.mxu0 0
      %6517 = vmatmul.mubr.bf16.gmra.mxu0 %v6413
      %v6518 = vpop.f32.mrf.mxu0
      %v6519 = vadd.f32 0.0, %v6518
      %v6520 = vpop.f32.mrf.mxu0
      %v6521 = vpop.f32.mrf.mxu0
      %v6522 = vadd.f32 0.0, %v6521
      %v6523 = vpop.f32.mrf.mxu0
      %6524 = vmatprep.mubr.bf16.mxu0 0
      %6525 = vmatmul.mubr.bf16.gmra.mxu0 %v6416
      %v6526 = vpop.f32.mrf.mxu0
      %v6527 = vadd.f32 0.0, %v6526
      %v6528 = vpop.f32.mrf.mxu0
      %v6529 = vpop.f32.mrf.mxu0
      %v6530 = vadd.f32 0.0, %v6529
      %v6531 = vpop.f32.mrf.mxu0
      %6532 = vmatprep.mubr.bf16.mxu0 0
      %6533 = vmatmul.mubr.bf16.gmra.mxu0 %v6419
      %v6534 = vpop.f32.mrf.mxu0
      %v6535 = vadd.f32 0.0, %v6534
      %v6536 = vpop.f32.mrf.mxu0
      %v6537 = vpop.f32.mrf.mxu0
      %v6538 = vadd.f32 0.0, %v6537
      %v6539 = vpop.f32.mrf.mxu0
      %6540 = vmatprep.mubr.bf16.mxu0 0
      %6541 = vmatmul.mubr.bf16.gmra.mxu0 %v6422
      %v6542 = vpop.f32.mrf.mxu0
      %v6543 = vadd.f32 0.0, %v6542
      %v6544 = vpop.f32.mrf.mxu0
      %v6545 = vpop.f32.mrf.mxu0
      %v6546 = vadd.f32 0.0, %v6545
      %v6547 = vpop.f32.mrf.mxu0
      %6548 = vmatprep.mubr.bf16.mxu0 0
      %6549 = vmatmul.mubr.bf16.gmra.mxu0 %v6425
      %v6550 = vpop.f32.mrf.mxu0
      %v6551 = vadd.f32 0.0, %v6550
      %v6552 = vpop.f32.mrf.mxu0
      %v6553 = vpop.f32.mrf.mxu0
      %v6554 = vadd.f32 0.0, %v6553
      %v6555 = vpop.f32.mrf.mxu0
      %6556 = vmatprep.mubr.bf16.mxu0 0
      %6557 = vmatmul.mubr.bf16.gmra.mxu0 %v6428
      %v6558 = vpop.f32.mrf.mxu0
      %v6559 = vadd.f32 0.0, %v6558
      %v6560 = vpop.f32.mrf.mxu0
      %v6561 = vpop.f32.mrf.mxu0
      %v6562 = vadd.f32 0.0, %v6561
      %v6563 = vpop.f32.mrf.mxu0
      %6564 = vmatprep.mubr.bf16.mxu0 0
      %6565 = vmatmul.mubr.bf16.gmra.mxu0 %v6431
      %v6566 = vpop.f32.mrf.mxu0
      %v6567 = vadd.f32 0.0, %v6566
      %v6568 = vpop.f32.mrf.mxu0
      %v6569 = vpop.f32.mrf.mxu0
      %v6570 = vadd.f32 0.0, %v6569
      %v6571 = vpop.f32.mrf.mxu0
      %6572 = vmatprep.mubr.bf16.mxu0 0
      %6573 = vmatmul.mubr.bf16.gmra.mxu0 %v6434
      %v6574 = vpop.f32.mrf.mxu0
      %v6575 = vadd.f32 0.0, %v6574
      %v6576 = vpop.f32.mrf.mxu0
      %v6577 = vpop.f32.mrf.mxu0
      %v6578 = vadd.f32 0.0, %v6577
      %v6579 = vpop.f32.mrf.mxu0
      %6580 = vmatprep.mubr.bf16.mxu0 0
      %6581 = vmatmul.mubr.bf16.gmra.mxu0 %v6437
      %v6582 = vpop.f32.mrf.mxu0
      %v6583 = vadd.f32 0.0, %v6582
      %v6584 = vpop.f32.mrf.mxu0
      %v6585 = vpop.f32.mrf.mxu0
      %v6586 = vadd.f32 0.0, %v6585
      %v6587 = vpop.f32.mrf.mxu0
      %6588 = vmatprep.mubr.bf16.mxu0 0
      %6589 = vmatmul.mubr.bf16.gmra.mxu0 %v6440
      %v6590 = vpop.f32.mrf.mxu0
      %v6591 = vadd.f32 0.0, %v6590
      %v6592 = vpop.f32.mrf.mxu0
      %v6593 = vpop.f32.mrf.mxu0
      %v6594 = vadd.f32 0.0, %v6593
      %v6595 = vpop.f32.mrf.mxu0
      %6596 = vmatprep.mubr.bf16.mxu0 0
      %6597 = vmatmul.mubr.bf16.gmra.mxu0 %v6443
      %v6598 = vpop.f32.mrf.mxu0
      %v6599 = vadd.f32 0.0, %v6598
      %v6600 = vpop.f32.mrf.mxu0
      %v6601 = vpop.f32.mrf.mxu0
      %v6602 = vadd.f32 0.0, %v6601
      %v6603 = vpop.f32.mrf.mxu0
      %6604 = vmatprep.mubr.bf16.mxu0 0
      %6605 = vmatmul.mubr.bf16.gmra.mxu0 %v6446
      %v6606 = vpop.f32.mrf.mxu0
      %v6607 = vadd.f32 0.0, %v6606
      %v6608 = vpop.f32.mrf.mxu0
      %v6609 = vpop.f32.mrf.mxu0
      %v6610 = vadd.f32 0.0, %v6609
      %v6611 = vpop.f32.mrf.mxu0
      %6612 = vmatprep.mubr.bf16.mxu0 0
      %6613 = vmatmul.mubr.bf16.gmra.mxu0 %v6449
      %v6614 = vpop.f32.mrf.mxu0
      %v6615 = vadd.f32 0.0, %v6614
      %v6616 = vpop.f32.mrf.mxu0
      %v6617 = vpop.f32.mrf.mxu0
      %v6618 = vadd.f32 0.0, %v6617
      %v6619 = vpop.f32.mrf.mxu0
      %6620 = vmatprep.mubr.bf16.mxu0 0
      %6621 = vmatmul.mubr.bf16.gmra.mxu0 %v6452
      %v6622 = vpop.f32.mrf.mxu0
      %v6623 = vadd.f32 0.0, %v6622
      %v6624 = vpop.f32.mrf.mxu0
      %v6625 = vpop.f32.mrf.mxu0
      %v6626 = vadd.f32 0.0, %v6625
      %v6627 = vpop.f32.mrf.mxu0
      %6628 = vmatprep.mubr.bf16.mxu0 0
      %6629 = vmatmul.mubr.bf16.gmra.mxu0 %v6455
      %v6630 = vpop.f32.mrf.mxu0
      %v6631 = vadd.f32 0.0, %v6630
      %v6632 = vpop.f32.mrf.mxu0
      %v6633 = vpop.f32.mrf.mxu0
      %v6634 = vadd.f32 0.0, %v6633
      %v6635 = vpop.f32.mrf.mxu0
      %6636 = vdwg.mxu0
      %v6637 = vadd.f32 %v6311, %v6495
      %v6638 = vadd.f32 %v6312, %v6498
      %v6639 = vadd.f32 %v6313, %v6503
      %v6640 = vadd.f32 %v6314, %v6506
      %v6641 = vadd.f32 %v6315, %v6511
      %v6642 = vadd.f32 %v6316, %v6514
      %v6643 = vadd.f32 %v6317, %v6519
      %v6644 = vadd.f32 %v6318, %v6522
      %v6645 = vadd.f32 %v6319, %v6527
      %v6646 = vadd.f32 %v6320, %v6530
      %v6647 = vadd.f32 %v6321, %v6535
      %v6648 = vadd.f32 %v6322, %v6538
      %v6649 = vadd.f32 %v6323, %v6543
      %v6650 = vadd.f32 %v6324, %v6546
      %v6651 = vadd.f32 %v6325, %v6551
      %v6652 = vadd.f32 %v6326, %v6554
      %v6653 = vadd.f32 %v6327, %v6559
      %v6654 = vadd.f32 %v6328, %v6562
      %v6655 = vadd.f32 %v6329, %v6567
      %v6656 = vadd.f32 %v6330, %v6570
      %v6657 = vadd.f32 %v6331, %v6575
      %v6658 = vadd.f32 %v6332, %v6578
      %v6659 = vadd.f32 %v6333, %v6583
      %v6660 = vadd.f32 %v6334, %v6586
      %v6661 = vadd.f32 %v6335, %v6591
      %v6662 = vadd.f32 %v6336, %v6594
      %v6663 = vadd.f32 %v6337, %v6599
      %v6664 = vadd.f32 %v6338, %v6602
      %v6665 = vadd.f32 %v6339, %v6607
      %v6666 = vadd.f32 %v6340, %v6610
      %v6667 = vadd.f32 %v6341, %v6615
      %v6668 = vadd.f32 %v6342, %v6618
      %v6669 = vadd.f32 %v6343, %v6623
      %v6670 = vadd.f32 %v6344, %v6626
      %v6671 = vadd.f32 %v6345, %v6631
      %v6672 = vadd.f32 %v6346, %v6634
      %v6673 = vld [vmem:[#allocation2 + $0x25] sm:$0xff]
      %v6674 = vld [vmem:[#allocation2 + $0x2d] sm:$0xff]
      %v6675 = vld [vmem:[#allocation2 + $0x35] sm:$0xff]
      %v6676 = vld [vmem:[#allocation2 + $0x3d] sm:$0xff]
      %v6677 = vld [vmem:[#allocation2 + $0x45] sm:$0xff]
      %v6678 = vld [vmem:[#allocation2 + $0x4d] sm:$0xff]
      %v6679 = vld [vmem:[#allocation2 + $0x55] sm:$0xff]
      %v6680 = vld [vmem:[#allocation2 + $0x5d] sm:$0xff]
      %v6681 = vld [vmem:[#allocation2 + $0x65] sm:$0xff]
      %v6682 = vld [vmem:[#allocation2 + $0x6d] sm:$0xff]
      %v6683 = vld [vmem:[#allocation2 + $0x75] sm:$0xff]
      %v6684 = vld [vmem:[#allocation2 + $0x7d] sm:$0xff]
      %v6685 = vld [vmem:[#allocation2 + $0x85] sm:$0xff]
      %v6686 = vld [vmem:[#allocation2 + $0x8d] sm:$0xff]
      %v6687 = vld [vmem:[#allocation2 + $0x95] sm:$0xff]
      %v6688 = vld [vmem:[#allocation2 + $0x9d] sm:$0xff]
      %v6689 = vld [vmem:[#allocation2 + $0xa5] sm:$0xff]
      %v6690 = vld [vmem:[#allocation2 + $0xad] sm:$0xff]
      %v6691 = vld [vmem:[#allocation2 + $0xb5] sm:$0xff]
      %v6692 = vld [vmem:[#allocation2 + $0xbd] sm:$0xff]
      %v6693 = vld [vmem:[#allocation2 + $0xc5] sm:$0xff]
      %v6694 = vld [vmem:[#allocation2 + $0xcd] sm:$0xff]
      %v6695 = vld [vmem:[#allocation2 + $0xd5] sm:$0xff]
      %v6696 = vld [vmem:[#allocation2 + $0xdd] sm:$0xff]
      %v6697 = vld [vmem:[#allocation2 + $0xe5] sm:$0xff]
      %v6698 = vld [vmem:[#allocation2 + $0xed] sm:$0xff]
      %v6699 = vld [vmem:[#allocation2 + $0xf5] sm:$0xff]
      %v6700 = vld [vmem:[#allocation2 + $0xfd] sm:$0xff]
      %v6701 = vld [vmem:[#allocation2 + $0x105] sm:$0xff]
      %v6702 = vld [vmem:[#allocation2 + $0x10d] sm:$0xff]
      %v6703 = vld [vmem:[#allocation2 + $0x115] sm:$0xff]
      %v6704 = vld [vmem:[#allocation2 + $0x11d] sm:$0xff]
      %v6705 = vld [vmem:[#allocation2 + $0x125] sm:$0xff]
      %v6706 = vld [vmem:[#allocation2 + $0x12d] sm:$0xff]
      %v6707 = vld [vmem:[#allocation2 + $0x135] sm:$0xff]
      %v6708 = vld [vmem:[#allocation2 + $0x13d] sm:$0xff]
      %v6709 = vpack.c.bf16 %v6674, %v6673
      %v6710 = vpack.c.bf16 %v6676, %v6675
      %v6711 = vpack.c.bf16 %v6678, %v6677
      %v6712 = vpack.c.bf16 %v6680, %v6679
      %v6713 = vpack.c.bf16 %v6682, %v6681
      %v6714 = vpack.c.bf16 %v6684, %v6683
      %v6715 = vpack.c.bf16 %v6686, %v6685
      %v6716 = vpack.c.bf16 %v6688, %v6687
      %v6717 = vpack.c.bf16 %v6690, %v6689
      %v6718 = vpack.c.bf16 %v6692, %v6691
      %v6719 = vpack.c.bf16 %v6694, %v6693
      %v6720 = vpack.c.bf16 %v6696, %v6695
      %v6721 = vpack.c.bf16 %v6698, %v6697
      %v6722 = vpack.c.bf16 %v6700, %v6699
      %v6723 = vpack.c.bf16 %v6702, %v6701
      %v6724 = vpack.c.bf16 %v6704, %v6703
      %v6725 = vpack.c.bf16 %v6706, %v6705
      %v6726 = vpack.c.bf16 %v6708, %v6707
      %s6727 = scalar_lea.vmem %s3, 28
      %v6728 = vld [vmem:[%s6727] sm:$0xf]
      %v6730 = vsel %vm363, %v6709, 0
      %v6733 = vsel %vm363, %v6710, 0
      %v6736 = vsel %vm363, %v6711, 0
      %v6739 = vsel %vm363, %v6712, 0
      %v6742 = vsel %vm363, %v6713, 0
      %v6745 = vsel %vm363, %v6714, 0
      %v6748 = vsel %vm363, %v6715, 0
      %v6751 = vsel %vm363, %v6716, 0
      %v6754 = vsel %vm363, %v6717, 0
      %v6757 = vsel %vm363, %v6718, 0
      %v6760 = vsel %vm363, %v6719, 0
      %v6763 = vsel %vm363, %v6720, 0
      %v6766 = vsel %vm363, %v6721, 0
      %v6769 = vsel %vm363, %v6722, 0
      %v6772 = vsel %vm363, %v6723, 0
      %v6775 = vsel %vm363, %v6724, 0
      %v6778 = vsel %vm363, %v6725, 0
      %v6781 = vsel %vm363, %v6726, 0
      %v6784 = vsel %vm1184, %v6728, 0
      %6786 = vmatprep.subr.bf16.mxu0 0
      %6787 = vmatpush1.bf16.msra.mxu0 0
      %6788 = vmatprep.subr.bf16.mxu0 0
      %6789 = vmatpush1.bf16.msra.mxu0 0
      %6790 = vmatprep.subr.bf16.mxu0 0
      %6791 = vmatpush1.bf16.msra.mxu0 0
      %6792 = vmatprep.subr.bf16.mxu0 0
      %6793 = vmatpush1.bf16.msra.mxu0 0
      %6794 = vmatprep.subr.bf16.mxu0 0
      %6795 = vmatpush1.bf16.msra.mxu0 0
      %6796 = vmatprep.subr.bf16.mxu0 0
      %6797 = vmatpush1.bf16.msra.mxu0 0
      %6798 = vmatprep.subr.bf16.mxu0 0
      %6799 = vmatpush1.bf16.msra.mxu0 0
      %6800 = vmatprep.subr.bf16.mxu0 0
      %6801 = vmatpush1.bf16.msra.mxu0 %v6784
      %6802 = vmatprep.subr.bf16.mxu0 0
      %6803 = vmatpush2.bf16.msra.mxu0 0
      %6804 = vmatprep.subr.bf16.mxu0 0
      %6805 = vmatpush2.bf16.msra.mxu0 0
      %6806 = vmatprep.subr.bf16.mxu0 0
      %6807 = vmatpush2.bf16.msra.mxu0 0
      %6808 = vmatprep.subr.bf16.mxu0 0
      %6809 = vmatpush2.bf16.msra.mxu0 0
      %6810 = vmatprep.subr.bf16.mxu0 0
      %6811 = vmatpush2.bf16.msra.mxu0 0
      %6812 = vmatprep.subr.bf16.mxu0 0
      %6813 = vmatpush2.bf16.msra.mxu0 0
      %6814 = vmatprep.subr.bf16.mxu0 0
      %6815 = vmatpush2.bf16.msra.mxu0 0
      %6816 = vmatprep.subr.bf16.mxu0 0
      %6817 = vmatpush2.bf16.msra.mxu0 0
      %6818 = vmatprep.mubr.bf16.mxu0 0
      %6819 = vmatmul.mubr.bf16.gmra.mxu0 %v6730
      %v6820 = vpop.f32.mrf.mxu0
      %v6821 = vadd.f32 0.0, %v6820
      %v6822 = vpop.f32.mrf.mxu0
      %v6823 = vpop.f32.mrf.mxu0
      %v6824 = vadd.f32 0.0, %v6823
      %v6825 = vpop.f32.mrf.mxu0
      %6826 = vmatprep.mubr.bf16.mxu0 0
      %6827 = vmatmul.mubr.bf16.gmra.mxu0 %v6733
      %v6828 = vpop.f32.mrf.mxu0
      %v6829 = vadd.f32 0.0, %v6828
      %v6830 = vpop.f32.mrf.mxu0
      %v6831 = vpop.f32.mrf.mxu0
      %v6832 = vadd.f32 0.0, %v6831
      %v6833 = vpop.f32.mrf.mxu0
      %6834 = vmatprep.mubr.bf16.mxu0 0
      %6835 = vmatmul.mubr.bf16.gmra.mxu0 %v6736
      %v6836 = vpop.f32.mrf.mxu0
      %v6837 = vadd.f32 0.0, %v6836
      %v6838 = vpop.f32.mrf.mxu0
      %v6839 = vpop.f32.mrf.mxu0
      %v6840 = vadd.f32 0.0, %v6839
      %v6841 = vpop.f32.mrf.mxu0
      %6842 = vmatprep.mubr.bf16.mxu0 0
      %6843 = vmatmul.mubr.bf16.gmra.mxu0 %v6739
      %v6844 = vpop.f32.mrf.mxu0
      %v6845 = vadd.f32 0.0, %v6844
      %v6846 = vpop.f32.mrf.mxu0
      %v6847 = vpop.f32.mrf.mxu0
      %v6848 = vadd.f32 0.0, %v6847
      %v6849 = vpop.f32.mrf.mxu0
      %6850 = vmatprep.mubr.bf16.mxu0 0
      %6851 = vmatmul.mubr.bf16.gmra.mxu0 %v6742
      %v6852 = vpop.f32.mrf.mxu0
      %v6853 = vadd.f32 0.0, %v6852
      %v6854 = vpop.f32.mrf.mxu0
      %v6855 = vpop.f32.mrf.mxu0
      %v6856 = vadd.f32 0.0, %v6855
      %v6857 = vpop.f32.mrf.mxu0
      %6858 = vmatprep.mubr.bf16.mxu0 0
      %6859 = vmatmul.mubr.bf16.gmra.mxu0 %v6745
      %v6860 = vpop.f32.mrf.mxu0
      %v6861 = vadd.f32 0.0, %v6860
      %v6862 = vpop.f32.mrf.mxu0
      %v6863 = vpop.f32.mrf.mxu0
      %v6864 = vadd.f32 0.0, %v6863
      %v6865 = vpop.f32.mrf.mxu0
      %6866 = vmatprep.mubr.bf16.mxu0 0
      %6867 = vmatmul.mubr.bf16.gmra.mxu0 %v6748
      %v6868 = vpop.f32.mrf.mxu0
      %v6869 = vadd.f32 0.0, %v6868
      %v6870 = vpop.f32.mrf.mxu0
      %v6871 = vpop.f32.mrf.mxu0
      %v6872 = vadd.f32 0.0, %v6871
      %v6873 = vpop.f32.mrf.mxu0
      %6874 = vmatprep.mubr.bf16.mxu0 0
      %6875 = vmatmul.mubr.bf16.gmra.mxu0 %v6751
      %v6876 = vpop.f32.mrf.mxu0
      %v6877 = vadd.f32 0.0, %v6876
      %v6878 = vpop.f32.mrf.mxu0
      %v6879 = vpop.f32.mrf.mxu0
      %v6880 = vadd.f32 0.0, %v6879
      %v6881 = vpop.f32.mrf.mxu0
      %6882 = vmatprep.mubr.bf16.mxu0 0
      %6883 = vmatmul.mubr.bf16.gmra.mxu0 %v6754
      %v6884 = vpop.f32.mrf.mxu0
      %v6885 = vadd.f32 0.0, %v6884
      %v6886 = vpop.f32.mrf.mxu0
      %v6887 = vpop.f32.mrf.mxu0
      %v6888 = vadd.f32 0.0, %v6887
      %v6889 = vpop.f32.mrf.mxu0
      %6890 = vmatprep.mubr.bf16.mxu0 0
      %6891 = vmatmul.mubr.bf16.gmra.mxu0 %v6757
      %v6892 = vpop.f32.mrf.mxu0
      %v6893 = vadd.f32 0.0, %v6892
      %v6894 = vpop.f32.mrf.mxu0
      %v6895 = vpop.f32.mrf.mxu0
      %v6896 = vadd.f32 0.0, %v6895
      %v6897 = vpop.f32.mrf.mxu0
      %6898 = vmatprep.mubr.bf16.mxu0 0
      %6899 = vmatmul.mubr.bf16.gmra.mxu0 %v6760
      %v6900 = vpop.f32.mrf.mxu0
      %v6901 = vadd.f32 0.0, %v6900
      %v6902 = vpop.f32.mrf.mxu0
      %v6903 = vpop.f32.mrf.mxu0
      %v6904 = vadd.f32 0.0, %v6903
      %v6905 = vpop.f32.mrf.mxu0
      %6906 = vmatprep.mubr.bf16.mxu0 0
      %6907 = vmatmul.mubr.bf16.gmra.mxu0 %v6763
      %v6908 = vpop.f32.mrf.mxu0
      %v6909 = vadd.f32 0.0, %v6908
      %v6910 = vpop.f32.mrf.mxu0
      %v6911 = vpop.f32.mrf.mxu0
      %v6912 = vadd.f32 0.0, %v6911
      %v6913 = vpop.f32.mrf.mxu0
      %6914 = vmatprep.mubr.bf16.mxu0 0
      %6915 = vmatmul.mubr.bf16.gmra.mxu0 %v6766
      %v6916 = vpop.f32.mrf.mxu0
      %v6917 = vadd.f32 0.0, %v6916
      %v6918 = vpop.f32.mrf.mxu0
      %v6919 = vpop.f32.mrf.mxu0
      %v6920 = vadd.f32 0.0, %v6919
      %v6921 = vpop.f32.mrf.mxu0
      %6922 = vmatprep.mubr.bf16.mxu0 0
      %6923 = vmatmul.mubr.bf16.gmra.mxu0 %v6769
      %v6924 = vpop.f32.mrf.mxu0
      %v6925 = vadd.f32 0.0, %v6924
      %v6926 = vpop.f32.mrf.mxu0
      %v6927 = vpop.f32.mrf.mxu0
      %v6928 = vadd.f32 0.0, %v6927
      %v6929 = vpop.f32.mrf.mxu0
      %6930 = vmatprep.mubr.bf16.mxu0 0
      %6931 = vmatmul.mubr.bf16.gmra.mxu0 %v6772
      %v6932 = vpop.f32.mrf.mxu0
      %v6933 = vadd.f32 0.0, %v6932
      %v6934 = vpop.f32.mrf.mxu0
      %v6935 = vpop.f32.mrf.mxu0
      %v6936 = vadd.f32 0.0, %v6935
      %v6937 = vpop.f32.mrf.mxu0
      %6938 = vmatprep.mubr.bf16.mxu0 0
      %6939 = vmatmul.mubr.bf16.gmra.mxu0 %v6775
      %v6940 = vpop.f32.mrf.mxu0
      %v6941 = vadd.f32 0.0, %v6940
      %v6942 = vpop.f32.mrf.mxu0
      %v6943 = vpop.f32.mrf.mxu0
      %v6944 = vadd.f32 0.0, %v6943
      %v6945 = vpop.f32.mrf.mxu0
      %6946 = vmatprep.mubr.bf16.mxu0 0
      %6947 = vmatmul.mubr.bf16.gmra.mxu0 %v6778
      %v6948 = vpop.f32.mrf.mxu0
      %v6949 = vadd.f32 0.0, %v6948
      %v6950 = vpop.f32.mrf.mxu0
      %v6951 = vpop.f32.mrf.mxu0
      %v6952 = vadd.f32 0.0, %v6951
      %v6953 = vpop.f32.mrf.mxu0
      %6954 = vmatprep.mubr.bf16.mxu0 0
      %6955 = vmatmul.mubr.bf16.gmra.mxu0 %v6781
      %v6956 = vpop.f32.mrf.mxu0
      %v6957 = vadd.f32 0.0, %v6956
      %v6958 = vpop.f32.mrf.mxu0
      %v6959 = vpop.f32.mrf.mxu0
      %v6960 = vadd.f32 0.0, %v6959
      %v6961 = vpop.f32.mrf.mxu0
      %6962 = vdwg.mxu0
      %v6963 = vadd.f32 %v6637, %v6821
      %v6964 = vadd.f32 %v6638, %v6824
      %v6965 = vadd.f32 %v6639, %v6829
      %v6966 = vadd.f32 %v6640, %v6832
      %v6967 = vadd.f32 %v6641, %v6837
      %v6968 = vadd.f32 %v6642, %v6840
      %v6969 = vadd.f32 %v6643, %v6845
      %v6970 = vadd.f32 %v6644, %v6848
      %v6971 = vadd.f32 %v6645, %v6853
      %v6972 = vadd.f32 %v6646, %v6856
      %v6973 = vadd.f32 %v6647, %v6861
      %v6974 = vadd.f32 %v6648, %v6864
      %v6975 = vadd.f32 %v6649, %v6869
      %v6976 = vadd.f32 %v6650, %v6872
      %v6977 = vadd.f32 %v6651, %v6877
      %v6978 = vadd.f32 %v6652, %v6880
      %v6979 = vadd.f32 %v6653, %v6885
      %v6980 = vadd.f32 %v6654, %v6888
      %v6981 = vadd.f32 %v6655, %v6893
      %v6982 = vadd.f32 %v6656, %v6896
      %v6983 = vadd.f32 %v6657, %v6901
      %v6984 = vadd.f32 %v6658, %v6904
      %v6985 = vadd.f32 %v6659, %v6909
      %v6986 = vadd.f32 %v6660, %v6912
      %v6987 = vadd.f32 %v6661, %v6917
      %v6988 = vadd.f32 %v6662, %v6920
      %v6989 = vadd.f32 %v6663, %v6925
      %v6990 = vadd.f32 %v6664, %v6928
      %v6991 = vadd.f32 %v6665, %v6933
      %v6992 = vadd.f32 %v6666, %v6936
      %v6993 = vadd.f32 %v6667, %v6941
      %v6994 = vadd.f32 %v6668, %v6944
      %v6995 = vadd.f32 %v6669, %v6949
      %v6996 = vadd.f32 %v6670, %v6952
      %v6997 = vadd.f32 %v6671, %v6957
      %v6998 = vadd.f32 %v6672, %v6960
      %v6999 = vld [vmem:[#allocation2 + $0x26] sm:$0xff]
      %v7000 = vld [vmem:[#allocation2 + $0x2e] sm:$0xff]
      %v7001 = vld [vmem:[#allocation2 + $0x36] sm:$0xff]
      %v7002 = vld [vmem:[#allocation2 + $0x3e] sm:$0xff]
      %v7003 = vld [vmem:[#allocation2 + $0x46] sm:$0xff]
      %v7004 = vld [vmem:[#allocation2 + $0x4e] sm:$0xff]
      %v7005 = vld [vmem:[#allocation2 + $0x56] sm:$0xff]
      %v7006 = vld [vmem:[#allocation2 + $0x5e] sm:$0xff]
      %v7007 = vld [vmem:[#allocation2 + $0x66] sm:$0xff]
      %v7008 = vld [vmem:[#allocation2 + $0x6e] sm:$0xff]
      %v7009 = vld [vmem:[#allocation2 + $0x76] sm:$0xff]
      %v7010 = vld [vmem:[#allocation2 + $0x7e] sm:$0xff]
      %v7011 = vld [vmem:[#allocation2 + $0x86] sm:$0xff]
      %v7012 = vld [vmem:[#allocation2 + $0x8e] sm:$0xff]
      %v7013 = vld [vmem:[#allocation2 + $0x96] sm:$0xff]
      %v7014 = vld [vmem:[#allocation2 + $0x9e] sm:$0xff]
      %v7015 = vld [vmem:[#allocation2 + $0xa6] sm:$0xff]
      %v7016 = vld [vmem:[#allocation2 + $0xae] sm:$0xff]
      %v7017 = vld [vmem:[#allocation2 + $0xb6] sm:$0xff]
      %v7018 = vld [vmem:[#allocation2 + $0xbe] sm:$0xff]
      %v7019 = vld [vmem:[#allocation2 + $0xc6] sm:$0xff]
      %v7020 = vld [vmem:[#allocation2 + $0xce] sm:$0xff]
      %v7021 = vld [vmem:[#allocation2 + $0xd6] sm:$0xff]
      %v7022 = vld [vmem:[#allocation2 + $0xde] sm:$0xff]
      %v7023 = vld [vmem:[#allocation2 + $0xe6] sm:$0xff]
      %v7024 = vld [vmem:[#allocation2 + $0xee] sm:$0xff]
      %v7025 = vld [vmem:[#allocation2 + $0xf6] sm:$0xff]
      %v7026 = vld [vmem:[#allocation2 + $0xfe] sm:$0xff]
      %v7027 = vld [vmem:[#allocation2 + $0x106] sm:$0xff]
      %v7028 = vld [vmem:[#allocation2 + $0x10e] sm:$0xff]
      %v7029 = vld [vmem:[#allocation2 + $0x116] sm:$0xff]
      %v7030 = vld [vmem:[#allocation2 + $0x11e] sm:$0xff]
      %v7031 = vld [vmem:[#allocation2 + $0x126] sm:$0xff]
      %v7032 = vld [vmem:[#allocation2 + $0x12e] sm:$0xff]
      %v7033 = vld [vmem:[#allocation2 + $0x136] sm:$0xff]
      %v7034 = vld [vmem:[#allocation2 + $0x13e] sm:$0xff]
      %v7035 = vpack.c.bf16 %v7000, %v6999
      %v7036 = vpack.c.bf16 %v7002, %v7001
      %v7037 = vpack.c.bf16 %v7004, %v7003
      %v7038 = vpack.c.bf16 %v7006, %v7005
      %v7039 = vpack.c.bf16 %v7008, %v7007
      %v7040 = vpack.c.bf16 %v7010, %v7009
      %v7041 = vpack.c.bf16 %v7012, %v7011
      %v7042 = vpack.c.bf16 %v7014, %v7013
      %v7043 = vpack.c.bf16 %v7016, %v7015
      %v7044 = vpack.c.bf16 %v7018, %v7017
      %v7045 = vpack.c.bf16 %v7020, %v7019
      %v7046 = vpack.c.bf16 %v7022, %v7021
      %v7047 = vpack.c.bf16 %v7024, %v7023
      %v7048 = vpack.c.bf16 %v7026, %v7025
      %v7049 = vpack.c.bf16 %v7028, %v7027
      %v7050 = vpack.c.bf16 %v7030, %v7029
      %v7051 = vpack.c.bf16 %v7032, %v7031
      %v7052 = vpack.c.bf16 %v7034, %v7033
      %s7053 = scalar_lea.vmem %s3, 32
      %v7054 = vld [vmem:[%s7053] sm:$0xf]
      %v7056 = vsel %vm363, %v7035, 0
      %v7059 = vsel %vm363, %v7036, 0
      %v7062 = vsel %vm363, %v7037, 0
      %v7065 = vsel %vm363, %v7038, 0
      %v7068 = vsel %vm363, %v7039, 0
      %v7071 = vsel %vm363, %v7040, 0
      %v7074 = vsel %vm363, %v7041, 0
      %v7077 = vsel %vm363, %v7042, 0
      %v7080 = vsel %vm363, %v7043, 0
      %v7083 = vsel %vm363, %v7044, 0
      %v7086 = vsel %vm363, %v7045, 0
      %v7089 = vsel %vm363, %v7046, 0
      %v7092 = vsel %vm363, %v7047, 0
      %v7095 = vsel %vm363, %v7048, 0
      %v7098 = vsel %vm363, %v7049, 0
      %v7101 = vsel %vm363, %v7050, 0
      %v7104 = vsel %vm363, %v7051, 0
      %v7107 = vsel %vm363, %v7052, 0
      %v7110 = vsel %vm1184, %v7054, 0
      %7112 = vmatprep.subr.bf16.mxu0 0
      %7113 = vmatpush1.bf16.msra.mxu0 0
      %7114 = vmatprep.subr.bf16.mxu0 0
      %7115 = vmatpush1.bf16.msra.mxu0 0
      %7116 = vmatprep.subr.bf16.mxu0 0
      %7117 = vmatpush1.bf16.msra.mxu0 0
      %7118 = vmatprep.subr.bf16.mxu0 0
      %7119 = vmatpush1.bf16.msra.mxu0 0
      %7120 = vmatprep.subr.bf16.mxu0 0
      %7121 = vmatpush1.bf16.msra.mxu0 0
      %7122 = vmatprep.subr.bf16.mxu0 0
      %7123 = vmatpush1.bf16.msra.mxu0 0
      %7124 = vmatprep.subr.bf16.mxu0 0
      %7125 = vmatpush1.bf16.msra.mxu0 0
      %7126 = vmatprep.subr.bf16.mxu0 0
      %7127 = vmatpush1.bf16.msra.mxu0 %v7110
      %7128 = vmatprep.subr.bf16.mxu0 0
      %7129 = vmatpush2.bf16.msra.mxu0 0
      %7130 = vmatprep.subr.bf16.mxu0 0
      %7131 = vmatpush2.bf16.msra.mxu0 0
      %7132 = vmatprep.subr.bf16.mxu0 0
      %7133 = vmatpush2.bf16.msra.mxu0 0
      %7134 = vmatprep.subr.bf16.mxu0 0
      %7135 = vmatpush2.bf16.msra.mxu0 0
      %7136 = vmatprep.subr.bf16.mxu0 0
      %7137 = vmatpush2.bf16.msra.mxu0 0
      %7138 = vmatprep.subr.bf16.mxu0 0
      %7139 = vmatpush2.bf16.msra.mxu0 0
      %7140 = vmatprep.subr.bf16.mxu0 0
      %7141 = vmatpush2.bf16.msra.mxu0 0
      %7142 = vmatprep.subr.bf16.mxu0 0
      %7143 = vmatpush2.bf16.msra.mxu0 0
      %7144 = vmatprep.mubr.bf16.mxu0 0
      %7145 = vmatmul.mubr.bf16.gmra.mxu0 %v7056
      %v7146 = vpop.f32.mrf.mxu0
      %v7147 = vadd.f32 0.0, %v7146
      %v7148 = vpop.f32.mrf.mxu0
      %v7149 = vpop.f32.mrf.mxu0
      %v7150 = vadd.f32 0.0, %v7149
      %v7151 = vpop.f32.mrf.mxu0
      %7152 = vmatprep.mubr.bf16.mxu0 0
      %7153 = vmatmul.mubr.bf16.gmra.mxu0 %v7059
      %v7154 = vpop.f32.mrf.mxu0
      %v7155 = vadd.f32 0.0, %v7154
      %v7156 = vpop.f32.mrf.mxu0
      %v7157 = vpop.f32.mrf.mxu0
      %v7158 = vadd.f32 0.0, %v7157
      %v7159 = vpop.f32.mrf.mxu0
      %7160 = vmatprep.mubr.bf16.mxu0 0
      %7161 = vmatmul.mubr.bf16.gmra.mxu0 %v7062
      %v7162 = vpop.f32.mrf.mxu0
      %v7163 = vadd.f32 0.0, %v7162
      %v7164 = vpop.f32.mrf.mxu0
      %v7165 = vpop.f32.mrf.mxu0
      %v7166 = vadd.f32 0.0, %v7165
      %v7167 = vpop.f32.mrf.mxu0
      %7168 = vmatprep.mubr.bf16.mxu0 0
      %7169 = vmatmul.mubr.bf16.gmra.mxu0 %v7065
      %v7170 = vpop.f32.mrf.mxu0
      %v7171 = vadd.f32 0.0, %v7170
      %v7172 = vpop.f32.mrf.mxu0
      %v7173 = vpop.f32.mrf.mxu0
      %v7174 = vadd.f32 0.0, %v7173
      %v7175 = vpop.f32.mrf.mxu0
      %7176 = vmatprep.mubr.bf16.mxu0 0
      %7177 = vmatmul.mubr.bf16.gmra.mxu0 %v7068
      %v7178 = vpop.f32.mrf.mxu0
      %v7179 = vadd.f32 0.0, %v7178
      %v7180 = vpop.f32.mrf.mxu0
      %v7181 = vpop.f32.mrf.mxu0
      %v7182 = vadd.f32 0.0, %v7181
      %v7183 = vpop.f32.mrf.mxu0
      %7184 = vmatprep.mubr.bf16.mxu0 0
      %7185 = vmatmul.mubr.bf16.gmra.mxu0 %v7071
      %v7186 = vpop.f32.mrf.mxu0
      %v7187 = vadd.f32 0.0, %v7186
      %v7188 = vpop.f32.mrf.mxu0
      %v7189 = vpop.f32.mrf.mxu0
      %v7190 = vadd.f32 0.0, %v7189
      %v7191 = vpop.f32.mrf.mxu0
      %7192 = vmatprep.mubr.bf16.mxu0 0
      %7193 = vmatmul.mubr.bf16.gmra.mxu0 %v7074
      %v7194 = vpop.f32.mrf.mxu0
      %v7195 = vadd.f32 0.0, %v7194
      %v7196 = vpop.f32.mrf.mxu0
      %v7197 = vpop.f32.mrf.mxu0
      %v7198 = vadd.f32 0.0, %v7197
      %v7199 = vpop.f32.mrf.mxu0
      %7200 = vmatprep.mubr.bf16.mxu0 0
      %7201 = vmatmul.mubr.bf16.gmra.mxu0 %v7077
      %v7202 = vpop.f32.mrf.mxu0
      %v7203 = vadd.f32 0.0, %v7202
      %v7204 = vpop.f32.mrf.mxu0
      %v7205 = vpop.f32.mrf.mxu0
      %v7206 = vadd.f32 0.0, %v7205
      %v7207 = vpop.f32.mrf.mxu0
      %7208 = vmatprep.mubr.bf16.mxu0 0
      %7209 = vmatmul.mubr.bf16.gmra.mxu0 %v7080
      %v7210 = vpop.f32.mrf.mxu0
      %v7211 = vadd.f32 0.0, %v7210
      %v7212 = vpop.f32.mrf.mxu0
      %v7213 = vpop.f32.mrf.mxu0
      %v7214 = vadd.f32 0.0, %v7213
      %v7215 = vpop.f32.mrf.mxu0
      %7216 = vmatprep.mubr.bf16.mxu0 0
      %7217 = vmatmul.mubr.bf16.gmra.mxu0 %v7083
      %v7218 = vpop.f32.mrf.mxu0
      %v7219 = vadd.f32 0.0, %v7218
      %v7220 = vpop.f32.mrf.mxu0
      %v7221 = vpop.f32.mrf.mxu0
      %v7222 = vadd.f32 0.0, %v7221
      %v7223 = vpop.f32.mrf.mxu0
      %7224 = vmatprep.mubr.bf16.mxu0 0
      %7225 = vmatmul.mubr.bf16.gmra.mxu0 %v7086
      %v7226 = vpop.f32.mrf.mxu0
      %v7227 = vadd.f32 0.0, %v7226
      %v7228 = vpop.f32.mrf.mxu0
      %v7229 = vpop.f32.mrf.mxu0
      %v7230 = vadd.f32 0.0, %v7229
      %v7231 = vpop.f32.mrf.mxu0
      %7232 = vmatprep.mubr.bf16.mxu0 0
      %7233 = vmatmul.mubr.bf16.gmra.mxu0 %v7089
      %v7234 = vpop.f32.mrf.mxu0
      %v7235 = vadd.f32 0.0, %v7234
      %v7236 = vpop.f32.mrf.mxu0
      %v7237 = vpop.f32.mrf.mxu0
      %v7238 = vadd.f32 0.0, %v7237
      %v7239 = vpop.f32.mrf.mxu0
      %7240 = vmatprep.mubr.bf16.mxu0 0
      %7241 = vmatmul.mubr.bf16.gmra.mxu0 %v7092
      %v7242 = vpop.f32.mrf.mxu0
      %v7243 = vadd.f32 0.0, %v7242
      %v7244 = vpop.f32.mrf.mxu0
      %v7245 = vpop.f32.mrf.mxu0
      %v7246 = vadd.f32 0.0, %v7245
      %v7247 = vpop.f32.mrf.mxu0
      %7248 = vmatprep.mubr.bf16.mxu0 0
      %7249 = vmatmul.mubr.bf16.gmra.mxu0 %v7095
      %v7250 = vpop.f32.mrf.mxu0
      %v7251 = vadd.f32 0.0, %v7250
      %v7252 = vpop.f32.mrf.mxu0
      %v7253 = vpop.f32.mrf.mxu0
      %v7254 = vadd.f32 0.0, %v7253
      %v7255 = vpop.f32.mrf.mxu0
      %7256 = vmatprep.mubr.bf16.mxu0 0
      %7257 = vmatmul.mubr.bf16.gmra.mxu0 %v7098
      %v7258 = vpop.f32.mrf.mxu0
      %v7259 = vadd.f32 0.0, %v7258
      %v7260 = vpop.f32.mrf.mxu0
      %v7261 = vpop.f32.mrf.mxu0
      %v7262 = vadd.f32 0.0, %v7261
      %v7263 = vpop.f32.mrf.mxu0
      %7264 = vmatprep.mubr.bf16.mxu0 0
      %7265 = vmatmul.mubr.bf16.gmra.mxu0 %v7101
      %v7266 = vpop.f32.mrf.mxu0
      %v7267 = vadd.f32 0.0, %v7266
      %v7268 = vpop.f32.mrf.mxu0
      %v7269 = vpop.f32.mrf.mxu0
      %v7270 = vadd.f32 0.0, %v7269
      %v7271 = vpop.f32.mrf.mxu0
      %7272 = vmatprep.mubr.bf16.mxu0 0
      %7273 = vmatmul.mubr.bf16.gmra.mxu0 %v7104
      %v7274 = vpop.f32.mrf.mxu0
      %v7275 = vadd.f32 0.0, %v7274
      %v7276 = vpop.f32.mrf.mxu0
      %v7277 = vpop.f32.mrf.mxu0
      %v7278 = vadd.f32 0.0, %v7277
      %v7279 = vpop.f32.mrf.mxu0
      %7280 = vmatprep.mubr.bf16.mxu0 0
      %7281 = vmatmul.mubr.bf16.gmra.mxu0 %v7107
      %v7282 = vpop.f32.mrf.mxu0
      %v7283 = vadd.f32 0.0, %v7282
      %v7284 = vpop.f32.mrf.mxu0
      %v7285 = vpop.f32.mrf.mxu0
      %v7286 = vadd.f32 0.0, %v7285
      %v7287 = vpop.f32.mrf.mxu0
      %7288 = vdwg.mxu0
      %v7289 = vadd.f32 %v6963, %v7147
      %v7290 = vadd.f32 %v6964, %v7150
      %v7291 = vadd.f32 %v6965, %v7155
      %v7292 = vadd.f32 %v6966, %v7158
      %v7293 = vadd.f32 %v6967, %v7163
      %v7294 = vadd.f32 %v6968, %v7166
      %v7295 = vadd.f32 %v6969, %v7171
      %v7296 = vadd.f32 %v6970, %v7174
      %v7297 = vadd.f32 %v6971, %v7179
      %v7298 = vadd.f32 %v6972, %v7182
      %v7299 = vadd.f32 %v6973, %v7187
      %v7300 = vadd.f32 %v6974, %v7190
      %v7301 = vadd.f32 %v6975, %v7195
      %v7302 = vadd.f32 %v6976, %v7198
      %v7303 = vadd.f32 %v6977, %v7203
      %v7304 = vadd.f32 %v6978, %v7206
      %v7305 = vadd.f32 %v6979, %v7211
      %v7306 = vadd.f32 %v6980, %v7214
      %v7307 = vadd.f32 %v6981, %v7219
      %v7308 = vadd.f32 %v6982, %v7222
      %v7309 = vadd.f32 %v6983, %v7227
      %v7310 = vadd.f32 %v6984, %v7230
      %v7311 = vadd.f32 %v6985, %v7235
      %v7312 = vadd.f32 %v6986, %v7238
      %v7313 = vadd.f32 %v6987, %v7243
      %v7314 = vadd.f32 %v6988, %v7246
      %v7315 = vadd.f32 %v6989, %v7251
      %v7316 = vadd.f32 %v6990, %v7254
      %v7317 = vadd.f32 %v6991, %v7259
      %v7318 = vadd.f32 %v6992, %v7262
      %v7319 = vadd.f32 %v6993, %v7267
      %v7320 = vadd.f32 %v6994, %v7270
      %v7321 = vadd.f32 %v6995, %v7275
      %v7322 = vadd.f32 %v6996, %v7278
      %v7323 = vadd.f32 %v6997, %v7283
      %v7324 = vadd.f32 %v6998, %v7286
      %v7325 = vld [vmem:[%s238] sm:$0xff]
      %v7326 = vld [vmem:[%s238 + $0x8] sm:$0xff]
      %v7327 = vld [vmem:[%s238 + $0x10] sm:$0xff]
      %v7328 = vld [vmem:[%s238 + $0x18] sm:$0xff]
      %v7329 = vld [vmem:[%s238 + $0x20] sm:$0xff]
      %v7330 = vld [vmem:[%s238 + $0x28] sm:$0xff]
      %v7331 = vld [vmem:[%s238 + $0x30] sm:$0xff]
      %v7332 = vld [vmem:[%s238 + $0x38] sm:$0xff]
      %v7333 = vld [vmem:[%s238 + $0x40] sm:$0xff]
      %v7334 = vld [vmem:[%s238 + $0x48] sm:$0xff]
      %v7335 = vld [vmem:[%s238 + $0x50] sm:$0xff]
      %v7336 = vld [vmem:[%s238 + $0x58] sm:$0xff]
      %v7337 = vld [vmem:[%s238 + $0x60] sm:$0xff]
      %v7338 = vld [vmem:[%s238 + $0x68] sm:$0xff]
      %v7339 = vld [vmem:[%s238 + $0x70] sm:$0xff]
      %v7340 = vld [vmem:[%s238 + $0x78] sm:$0xff]
      %v7341 = vld [vmem:[%s238 + $0x80] sm:$0xff]
      %v7342 = vld [vmem:[%s238 + $0x88] sm:$0xff]
      %v7343 = vld [vmem:[%s238 + $0x90] sm:$0xff]
      %v7344 = vld [vmem:[%s238 + $0x98] sm:$0xff]
      %v7345 = vld [vmem:[%s238 + $0xa0] sm:$0xff]
      %v7346 = vld [vmem:[%s238 + $0xa8] sm:$0xff]
      %v7347 = vld [vmem:[%s238 + $0xb0] sm:$0xff]
      %v7348 = vld [vmem:[%s238 + $0xb8] sm:$0xff]
      %v7349 = vld [vmem:[%s238 + $0xc0] sm:$0xff]
      %v7350 = vld [vmem:[%s238 + $0xc8] sm:$0xff]
      %v7351 = vld [vmem:[%s238 + $0xd0] sm:$0xff]
      %v7352 = vld [vmem:[%s238 + $0xd8] sm:$0xff]
      %v7353 = vld [vmem:[%s238 + $0xe0] sm:$0xff]
      %v7354 = vld [vmem:[%s238 + $0xe8] sm:$0xff]
      %v7355 = vld [vmem:[%s238 + $0xf0] sm:$0xff]
      %v7356 = vld [vmem:[%s238 + $0xf8] sm:$0xff]
      %v7357 = vld [vmem:[%s238 + $0x100] sm:$0xff]
      %v7358 = vld [vmem:[%s238 + $0x108] sm:$0xff]
      %v7359 = vld [vmem:[%s238 + $0x110] sm:$0xff]
      %v7360 = vld [vmem:[%s238 + $0x118] sm:$0xff]
      %v7361 = vadd.f32 %v7325, %v7289
      %v7362 = vadd.f32 %v7326, %v7290
      %v7363 = vadd.f32 %v7327, %v7291
      %v7364 = vadd.f32 %v7328, %v7292
      %v7365 = vadd.f32 %v7329, %v7293
      %v7366 = vadd.f32 %v7330, %v7294
      %v7367 = vadd.f32 %v7331, %v7295
      %v7368 = vadd.f32 %v7332, %v7296
      %v7369 = vadd.f32 %v7333, %v7297
      %v7370 = vadd.f32 %v7334, %v7298
      %v7371 = vadd.f32 %v7335, %v7299
      %v7372 = vadd.f32 %v7336, %v7300
      %v7373 = vadd.f32 %v7337, %v7301
      %v7374 = vadd.f32 %v7338, %v7302
      %v7375 = vadd.f32 %v7339, %v7303
      %v7376 = vadd.f32 %v7340, %v7304
      %v7377 = vadd.f32 %v7341, %v7305
      %v7378 = vadd.f32 %v7342, %v7306
      %v7379 = vadd.f32 %v7343, %v7307
      %v7380 = vadd.f32 %v7344, %v7308
      %v7381 = vadd.f32 %v7345, %v7309
      %v7382 = vadd.f32 %v7346, %v7310
      %v7383 = vadd.f32 %v7347, %v7311
      %v7384 = vadd.f32 %v7348, %v7312
      %v7385 = vadd.f32 %v7349, %v7313
      %v7386 = vadd.f32 %v7350, %v7314
      %v7387 = vadd.f32 %v7351, %v7315
      %v7388 = vadd.f32 %v7352, %v7316
      %v7389 = vadd.f32 %v7353, %v7317
      %v7390 = vadd.f32 %v7354, %v7318
      %v7391 = vadd.f32 %v7355, %v7319
      %v7392 = vadd.f32 %v7356, %v7320
      %v7393 = vadd.f32 %v7357, %v7321
      %v7394 = vadd.f32 %v7358, %v7322
      %v7395 = vadd.f32 %v7359, %v7323
      %v7396 = vadd.f32 %v7360, %v7324
      %7397 = vst.msk [vmem:[%s238] sm:$0xff] %vm363, %v7361
      %7398 = vst.msk [vmem:[%s238 + $0x8] sm:$0xff] %vm363, %v7362
      %7399 = vst.msk [vmem:[%s238 + $0x10] sm:$0xff] %vm363, %v7363
      %7400 = vst.msk [vmem:[%s238 + $0x18] sm:$0xff] %vm363, %v7364
      %7401 = vst.msk [vmem:[%s238 + $0x20] sm:$0xff] %vm363, %v7365
      %7402 = vst.msk [vmem:[%s238 + $0x28] sm:$0xff] %vm363, %v7366
      %7403 = vst.msk [vmem:[%s238 + $0x30] sm:$0xff] %vm363, %v7367
      %7404 = vst.msk [vmem:[%s238 + $0x38] sm:$0xff] %vm363, %v7368
      %7405 = vst.msk [vmem:[%s238 + $0x40] sm:$0xff] %vm363, %v7369
      %7406 = vst.msk [vmem:[%s238 + $0x48] sm:$0xff] %vm363, %v7370
      %7407 = vst.msk [vmem:[%s238 + $0x50] sm:$0xff] %vm363, %v7371
      %7408 = vst.msk [vmem:[%s238 + $0x58] sm:$0xff] %vm363, %v7372
      %7409 = vst.msk [vmem:[%s238 + $0x60] sm:$0xff] %vm363, %v7373
      %7410 = vst.msk [vmem:[%s238 + $0x68] sm:$0xff] %vm363, %v7374
      %7411 = vst.msk [vmem:[%s238 + $0x70] sm:$0xff] %vm363, %v7375
      %7412 = vst.msk [vmem:[%s238 + $0x78] sm:$0xff] %vm363, %v7376
      %7413 = vst.msk [vmem:[%s238 + $0x80] sm:$0xff] %vm363, %v7377
      %7414 = vst.msk [vmem:[%s238 + $0x88] sm:$0xff] %vm363, %v7378
      %7415 = vst.msk [vmem:[%s238 + $0x90] sm:$0xff] %vm363, %v7379
      %7416 = vst.msk [vmem:[%s238 + $0x98] sm:$0xff] %vm363, %v7380
      %7417 = vst.msk [vmem:[%s238 + $0xa0] sm:$0xff] %vm363, %v7381
      %7418 = vst.msk [vmem:[%s238 + $0xa8] sm:$0xff] %vm363, %v7382
      %7419 = vst.msk [vmem:[%s238 + $0xb0] sm:$0xff] %vm363, %v7383
      %7420 = vst.msk [vmem:[%s238 + $0xb8] sm:$0xff] %vm363, %v7384
      %7421 = vst.msk [vmem:[%s238 + $0xc0] sm:$0xff] %vm363, %v7385
      %7422 = vst.msk [vmem:[%s238 + $0xc8] sm:$0xff] %vm363, %v7386
      %7423 = vst.msk [vmem:[%s238 + $0xd0] sm:$0xff] %vm363, %v7387
      %7424 = vst.msk [vmem:[%s238 + $0xd8] sm:$0xff] %vm363, %v7388
      %7425 = vst.msk [vmem:[%s238 + $0xe0] sm:$0xff] %vm363, %v7389
      %7426 = vst.msk [vmem:[%s238 + $0xe8] sm:$0xff] %vm363, %v7390
      %7427 = vst.msk [vmem:[%s238 + $0xf0] sm:$0xff] %vm363, %v7391
      %7428 = vst.msk [vmem:[%s238 + $0xf8] sm:$0xff] %vm363, %v7392
      %7429 = vst.msk [vmem:[%s238 + $0x100] sm:$0xff] %vm363, %v7393
      %7430 = vst.msk [vmem:[%s238 + $0x108] sm:$0xff] %vm363, %v7394
      %7431 = vst.msk [vmem:[%s238 + $0x110] sm:$0xff] %vm363, %v7395
      %7432 = vst.msk [vmem:[%s238 + $0x118] sm:$0xff] %vm363, %v7396
      %p7433 = scmp.lt.s32.totalorder %s16, 1
      %s7434 = scalar_select %p7433, %s16, 1
      %s7435 = smul.addr %s7434, 36
      %s7436 = smul.addr %s7435, 8
      %s7437 = scalar_lea.vmem %s5, %s7436
      // Predicated region
      $region41: #{tpu_custom_call.1} parent=39 // pred_check
        %p7438 = pneg %p149
      $region42: #{tpu_custom_call.1} parent=39 // pred_check_branch
        %7440 = sbr.rel (%p7438) target = $region44
      $region43: #{tpu_custom_call.1} parent=39 // pred_region
        _
      $region44: #{tpu_custom_call.1} parent=39 // pred_fallthru
        _
    $region40: #{tpu_custom_call.1} parent=5 // pred_fallthru
      _
    %p7441 = scmp.le.s32.totalorder 2, %s11
    // Predicated region
    $region45: #{tpu_custom_call.1} parent=5 // pred_check
      %p7442 = pneg %p7441
    $region46: #{tpu_custom_call.1} parent=5 // pred_check_branch
      %7444 = sbr.rel (%p7442) target = $region48
    $region47: #{tpu_custom_call.1} parent=5 // pred_region
      %s7445 = ssub.s32 %s11, 2
      // Predicated region
      $region49: #{tpu_custom_call.1} parent=47 // pred_check
        %p7446 = pneg %p155
      $region50: #{tpu_custom_call.1} parent=47 // pred_check_branch
        %7448 = sbr.rel (%p7446) target = $region52
      $region51: #{tpu_custom_call.1} parent=47 // pred_region
        %p7449 = scmp.lt.s32.totalorder %s17, 1
        %s7450 = scalar_select %p7449, %s17, 1
        %s7451 = smul.addr %s7450, 36
        %s7452 = smul.addr %s7451, 8
        %s7453 = scalar_lea.vmem %s5, %s7452
      $region52: #{tpu_custom_call.1} parent=47 // pred_fallthru
        _
    $region48: #{tpu_custom_call.1} parent=5 // pred_fallthru
      _
  $region6: #{tpu_custom_call.1} parent=0 // loop_footer
    %s15 = sadd.s32 1, %s11
  $region7: #{tpu_custom_call.1} parent=0 // loop_footer_branch
    %10 = sbr.rel target = $region3
  $region8: #{tpu_custom_call.1} parent=0 // loop_exit
    _

</llo_original>
